<compile_context>
chip_gen: v7x
topology: tpu7x:2x2x1
jax: 0.10.0
libtpu: 0.0.40
codegen_flags: <defaults>
</compile_context>

<pallas_src>
import math

import jax
import jax.numpy as jnp
from jax.experimental import pallas as pl
from jax.experimental.pallas import tpu as pltpu


# ---------------------------------------------------------------------------
# Helpers
# ---------------------------------------------------------------------------
def _nbytes(*arrs):
    return int(sum(int(a.size) * a.dtype.itemsize for a in arrs))


def pick_tm(m_total, target=256):
    """Largest multiple-of-16 divisor of m_total <= target; prefer grid >= 2 (megacore)."""
    best_g2, best_any = None, None
    for tm in range(16, min(target, m_total) + 1, 16):
        if m_total % tm == 0:
            best_any = tm
            if m_total // tm >= 2:
                best_g2 = tm
    if best_g2 is not None:
        return best_g2
    if best_any is not None:
        return best_any
    return m_total  # fallback: single full-array tile


def pick_kc(tm, k, max_rows=2048):
    """Neighbor-chunk size: keep chunk rows (kc*tm) ~<= max_rows to bound f32 intermediates.
    kc=1 when tm is not a multiple of 16 (avoids non-trivial bf16 leading-dim reshapes)."""
    if tm % 16 != 0:
        return 1
    kc = max(1, min(k, max_rows // max(tm, 1)))
    while k % kc != 0:
        kc -= 1
    return kc


# ---------------------------------------------------------------------------
# Pallas kernels
# ---------------------------------------------------------------------------
def _sa_mlp_max_body(x_ref, rel_ref, w1x_ref, w1p_ref, b1_ref, w2_ref, b2_ref,
                     w3_ref, b3_ref, o_ref, kc):
    """Shared PointNetConv MLP + running-max aggregation (neighbor-major layout).

    rel_ref: [K, TM, 8] bf16 (rel xyz zero-padded to 8 channels, MXU K=8 pass),
    x_ref:   [K, TM, Cx] bf16 or None (SA1 folds x==1 into the bias),
    o_ref:   [TM, Cout] bf16.  Max is accumulated in f32, cast at the store.
    """
    k, tm, relc = rel_ref.shape
    cout = o_ref.shape[-1]
    acc = jnp.full((tm, cout), -jnp.inf, dtype=jnp.float32)
    for k0 in range(0, k, kc):
        if kc == 1:
            rs = rel_ref[k0]                                  # [TM, 8]
            xs = None if x_ref is None else x_ref[k0]         # [TM, Cx]
        else:
            rs = rel_ref[k0:k0 + kc].reshape(kc * tm, relc)
            xs = (None if x_ref is None
                  else x_ref[k0:k0 + kc].reshape(kc * tm, x_ref.shape[2]))
        h = jnp.dot(rs, w1p_ref[...], preferred_element_type=jnp.float32)
        if xs is not None:
            h = h + jnp.dot(xs, w1x_ref[...], preferred_element_type=jnp.float32)
        h = jnp.maximum(h + b1_ref[...], 0.0)
        h = jnp.dot(h.astype(jnp.bfloat16), w2_ref[...],
                    preferred_element_type=jnp.float32)
        h = jnp.maximum(h + b2_ref[...], 0.0)
        h = jnp.dot(h.astype(jnp.bfloat16), w3_ref[...],
                    preferred_element_type=jnp.float32) + b3_ref[...]
        if kc == 1:
            cm = h
        else:
            # max over the (leading) neighbor axis: elementwise over aligned tiles (VPU).
            cm = jnp.max(h.reshape(kc, tm, cout), axis=0)
        acc = jnp.maximum(acc, cm)
    o_ref[...] = acc.astype(o_ref.dtype)


def make_sa_kernel(has_x, kc):
    if has_x:
        def kernel(x_ref, rel_ref, w1x_ref, w1p_ref, b1_ref, w2_ref, b2_ref,
                   w3_ref, b3_ref, o_ref):
            _sa_mlp_max_body(x_ref, rel_ref, w1x_ref, w1p_ref, b1_ref, w2_ref,
                             b2_ref, w3_ref, b3_ref, o_ref, kc)
    else:
        def kernel(rel_ref, w1p_ref, b1_ref, w2_ref, b2_ref, w3_ref, b3_ref, o_ref):
            _sa_mlp_max_body(None, rel_ref, None, w1p_ref, b1_ref, w2_ref,
                             b2_ref, w3_ref, b3_ref, o_ref, kc)
    return kernel


def global_sa_kernel(x_ref, pos_ref, w1x_ref, w1p_ref, b1_ref, w2_ref, b2_ref,
                     w3_ref, b3_ref, o_ref):
    """GlobalSAModule MLP + per-cloud global max pool.  One grid step == one batch element.

    x_ref: [1, M2, 256] bf16, pos_ref: [1, M2, 8] bf16 (xyz zero-padded), o_ref: [1, 1, 1024] bf16.
    """
    x = x_ref[0]
    pos = pos_ref[0]
    h = jnp.dot(x, w1x_ref[...], preferred_element_type=jnp.float32)
    h = h + jnp.dot(pos, w1p_ref[...], preferred_element_type=jnp.float32)
    h = jnp.maximum(h + b1_ref[...], 0.0)
    h = jnp.dot(h.astype(jnp.bfloat16), w2_ref[...],
                preferred_element_type=jnp.float32)
    h = jnp.maximum(h + b2_ref[...], 0.0)
    h = jnp.dot(h.astype(jnp.bfloat16), w3_ref[...],
                preferred_element_type=jnp.float32) + b3_ref[...]
    g = jnp.max(h, axis=0, keepdims=True)                    # [1, 1024] global max pool (f32)
    o_ref[...] = g.reshape(1, 1, -1).astype(o_ref.dtype)


def head_mlp_kernel(g_ref, w1_ref, b1_ref, w2_ref, b2_ref, w3_ref, b3_ref, o_ref):
    """Head MLP 1024->512->256->128 run once for all batch rows (M = B)."""
    g = jnp.dot(g_ref[...], w1_ref[...], preferred_element_type=jnp.float32)
    g = jnp.maximum(g + b1_ref[...], 0.0)
    g = jnp.dot(g.astype(jnp.bfloat16), w2_ref[...], preferred_element_type=jnp.float32)
    g = jnp.maximum(g + b2_ref[...], 0.0)
    g = jnp.dot(g.astype(jnp.bfloat16), w3_ref[...], preferred_element_type=jnp.float32) + b3_ref[...]
    o_ref[...] = g


# ---------------------------------------------------------------------------
# Pallas wrappers
# ---------------------------------------------------------------------------
_SA_VMEM_LIMIT = 48 * 1024 * 1024   # explicit: above v5e's 16 MiB scoped default, below v7x's 64 MiB


def grouped_mlp_max(x3d, rel3d, p, *, m_total, k, tm, kc):
    """x3d: [K, M, Cx] bf16 or None, rel3d: [K, M, 8] bf16 -> [M, Cout] bf16."""
    has_x = x3d is not None
    h1 = p["w1p"].shape[1]
    h2 = p["w2"].shape[1]
    cout = p["w3"].shape[1]
    rows = m_total * k

    weight_specs = [
        pl.BlockSpec((8, h1), lambda i: (0, 0)),
        pl.BlockSpec((1, h1), lambda i: (0, 0)),
        pl.BlockSpec((h1, h2), lambda i: (0, 0)),
        pl.BlockSpec((1, h2), lambda i: (0, 0)),
        pl.BlockSpec((h2, cout), lambda i: (0, 0)),
        pl.BlockSpec((1, cout), lambda i: (0, 0)),
    ]
    rel_spec = pl.BlockSpec((k, tm, 8), lambda i: (0, i, 0))

    if has_x:
        cx = x3d.shape[-1]
        operands = (x3d, rel3d, p["w1x"], p["w1p"], p["b1"], p["w2"], p["b2"],
                    p["w3"], p["b3"])
        in_specs = [pl.BlockSpec((k, tm, cx), lambda i: (0, i, 0)), rel_spec,
                    pl.BlockSpec((cx, h1), lambda i: (0, 0))] + weight_specs
        flops = 2 * rows * (cx * h1 + 8 * h1 + h1 * h2 + h2 * cout)
    else:
        operands = (rel3d, p["w1p"], p["b1"], p["w2"], p["b2"], p["w3"], p["b3"])
        in_specs = [rel_spec] + weight_specs
        flops = 2 * rows * (8 * h1 + h1 * h2 + h2 * cout)

    cost = pl.CostEstimate(flops=flops, transcendentals=0,
                           bytes_accessed=_nbytes(*operands) + m_total * cout * 2)
    return pl.pallas_call(
        make_sa_kernel(has_x, kc),
        out_shape=jax.ShapeDtypeStruct((m_total, cout), jnp.bfloat16),
        grid=(m_total // tm,),
        in_specs=in_specs,
        out_specs=pl.BlockSpec((tm, cout), lambda i: (i, 0)),
        compiler_params=pltpu.CompilerParams(
            dimension_semantics=("parallel",),
            vmem_limit_bytes=_SA_VMEM_LIMIT),
        cost_estimate=cost,
    )(*operands)


def global_sa(x2, pos2, p_sa):
    """x2: [B, M2, 256] bf16, pos2: [B, M2, 3] f32 -> pooled feature [B, 1024] bf16."""
    b, m2, cx = x2.shape
    h1 = p_sa["w1x"].shape[1]
    h2 = p_sa["w2"].shape[1]
    h3 = p_sa["w3"].shape[1]
    pos8 = jnp.pad(pos2, ((0, 0), (0, 0), (0, 5))).astype(jnp.bfloat16)
    operands = (x2, pos8, p_sa["w1x"], p_sa["w1p"], p_sa["b1"],
                p_sa["w2"], p_sa["b2"], p_sa["w3"], p_sa["b3"])
    cost = pl.CostEstimate(
        flops=2 * b * m2 * (cx * h1 + 8 * h1 + h1 * h2 + h2 * h3),
        transcendentals=0,
        bytes_accessed=_nbytes(*operands) + b * h3 * 2)
    out = pl.pallas_call(
        global_sa_kernel,
        out_shape=jax.ShapeDtypeStruct((b, 1, h3), jnp.bfloat16),
        grid=(b,),
        in_specs=[
            pl.BlockSpec((1, m2, cx), lambda i: (i, 0, 0)),
            pl.BlockSpec((1, m2, 8), lambda i: (i, 0, 0)),
            pl.BlockSpec((cx, h1), lambda i: (0, 0)),
            pl.BlockSpec((8, h1), lambda i: (0, 0)),
            pl.BlockSpec((1, h1), lambda i: (0, 0)),
            pl.BlockSpec((h1, h2), lambda i: (0, 0)),
            pl.BlockSpec((1, h2), lambda i: (0, 0)),
            pl.BlockSpec((h2, h3), lambda i: (0, 0)),
            pl.BlockSpec((1, h3), lambda i: (0, 0)),
        ],
        out_specs=pl.BlockSpec((1, 1, h3), lambda i: (i, 0, 0)),
        compiler_params=pltpu.CompilerParams(dimension_semantics=("parallel",)),
        cost_estimate=cost,
    )(*operands)
    return out[:, 0, :]


def head_mlp(g, p_head):
    """g: [B, 1024] bf16 -> [B, 128] f32 (single whole-array call, M = B)."""
    b = g.shape[0]
    d1 = p_head["w1"].shape[1]
    d2 = p_head["w2"].shape[1]
    dout = p_head["w3"].shape[1]
    operands = (g, p_head["w1"], p_head["b1"], p_head["w2"], p_head["b2"],
                p_head["w3"], p_head["b3"])
    cost = pl.CostEstimate(
        flops=2 * b * (g.shape[1] * d1 + d1 * d2 + d2 * dout),
        transcendentals=0,
        bytes_accessed=_nbytes(*operands) + b * dout * 4)
    return pl.pallas_call(
        head_mlp_kernel,
        out_shape=jax.ShapeDtypeStruct((b, dout), jnp.float32),
        cost_estimate=cost,
    )(*operands)


# ---------------------------------------------------------------------------
# Plain-JAX glue: FPS, radius ball-query grouping (irregular, data dependent)
# ---------------------------------------------------------------------------
def farthest_point_sampling(pos, n_samples):
    """pos: [N, 3] -> [n_samples] int32 indices, deterministic start at index 0."""
    n = pos.shape[0]

    def body(i, state):
        idxs, dists = state
        last = pos[idxs[i - 1]]
        d = jnp.sum((pos - last) ** 2, axis=-1)
        dists = jnp.minimum(dists, d)
        nxt = jnp.argmax(dists).astype(jnp.int32)
        return idxs.at[i].set(nxt), dists

    idxs0 = jnp.zeros((n_samples,), jnp.int32)
    dists0 = jnp.full((n,), jnp.inf, jnp.float32)
    idxs, _ = jax.lax.fori_loop(1, n_samples, body, (idxs0, dists0))
    return idxs


def sa_module(x, pos, *, ratio, radius, k, sa_params):
    """Set-abstraction module.
    x: [B, N, C] bf16 or None (SA1, constant-one features folded into the bias),
    pos: [B, N, 3] f32 -> ([B, M, Cout] bf16, [B, M, 3] f32)."""
    b, n, _ = pos.shape
    m = int(math.ceil(ratio * n))

    idx = jax.vmap(lambda p: farthest_point_sampling(p, m))(pos)              # [B, M]
    pos_c = jnp.take_along_axis(pos, idx[:, :, None], axis=1)                 # [B, M, 3]

    d2 = jnp.sum((pos_c[:, :, None, :] - pos[:, None, :, :]) ** 2, axis=-1)   # [B, M, N]
    within = d2 <= radius * radius
    keys = jnp.where(within, d2, jnp.inf)
    _, order = jax.lax.top_k(-keys, k)                                        # K nearest
    valid = jnp.take_along_axis(within, order, axis=-1)
    nbr = jnp.where(valid, order, idx[:, :, None])                            # pad w/ center

    gather = jax.vmap(lambda arr, nb: arr[nb])                                # [M, K, ...]
    pos_j = gather(pos, nbr)                                                  # [B, M, K, 3]
    rel = pos_j - pos_c[:, :, None, :]
    # neighbor-major [K, B*M, 8] bf16 (xyz zero-padded to 8 channels for the MXU K=8 pass)
    rel3d = jnp.transpose(
        jnp.pad(rel, ((0, 0), (0, 0), (0, 0), (0, 5))).astype(jnp.bfloat16)
        .reshape(b * m, k, 8), (1, 0, 2))
    x3d = None
    if x is not None:
        c = x.shape[-1]
        x3d = jnp.transpose(gather(x, nbr).reshape(b * m, k, c), (1, 0, 2))   # [K, B*M, C]

    m_total = b * m
    tm = pick_tm(m_total)
    kc = pick_kc(tm, k)
    cout = sa_params["w3"].shape[1]
    feat = grouped_mlp_max(x3d, rel3d, sa_params, m_total=m_total, k=k, tm=tm, kc=kc)
    return feat.reshape(b, m, cout), pos_c


# ---------------------------------------------------------------------------
# Parameters (deterministic init; BN folded for eval mode; bf16 matmul weights)
# ---------------------------------------------------------------------------
def init_mlp(key, dims, fold_bn):
    """PyTorch-Linear-like uniform init; last layer is 'plain' (no BN/act)."""
    params = []
    n_layers = len(dims) - 1
    bn_scale = 1.0 / math.sqrt(1.0 + 1e-5)
    for li in range(n_layers):
        key, kw, kb = jax.random.split(key, 3)
        bound = 1.0 / math.sqrt(dims[li])
        w = jax.random.uniform(kw, (dims[li], dims[li + 1]), jnp.float32, -bound, bound)
        bias = jax.random.uniform(kb, (1, dims[li + 1]), jnp.float32, -bound, bound)
        if fold_bn and li < n_layers - 1:
            w = w * bn_scale
            bias = bias * bn_scale
        params.append((w, bias))
    return params, key


def _pad_pos_rows(w_pos):
    """[3, H] -> [8, H] zero-padded (bf16) so layer-1's position term is one K=8 MXU pass."""
    return jnp.zeros((8, w_pos.shape[1]), jnp.float32).at[0:3, :].set(w_pos).astype(jnp.bfloat16)


def pack_sa1_params(mlp):
    (w1, b1), (w2, b2), (w3, b3) = mlp
    return {
        "w1p": _pad_pos_rows(w1[1:4, :]),        # rel part (K=8 bf16 MXU pass)
        "b1": b1 + w1[0:1, :],                   # x == 1 -> fold W1 feature row into bias
        "w2": w2.astype(jnp.bfloat16), "b2": b2,
        "w3": w3.astype(jnp.bfloat16), "b3": b3,
    }


def pack_sa_params(mlp, c_x):
    (w1, b1), (w2, b2), (w3, b3) = mlp
    return {
        "w1x": w1[:c_x, :].astype(jnp.bfloat16), # feature part (exact 128/256-wide K on MXU)
        "w1p": _pad_pos_rows(w1[c_x:c_x + 3, :]),
        "b1": b1,
        "w2": w2.astype(jnp.bfloat16), "b2": b2,
        "w3": w3.astype(jnp.bfloat16), "b3": b3,
    }


def pack_head_params(mlp):
    (w1, b1), (w2, b2), (w3, b3) = mlp
    return {
        "w1": w1.astype(jnp.bfloat16), "b1": b1,
        "w2": w2.astype(jnp.bfloat16), "b2": b2,
        "w3": w3.astype(jnp.bfloat16), "b3": b3,
    }


def init_pointnetpp_params(key):
    sa1, key = init_mlp(key, [1 + 3, 64, 64, 128], fold_bn=True)
    sa2, key = init_mlp(key, [128 + 3, 128, 128, 256], fold_bn=True)
    sa3, key = init_mlp(key, [256 + 3, 256, 512, 1024], fold_bn=True)
    head, key = init_mlp(key, [1024, 512, 256, 128], fold_bn=False)  # norm=None
    return {
        "sa1": pack_sa1_params(sa1),
        "sa2": pack_sa_params(sa2, 128),
        "sa3": pack_sa_params(sa3, 256),
        "head": pack_head_params(head),
    }


# ---------------------------------------------------------------------------
# Full forward (PointNetPP.forward equivalent)
# ---------------------------------------------------------------------------
def pointnetpp_forward(obj_pc, params):
    """obj_pc: [B, NO, 3] float32 -> [B, 128] feature."""
    # prepare_data: x = ones[B*N, 1] (constant -> folded into the SA1 bias), pos = points,
    # batch index is encoded by the leading B axis (each cloud's points stay contiguous).
    pos0 = obj_pc
    x1, pos1 = sa_module(None, pos0, ratio=0.5, radius=0.2, k=16,
                         sa_params=params["sa1"])
    x2, pos2 = sa_module(x1, pos1, ratio=0.25, radius=0.4, k=16,
                         sa_params=params["sa2"])
    g = global_sa(x2, pos2, params["sa3"])       # [B, 1024] bf16 (GlobalSA + global max pool)
    return head_mlp(g, params["head"])           # [B, 128] f32 (head MLP, M = B)


if __name__ == "__main__":
    key = jax.random.PRNGKey(0)
    params = init_pointnetpp_params(key)

    key, kpc = jax.random.split(key)
    B, N = 2, 64
    obj_pc = jax.random.uniform(kpc, (B, N, 3), jnp.float32)  # points in the unit cube

    fwd = jax.jit(pointnetpp_forward)
    out = jax.block_until_ready(fwd(obj_pc, params))
    assert out.shape == (B, 128) and out.dtype == jnp.float32
    assert bool(jnp.all(jnp.isfinite(out)))
    print("KERNEL_OK")
</pallas_src>

<mosaic_0001>
module attributes {stable_mosaic.version = 11 : i64} {
  func.func @kernel(%arg0: i32, %arg1: memref<16x32x8xbf16, #tpu.memory_space<vmem>>, %arg2: memref<8x64xbf16, #tpu.memory_space<vmem>>, %arg3: memref<1x64xf32, #tpu.memory_space<vmem>>, %arg4: memref<64x64xbf16, #tpu.memory_space<vmem>>, %arg5: memref<1x64xf32, #tpu.memory_space<vmem>>, %arg6: memref<64x128xbf16, #tpu.memory_space<vmem>>, %arg7: memref<1x128xf32, #tpu.memory_space<vmem>>, %arg8: memref<32x128xbf16, #tpu.memory_space<vmem>>) attributes {dimension_semantics = [#tpu.dimension_semantics<parallel>], iteration_bounds = array<i64: 2>, scalar_prefetch = 0 : i64, scratch_operands = 0 : i64, tpu.core_type = #tpu.core_type<tc>, window_params = [{transform_indices = @transform_0, window_bounds = array<i64: 16, 32, 8>}, {pipeline_mode = #tpu.pipeline_mode<synchronous>, transform_indices = @transform_1, window_bounds = array<i64: 8, 64>}, {pipeline_mode = #tpu.pipeline_mode<synchronous>, transform_indices = @transform_2, window_bounds = array<i64: 1, 64>}, {pipeline_mode = #tpu.pipeline_mode<synchronous>, transform_indices = @transform_3, window_bounds = array<i64: 64, 64>}, {pipeline_mode = #tpu.pipeline_mode<synchronous>, transform_indices = @transform_4, window_bounds = array<i64: 1, 64>}, {pipeline_mode = #tpu.pipeline_mode<synchronous>, transform_indices = @transform_5, window_bounds = array<i64: 64, 128>}, {pipeline_mode = #tpu.pipeline_mode<synchronous>, transform_indices = @transform_6, window_bounds = array<i64: 1, 128>}, {transform_indices = @transform_7, window_bounds = array<i64: 32, 128>}]} {
    %cst = arith.constant 0xFF800000 : f32
    %0 = vector.broadcast %cst : f32 to vector<32x128xf32>
    %c0 = arith.constant 0 : index
    %c0_0 = arith.constant 0 : index
    %c0_1 = arith.constant 0 : index
    %1 = vector.load %arg1[%c0, %c0_0, %c0_1] : memref<16x32x8xbf16, #tpu.memory_space<vmem>>, vector<16x32x8xbf16>
    %2 = vector.shape_cast %1 : vector<16x32x8xbf16> to vector<512x8xbf16>
    %c0_2 = arith.constant 0 : index
    %c0_3 = arith.constant 0 : index
    %3 = vector.load %arg2[%c0_2, %c0_3] : memref<8x64xbf16, #tpu.memory_space<vmem>>, vector<8x64xbf16>
    %cst_4 = arith.constant dense<0.000000e+00> : vector<512x64xf32>
    %4 = tpu.matmul %2, %3, %cst_4 {dimension_numbers = #tpu.dot_dimension_numbers<[1], [0], [0], [1], [0, 0, 1, 1], [], []>} : vector<512x8xbf16>, vector<8x64xbf16>, vector<512x64xf32> -> vector<512x64xf32>
    %c0_5 = arith.constant 0 : index
    %c0_6 = arith.constant 0 : index
    %5 = vector.load %arg3[%c0_5, %c0_6] : memref<1x64xf32, #tpu.memory_space<vmem>>, vector<1x64xf32>
    %6 = vector.broadcast %5 : vector<1x64xf32> to vector<512x64xf32>
    %7 = arith.addf %4, %6 : vector<512x64xf32>
    %cst_7 = arith.constant 0.000000e+00 : f32
    %8 = vector.broadcast %cst_7 : f32 to vector<512x64xf32>
    %9 = arith.maximumf %7, %8 : vector<512x64xf32>
    %10 = arith.truncf %9 : vector<512x64xf32> to vector<512x64xbf16>
    %c0_8 = arith.constant 0 : index
    %c0_9 = arith.constant 0 : index
    %11 = vector.load %arg4[%c0_8, %c0_9] : memref<64x64xbf16, #tpu.memory_space<vmem>>, vector<64x64xbf16>
    %cst_10 = arith.constant dense<0.000000e+00> : vector<512x64xf32>
    %12 = tpu.matmul %10, %11, %cst_10 {dimension_numbers = #tpu.dot_dimension_numbers<[1], [0], [0], [1], [0, 0, 1, 1], [], []>} : vector<512x64xbf16>, vector<64x64xbf16>, vector<512x64xf32> -> vector<512x64xf32>
    %c0_11 = arith.constant 0 : index
    %c0_12 = arith.constant 0 : index
    %13 = vector.load %arg5[%c0_11, %c0_12] : memref<1x64xf32, #tpu.memory_space<vmem>>, vector<1x64xf32>
    %14 = vector.broadcast %13 : vector<1x64xf32> to vector<512x64xf32>
    %15 = arith.addf %12, %14 : vector<512x64xf32>
    %cst_13 = arith.constant 0.000000e+00 : f32
    %16 = vector.broadcast %cst_13 : f32 to vector<512x64xf32>
    %17 = arith.maximumf %15, %16 : vector<512x64xf32>
    %18 = arith.truncf %17 : vector<512x64xf32> to vector<512x64xbf16>
    %c0_14 = arith.constant 0 : index
    %c0_15 = arith.constant 0 : index
    %19 = vector.load %arg6[%c0_14, %c0_15] : memref<64x128xbf16, #tpu.memory_space<vmem>>, vector<64x128xbf16>
    %cst_16 = arith.constant dense<0.000000e+00> : vector<512x128xf32>
    %20 = tpu.matmul %18, %19, %cst_16 {dimension_numbers = #tpu.dot_dimension_numbers<[1], [0], [0], [1], [0, 0, 1, 1], [], []>} : vector<512x64xbf16>, vector<64x128xbf16>, vector<512x128xf32> -> vector<512x128xf32>
    %c0_17 = arith.constant 0 : index
    %c0_18 = arith.constant 0 : index
    %21 = vector.load %arg7[%c0_17, %c0_18] : memref<1x128xf32, #tpu.memory_space<vmem>>, vector<1x128xf32>
    %22 = vector.broadcast %21 : vector<1x128xf32> to vector<512x128xf32>
    %23 = arith.addf %20, %22 : vector<512x128xf32>
    %24 = vector.shape_cast %23 : vector<512x128xf32> to vector<16x32x128xf32>
    %cst_19 = arith.constant dense<0xFF800000> : vector<32x128xf32>
    %25 = vector.multi_reduction <maximumf>, %24, %cst_19 [0] : vector<16x32x128xf32> to vector<32x128xf32>
    %26 = arith.maximumf %0, %25 : vector<32x128xf32>
    %27 = arith.truncf %26 : vector<32x128xf32> to vector<32x128xbf16>
    %c0_20 = arith.constant 0 : index
    %c0_21 = arith.constant 0 : index
    %28 = vector.load %arg8[%c0_20, %c0_21] : memref<32x128xbf16, #tpu.memory_space<vmem>>, vector<32x128xbf16>
    tpu.vector_store %arg8[%c0_20, %c0_21], %27 {strides = array<i32>} : memref<32x128xbf16, #tpu.memory_space<vmem>>, vector<32x128xbf16>,
    return
  }
  func.func @transform_0(%arg0: i32) -> (i32, i32, i32) {
    %c0_i32 = arith.constant 0 : i32
    %c0_i32_0 = arith.constant 0 : i32
    %c0_i32_1 = arith.constant 0 : i32
    return %c0_i32, %arg0, %c0_i32_0 : i32, i32, i32
  }
  func.func @transform_1(%arg0: i32) -> (i32, i32) {
    %c0_i32 = arith.constant 0 : i32
    %c0_i32_0 = arith.constant 0 : i32
    %c0_i32_1 = arith.constant 0 : i32
    return %c0_i32, %c0_i32_0 : i32, i32
  }
  func.func @transform_2(%arg0: i32) -> (i32, i32) {
    %c0_i32 = arith.constant 0 : i32
    %c0_i32_0 = arith.constant 0 : i32
    %c0_i32_1 = arith.constant 0 : i32
    return %c0_i32, %c0_i32_0 : i32, i32
  }
  func.func @transform_3(%arg0: i32) -> (i32, i32) {
    %c0_i32 = arith.constant 0 : i32
    %c0_i32_0 = arith.constant 0 : i32
    %c0_i32_1 = arith.constant 0 : i32
    return %c0_i32, %c0_i32_0 : i32, i32
  }
  func.func @transform_4(%arg0: i32) -> (i32, i32) {
    %c0_i32 = arith.constant 0 : i32
    %c0_i32_0 = arith.constant 0 : i32
    %c0_i32_1 = arith.constant 0 : i32
    return %c0_i32, %c0_i32_0 : i32, i32
  }
  func.func @transform_5(%arg0: i32) -> (i32, i32) {
    %c0_i32 = arith.constant 0 : i32
    %c0_i32_0 = arith.constant 0 : i32
    %c0_i32_1 = arith.constant 0 : i32
    return %c0_i32, %c0_i32_0 : i32, i32
  }
  func.func @transform_6(%arg0: i32) -> (i32, i32) {
    %c0_i32 = arith.constant 0 : i32
    %c0_i32_0 = arith.constant 0 : i32
    %c0_i32_1 = arith.constant 0 : i32
    return %c0_i32, %c0_i32_0 : i32, i32
  }
  func.func @transform_7(%arg0: i32) -> (i32, i32) {
    %c0_i32 = arith.constant 0 : i32
    %c0_i32_0 = arith.constant 0 : i32
    return %arg0, %c0_i32 : i32, i32
  }
}

module attributes {stable_mosaic.version = 11 : i64} {
  func.func @global_sa_kernel(%arg0: i32, %arg1: memref<1x8x256xbf16, #tpu.memory_space<vmem>>, %arg2: memref<1x8x8xbf16, #tpu.memory_space<vmem>>, %arg3: memref<256x256xbf16, #tpu.memory_space<vmem>>, %arg4: memref<8x256xbf16, #tpu.memory_space<vmem>>, %arg5: memref<1x256xf32, #tpu.memory_space<vmem>>, %arg6: memref<256x512xbf16, #tpu.memory_space<vmem>>, %arg7: memref<1x512xf32, #tpu.memory_space<vmem>>, %arg8: memref<512x1024xbf16, #tpu.memory_space<vmem>>, %arg9: memref<1x1024xf32, #tpu.memory_space<vmem>>, %arg10: memref<1x1x1024xbf16, #tpu.memory_space<vmem>>) attributes {dimension_semantics = [#tpu.dimension_semantics<parallel>], iteration_bounds = array<i64: 2>, scalar_prefetch = 0 : i64, scratch_operands = 0 : i64, tpu.core_type = #tpu.core_type<tc>, window_params = [{transform_indices = @transform_0, window_bounds = array<i64: 1, 8, 256>}, {transform_indices = @transform_1, window_bounds = array<i64: 1, 8, 8>}, {pipeline_mode = #tpu.pipeline_mode<synchronous>, transform_indices = @transform_2, window_bounds = array<i64: 256, 256>}, {pipeline_mode = #tpu.pipeline_mode<synchronous>, transform_indices = @transform_3, window_bounds = array<i64: 8, 256>}, {pipeline_mode = #tpu.pipeline_mode<synchronous>, transform_indices = @transform_4, window_bounds = array<i64: 1, 256>}, {pipeline_mode = #tpu.pipeline_mode<synchronous>, transform_indices = @transform_5, window_bounds = array<i64: 256, 512>}, {pipeline_mode = #tpu.pipeline_mode<synchronous>, transform_indices = @transform_6, window_bounds = array<i64: 1, 512>}, {pipeline_mode = #tpu.pipeline_mode<synchronous>, transform_indices = @transform_7, window_bounds = array<i64: 512, 1024>}, {pipeline_mode = #tpu.pipeline_mode<synchronous>, transform_indices = @transform_8, window_bounds = array<i64: 1, 1024>}, {transform_indices = @transform_9, window_bounds = array<i64: 1, 1, 1024>}]} {
    %c0 = arith.constant 0 : index
    %c0_0 = arith.constant 0 : index
    %c0_1 = arith.constant 0 : index
    %0 = vector.load %arg1[%c0, %c0_0, %c0_1] : memref<1x8x256xbf16, #tpu.memory_space<vmem>>, vector<1x8x256xbf16>
    %1 = vector.shape_cast %0 : vector<1x8x256xbf16> to vector<8x256xbf16>
    %c0_2 = arith.constant 0 : index
    %c0_3 = arith.constant 0 : index
    %c0_4 = arith.constant 0 : index
    %2 = vector.load %arg2[%c0_2, %c0_3, %c0_4] : memref<1x8x8xbf16, #tpu.memory_space<vmem>>, vector<1x8x8xbf16>
    %3 = vector.shape_cast %2 : vector<1x8x8xbf16> to vector<8x8xbf16>
    %c0_5 = arith.constant 0 : index
    %c0_6 = arith.constant 0 : index
    %4 = vector.load %arg3[%c0_5, %c0_6] : memref<256x256xbf16, #tpu.memory_space<vmem>>, vector<256x256xbf16>
    %cst = arith.constant dense<0.000000e+00> : vector<8x256xf32>
    %5 = tpu.matmul %1, %4, %cst {dimension_numbers = #tpu.dot_dimension_numbers<[1], [0], [0], [1], [0, 0, 1, 1], [], []>} : vector<8x256xbf16>, vector<256x256xbf16>, vector<8x256xf32> -> vector<8x256xf32>
    %c0_7 = arith.constant 0 : index
    %c0_8 = arith.constant 0 : index
    %6 = vector.load %arg4[%c0_7, %c0_8] : memref<8x256xbf16, #tpu.memory_space<vmem>>, vector<8x256xbf16>
    %cst_9 = arith.constant dense<0.000000e+00> : vector<8x256xf32>
    %7 = tpu.matmul %3, %6, %cst_9 {dimension_numbers = #tpu.dot_dimension_numbers<[1], [0], [0], [1], [0, 0, 1, 1], [], []>} : vector<8x8xbf16>, vector<8x256xbf16>, vector<8x256xf32> -> vector<8x256xf32>
    %8 = arith.addf %5, %7 : vector<8x256xf32>
    %c0_10 = arith.constant 0 : index
    %c0_11 = arith.constant 0 : index
    %9 = vector.load %arg5[%c0_10, %c0_11] : memref<1x256xf32, #tpu.memory_space<vmem>>, vector<1x256xf32>
    %10 = vector.broadcast %9 : vector<1x256xf32> to vector<8x256xf32>
    %11 = arith.addf %8, %10 : vector<8x256xf32>
    %cst_12 = arith.constant 0.000000e+00 : f32
    %12 = vector.broadcast %cst_12 : f32 to vector<8x256xf32>
    %13 = arith.maximumf %11, %12 : vector<8x256xf32>
    %14 = arith.truncf %13 : vector<8x256xf32> to vector<8x256xbf16>
    %c0_13 = arith.constant 0 : index
    %c0_14 = arith.constant 0 : index
    %15 = vector.load %arg6[%c0_13, %c0_14] : memref<256x512xbf16, #tpu.memory_space<vmem>>, vector<256x512xbf16>
    %cst_15 = arith.constant dense<0.000000e+00> : vector<8x512xf32>
    %16 = tpu.matmul %14, %15, %cst_15 {dimension_numbers = #tpu.dot_dimension_numbers<[1], [0], [0], [1], [0, 0, 1, 1], [], []>} : vector<8x256xbf16>, vector<256x512xbf16>, vector<8x512xf32> -> vector<8x512xf32>
    %c0_16 = arith.constant 0 : index
    %c0_17 = arith.constant 0 : index
    %17 = vector.load %arg7[%c0_16, %c0_17] : memref<1x512xf32, #tpu.memory_space<vmem>>, vector<1x512xf32>
    %18 = vector.broadcast %17 : vector<1x512xf32> to vector<8x512xf32>
    %19 = arith.addf %16, %18 : vector<8x512xf32>
    %cst_18 = arith.constant 0.000000e+00 : f32
    %20 = vector.broadcast %cst_18 : f32 to vector<8x512xf32>
    %21 = arith.maximumf %19, %20 : vector<8x512xf32>
    %22 = arith.truncf %21 : vector<8x512xf32> to vector<8x512xbf16>
    %c0_19 = arith.constant 0 : index
    %c0_20 = arith.constant 0 : index
    %23 = vector.load %arg8[%c0_19, %c0_20] : memref<512x1024xbf16, #tpu.memory_space<vmem>>, vector<512x1024xbf16>
    %cst_21 = arith.constant dense<0.000000e+00> : vector<8x1024xf32>
    %24 = tpu.matmul %22, %23, %cst_21 {dimension_numbers = #tpu.dot_dimension_numbers<[1], [0], [0], [1], [0, 0, 1, 1], [], []>} : vector<8x512xbf16>, vector<512x1024xbf16>, vector<8x1024xf32> -> vector<8x1024xf32>
    %c0_22 = arith.constant 0 : index
    %c0_23 = arith.constant 0 : index
    %25 = vector.load %arg9[%c0_22, %c0_23] : memref<1x1024xf32, #tpu.memory_space<vmem>>, vector<1x1024xf32>
    %26 = vector.broadcast %25 : vector<1x1024xf32> to vector<8x1024xf32>
    %27 = arith.addf %24, %26 : vector<8x1024xf32>
    %cst_24 = arith.constant dense<0xFF800000> : vector<1024xf32>
    %28 = vector.multi_reduction <maximumf>, %27, %cst_24 [0] : vector<8x1024xf32> to vector<1024xf32>
    %29 = vector.shape_cast %28 : vector<1024xf32> to vector<1x1024xf32>
    %30 = vector.shape_cast %29 : vector<1x1024xf32> to vector<1x1x1024xf32>
    %31 = arith.truncf %30 : vector<1x1x1024xf32> to vector<1x1x1024xbf16>
    %c0_25 = arith.constant 0 : index
    %c0_26 = arith.constant 0 : index
    %c0_27 = arith.constant 0 : index
    %32 = vector.load %arg10[%c0_25, %c0_26, %c0_27] : memref<1x1x1024xbf16, #tpu.memory_space<vmem>>, vector<1x1x1024xbf16>
    tpu.vector_store %arg10[%c0_25, %c0_26, %c0_27], %31 {strides = array<i32>} : memref<1x1x1024xbf16, #tpu.memory_space<vmem>>, vector<1x1x1024xbf16>,
    return
  }
  func.func @transform_0(%arg0: i32) -> (i32, i32, i32) {
    %c0_i32 = arith.constant 0 : i32
    %c0_i32_0 = arith.constant 0 : i32
    %c0_i32_1 = arith.constant 0 : i32
    return %arg0, %c0_i32, %c0_i32_0 : i32, i32, i32
  }
  func.func @transform_1(%arg0: i32) -> (i32, i32, i32) {
    %c0_i32 = arith.constant 0 : i32
    %c0_i32_0 = arith.constant 0 : i32
    %c0_i32_1 = arith.constant 0 : i32
    return %arg0, %c0_i32, %c0_i32_0 : i32, i32, i32
  }
  func.func @transform_2(%arg0: i32) -> (i32, i32) {
    %c0_i32 = arith.constant 0 : i32
    %c0_i32_0 = arith.constant 0 : i32
    %c0_i32_1 = arith.constant 0 : i32
    return %c0_i32, %c0_i32_0 : i32, i32
  }
  func.func @transform_3(%arg0: i32) -> (i32, i32) {
    %c0_i32 = arith.constant 0 : i32
    %c0_i32_0 = arith.constant 0 : i32
    %c0_i32_1 = arith.constant 0 : i32
    return %c0_i32, %c0_i32_0 : i32, i32
  }
  func.func @transform_4(%arg0: i32) -> (i32, i32) {
    %c0_i32 = arith.constant 0 : i32
    %c0_i32_0 = arith.constant 0 : i32
    %c0_i32_1 = arith.constant 0 : i32
    return %c0_i32, %c0_i32_0 : i32, i32
  }
  func.func @transform_5(%arg0: i32) -> (i32, i32) {
    %c0_i32 = arith.constant 0 : i32
    %c0_i32_0 = arith.constant 0 : i32
    %c0_i32_1 = arith.constant 0 : i32
    return %c0_i32, %c0_i32_0 : i32, i32
  }
  func.func @transform_6(%arg0: i32) -> (i32, i32) {
    %c0_i32 = arith.constant 0 : i32
    %c0_i32_0 = arith.constant 0 : i32
    %c0_i32_1 = arith.constant 0 : i32
    return %c0_i32, %c0_i32_0 : i32, i32
  }
  func.func @transform_7(%arg0: i32) -> (i32, i32) {
    %c0_i32 = arith.constant 0 : i32
    %c0_i32_0 = arith.constant 0 : i32
    %c0_i32_1 = arith.constant 0 : i32
    return %c0_i32, %c0_i32_0 : i32, i32
  }
  func.func @transform_8(%arg0: i32) -> (i32, i32) {
    %c0_i32 = arith.constant 0 : i32
    %c0_i32_0 = arith.constant 0 : i32
    %c0_i32_1 = arith.constant 0 : i32
    return %c0_i32, %c0_i32_0 : i32, i32
  }
  func.func @transform_9(%arg0: i32) -> (i32, i32, i32) {
    %c0_i32 = arith.constant 0 : i32
    %c0_i32_0 = arith.constant 0 : i32
    %c0_i32_1 = arith.constant 0 : i32
    return %arg0, %c0_i32, %c0_i32_0 : i32, i32, i32
  }
}

module attributes {stable_mosaic.version = 11 : i64} {
  func.func @kernel(%arg0: i32, %arg1: memref<16x16x128xbf16, #tpu.memory_space<vmem>>, %arg2: memref<16x16x8xbf16, #tpu.memory_space<vmem>>, %arg3: memref<128x128xbf16, #tpu.memory_space<vmem>>, %arg4: memref<8x128xbf16, #tpu.memory_space<vmem>>, %arg5: memref<1x128xf32, #tpu.memory_space<vmem>>, %arg6: memref<128x128xbf16, #tpu.memory_space<vmem>>, %arg7: memref<1x128xf32, #tpu.memory_space<vmem>>, %arg8: memref<128x256xbf16, #tpu.memory_space<vmem>>, %arg9: memref<1x256xf32, #tpu.memory_space<vmem>>, %arg10: memref<16x256xbf16, #tpu.memory_space<vmem>>) attributes {dimension_semantics = [#tpu.dimension_semantics<parallel>], iteration_bounds = array<i64: 1>, scalar_prefetch = 0 : i64, scratch_operands = 0 : i64, tpu.core_type = #tpu.core_type<tc>, window_params = [{transform_indices = @transform_0, window_bounds = array<i64: 16, 16, 128>}, {transform_indices = @transform_1, window_bounds = array<i64: 16, 16, 8>}, {pipeline_mode = #tpu.pipeline_mode<synchronous>, transform_indices = @transform_2, window_bounds = array<i64: 128, 128>}, {pipeline_mode = #tpu.pipeline_mode<synchronous>, transform_indices = @transform_3, window_bounds = array<i64: 8, 128>}, {pipeline_mode = #tpu.pipeline_mode<synchronous>, transform_indices = @transform_4, window_bounds = array<i64: 1, 128>}, {pipeline_mode = #tpu.pipeline_mode<synchronous>, transform_indices = @transform_5, window_bounds = array<i64: 128, 128>}, {pipeline_mode = #tpu.pipeline_mode<synchronous>, transform_indices = @transform_6, window_bounds = array<i64: 1, 128>}, {pipeline_mode = #tpu.pipeline_mode<synchronous>, transform_indices = @transform_7, window_bounds = array<i64: 128, 256>}, {pipeline_mode = #tpu.pipeline_mode<synchronous>, transform_indices = @transform_8, window_bounds = array<i64: 1, 256>}, {transform_indices = @transform_9, window_bounds = array<i64: 16, 256>}]} {
    %cst = arith.constant 0xFF800000 : f32
    %0 = vector.broadcast %cst : f32 to vector<16x256xf32>
    %c0 = arith.constant 0 : index
    %c0_0 = arith.constant 0 : index
    %c0_1 = arith.constant 0 : index
    %1 = vector.load %arg2[%c0, %c0_0, %c0_1] : memref<16x16x8xbf16, #tpu.memory_space<vmem>>, vector<16x16x8xbf16>
    %2 = vector.shape_cast %1 : vector<16x16x8xbf16> to vector<256x8xbf16>
    %c0_2 = arith.constant 0 : index
    %c0_3 = arith.constant 0 : index
    %c0_4 = arith.constant 0 : index
    %3 = vector.load %arg1[%c0_2, %c0_3, %c0_4] : memref<16x16x128xbf16, #tpu.memory_space<vmem>>, vector<16x16x128xbf16>
    %4 = vector.shape_cast %3 : vector<16x16x128xbf16> to vector<256x128xbf16>
    %c0_5 = arith.constant 0 : index
    %c0_6 = arith.constant 0 : index
    %5 = vector.load %arg4[%c0_5, %c0_6] : memref<8x128xbf16, #tpu.memory_space<vmem>>, vector<8x128xbf16>
    %cst_7 = arith.constant dense<0.000000e+00> : vector<256x128xf32>
    %6 = tpu.matmul %2, %5, %cst_7 {dimension_numbers = #tpu.dot_dimension_numbers<[1], [0], [0], [1], [0, 0, 1, 1], [], []>} : vector<256x8xbf16>, vector<8x128xbf16>, vector<256x128xf32> -> vector<256x128xf32>
    %c0_8 = arith.constant 0 : index
    %c0_9 = arith.constant 0 : index
    %7 = vector.load %arg3[%c0_8, %c0_9] : memref<128x128xbf16, #tpu.memory_space<vmem>>, vector<128x128xbf16>
    %cst_10 = arith.constant dense<0.000000e+00> : vector<256x128xf32>
    %8 = tpu.matmul %4, %7, %cst_10 {dimension_numbers = #tpu.dot_dimension_numbers<[1], [0], [0], [1], [0, 0, 1, 1], [], []>} : vector<256x128xbf16>, vector<128x128xbf16>, vector<256x128xf32> -> vector<256x128xf32>
    %9 = arith.addf %6, %8 : vector<256x128xf32>
    %c0_11 = arith.constant 0 : index
    %c0_12 = arith.constant 0 : index
    %10 = vector.load %arg5[%c0_11, %c0_12] : memref<1x128xf32, #tpu.memory_space<vmem>>, vector<1x128xf32>
    %11 = vector.broadcast %10 : vector<1x128xf32> to vector<256x128xf32>
    %12 = arith.addf %9, %11 : vector<256x128xf32>
    %cst_13 = arith.constant 0.000000e+00 : f32
    %13 = vector.broadcast %cst_13 : f32 to vector<256x128xf32>
    %14 = arith.maximumf %12, %13 : vector<256x128xf32>
    %15 = arith.truncf %14 : vector<256x128xf32> to vector<256x128xbf16>
    %c0_14 = arith.constant 0 : index
    %c0_15 = arith.constant 0 : index
    %16 = vector.load %arg6[%c0_14, %c0_15] : memref<128x128xbf16, #tpu.memory_space<vmem>>, vector<128x128xbf16>
    %cst_16 = arith.constant dense<0.000000e+00> : vector<256x128xf32>
    %17 = tpu.matmul %15, %16, %cst_16 {dimension_numbers = #tpu.dot_dimension_numbers<[1], [0], [0], [1], [0, 0, 1, 1], [], []>} : vector<256x128xbf16>, vector<128x128xbf16>, vector<256x128xf32> -> vector<256x128xf32>
    %c0_17 = arith.constant 0 : index
    %c0_18 = arith.constant 0 : index
    %18 = vector.load %arg7[%c0_17, %c0_18] : memref<1x128xf32, #tpu.memory_space<vmem>>, vector<1x128xf32>
    %19 = vector.broadcast %18 : vector<1x128xf32> to vector<256x128xf32>
    %20 = arith.addf %17, %19 : vector<256x128xf32>
    %cst_19 = arith.constant 0.000000e+00 : f32
    %21 = vector.broadcast %cst_19 : f32 to vector<256x128xf32>
    %22 = arith.maximumf %20, %21 : vector<256x128xf32>
    %23 = arith.truncf %22 : vector<256x128xf32> to vector<256x128xbf16>
    %c0_20 = arith.constant 0 : index
    %c0_21 = arith.constant 0 : index
    %24 = vector.load %arg8[%c0_20, %c0_21] : memref<128x256xbf16, #tpu.memory_space<vmem>>, vector<128x256xbf16>
    %cst_22 = arith.constant dense<0.000000e+00> : vector<256x256xf32>
    %25 = tpu.matmul %23, %24, %cst_22 {dimension_numbers = #tpu.dot_dimension_numbers<[1], [0], [0], [1], [0, 0, 1, 1], [], []>} : vector<256x128xbf16>, vector<128x256xbf16>, vector<256x256xf32> -> vector<256x256xf32>
    %c0_23 = arith.constant 0 : index
    %c0_24 = arith.constant 0 : index
    %26 = vector.load %arg9[%c0_23, %c0_24] : memref<1x256xf32, #tpu.memory_space<vmem>>, vector<1x256xf32>
    %27 = vector.broadcast %26 : vector<1x256xf32> to vector<256x256xf32>
    %28 = arith.addf %25, %27 : vector<256x256xf32>
    %29 = vector.shape_cast %28 : vector<256x256xf32> to vector<16x16x256xf32>
    %cst_25 = arith.constant dense<0xFF800000> : vector<16x256xf32>
    %30 = vector.multi_reduction <maximumf>, %29, %cst_25 [0] : vector<16x16x256xf32> to vector<16x256xf32>
    %31 = arith.maximumf %0, %30 : vector<16x256xf32>
    %32 = arith.truncf %31 : vector<16x256xf32> to vector<16x256xbf16>
    %c0_26 = arith.constant 0 : index
    %c0_27 = arith.constant 0 : index
    %33 = vector.load %arg10[%c0_26, %c0_27] : memref<16x256xbf16, #tpu.memory_space<vmem>>, vector<16x256xbf16>
    tpu.vector_store %arg10[%c0_26, %c0_27], %32 {strides = array<i32>} : memref<16x256xbf16, #tpu.memory_space<vmem>>, vector<16x256xbf16>,
    return
  }
  func.func @transform_0(%arg0: i32) -> (i32, i32, i32) {
    %c0_i32 = arith.constant 0 : i32
    %c0_i32_0 = arith.constant 0 : i32
    %c0_i32_1 = arith.constant 0 : i32
    return %c0_i32, %arg0, %c0_i32_0 : i32, i32, i32
  }
  func.func @transform_1(%arg0: i32) -> (i32, i32, i32) {
    %c0_i32 = arith.constant 0 : i32
    %c0_i32_0 = arith.constant 0 : i32
    %c0_i32_1 = arith.constant 0 : i32
    return %c0_i32, %arg0, %c0_i32_0 : i32, i32, i32
  }
  func.func @transform_2(%arg0: i32) -> (i32, i32) {
    %c0_i32 = arith.constant 0 : i32
    %c0_i32_0 = arith.constant 0 : i32
    %c0_i32_1 = arith.constant 0 : i32
    return %c0_i32, %c0_i32_0 : i32, i32
  }
  func.func @transform_3(%arg0: i32) -> (i32, i32) {
    %c0_i32 = arith.constant 0 : i32
    %c0_i32_0 = arith.constant 0 : i32
    %c0_i32_1 = arith.constant 0 : i32
    return %c0_i32, %c0_i32_0 : i32, i32
  }
  func.func @transform_4(%arg0: i32) -> (i32, i32) {
    %c0_i32 = arith.constant 0 : i32
    %c0_i32_0 = arith.constant 0 : i32
    %c0_i32_1 = arith.constant 0 : i32
    return %c0_i32, %c0_i32_0 : i32, i32
  }
  func.func @transform_5(%arg0: i32) -> (i32, i32) {
    %c0_i32 = arith.constant 0 : i32
    %c0_i32_0 = arith.constant 0 : i32
    %c0_i32_1 = arith.constant 0 : i32
    return %c0_i32, %c0_i32_0 : i32, i32
  }
  func.func @transform_6(%arg0: i32) -> (i32, i32) {
    %c0_i32 = arith.constant 0 : i32
    %c0_i32_0 = arith.constant 0 : i32
    %c0_i32_1 = arith.constant 0 : i32
    return %c0_i32, %c0_i32_0 : i32, i32
  }
  func.func @transform_7(%arg0: i32) -> (i32, i32) {
    %c0_i32 = arith.constant 0 : i32
    %c0_i32_0 = arith.constant 0 : i32
    %c0_i32_1 = arith.constant 0 : i32
    return %c0_i32, %c0_i32_0 : i32, i32
  }
  func.func @transform_8(%arg0: i32) -> (i32, i32) {
    %c0_i32 = arith.constant 0 : i32
    %c0_i32_0 = arith.constant 0 : i32
    %c0_i32_1 = arith.constant 0 : i32
    return %c0_i32, %c0_i32_0 : i32, i32
  }
  func.func @transform_9(%arg0: i32) -> (i32, i32) {
    %c0_i32 = arith.constant 0 : i32
    %c0_i32_0 = arith.constant 0 : i32
    return %arg0, %c0_i32 : i32, i32
  }
}

module attributes {stable_mosaic.version = 11 : i64} {
  func.func @head_mlp_kernel(%arg0: memref<2x1024xbf16, #tpu.memory_space<vmem>>, %arg1: memref<1024x512xbf16, #tpu.memory_space<vmem>>, %arg2: memref<1x512xf32, #tpu.memory_space<vmem>>, %arg3: memref<512x256xbf16, #tpu.memory_space<vmem>>, %arg4: memref<1x256xf32, #tpu.memory_space<vmem>>, %arg5: memref<256x128xbf16, #tpu.memory_space<vmem>>, %arg6: memref<1x128xf32, #tpu.memory_space<vmem>>, %arg7: memref<2x128xf32, #tpu.memory_space<vmem>>) attributes {dimension_semantics = [], scalar_prefetch = 0 : i64, scratch_operands = 0 : i64, tpu.core_type = #tpu.core_type<tc>} {
    %c0 = arith.constant 0 : index
    %c0_0 = arith.constant 0 : index
    %0 = vector.load %arg0[%c0, %c0_0] : memref<2x1024xbf16, #tpu.memory_space<vmem>>, vector<2x1024xbf16>
    %c0_1 = arith.constant 0 : index
    %c0_2 = arith.constant 0 : index
    %1 = vector.load %arg1[%c0_1, %c0_2] : memref<1024x512xbf16, #tpu.memory_space<vmem>>, vector<1024x512xbf16>
    %cst = arith.constant dense<0.000000e+00> : vector<2x512xf32>
    %2 = tpu.matmul %0, %1, %cst {dimension_numbers = #tpu.dot_dimension_numbers<[1], [0], [0], [1], [0, 0, 1, 1], [], []>} : vector<2x1024xbf16>, vector<1024x512xbf16>, vector<2x512xf32> -> vector<2x512xf32>
    %c0_3 = arith.constant 0 : index
    %c0_4 = arith.constant 0 : index
    %3 = vector.load %arg2[%c0_3, %c0_4] : memref<1x512xf32, #tpu.memory_space<vmem>>, vector<1x512xf32>
    %4 = vector.broadcast %3 : vector<1x512xf32> to vector<2x512xf32>
    %5 = arith.addf %2, %4 : vector<2x512xf32>
    %cst_5 = arith.constant 0.000000e+00 : f32
    %6 = vector.broadcast %cst_5 : f32 to vector<2x512xf32>
    %7 = arith.maximumf %5, %6 : vector<2x512xf32>
    %8 = arith.truncf %7 : vector<2x512xf32> to vector<2x512xbf16>
    %c0_6 = arith.constant 0 : index
    %c0_7 = arith.constant 0 : index
    %9 = vector.load %arg3[%c0_6, %c0_7] : memref<512x256xbf16, #tpu.memory_space<vmem>>, vector<512x256xbf16>
    %cst_8 = arith.constant dense<0.000000e+00> : vector<2x256xf32>
    %10 = tpu.matmul %8, %9, %cst_8 {dimension_numbers = #tpu.dot_dimension_numbers<[1], [0], [0], [1], [0, 0, 1, 1], [], []>} : vector<2x512xbf16>, vector<512x256xbf16>, vector<2x256xf32> -> vector<2x256xf32>
    %c0_9 = arith.constant 0 : index
    %c0_10 = arith.constant 0 : index
    %11 = vector.load %arg4[%c0_9, %c0_10] : memref<1x256xf32, #tpu.memory_space<vmem>>, vector<1x256xf32>
    %12 = vector.broadcast %11 : vector<1x256xf32> to vector<2x256xf32>
    %13 = arith.addf %10, %12 : vector<2x256xf32>
    %cst_11 = arith.constant 0.000000e+00 : f32
    %14 = vector.broadcast %cst_11 : f32 to vector<2x256xf32>
    %15 = arith.maximumf %13, %14 : vector<2x256xf32>
    %16 = arith.truncf %15 : vector<2x256xf32> to vector<2x256xbf16>
    %c0_12 = arith.constant 0 : index
    %c0_13 = arith.constant 0 : index
    %17 = vector.load %arg5[%c0_12, %c0_13] : memref<256x128xbf16, #tpu.memory_space<vmem>>, vector<256x128xbf16>
    %cst_14 = arith.constant dense<0.000000e+00> : vector<2x128xf32>
    %18 = tpu.matmul %16, %17, %cst_14 {dimension_numbers = #tpu.dot_dimension_numbers<[1], [0], [0], [1], [0, 0, 1, 1], [], []>} : vector<2x256xbf16>, vector<256x128xbf16>, vector<2x128xf32> -> vector<2x128xf32>
    %c0_15 = arith.constant 0 : index
    %c0_16 = arith.constant 0 : index
    %19 = vector.load %arg6[%c0_15, %c0_16] : memref<1x128xf32, #tpu.memory_space<vmem>>, vector<1x128xf32>
    %20 = vector.broadcast %19 : vector<1x128xf32> to vector<2x128xf32>
    %21 = arith.addf %18, %20 : vector<2x128xf32>
    %c0_17 = arith.constant 0 : index
    %c0_18 = arith.constant 0 : index
    %22 = vector.load %arg7[%c0_17, %c0_18] : memref<2x128xf32, #tpu.memory_space<vmem>>, vector<2x128xf32>
    tpu.vector_store %arg7[%c0_17, %c0_18], %21 {strides = array<i32>} : memref<2x128xf32, #tpu.memory_space<vmem>>, vector<2x128xf32>,
    return
  }
}

</mosaic_0001>

<llo_original>
// kernel: custom-call.18
$region0: #{custom-call.18}
  %s0 = inlined_call_operand.vmem [shape: f32[2,64], index: 0, kind: output, shape index: {}]

// kernel: custom-call.19
$region0: #{custom-call.19}
  %s0 = inlined_call_operand.vmem [shape: f32[2,32], index: 0, kind: output, shape index: {}]

// kernel: pointnetpp_forward.4
$region0: #{pointnetpp_forward.4}
  #allocation0 [shape = 'u32[]', space=smem, size = 0x4, offset = 0x4, fixed_abs, tag = 'smem constant byte address 0x4 - core index']
  #allocation1 [shape = 'u32[144,128]{1,0:T(1,128)}', space=vmem, size = 0x12000, scoped, tag = 'internal scratch']
  %s0 = inlined_call_operand.vmem [shape: bf16[16,64,8], index: 0, kind: input, shape index: {}]
  %s1 = inlined_call_operand.vmem [shape: bf16[8,64], index: 1, kind: input, shape index: {}]
  %s2 = inlined_call_operand.vmem [shape: f32[1,64], index: 2, kind: input, shape index: {}]
  %s3 = inlined_call_operand.vmem [shape: bf16[64,64], index: 3, kind: input, shape index: {}]
  %s4 = inlined_call_operand.vmem [shape: f32[1,64], index: 4, kind: input, shape index: {}]
  %s5 = inlined_call_operand.vmem [shape: bf16[64,128], index: 5, kind: input, shape index: {}]
  %s6 = inlined_call_operand.vmem [shape: f32[1,128], index: 6, kind: input, shape index: {}]
  %s7 = inlined_call_operand.vmem [shape: bf16[64,128], index: 7, kind: output, shape index: {}]
  %s8 = sld [smem:[#allocation0]]
  $region102: #{pointnetpp_forward.4} parent=0
    _
  %s10 = ssub.s32 1, %s8
  %s11 = scalar_select 0, %s10, %s8
  $region1: #{pointnetpp_forward.4} parent=0
    #allocation2 [shape = 'u8[262144]{0}', space=vmem, size = 0x40000, scoped, tag = 'input window, operand 0']
    loop: start=0, step=1, limit=4
    $region2: #{pointnetpp_forward.4} parent=1 // loop_pre_header
      _
    $region3: #{pointnetpp_forward.4} parent=1 // loop_header
      %s13 = sphi 0, %s17
      %p14 = scmp.ge.s32.totalorder %s13, 4
      %s23 = sphi 0, %s25
      %s26 = sphi 0, %s23
      %s27 = sphi 0, %s26
      %s43 = sphi 0, %s27
      %s47 = sphi 0, %s47
      %s49 = sphi 0, %s47
      %s50 = sphi 0, %s49
      %s64 = sphi 0, %s50
      %s68 = sphi 0, %s68
      %s70 = sphi 0, %s68
      %s71 = sphi 0, %s70
      %s85 = sphi 0, %s71
      %s89 = sphi 0, %s89
      %s91 = sphi 0, %s89
      %s92 = sphi 0, %s91
      %s106 = sphi 0, %s92
      %s110 = sphi 0, %s110
      %s112 = sphi 0, %s110
      %s113 = sphi 0, %s112
      %s127 = sphi 0, %s113
      %s131 = sphi 0, %s131
      %s133 = sphi 0, %s131
      %s134 = sphi 0, %s133
      %s148 = sphi 0, %s134
      %s152 = sphi 0, %s152
      %s154 = sphi 0, %s152
      %s155 = sphi 0, %s154
      %s169 = sphi 0, %s155
      %s175 = sphi 0, %s177
      %s178 = sphi 0, %s175
      %s179 = sphi 0, %s178
      %s195 = sphi 0, %s179
    $region4: #{pointnetpp_forward.4} parent=1 // loop_header_branch
      %16 = sbr.rel (%p14) target = $region8
    $region5: #{pointnetpp_forward.4} parent=1 // loop_body
      %s18 = ssub.s32 %s13, 1
      %s19 = ssub.s32 %s13, 2
      %s20 = sadd.s32 %s13, 1
      %s21 = ssub.s32 %s13, %s20
      %p22 = scmp.eq.s32.totalorder %s21, 0
      %s24 = sadd.s32 %s23, 1
      %s25 = scalar_select %p22, %s23, %s24
      %p28 = pneg %p22
      %p29 = scmp.eq.s32.totalorder %s13, 1
      %p30 = por %p28, %p29
      %p31 = scmp.ne.s32.totalorder %s23, %s26
      %p32 = scmp.eq.s32.totalorder %s13, 0
      %p33 = por %p31, %p32
      %p34 = scmp.ne.s32.totalorder %s23, %s26
      %p35 = scmp.eq.s32.totalorder %s18, 1
      %p36 = por %p34, %p35
      %p37 = scmp.ne.s32.totalorder %s26, %s27
      %p38 = scmp.eq.s32.totalorder %s18, 0
      %p39 = por %p37, %p38
      %p40 = scmp.ne.s32.totalorder %s26, %s27
      %p41 = scmp.eq.s32.totalorder %s19, 1
      %p42 = por %p40, %p41
      %p44 = scmp.ne.s32.totalorder %s27, %s43
      %p45 = scmp.eq.s32.totalorder %s19, 0
      %p46 = por %p44, %p45
      %s48 = sadd.s32 %s47, 1
      %p51 = scmp.eq.s32.totalorder %s13, 1
      %p52 = scmp.ne.s32.totalorder %s47, %s49
      %p53 = scmp.eq.s32.totalorder %s13, 0
      %p54 = por %p52, %p53
      %p55 = scmp.ne.s32.totalorder %s47, %s49
      %p56 = scmp.eq.s32.totalorder %s18, 1
      %p57 = por %p55, %p56
      %p58 = scmp.ne.s32.totalorder %s49, %s50
      %p59 = scmp.eq.s32.totalorder %s18, 0
      %p60 = por %p58, %p59
      %p61 = scmp.ne.s32.totalorder %s49, %s50
      %p62 = scmp.eq.s32.totalorder %s19, 1
      %p63 = por %p61, %p62
      %p65 = scmp.ne.s32.totalorder %s50, %s64
      %p66 = scmp.eq.s32.totalorder %s19, 0
      %p67 = por %p65, %p66
      %s69 = sadd.s32 %s68, 1
      %p72 = scmp.eq.s32.totalorder %s13, 1
      %p73 = scmp.ne.s32.totalorder %s68, %s70
      %p74 = scmp.eq.s32.totalorder %s13, 0
      %p75 = por %p73, %p74
      %p76 = scmp.ne.s32.totalorder %s68, %s70
      %p77 = scmp.eq.s32.totalorder %s18, 1
      %p78 = por %p76, %p77
      %p79 = scmp.ne.s32.totalorder %s70, %s71
      %p80 = scmp.eq.s32.totalorder %s18, 0
      %p81 = por %p79, %p80
      %p82 = scmp.ne.s32.totalorder %s70, %s71
      %p83 = scmp.eq.s32.totalorder %s19, 1
      %p84 = por %p82, %p83
      %p86 = scmp.ne.s32.totalorder %s71, %s85
      %p87 = scmp.eq.s32.totalorder %s19, 0
      %p88 = por %p86, %p87
      %s90 = sadd.s32 %s89, 1
      %p93 = scmp.eq.s32.totalorder %s13, 1
      %p94 = scmp.ne.s32.totalorder %s89, %s91
      %p95 = scmp.eq.s32.totalorder %s13, 0
      %p96 = por %p94, %p95
      %p97 = scmp.ne.s32.totalorder %s89, %s91
      %p98 = scmp.eq.s32.totalorder %s18, 1
      %p99 = por %p97, %p98
      %p100 = scmp.ne.s32.totalorder %s91, %s92
      %p101 = scmp.eq.s32.totalorder %s18, 0
      %p102 = por %p100, %p101
      %p103 = scmp.ne.s32.totalorder %s91, %s92
      %p104 = scmp.eq.s32.totalorder %s19, 1
      %p105 = por %p103, %p104
      %p107 = scmp.ne.s32.totalorder %s92, %s106
      %p108 = scmp.eq.s32.totalorder %s19, 0
      %p109 = por %p107, %p108
      %s111 = sadd.s32 %s110, 1
      %p114 = scmp.eq.s32.totalorder %s13, 1
      %p115 = scmp.ne.s32.totalorder %s110, %s112
      %p116 = scmp.eq.s32.totalorder %s13, 0
      %p117 = por %p115, %p116
      %p118 = scmp.ne.s32.totalorder %s110, %s112
      %p119 = scmp.eq.s32.totalorder %s18, 1
      %p120 = por %p118, %p119
      %p121 = scmp.ne.s32.totalorder %s112, %s113
      %p122 = scmp.eq.s32.totalorder %s18, 0
      %p123 = por %p121, %p122
      %p124 = scmp.ne.s32.totalorder %s112, %s113
      %p125 = scmp.eq.s32.totalorder %s19, 1
      %p126 = por %p124, %p125
      %p128 = scmp.ne.s32.totalorder %s113, %s127
      %p129 = scmp.eq.s32.totalorder %s19, 0
      %p130 = por %p128, %p129
      %s132 = sadd.s32 %s131, 1
      %p135 = scmp.eq.s32.totalorder %s13, 1
      %p136 = scmp.ne.s32.totalorder %s131, %s133
      %p137 = scmp.eq.s32.totalorder %s13, 0
      %p138 = por %p136, %p137
      %p139 = scmp.ne.s32.totalorder %s131, %s133
      %p140 = scmp.eq.s32.totalorder %s18, 1
      %p141 = por %p139, %p140
      %p142 = scmp.ne.s32.totalorder %s133, %s134
      %p143 = scmp.eq.s32.totalorder %s18, 0
      %p144 = por %p142, %p143
      %p145 = scmp.ne.s32.totalorder %s133, %s134
      %p146 = scmp.eq.s32.totalorder %s19, 1
      %p147 = por %p145, %p146
      %p149 = scmp.ne.s32.totalorder %s134, %s148
      %p150 = scmp.eq.s32.totalorder %s19, 0
      %p151 = por %p149, %p150
      %s153 = sadd.s32 %s152, 1
      %p156 = scmp.eq.s32.totalorder %s13, 1
      %p157 = scmp.ne.s32.totalorder %s152, %s154
      %p158 = scmp.eq.s32.totalorder %s13, 0
      %p159 = por %p157, %p158
      %p160 = scmp.ne.s32.totalorder %s152, %s154
      %p161 = scmp.eq.s32.totalorder %s18, 1
      %p162 = por %p160, %p161
      %p163 = scmp.ne.s32.totalorder %s154, %s155
      %p164 = scmp.eq.s32.totalorder %s18, 0
      %p165 = por %p163, %p164
      %p166 = scmp.ne.s32.totalorder %s154, %s155
      %p167 = scmp.eq.s32.totalorder %s19, 1
      %p168 = por %p166, %p167
      %p170 = scmp.ne.s32.totalorder %s155, %s169
      %p171 = scmp.eq.s32.totalorder %s19, 0
      %p172 = por %p170, %p171
      %s173 = ssub.s32 %s13, %s20
      %p174 = scmp.eq.s32.totalorder %s173, 0
      %s176 = sadd.s32 %s175, 1
      %s177 = scalar_select %p174, %s175, %s176
      %p180 = pneg %p174
      %p181 = scmp.eq.s32.totalorder %s13, 1
      %p182 = por %p180, %p181
      %p183 = scmp.ne.s32.totalorder %s175, %s178
      %p184 = scmp.eq.s32.totalorder %s13, 0
      %p185 = por %p183, %p184
      %p186 = scmp.ne.s32.totalorder %s175, %s178
      %p187 = scmp.eq.s32.totalorder %s18, 1
      %p188 = por %p186, %p187
      %p189 = scmp.ne.s32.totalorder %s178, %s179
      %p190 = scmp.eq.s32.totalorder %s18, 0
      %p191 = por %p189, %p190
      %p192 = scmp.ne.s32.totalorder %s178, %s179
      %p193 = scmp.eq.s32.totalorder %s19, 1
      %p194 = por %p192, %p193
      %p196 = scmp.ne.s32.totalorder %s179, %s195
      %p197 = scmp.eq.s32.totalorder %s19, 0
      %p198 = por %p196, %p197
      %p199 = scmp.le.s32.totalorder 1, %s13
      %p200 = scmp.lt.s32.totalorder %s13, 3
      %p201 = pnand %p199, %p200
      %p202 = pneg %p201
      // Predicated region
      $region9: #{pointnetpp_forward.4} parent=5 // pred_check
        _
      $region10: #{pointnetpp_forward.4} parent=5 // pred_check_branch
        %204 = sbr.rel (%p201) target = $region12
      $region11: #{pointnetpp_forward.4} parent=5 // pred_region
        %s205 = ssub.s32 %s13, 1
        // Predicated region
        $region13: #{pointnetpp_forward.4} parent=11 // pred_check
          %p206 = pneg %p60
        $region14: #{pointnetpp_forward.4} parent=11 // pred_check_branch
          %208 = sbr.rel (%p206) target = $region16
        $region15: #{pointnetpp_forward.4} parent=11 // pred_region
          _
        $region16: #{pointnetpp_forward.4} parent=11 // pred_fallthru
          _
        // Predicated region
        $region17: #{pointnetpp_forward.4} parent=11 // pred_check
          %p209 = pneg %p81
        $region18: #{pointnetpp_forward.4} parent=11 // pred_check_branch
          %211 = sbr.rel (%p209) target = $region20
        $region19: #{pointnetpp_forward.4} parent=11 // pred_region
          _
        $region20: #{pointnetpp_forward.4} parent=11 // pred_fallthru
          _
        // Predicated region
        $region21: #{pointnetpp_forward.4} parent=11 // pred_check
          %p212 = pneg %p102
        $region22: #{pointnetpp_forward.4} parent=11 // pred_check_branch
          %214 = sbr.rel (%p212) target = $region24
        $region23: #{pointnetpp_forward.4} parent=11 // pred_region
          _
        $region24: #{pointnetpp_forward.4} parent=11 // pred_fallthru
          _
        // Predicated region
        $region25: #{pointnetpp_forward.4} parent=11 // pred_check
          %p215 = pneg %p123
        $region26: #{pointnetpp_forward.4} parent=11 // pred_check_branch
          %217 = sbr.rel (%p215) target = $region28
        $region27: #{pointnetpp_forward.4} parent=11 // pred_region
          _
        $region28: #{pointnetpp_forward.4} parent=11 // pred_fallthru
          _
        // Predicated region
        $region29: #{pointnetpp_forward.4} parent=11 // pred_check
          %p218 = pneg %p144
        $region30: #{pointnetpp_forward.4} parent=11 // pred_check_branch
          %220 = sbr.rel (%p218) target = $region32
        $region31: #{pointnetpp_forward.4} parent=11 // pred_region
          _
        $region32: #{pointnetpp_forward.4} parent=11 // pred_fallthru
          _
        // Predicated region
        $region33: #{pointnetpp_forward.4} parent=11 // pred_check
          %p221 = pneg %p165
        $region34: #{pointnetpp_forward.4} parent=11 // pred_check_branch
          %223 = sbr.rel (%p221) target = $region36
        $region35: #{pointnetpp_forward.4} parent=11 // pred_region
          _
        $region36: #{pointnetpp_forward.4} parent=11 // pred_fallthru
          _
      $region12: #{pointnetpp_forward.4} parent=5 // pred_fallthru
        _
      %p224 = scmp.lt.s32.totalorder %s13, 2
      // Predicated region
      $region37: #{pointnetpp_forward.4} parent=5 // pred_check
        %p225 = pneg %p224
      $region38: #{pointnetpp_forward.4} parent=5 // pred_check_branch
        %227 = sbr.rel (%p225) target = $region40
      $region39: #{pointnetpp_forward.4} parent=5 // pred_region
        // Predicated region
        $region41: #{pointnetpp_forward.4} parent=39 // pred_check
          %p228 = pneg %p33
        $region42: #{pointnetpp_forward.4} parent=39 // pred_check_branch
          %230 = sbr.rel (%p228) target = $region44
        $region43: #{pointnetpp_forward.4} parent=39 // pred_region
          %s231 = sand.u32 %s23, 1
          %s232 = sand.u32 %s23, 1
          %s233 = smul.addr %s232, 256
          %s234 = scalar_lea.vmem [#allocation2], %s233
          %s235 = smul.u32 4, %s13
          %s236 = smul.addr %s235, 4
          %s237 = scalar_lea.vmem %s0, %s236
          // Predicated region
          $region45: #{pointnetpp_forward.4} parent=43 // pred_check
            _
          $region46: #{pointnetpp_forward.4} parent=43 // pred_check_branch
            %239 = sbr.rel (0) target = $region48
          $region47: #{pointnetpp_forward.4} parent=43 // pred_region
            // Predicated region
            $region49: #{pointnetpp_forward.4} parent=47 // pred_check
              _
            $region50: #{pointnetpp_forward.4} parent=47 // pred_check_branch
              %241 = sbr.rel target = $region52
            $region51: #{pointnetpp_forward.4} parent=47 // pred_region
              // Predicated region
              $region64: #{pointnetpp_forward.4} parent=51 // pred_check
                _
              $region65: #{pointnetpp_forward.4} parent=51 // pred_check_branch
                %382 = sbr.rel (0) target = $region67
              $region66: #{pointnetpp_forward.4} parent=51 // pred_region
                loop: start=0, step=1, limit=1
                $region68: #{pointnetpp_forward.4} parent=66 // loop_pre_header
                  _
                $region69: #{pointnetpp_forward.4} parent=66 // loop_header
                  %s384 = sphi 0, %s388
                  %p385 = scmp.ge.s32.totalorder %s384, 1
                  %s389 = sphi %s237, %s237
                  %s390 = sphi %s234, %s234
                $region70: #{pointnetpp_forward.4} parent=66 // loop_header_branch
                  %387 = sbr.rel (%p385) target = $region74
                $region71: #{pointnetpp_forward.4} parent=66 // loop_body
                  _
                $region72: #{pointnetpp_forward.4} parent=66 // loop_footer
                  %s388 = sadd.s32 1, %s384
                $region73: #{pointnetpp_forward.4} parent=66 // loop_footer_branch
                  %383 = sbr.rel target = $region69
                $region74: #{pointnetpp_forward.4} parent=66 // loop_exit
                  _
                loop: start=0, step=1, limit=1
                $region75: #{pointnetpp_forward.4} parent=66 // loop_pre_header
                  _
                $region76: #{pointnetpp_forward.4} parent=66 // loop_header
                  %s393 = sphi 0, %s397
                  %p394 = scmp.ge.s32.totalorder %s393, 1
                  %s398 = sphi %s237, %s237
                  %s399 = sphi %s234, %s234
                $region77: #{pointnetpp_forward.4} parent=66 // loop_header_branch
                  %396 = sbr.rel (%p394) target = $region81
                $region78: #{pointnetpp_forward.4} parent=66 // loop_body
                  %v400 = vld [vmem:[%s398] sm:$0xf]
                  %401 = vst [vmem:[%s399] sm:$0xf] %v400
                  %v402 = vld [vmem:[%s398 + $0x4] sm:$0xf]
                  %403 = vst [vmem:[%s399 + $0x4] sm:$0xf] %v402
                  %v404 = vld [vmem:[%s398 + $0x8] sm:$0xf]
                  %405 = vst [vmem:[%s399 + $0x8] sm:$0xf] %v404
                  %v406 = vld [vmem:[%s398 + $0xc] sm:$0xf]
                  %407 = vst [vmem:[%s399 + $0xc] sm:$0xf] %v406
                  %v408 = vld [vmem:[%s398 + $0x20] sm:$0xf]
                  %409 = vst [vmem:[%s399 + $0x10] sm:$0xf] %v408
                  %v410 = vld [vmem:[%s398 + $0x24] sm:$0xf]
                  %411 = vst [vmem:[%s399 + $0x14] sm:$0xf] %v410
                  %v412 = vld [vmem:[%s398 + $0x28] sm:$0xf]
                  %413 = vst [vmem:[%s399 + $0x18] sm:$0xf] %v412
                  %v414 = vld [vmem:[%s398 + $0x2c] sm:$0xf]
                  %415 = vst [vmem:[%s399 + $0x1c] sm:$0xf] %v414
                  %v416 = vld [vmem:[%s398 + $0x40] sm:$0xf]
                  %417 = vst [vmem:[%s399 + $0x20] sm:$0xf] %v416
                  %v418 = vld [vmem:[%s398 + $0x44] sm:$0xf]
                  %419 = vst [vmem:[%s399 + $0x24] sm:$0xf] %v418
                  %v420 = vld [vmem:[%s398 + $0x48] sm:$0xf]
                  %421 = vst [vmem:[%s399 + $0x28] sm:$0xf] %v420
                  %v422 = vld [vmem:[%s398 + $0x4c] sm:$0xf]
                  %423 = vst [vmem:[%s399 + $0x2c] sm:$0xf] %v422
                  %v424 = vld [vmem:[%s398 + $0x60] sm:$0xf]
                  %425 = vst [vmem:[%s399 + $0x30] sm:$0xf] %v424
                  %v426 = vld [vmem:[%s398 + $0x64] sm:$0xf]
                  %427 = vst [vmem:[%s399 + $0x34] sm:$0xf] %v426
                  %v428 = vld [vmem:[%s398 + $0x68] sm:$0xf]
                  %429 = vst [vmem:[%s399 + $0x38] sm:$0xf] %v428
                  %v430 = vld [vmem:[%s398 + $0x6c] sm:$0xf]
                  %431 = vst [vmem:[%s399 + $0x3c] sm:$0xf] %v430
                  %v432 = vld [vmem:[%s398 + $0x80] sm:$0xf]
                  %433 = vst [vmem:[%s399 + $0x40] sm:$0xf] %v432
                  %v434 = vld [vmem:[%s398 + $0x84] sm:$0xf]
                  %435 = vst [vmem:[%s399 + $0x44] sm:$0xf] %v434
                  %v436 = vld [vmem:[%s398 + $0x88] sm:$0xf]
                  %437 = vst [vmem:[%s399 + $0x48] sm:$0xf] %v436
                  %v438 = vld [vmem:[%s398 + $0x8c] sm:$0xf]
                  %439 = vst [vmem:[%s399 + $0x4c] sm:$0xf] %v438
                  %v440 = vld [vmem:[%s398 + $0xa0] sm:$0xf]
                  %441 = vst [vmem:[%s399 + $0x50] sm:$0xf] %v440
                  %v442 = vld [vmem:[%s398 + $0xa4] sm:$0xf]
                  %443 = vst [vmem:[%s399 + $0x54] sm:$0xf] %v442
                  %v444 = vld [vmem:[%s398 + $0xa8] sm:$0xf]
                  %445 = vst [vmem:[%s399 + $0x58] sm:$0xf] %v444
                  %v446 = vld [vmem:[%s398 + $0xac] sm:$0xf]
                  %447 = vst [vmem:[%s399 + $0x5c] sm:$0xf] %v446
                  %v448 = vld [vmem:[%s398 + $0xc0] sm:$0xf]
                  %449 = vst [vmem:[%s399 + $0x60] sm:$0xf] %v448
                  %v450 = vld [vmem:[%s398 + $0xc4] sm:$0xf]
                  %451 = vst [vmem:[%s399 + $0x64] sm:$0xf] %v450
                  %v452 = vld [vmem:[%s398 + $0xc8] sm:$0xf]
                  %453 = vst [vmem:[%s399 + $0x68] sm:$0xf] %v452
                  %v454 = vld [vmem:[%s398 + $0xcc] sm:$0xf]
                  %455 = vst [vmem:[%s399 + $0x6c] sm:$0xf] %v454
                  %v456 = vld [vmem:[%s398 + $0xe0] sm:$0xf]
                  %457 = vst [vmem:[%s399 + $0x70] sm:$0xf] %v456
                  %v458 = vld [vmem:[%s398 + $0xe4] sm:$0xf]
                  %459 = vst [vmem:[%s399 + $0x74] sm:$0xf] %v458
                  %v460 = vld [vmem:[%s398 + $0xe8] sm:$0xf]
                  %461 = vst [vmem:[%s399 + $0x78] sm:$0xf] %v460
                  %v462 = vld [vmem:[%s398 + $0xec] sm:$0xf]
                  %463 = vst [vmem:[%s399 + $0x7c] sm:$0xf] %v462
                  %v464 = vld [vmem:[%s398 + $0x100] sm:$0xf]
                  %465 = vst [vmem:[%s399 + $0x80] sm:$0xf] %v464
                  %v466 = vld [vmem:[%s398 + $0x104] sm:$0xf]
                  %467 = vst [vmem:[%s399 + $0x84] sm:$0xf] %v466
                  %v468 = vld [vmem:[%s398 + $0x108] sm:$0xf]
                  %469 = vst [vmem:[%s399 + $0x88] sm:$0xf] %v468
                  %v470 = vld [vmem:[%s398 + $0x10c] sm:$0xf]
                  %471 = vst [vmem:[%s399 + $0x8c] sm:$0xf] %v470
                  %v472 = vld [vmem:[%s398 + $0x120] sm:$0xf]
                  %473 = vst [vmem:[%s399 + $0x90] sm:$0xf] %v472
                  %v474 = vld [vmem:[%s398 + $0x124] sm:$0xf]
                  %475 = vst [vmem:[%s399 + $0x94] sm:$0xf] %v474
                  %v476 = vld [vmem:[%s398 + $0x128] sm:$0xf]
                  %477 = vst [vmem:[%s399 + $0x98] sm:$0xf] %v476
                  %v478 = vld [vmem:[%s398 + $0x12c] sm:$0xf]
                  %479 = vst [vmem:[%s399 + $0x9c] sm:$0xf] %v478
                  %v480 = vld [vmem:[%s398 + $0x140] sm:$0xf]
                  %481 = vst [vmem:[%s399 + $0xa0] sm:$0xf] %v480
                  %v482 = vld [vmem:[%s398 + $0x144] sm:$0xf]
                  %483 = vst [vmem:[%s399 + $0xa4] sm:$0xf] %v482
                  %v484 = vld [vmem:[%s398 + $0x148] sm:$0xf]
                  %485 = vst [vmem:[%s399 + $0xa8] sm:$0xf] %v484
                  %v486 = vld [vmem:[%s398 + $0x14c] sm:$0xf]
                  %487 = vst [vmem:[%s399 + $0xac] sm:$0xf] %v486
                  %v488 = vld [vmem:[%s398 + $0x160] sm:$0xf]
                  %489 = vst [vmem:[%s399 + $0xb0] sm:$0xf] %v488
                  %v490 = vld [vmem:[%s398 + $0x164] sm:$0xf]
                  %491 = vst [vmem:[%s399 + $0xb4] sm:$0xf] %v490
                  %v492 = vld [vmem:[%s398 + $0x168] sm:$0xf]
                  %493 = vst [vmem:[%s399 + $0xb8] sm:$0xf] %v492
                  %v494 = vld [vmem:[%s398 + $0x16c] sm:$0xf]
                  %495 = vst [vmem:[%s399 + $0xbc] sm:$0xf] %v494
                  %v496 = vld [vmem:[%s398 + $0x180] sm:$0xf]
                  %497 = vst [vmem:[%s399 + $0xc0] sm:$0xf] %v496
                  %v498 = vld [vmem:[%s398 + $0x184] sm:$0xf]
                  %499 = vst [vmem:[%s399 + $0xc4] sm:$0xf] %v498
                  %v500 = vld [vmem:[%s398 + $0x188] sm:$0xf]
                  %501 = vst [vmem:[%s399 + $0xc8] sm:$0xf] %v500
                  %v502 = vld [vmem:[%s398 + $0x18c] sm:$0xf]
                  %503 = vst [vmem:[%s399 + $0xcc] sm:$0xf] %v502
                  %v504 = vld [vmem:[%s398 + $0x1a0] sm:$0xf]
                  %505 = vst [vmem:[%s399 + $0xd0] sm:$0xf] %v504
                  %v506 = vld [vmem:[%s398 + $0x1a4] sm:$0xf]
                  %507 = vst [vmem:[%s399 + $0xd4] sm:$0xf] %v506
                  %v508 = vld [vmem:[%s398 + $0x1a8] sm:$0xf]
                  %509 = vst [vmem:[%s399 + $0xd8] sm:$0xf] %v508
                  %v510 = vld [vmem:[%s398 + $0x1ac] sm:$0xf]
                  %511 = vst [vmem:[%s399 + $0xdc] sm:$0xf] %v510
                  %v512 = vld [vmem:[%s398 + $0x1c0] sm:$0xf]
                  %513 = vst [vmem:[%s399 + $0xe0] sm:$0xf] %v512
                  %v514 = vld [vmem:[%s398 + $0x1c4] sm:$0xf]
                  %515 = vst [vmem:[%s399 + $0xe4] sm:$0xf] %v514
                  %v516 = vld [vmem:[%s398 + $0x1c8] sm:$0xf]
                  %517 = vst [vmem:[%s399 + $0xe8] sm:$0xf] %v516
                  %v518 = vld [vmem:[%s398 + $0x1cc] sm:$0xf]
                  %519 = vst [vmem:[%s399 + $0xec] sm:$0xf] %v518
                  %v520 = vld [vmem:[%s398 + $0x1e0] sm:$0xf]
                  %521 = vst [vmem:[%s399 + $0xf0] sm:$0xf] %v520
                  %v522 = vld [vmem:[%s398 + $0x1e4] sm:$0xf]
                  %523 = vst [vmem:[%s399 + $0xf4] sm:$0xf] %v522
                  %v524 = vld [vmem:[%s398 + $0x1e8] sm:$0xf]
                  %525 = vst [vmem:[%s399 + $0xf8] sm:$0xf] %v524
                  %v526 = vld [vmem:[%s398 + $0x1ec] sm:$0xf]
                  %527 = vst [vmem:[%s399 + $0xfc] sm:$0xf] %v526
                $region79: #{pointnetpp_forward.4} parent=66 // loop_footer
                  %s397 = sadd.s32 1, %s393
                $region80: #{pointnetpp_forward.4} parent=66 // loop_footer_branch
                  %392 = sbr.rel target = $region76
                $region81: #{pointnetpp_forward.4} parent=66 // loop_exit
                  _
              $region67: #{pointnetpp_forward.4} parent=51 // pred_fallthru
                _
            $region52: #{pointnetpp_forward.4} parent=47 // pred_fallthru
              _
            // Predicated region
            $region53: #{pointnetpp_forward.4} parent=47 // pred_check
              _
            $region54: #{pointnetpp_forward.4} parent=47 // pred_check_branch
              %243 = sbr.rel (0) target = $region56
            $region55: #{pointnetpp_forward.4} parent=47 // pred_region
              loop: start=0, step=1, limit=1
              $region57: #{pointnetpp_forward.4} parent=55 // loop_pre_header
                _
              $region58: #{pointnetpp_forward.4} parent=55 // loop_header
                %s246 = sphi 0, %s250
                %p247 = scmp.ge.s32.totalorder %s246, 1
                %s251 = sphi %s237, %s237
                %s252 = sphi %s234, %s234
              $region59: #{pointnetpp_forward.4} parent=55 // loop_header_branch
                %249 = sbr.rel (%p247) target = $region63
              $region60: #{pointnetpp_forward.4} parent=55 // loop_body
                %v253 = vld [vmem:[%s251] sm:$0xf]
                %254 = vst [vmem:[%s252] sm:$0xf] %v253
                %v255 = vld [vmem:[%s251 + $0x4] sm:$0xf]
                %256 = vst [vmem:[%s252 + $0x4] sm:$0xf] %v255
                %v257 = vld [vmem:[%s251 + $0x8] sm:$0xf]
                %258 = vst [vmem:[%s252 + $0x8] sm:$0xf] %v257
                %v259 = vld [vmem:[%s251 + $0xc] sm:$0xf]
                %260 = vst [vmem:[%s252 + $0xc] sm:$0xf] %v259
                %v261 = vld [vmem:[%s251 + $0x20] sm:$0xf]
                %262 = vst [vmem:[%s252 + $0x10] sm:$0xf] %v261
                %v263 = vld [vmem:[%s251 + $0x24] sm:$0xf]
                %264 = vst [vmem:[%s252 + $0x14] sm:$0xf] %v263
                %v265 = vld [vmem:[%s251 + $0x28] sm:$0xf]
                %266 = vst [vmem:[%s252 + $0x18] sm:$0xf] %v265
                %v267 = vld [vmem:[%s251 + $0x2c] sm:$0xf]
                %268 = vst [vmem:[%s252 + $0x1c] sm:$0xf] %v267
                %v269 = vld [vmem:[%s251 + $0x40] sm:$0xf]
                %270 = vst [vmem:[%s252 + $0x20] sm:$0xf] %v269
                %v271 = vld [vmem:[%s251 + $0x44] sm:$0xf]
                %272 = vst [vmem:[%s252 + $0x24] sm:$0xf] %v271
                %v273 = vld [vmem:[%s251 + $0x48] sm:$0xf]
                %274 = vst [vmem:[%s252 + $0x28] sm:$0xf] %v273
                %v275 = vld [vmem:[%s251 + $0x4c] sm:$0xf]
                %276 = vst [vmem:[%s252 + $0x2c] sm:$0xf] %v275
                %v277 = vld [vmem:[%s251 + $0x60] sm:$0xf]
                %278 = vst [vmem:[%s252 + $0x30] sm:$0xf] %v277
                %v279 = vld [vmem:[%s251 + $0x64] sm:$0xf]
                %280 = vst [vmem:[%s252 + $0x34] sm:$0xf] %v279
                %v281 = vld [vmem:[%s251 + $0x68] sm:$0xf]
                %282 = vst [vmem:[%s252 + $0x38] sm:$0xf] %v281
                %v283 = vld [vmem:[%s251 + $0x6c] sm:$0xf]
                %284 = vst [vmem:[%s252 + $0x3c] sm:$0xf] %v283
                %v285 = vld [vmem:[%s251 + $0x80] sm:$0xf]
                %286 = vst [vmem:[%s252 + $0x40] sm:$0xf] %v285
                %v287 = vld [vmem:[%s251 + $0x84] sm:$0xf]
                %288 = vst [vmem:[%s252 + $0x44] sm:$0xf] %v287
                %v289 = vld [vmem:[%s251 + $0x88] sm:$0xf]
                %290 = vst [vmem:[%s252 + $0x48] sm:$0xf] %v289
                %v291 = vld [vmem:[%s251 + $0x8c] sm:$0xf]
                %292 = vst [vmem:[%s252 + $0x4c] sm:$0xf] %v291
                %v293 = vld [vmem:[%s251 + $0xa0] sm:$0xf]
                %294 = vst [vmem:[%s252 + $0x50] sm:$0xf] %v293
                %v295 = vld [vmem:[%s251 + $0xa4] sm:$0xf]
                %296 = vst [vmem:[%s252 + $0x54] sm:$0xf] %v295
                %v297 = vld [vmem:[%s251 + $0xa8] sm:$0xf]
                %298 = vst [vmem:[%s252 + $0x58] sm:$0xf] %v297
                %v299 = vld [vmem:[%s251 + $0xac] sm:$0xf]
                %300 = vst [vmem:[%s252 + $0x5c] sm:$0xf] %v299
                %v301 = vld [vmem:[%s251 + $0xc0] sm:$0xf]
                %302 = vst [vmem:[%s252 + $0x60] sm:$0xf] %v301
                %v303 = vld [vmem:[%s251 + $0xc4] sm:$0xf]
                %304 = vst [vmem:[%s252 + $0x64] sm:$0xf] %v303
                %v305 = vld [vmem:[%s251 + $0xc8] sm:$0xf]
                %306 = vst [vmem:[%s252 + $0x68] sm:$0xf] %v305
                %v307 = vld [vmem:[%s251 + $0xcc] sm:$0xf]
                %308 = vst [vmem:[%s252 + $0x6c] sm:$0xf] %v307
                %v309 = vld [vmem:[%s251 + $0xe0] sm:$0xf]
                %310 = vst [vmem:[%s252 + $0x70] sm:$0xf] %v309
                %v311 = vld [vmem:[%s251 + $0xe4] sm:$0xf]
                %312 = vst [vmem:[%s252 + $0x74] sm:$0xf] %v311
                %v313 = vld [vmem:[%s251 + $0xe8] sm:$0xf]
                %314 = vst [vmem:[%s252 + $0x78] sm:$0xf] %v313
                %v315 = vld [vmem:[%s251 + $0xec] sm:$0xf]
                %316 = vst [vmem:[%s252 + $0x7c] sm:$0xf] %v315
                %v317 = vld [vmem:[%s251 + $0x100] sm:$0xf]
                %318 = vst [vmem:[%s252 + $0x80] sm:$0xf] %v317
                %v319 = vld [vmem:[%s251 + $0x104] sm:$0xf]
                %320 = vst [vmem:[%s252 + $0x84] sm:$0xf] %v319
                %v321 = vld [vmem:[%s251 + $0x108] sm:$0xf]
                %322 = vst [vmem:[%s252 + $0x88] sm:$0xf] %v321
                %v323 = vld [vmem:[%s251 + $0x10c] sm:$0xf]
                %324 = vst [vmem:[%s252 + $0x8c] sm:$0xf] %v323
                %v325 = vld [vmem:[%s251 + $0x120] sm:$0xf]
                %326 = vst [vmem:[%s252 + $0x90] sm:$0xf] %v325
                %v327 = vld [vmem:[%s251 + $0x124] sm:$0xf]
                %328 = vst [vmem:[%s252 + $0x94] sm:$0xf] %v327
                %v329 = vld [vmem:[%s251 + $0x128] sm:$0xf]
                %330 = vst [vmem:[%s252 + $0x98] sm:$0xf] %v329
                %v331 = vld [vmem:[%s251 + $0x12c] sm:$0xf]
                %332 = vst [vmem:[%s252 + $0x9c] sm:$0xf] %v331
                %v333 = vld [vmem:[%s251 + $0x140] sm:$0xf]
                %334 = vst [vmem:[%s252 + $0xa0] sm:$0xf] %v333
                %v335 = vld [vmem:[%s251 + $0x144] sm:$0xf]
                %336 = vst [vmem:[%s252 + $0xa4] sm:$0xf] %v335
                %v337 = vld [vmem:[%s251 + $0x148] sm:$0xf]
                %338 = vst [vmem:[%s252 + $0xa8] sm:$0xf] %v337
                %v339 = vld [vmem:[%s251 + $0x14c] sm:$0xf]
                %340 = vst [vmem:[%s252 + $0xac] sm:$0xf] %v339
                %v341 = vld [vmem:[%s251 + $0x160] sm:$0xf]
                %342 = vst [vmem:[%s252 + $0xb0] sm:$0xf] %v341
                %v343 = vld [vmem:[%s251 + $0x164] sm:$0xf]
                %344 = vst [vmem:[%s252 + $0xb4] sm:$0xf] %v343
                %v345 = vld [vmem:[%s251 + $0x168] sm:$0xf]
                %346 = vst [vmem:[%s252 + $0xb8] sm:$0xf] %v345
                %v347 = vld [vmem:[%s251 + $0x16c] sm:$0xf]
                %348 = vst [vmem:[%s252 + $0xbc] sm:$0xf] %v347
                %v349 = vld [vmem:[%s251 + $0x180] sm:$0xf]
                %350 = vst [vmem:[%s252 + $0xc0] sm:$0xf] %v349
                %v351 = vld [vmem:[%s251 + $0x184] sm:$0xf]
                %352 = vst [vmem:[%s252 + $0xc4] sm:$0xf] %v351
                %v353 = vld [vmem:[%s251 + $0x188] sm:$0xf]
                %354 = vst [vmem:[%s252 + $0xc8] sm:$0xf] %v353
                %v355 = vld [vmem:[%s251 + $0x18c] sm:$0xf]
                %356 = vst [vmem:[%s252 + $0xcc] sm:$0xf] %v355
                %v357 = vld [vmem:[%s251 + $0x1a0] sm:$0xf]
                %358 = vst [vmem:[%s252 + $0xd0] sm:$0xf] %v357
                %v359 = vld [vmem:[%s251 + $0x1a4] sm:$0xf]
                %360 = vst [vmem:[%s252 + $0xd4] sm:$0xf] %v359
                %v361 = vld [vmem:[%s251 + $0x1a8] sm:$0xf]
                %362 = vst [vmem:[%s252 + $0xd8] sm:$0xf] %v361
                %v363 = vld [vmem:[%s251 + $0x1ac] sm:$0xf]
                %364 = vst [vmem:[%s252 + $0xdc] sm:$0xf] %v363
                %v365 = vld [vmem:[%s251 + $0x1c0] sm:$0xf]
                %366 = vst [vmem:[%s252 + $0xe0] sm:$0xf] %v365
                %v367 = vld [vmem:[%s251 + $0x1c4] sm:$0xf]
                %368 = vst [vmem:[%s252 + $0xe4] sm:$0xf] %v367
                %v369 = vld [vmem:[%s251 + $0x1c8] sm:$0xf]
                %370 = vst [vmem:[%s252 + $0xe8] sm:$0xf] %v369
                %v371 = vld [vmem:[%s251 + $0x1cc] sm:$0xf]
                %372 = vst [vmem:[%s252 + $0xec] sm:$0xf] %v371
                %v373 = vld [vmem:[%s251 + $0x1e0] sm:$0xf]
                %374 = vst [vmem:[%s252 + $0xf0] sm:$0xf] %v373
                %v375 = vld [vmem:[%s251 + $0x1e4] sm:$0xf]
                %376 = vst [vmem:[%s252 + $0xf4] sm:$0xf] %v375
                %v377 = vld [vmem:[%s251 + $0x1e8] sm:$0xf]
                %378 = vst [vmem:[%s252 + $0xf8] sm:$0xf] %v377
                %v379 = vld [vmem:[%s251 + $0x1ec] sm:$0xf]
                %380 = vst [vmem:[%s252 + $0xfc] sm:$0xf] %v379
              $region61: #{pointnetpp_forward.4} parent=55 // loop_footer
                %s250 = sadd.s32 1, %s246
              $region62: #{pointnetpp_forward.4} parent=55 // loop_footer_branch
                %245 = sbr.rel target = $region58
              $region63: #{pointnetpp_forward.4} parent=55 // loop_exit
                _
            $region56: #{pointnetpp_forward.4} parent=47 // pred_fallthru
              _
          $region48: #{pointnetpp_forward.4} parent=43 // pred_fallthru
            _
          %528 = vnop
        $region44: #{pointnetpp_forward.4} parent=39 // pred_fallthru
          _
      $region40: #{pointnetpp_forward.4} parent=5 // pred_fallthru
        _
      %p529 = scmp.le.s32.totalorder 1, %s13
      %p530 = scmp.lt.s32.totalorder %s13, 3
      %p531 = pnand %p529, %p530
      %p532 = pneg %p531
      // Predicated region
      $region82: #{pointnetpp_forward.4} parent=5 // pred_check
        _
      $region83: #{pointnetpp_forward.4} parent=5 // pred_check_branch
        %534 = sbr.rel (%p531) target = $region85
      $region84: #{pointnetpp_forward.4} parent=5 // pred_region
        %s535 = ssub.s32 %s13, 1
        %s536 = sand.u32 %s26, 1
        %s537 = sand.u32 %s26, 1
        %s538 = smul.addr %s537, 256
        %s539 = scalar_lea.vmem [#allocation2], %s538
        // Predicated region
        $region86: #{pointnetpp_forward.4} parent=84 // pred_check
          %p540 = pneg %p39
        $region87: #{pointnetpp_forward.4} parent=84 // pred_check_branch
          %542 = sbr.rel (%p540) target = $region89
        $region88: #{pointnetpp_forward.4} parent=84 // pred_region
          _
        $region89: #{pointnetpp_forward.4} parent=84 // pred_fallthru
          _
        %s543 = sand.u32 %s26, 1
        %s544 = sand.u32 %s26, 1
        %s545 = smul.addr %s544, 256
        %s546 = scalar_lea.vmem [#allocation2], %s545
        %p547 = pneg %p39
        %p548 = pneg %p36
        %p549 = pneg %p60
        %p550 = pneg %p57
        %p551 = pneg %p81
        %p552 = pneg %p78
        %p553 = pneg %p102
        %p554 = pneg %p99
        %p555 = pneg %p123
        %p556 = pneg %p120
        %p557 = pneg %p144
        %p558 = pneg %p141
        %p559 = pneg %p165
        %p560 = pneg %p162
        %p561 = pneg %p191
        %p562 = pneg %p188
        %s563 = smul.u32 4, %s18
        %p564 = scmp.lt.s32.totalorder %s563, 7
        %s565 = scalar_select %p564, %s563, 7
        %s566 = smul.addr %s565, 4
        %s567 = scalar_lea.vmem %s7, %s566
        %s568 = smul.u32 4, %s18
        %s569 = smul.u32 4, %s18
        %p570 = scmp.lt.s32.totalorder %s569, 7
        %s571 = scalar_select %p570, %s569, 7
        %s572 = smul.addr %s571, 4
        %s573 = scalar_lea.vmem %s7, %s572
        %s574 = smul.u32 4, %s18
        %v576 = vld [vmem:[%s539] sm:$0xf]
        %v577 = vld [vmem:[%s539 + $0x4] sm:$0xf]
        %v578 = vld [vmem:[%s539 + $0x8] sm:$0xf]
        %v579 = vld [vmem:[%s539 + $0xc] sm:$0xf]
        %v580 = vld [vmem:[%s539 + $0x10] sm:$0xf]
        %v581 = vld [vmem:[%s539 + $0x14] sm:$0xf]
        %v582 = vld [vmem:[%s539 + $0x18] sm:$0xf]
        %v583 = vld [vmem:[%s539 + $0x1c] sm:$0xf]
        %v584 = vld [vmem:[%s539 + $0x20] sm:$0xf]
        %v585 = vld [vmem:[%s539 + $0x24] sm:$0xf]
        %v586 = vld [vmem:[%s539 + $0x28] sm:$0xf]
        %v587 = vld [vmem:[%s539 + $0x2c] sm:$0xf]
        %v588 = vld [vmem:[%s539 + $0x30] sm:$0xf]
        %v589 = vld [vmem:[%s539 + $0x34] sm:$0xf]
        %v590 = vld [vmem:[%s539 + $0x38] sm:$0xf]
        %v591 = vld [vmem:[%s539 + $0x3c] sm:$0xf]
        %v592 = vld [vmem:[%s539 + $0x40] sm:$0xf]
        %v593 = vld [vmem:[%s539 + $0x44] sm:$0xf]
        %v594 = vld [vmem:[%s539 + $0x48] sm:$0xf]
        %v595 = vld [vmem:[%s539 + $0x4c] sm:$0xf]
        %v596 = vld [vmem:[%s539 + $0x50] sm:$0xf]
        %v597 = vld [vmem:[%s539 + $0x54] sm:$0xf]
        %v598 = vld [vmem:[%s539 + $0x58] sm:$0xf]
        %v599 = vld [vmem:[%s539 + $0x5c] sm:$0xf]
        %v600 = vld [vmem:[%s539 + $0x60] sm:$0xf]
        %v601 = vld [vmem:[%s539 + $0x64] sm:$0xf]
        %v602 = vld [vmem:[%s539 + $0x68] sm:$0xf]
        %v603 = vld [vmem:[%s539 + $0x6c] sm:$0xf]
        %v604 = vld [vmem:[%s539 + $0x70] sm:$0xf]
        %v605 = vld [vmem:[%s539 + $0x74] sm:$0xf]
        %v606 = vld [vmem:[%s539 + $0x78] sm:$0xf]
        %v607 = vld [vmem:[%s539 + $0x7c] sm:$0xf]
        %v608 = vld [vmem:[%s539 + $0x80] sm:$0xf]
        %v609 = vld [vmem:[%s539 + $0x84] sm:$0xf]
        %v610 = vld [vmem:[%s539 + $0x88] sm:$0xf]
        %v611 = vld [vmem:[%s539 + $0x8c] sm:$0xf]
        %v612 = vld [vmem:[%s539 + $0x90] sm:$0xf]
        %v613 = vld [vmem:[%s539 + $0x94] sm:$0xf]
        %v614 = vld [vmem:[%s539 + $0x98] sm:$0xf]
        %v615 = vld [vmem:[%s539 + $0x9c] sm:$0xf]
        %v616 = vld [vmem:[%s539 + $0xa0] sm:$0xf]
        %v617 = vld [vmem:[%s539 + $0xa4] sm:$0xf]
        %v618 = vld [vmem:[%s539 + $0xa8] sm:$0xf]
        %v619 = vld [vmem:[%s539 + $0xac] sm:$0xf]
        %v620 = vld [vmem:[%s539 + $0xb0] sm:$0xf]
        %v621 = vld [vmem:[%s539 + $0xb4] sm:$0xf]
        %v622 = vld [vmem:[%s539 + $0xb8] sm:$0xf]
        %v623 = vld [vmem:[%s539 + $0xbc] sm:$0xf]
        %v624 = vld [vmem:[%s539 + $0xc0] sm:$0xf]
        %v625 = vld [vmem:[%s539 + $0xc4] sm:$0xf]
        %v626 = vld [vmem:[%s539 + $0xc8] sm:$0xf]
        %v627 = vld [vmem:[%s539 + $0xcc] sm:$0xf]
        %v628 = vld [vmem:[%s539 + $0xd0] sm:$0xf]
        %v629 = vld [vmem:[%s539 + $0xd4] sm:$0xf]
        %v630 = vld [vmem:[%s539 + $0xd8] sm:$0xf]
        %v631 = vld [vmem:[%s539 + $0xdc] sm:$0xf]
        %v632 = vld [vmem:[%s539 + $0xe0] sm:$0xf]
        %v633 = vld [vmem:[%s539 + $0xe4] sm:$0xf]
        %v634 = vld [vmem:[%s539 + $0xe8] sm:$0xf]
        %v635 = vld [vmem:[%s539 + $0xec] sm:$0xf]
        %v636 = vld [vmem:[%s539 + $0xf0] sm:$0xf]
        %v637 = vld [vmem:[%s539 + $0xf4] sm:$0xf]
        %v638 = vld [vmem:[%s539 + $0xf8] sm:$0xf]
        %v639 = vld [vmem:[%s539 + $0xfc] sm:$0xf]
        %v640 = vld [vmem:[%s1] sm:$0xf]
        %v641 = vld [vmem:[%s2] sm:$0x1]
        %v643 = vlaneseq
        %v644 = vshrl.u32 %v643, 7
        %v645 = vsub.s32 0, %v644
        %v646 = vrot.slane %v641, %v645
        %v712 = vunpack.c.l.b16 %v576
        %v713 = vunpack.c.l.b16 %v577
        %v714 = vunpack.c.l.b16 %v578
        %v715 = vunpack.c.l.b16 %v579
        %v716 = vunpack.c.l.b16 %v580
        %v717 = vunpack.c.l.b16 %v581
        %v718 = vunpack.c.l.b16 %v582
        %v719 = vunpack.c.l.b16 %v583
        %v720 = vunpack.c.l.b16 %v584
        %v721 = vunpack.c.l.b16 %v585
        %v722 = vunpack.c.l.b16 %v586
        %v723 = vunpack.c.l.b16 %v587
        %v724 = vunpack.c.l.b16 %v588
        %v725 = vunpack.c.l.b16 %v589
        %v726 = vunpack.c.l.b16 %v590
        %v727 = vunpack.c.l.b16 %v591
        %v728 = vunpack.c.l.b16 %v592
        %v729 = vunpack.c.l.b16 %v593
        %v730 = vunpack.c.l.b16 %v594
        %v731 = vunpack.c.l.b16 %v595
        %v732 = vunpack.c.l.b16 %v596
        %v733 = vunpack.c.l.b16 %v597
        %v734 = vunpack.c.l.b16 %v598
        %v735 = vunpack.c.l.b16 %v599
        %v736 = vunpack.c.l.b16 %v600
        %v737 = vunpack.c.l.b16 %v601
        %v738 = vunpack.c.l.b16 %v602
        %v739 = vunpack.c.l.b16 %v603
        %v740 = vunpack.c.l.b16 %v604
        %v741 = vunpack.c.l.b16 %v605
        %v742 = vunpack.c.l.b16 %v606
        %v743 = vunpack.c.l.b16 %v607
        %v744 = vunpack.c.l.b16 %v608
        %v745 = vunpack.c.l.b16 %v609
        %v746 = vunpack.c.l.b16 %v610
        %v747 = vunpack.c.l.b16 %v611
        %v748 = vunpack.c.l.b16 %v612
        %v749 = vunpack.c.l.b16 %v613
        %v750 = vunpack.c.l.b16 %v614
        %v751 = vunpack.c.l.b16 %v615
        %v752 = vunpack.c.l.b16 %v616
        %v753 = vunpack.c.l.b16 %v617
        %v754 = vunpack.c.l.b16 %v618
        %v755 = vunpack.c.l.b16 %v619
        %v756 = vunpack.c.l.b16 %v620
        %v757 = vunpack.c.l.b16 %v621
        %v758 = vunpack.c.l.b16 %v622
        %v759 = vunpack.c.l.b16 %v623
        %v760 = vunpack.c.l.b16 %v624
        %v761 = vunpack.c.l.b16 %v625
        %v762 = vunpack.c.l.b16 %v626
        %v763 = vunpack.c.l.b16 %v627
        %v764 = vunpack.c.l.b16 %v628
        %v765 = vunpack.c.l.b16 %v629
        %v766 = vunpack.c.l.b16 %v630
        %v767 = vunpack.c.l.b16 %v631
        %v768 = vunpack.c.l.b16 %v632
        %v769 = vunpack.c.l.b16 %v633
        %v770 = vunpack.c.l.b16 %v634
        %v771 = vunpack.c.l.b16 %v635
        %v772 = vunpack.c.l.b16 %v636
        %v773 = vunpack.c.l.b16 %v637
        %v774 = vunpack.c.l.b16 %v638
        %v775 = vunpack.c.l.b16 %v639
        %v776 = vpack.c.b16 %v713, %v712
        %v777 = vpack.c.b16 %v715, %v714
        %v778 = vpack.c.b16 %v717, %v716
        %v779 = vpack.c.b16 %v719, %v718
        %v780 = vpack.c.b16 %v721, %v720
        %v781 = vpack.c.b16 %v723, %v722
        %v782 = vpack.c.b16 %v725, %v724
        %v783 = vpack.c.b16 %v727, %v726
        %v784 = vpack.c.b16 %v729, %v728
        %v785 = vpack.c.b16 %v731, %v730
        %v786 = vpack.c.b16 %v733, %v732
        %v787 = vpack.c.b16 %v735, %v734
        %v788 = vpack.c.b16 %v737, %v736
        %v789 = vpack.c.b16 %v739, %v738
        %v790 = vpack.c.b16 %v741, %v740
        %v791 = vpack.c.b16 %v743, %v742
        %v792 = vpack.c.b16 %v745, %v744
        %v793 = vpack.c.b16 %v747, %v746
        %v794 = vpack.c.b16 %v749, %v748
        %v795 = vpack.c.b16 %v751, %v750
        %v796 = vpack.c.b16 %v753, %v752
        %v797 = vpack.c.b16 %v755, %v754
        %v798 = vpack.c.b16 %v757, %v756
        %v799 = vpack.c.b16 %v759, %v758
        %v800 = vpack.c.b16 %v761, %v760
        %v801 = vpack.c.b16 %v763, %v762
        %v802 = vpack.c.b16 %v765, %v764
        %v803 = vpack.c.b16 %v767, %v766
        %v804 = vpack.c.b16 %v769, %v768
        %v805 = vpack.c.b16 %v771, %v770
        %v806 = vpack.c.b16 %v773, %v772
        %v807 = vpack.c.b16 %v775, %v774
        %vm808 = vcmask 64512
        %v810 = vsel %vm808, %v776, 0
        %v813 = vsel %vm808, %v777, 0
        %v816 = vsel %vm808, %v778, 0
        %v819 = vsel %vm808, %v779, 0
        %v822 = vsel %vm808, %v780, 0
        %v825 = vsel %vm808, %v781, 0
        %v828 = vsel %vm808, %v782, 0
        %v831 = vsel %vm808, %v783, 0
        %v834 = vsel %vm808, %v784, 0
        %v837 = vsel %vm808, %v785, 0
        %v840 = vsel %vm808, %v786, 0
        %v843 = vsel %vm808, %v787, 0
        %v846 = vsel %vm808, %v788, 0
        %v849 = vsel %vm808, %v789, 0
        %v852 = vsel %vm808, %v790, 0
        %v855 = vsel %vm808, %v791, 0
        %v858 = vsel %vm808, %v792, 0
        %v861 = vsel %vm808, %v793, 0
        %v864 = vsel %vm808, %v794, 0
        %v867 = vsel %vm808, %v795, 0
        %v870 = vsel %vm808, %v796, 0
        %v873 = vsel %vm808, %v797, 0
        %v876 = vsel %vm808, %v798, 0
        %v879 = vsel %vm808, %v799, 0
        %v882 = vsel %vm808, %v800, 0
        %v885 = vsel %vm808, %v801, 0
        %v888 = vsel %vm808, %v802, 0
        %v891 = vsel %vm808, %v803, 0
        %v894 = vsel %vm808, %v804, 0
        %v897 = vsel %vm808, %v805, 0
        %v900 = vsel %vm808, %v806, 0
        %v903 = vsel %vm808, %v807, 0
        %vm905 = vcmask 1043456
        %v907 = vsel %vm905, %v640, 0
        %909 = vmatprep.subr.bf16.mxu0 0
        %910 = vmatpush1.bf16.msra.mxu0 %v907
        %911 = vmatprep.subr.bf16.mxu0 0
        %912 = vmatpush1.bf16.msra.mxu0 0
        %913 = vmatprep.subr.bf16.mxu0 0
        %914 = vmatpush1.bf16.msra.mxu0 0
        %915 = vmatprep.subr.bf16.mxu0 0
        %916 = vmatpush1.bf16.msra.mxu0 0
        %917 = vmatprep.subr.bf16.mxu0 0
        %918 = vmatpush1.bf16.msra.mxu0 0
        %919 = vmatprep.subr.bf16.mxu0 0
        %920 = vmatpush1.bf16.msra.mxu0 0
        %921 = vmatprep.subr.bf16.mxu0 0
        %922 = vmatpush1.bf16.msra.mxu0 0
        %923 = vmatprep.subr.bf16.mxu0 0
        %924 = vmatpush1.bf16.msra.mxu0 0
        %925 = vmatprep.subr.bf16.mxu0 0
        %926 = vmatpush1.bf16.msra.mxu0 0
        %927 = vmatprep.subr.bf16.mxu0 0
        %928 = vmatpush1.bf16.msra.mxu0 0
        %929 = vmatprep.subr.bf16.mxu0 0
        %930 = vmatpush1.bf16.msra.mxu0 0
        %931 = vmatprep.subr.bf16.mxu0 0
        %932 = vmatpush1.bf16.msra.mxu0 0
        %933 = vmatprep.subr.bf16.mxu0 0
        %934 = vmatpush1.bf16.msra.mxu0 0
        %935 = vmatprep.subr.bf16.mxu0 0
        %936 = vmatpush1.bf16.msra.mxu0 0
        %937 = vmatprep.subr.bf16.mxu0 0
        %938 = vmatpush1.bf16.msra.mxu0 0
        %939 = vmatprep.subr.bf16.mxu0 0
        %940 = vmatpush1.bf16.msra.mxu0 0
        %941 = vmatprep.mubr.bf16.mxu0 0
        %942 = vmatmul.mubr.bf16.gmra.mrb[0].mxu0 %v810
        %v943 = vpop.f32.mrb[0].mxu0
        %v944 = vadd.f32 %v646, %v943
        %v945 = vpop.f32.mrb[0].mxu0
        %v946 = vpop.f32.mrb[0].mxu0
        %v947 = vadd.f32 %v646, %v946
        %v948 = vpop.f32.mrb[0].mxu0
        %949 = vmatprep.mubr.bf16.mxu0 0
        %950 = vmatmul.mubr.bf16.gmra.mrb[0].mxu0 %v813
        %v951 = vpop.f32.mrb[0].mxu0
        %v952 = vadd.f32 %v646, %v951
        %v953 = vpop.f32.mrb[0].mxu0
        %v954 = vpop.f32.mrb[0].mxu0
        %v955 = vadd.f32 %v646, %v954
        %v956 = vpop.f32.mrb[0].mxu0
        %957 = vmatprep.mubr.bf16.mxu0 0
        %958 = vmatmul.mubr.bf16.gmra.mrb[0].mxu0 %v816
        %v959 = vpop.f32.mrb[0].mxu0
        %v960 = vadd.f32 %v646, %v959
        %v961 = vpop.f32.mrb[0].mxu0
        %v962 = vpop.f32.mrb[0].mxu0
        %v963 = vadd.f32 %v646, %v962
        %v964 = vpop.f32.mrb[0].mxu0
        %965 = vmatprep.mubr.bf16.mxu0 0
        %966 = vmatmul.mubr.bf16.gmra.mrb[0].mxu0 %v819
        %v967 = vpop.f32.mrb[0].mxu0
        %v968 = vadd.f32 %v646, %v967
        %v969 = vpop.f32.mrb[0].mxu0
        %v970 = vpop.f32.mrb[0].mxu0
        %v971 = vadd.f32 %v646, %v970
        %v972 = vpop.f32.mrb[0].mxu0
        %973 = vmatprep.mubr.bf16.mxu0 0
        %974 = vmatmul.mubr.bf16.gmra.mrb[0].mxu0 %v822
        %v975 = vpop.f32.mrb[0].mxu0
        %v976 = vadd.f32 %v646, %v975
        %v977 = vpop.f32.mrb[0].mxu0
        %v978 = vpop.f32.mrb[0].mxu0
        %v979 = vadd.f32 %v646, %v978
        %v980 = vpop.f32.mrb[0].mxu0
        %981 = vmatprep.mubr.bf16.mxu0 0
        %982 = vmatmul.mubr.bf16.gmra.mrb[0].mxu0 %v825
        %v983 = vpop.f32.mrb[0].mxu0
        %v984 = vadd.f32 %v646, %v983
        %v985 = vpop.f32.mrb[0].mxu0
        %v986 = vpop.f32.mrb[0].mxu0
        %v987 = vadd.f32 %v646, %v986
        %v988 = vpop.f32.mrb[0].mxu0
        %989 = vmatprep.mubr.bf16.mxu0 0
        %990 = vmatmul.mubr.bf16.gmra.mrb[0].mxu0 %v828
        %v991 = vpop.f32.mrb[0].mxu0
        %v992 = vadd.f32 %v646, %v991
        %v993 = vpop.f32.mrb[0].mxu0
        %v994 = vpop.f32.mrb[0].mxu0
        %v995 = vadd.f32 %v646, %v994
        %v996 = vpop.f32.mrb[0].mxu0
        %997 = vmatprep.mubr.bf16.mxu0 0
        %998 = vmatmul.mubr.bf16.gmra.mrb[0].mxu0 %v831
        %v999 = vpop.f32.mrb[0].mxu0
        %v1000 = vadd.f32 %v646, %v999
        %v1001 = vpop.f32.mrb[0].mxu0
        %v1002 = vpop.f32.mrb[0].mxu0
        %v1003 = vadd.f32 %v646, %v1002
        %v1004 = vpop.f32.mrb[0].mxu0
        %1005 = vmatprep.mubr.bf16.mxu0 0
        %1006 = vmatmul.mubr.bf16.gmra.mrb[0].mxu0 %v834
        %v1007 = vpop.f32.mrb[0].mxu0
        %v1008 = vadd.f32 %v646, %v1007
        %v1009 = vpop.f32.mrb[0].mxu0
        %v1010 = vpop.f32.mrb[0].mxu0
        %v1011 = vadd.f32 %v646, %v1010
        %v1012 = vpop.f32.mrb[0].mxu0
        %1013 = vmatprep.mubr.bf16.mxu0 0
        %1014 = vmatmul.mubr.bf16.gmra.mrb[0].mxu0 %v837
        %v1015 = vpop.f32.mrb[0].mxu0
        %v1016 = vadd.f32 %v646, %v1015
        %v1017 = vpop.f32.mrb[0].mxu0
        %v1018 = vpop.f32.mrb[0].mxu0
        %v1019 = vadd.f32 %v646, %v1018
        %v1020 = vpop.f32.mrb[0].mxu0
        %1021 = vmatprep.mubr.bf16.mxu0 0
        %1022 = vmatmul.mubr.bf16.gmra.mrb[0].mxu0 %v840
        %v1023 = vpop.f32.mrb[0].mxu0
        %v1024 = vadd.f32 %v646, %v1023
        %v1025 = vpop.f32.mrb[0].mxu0
        %v1026 = vpop.f32.mrb[0].mxu0
        %v1027 = vadd.f32 %v646, %v1026
        %v1028 = vpop.f32.mrb[0].mxu0
        %1029 = vmatprep.mubr.bf16.mxu0 0
        %1030 = vmatmul.mubr.bf16.gmra.mrb[0].mxu0 %v843
        %v1031 = vpop.f32.mrb[0].mxu0
        %v1032 = vadd.f32 %v646, %v1031
        %v1033 = vpop.f32.mrb[0].mxu0
        %v1034 = vpop.f32.mrb[0].mxu0
        %v1035 = vadd.f32 %v646, %v1034
        %v1036 = vpop.f32.mrb[0].mxu0
        %1037 = vmatprep.mubr.bf16.mxu0 0
        %1038 = vmatmul.mubr.bf16.gmra.mrb[0].mxu0 %v846
        %v1039 = vpop.f32.mrb[0].mxu0
        %v1040 = vadd.f32 %v646, %v1039
        %v1041 = vpop.f32.mrb[0].mxu0
        %v1042 = vpop.f32.mrb[0].mxu0
        %v1043 = vadd.f32 %v646, %v1042
        %v1044 = vpop.f32.mrb[0].mxu0
        %1045 = vmatprep.mubr.bf16.mxu0 0
        %1046 = vmatmul.mubr.bf16.gmra.mrb[0].mxu0 %v849
        %v1047 = vpop.f32.mrb[0].mxu0
        %v1048 = vadd.f32 %v646, %v1047
        %v1049 = vpop.f32.mrb[0].mxu0
        %v1050 = vpop.f32.mrb[0].mxu0
        %v1051 = vadd.f32 %v646, %v1050
        %v1052 = vpop.f32.mrb[0].mxu0
        %1053 = vmatprep.mubr.bf16.mxu0 0
        %1054 = vmatmul.mubr.bf16.gmra.mrb[0].mxu0 %v852
        %v1055 = vpop.f32.mrb[0].mxu0
        %v1056 = vadd.f32 %v646, %v1055
        %v1057 = vpop.f32.mrb[0].mxu0
        %v1058 = vpop.f32.mrb[0].mxu0
        %v1059 = vadd.f32 %v646, %v1058
        %v1060 = vpop.f32.mrb[0].mxu0
        %1061 = vmatprep.mubr.bf16.mxu0 0
        %1062 = vmatmul.mubr.bf16.gmra.mrb[0].mxu0 %v855
        %v1063 = vpop.f32.mrb[0].mxu0
        %v1064 = vadd.f32 %v646, %v1063
        %v1065 = vpop.f32.mrb[0].mxu0
        %v1066 = vpop.f32.mrb[0].mxu0
        %v1067 = vadd.f32 %v646, %v1066
        %v1068 = vpop.f32.mrb[0].mxu0
        %1069 = vmatprep.mubr.bf16.mxu0 0
        %1070 = vmatmul.mubr.bf16.gmra.mrb[0].mxu0 %v858
        %v1071 = vpop.f32.mrb[0].mxu0
        %v1072 = vadd.f32 %v646, %v1071
        %v1073 = vpop.f32.mrb[0].mxu0
        %v1074 = vpop.f32.mrb[0].mxu0
        %v1075 = vadd.f32 %v646, %v1074
        %v1076 = vpop.f32.mrb[0].mxu0
        %1077 = vmatprep.mubr.bf16.mxu0 0
        %1078 = vmatmul.mubr.bf16.gmra.mrb[0].mxu0 %v861
        %v1079 = vpop.f32.mrb[0].mxu0
        %v1080 = vadd.f32 %v646, %v1079
        %v1081 = vpop.f32.mrb[0].mxu0
        %v1082 = vpop.f32.mrb[0].mxu0
        %v1083 = vadd.f32 %v646, %v1082
        %v1084 = vpop.f32.mrb[0].mxu0
        %1085 = vmatprep.mubr.bf16.mxu0 0
        %1086 = vmatmul.mubr.bf16.gmra.mrb[0].mxu0 %v864
        %v1087 = vpop.f32.mrb[0].mxu0
        %v1088 = vadd.f32 %v646, %v1087
        %v1089 = vpop.f32.mrb[0].mxu0
        %v1090 = vpop.f32.mrb[0].mxu0
        %v1091 = vadd.f32 %v646, %v1090
        %v1092 = vpop.f32.mrb[0].mxu0
        %1093 = vmatprep.mubr.bf16.mxu0 0
        %1094 = vmatmul.mubr.bf16.gmra.mrb[0].mxu0 %v867
        %v1095 = vpop.f32.mrb[0].mxu0
        %v1096 = vadd.f32 %v646, %v1095
        %v1097 = vpop.f32.mrb[0].mxu0
        %v1098 = vpop.f32.mrb[0].mxu0
        %v1099 = vadd.f32 %v646, %v1098
        %v1100 = vpop.f32.mrb[0].mxu0
        %1101 = vmatprep.mubr.bf16.mxu0 0
        %1102 = vmatmul.mubr.bf16.gmra.mrb[0].mxu0 %v870
        %v1103 = vpop.f32.mrb[0].mxu0
        %v1104 = vadd.f32 %v646, %v1103
        %v1105 = vpop.f32.mrb[0].mxu0
        %v1106 = vpop.f32.mrb[0].mxu0
        %v1107 = vadd.f32 %v646, %v1106
        %v1108 = vpop.f32.mrb[0].mxu0
        %1109 = vmatprep.mubr.bf16.mxu0 0
        %1110 = vmatmul.mubr.bf16.gmra.mrb[0].mxu0 %v873
        %v1111 = vpop.f32.mrb[0].mxu0
        %v1112 = vadd.f32 %v646, %v1111
        %v1113 = vpop.f32.mrb[0].mxu0
        %v1114 = vpop.f32.mrb[0].mxu0
        %v1115 = vadd.f32 %v646, %v1114
        %v1116 = vpop.f32.mrb[0].mxu0
        %1117 = vmatprep.mubr.bf16.mxu0 0
        %1118 = vmatmul.mubr.bf16.gmra.mrb[0].mxu0 %v876
        %v1119 = vpop.f32.mrb[0].mxu0
        %v1120 = vadd.f32 %v646, %v1119
        %v1121 = vpop.f32.mrb[0].mxu0
        %v1122 = vpop.f32.mrb[0].mxu0
        %v1123 = vadd.f32 %v646, %v1122
        %v1124 = vpop.f32.mrb[0].mxu0
        %1125 = vmatprep.mubr.bf16.mxu0 0
        %1126 = vmatmul.mubr.bf16.gmra.mrb[0].mxu0 %v879
        %v1127 = vpop.f32.mrb[0].mxu0
        %v1128 = vadd.f32 %v646, %v1127
        %v1129 = vpop.f32.mrb[0].mxu0
        %v1130 = vpop.f32.mrb[0].mxu0
        %v1131 = vadd.f32 %v646, %v1130
        %v1132 = vpop.f32.mrb[0].mxu0
        %1133 = vmatprep.mubr.bf16.mxu0 0
        %1134 = vmatmul.mubr.bf16.gmra.mrb[0].mxu0 %v882
        %v1135 = vpop.f32.mrb[0].mxu0
        %v1136 = vadd.f32 %v646, %v1135
        %v1137 = vpop.f32.mrb[0].mxu0
        %v1138 = vpop.f32.mrb[0].mxu0
        %v1139 = vadd.f32 %v646, %v1138
        %v1140 = vpop.f32.mrb[0].mxu0
        %1141 = vmatprep.mubr.bf16.mxu0 0
        %1142 = vmatmul.mubr.bf16.gmra.mrb[0].mxu0 %v885
        %v1143 = vpop.f32.mrb[0].mxu0
        %v1144 = vadd.f32 %v646, %v1143
        %v1145 = vpop.f32.mrb[0].mxu0
        %v1146 = vpop.f32.mrb[0].mxu0
        %v1147 = vadd.f32 %v646, %v1146
        %v1148 = vpop.f32.mrb[0].mxu0
        %1149 = vmatprep.mubr.bf16.mxu0 0
        %1150 = vmatmul.mubr.bf16.gmra.mrb[0].mxu0 %v888
        %v1151 = vpop.f32.mrb[0].mxu0
        %v1152 = vadd.f32 %v646, %v1151
        %v1153 = vpop.f32.mrb[0].mxu0
        %v1154 = vpop.f32.mrb[0].mxu0
        %v1155 = vadd.f32 %v646, %v1154
        %v1156 = vpop.f32.mrb[0].mxu0
        %1157 = vmatprep.mubr.bf16.mxu0 0
        %1158 = vmatmul.mubr.bf16.gmra.mrb[0].mxu0 %v891
        %v1159 = vpop.f32.mrb[0].mxu0
        %v1160 = vadd.f32 %v646, %v1159
        %v1161 = vpop.f32.mrb[0].mxu0
        %v1162 = vpop.f32.mrb[0].mxu0
        %v1163 = vadd.f32 %v646, %v1162
        %v1164 = vpop.f32.mrb[0].mxu0
        %1165 = vmatprep.mubr.bf16.mxu0 0
        %1166 = vmatmul.mubr.bf16.gmra.mrb[0].mxu0 %v894
        %v1167 = vpop.f32.mrb[0].mxu0
        %v1168 = vadd.f32 %v646, %v1167
        %v1169 = vpop.f32.mrb[0].mxu0
        %v1170 = vpop.f32.mrb[0].mxu0
        %v1171 = vadd.f32 %v646, %v1170
        %v1172 = vpop.f32.mrb[0].mxu0
        %1173 = vmatprep.mubr.bf16.mxu0 0
        %1174 = vmatmul.mubr.bf16.gmra.mrb[0].mxu0 %v897
        %v1175 = vpop.f32.mrb[0].mxu0
        %v1176 = vadd.f32 %v646, %v1175
        %v1177 = vpop.f32.mrb[0].mxu0
        %v1178 = vpop.f32.mrb[0].mxu0
        %v1179 = vadd.f32 %v646, %v1178
        %v1180 = vpop.f32.mrb[0].mxu0
        %1181 = vmatprep.mubr.bf16.mxu0 0
        %1182 = vmatmul.mubr.bf16.gmra.mrb[0].mxu0 %v900
        %v1183 = vpop.f32.mrb[0].mxu0
        %v1184 = vadd.f32 %v646, %v1183
        %v1185 = vpop.f32.mrb[0].mxu0
        %v1186 = vpop.f32.mrb[0].mxu0
        %v1187 = vadd.f32 %v646, %v1186
        %v1188 = vpop.f32.mrb[0].mxu0
        %1189 = vmatprep.mubr.bf16.mxu0 0
        %1190 = vmatmul.mubr.bf16.gmra.mrb[0].mxu0 %v903
        %v1191 = vpop.f32.mrb[0].mxu0
        %v1192 = vadd.f32 %v646, %v1191
        %v1193 = vpop.f32.mrb[0].mxu0
        %v1194 = vpop.f32.mrb[0].mxu0
        %v1195 = vadd.f32 %v646, %v1194
        %v1196 = vpop.f32.mrb[0].mxu0
        %1197 = vdwg.mxu0
        %v1198 = vmax.f32 %v944, 0.0
        %v1199 = vmax.f32 %v947, 0.0
        %v1200 = vmax.f32 %v952, 0.0
        %v1201 = vmax.f32 %v955, 0.0
        %v1202 = vmax.f32 %v960, 0.0
        %v1203 = vmax.f32 %v963, 0.0
        %v1204 = vmax.f32 %v968, 0.0
        %v1205 = vmax.f32 %v971, 0.0
        %v1206 = vmax.f32 %v976, 0.0
        %v1207 = vmax.f32 %v979, 0.0
        %v1208 = vmax.f32 %v984, 0.0
        %v1209 = vmax.f32 %v987, 0.0
        %v1210 = vmax.f32 %v992, 0.0
        %v1211 = vmax.f32 %v995, 0.0
        %v1212 = vmax.f32 %v1000, 0.0
        %v1213 = vmax.f32 %v1003, 0.0
        %v1214 = vmax.f32 %v1008, 0.0
        %v1215 = vmax.f32 %v1011, 0.0
        %v1216 = vmax.f32 %v1016, 0.0
        %v1217 = vmax.f32 %v1019, 0.0
        %v1218 = vmax.f32 %v1024, 0.0
        %v1219 = vmax.f32 %v1027, 0.0
        %v1220 = vmax.f32 %v1032, 0.0
        %v1221 = vmax.f32 %v1035, 0.0
        %v1222 = vmax.f32 %v1040, 0.0
        %v1223 = vmax.f32 %v1043, 0.0
        %v1224 = vmax.f32 %v1048, 0.0
        %v1225 = vmax.f32 %v1051, 0.0
        %v1226 = vmax.f32 %v1056, 0.0
        %v1227 = vmax.f32 %v1059, 0.0
        %v1228 = vmax.f32 %v1064, 0.0
        %v1229 = vmax.f32 %v1067, 0.0
        %v1230 = vmax.f32 %v1072, 0.0
        %v1231 = vmax.f32 %v1075, 0.0
        %v1232 = vmax.f32 %v1080, 0.0
        %v1233 = vmax.f32 %v1083, 0.0
        %v1234 = vmax.f32 %v1088, 0.0
        %v1235 = vmax.f32 %v1091, 0.0
        %v1236 = vmax.f32 %v1096, 0.0
        %v1237 = vmax.f32 %v1099, 0.0
        %v1238 = vmax.f32 %v1104, 0.0
        %v1239 = vmax.f32 %v1107, 0.0
        %v1240 = vmax.f32 %v1112, 0.0
        %v1241 = vmax.f32 %v1115, 0.0
        %v1242 = vmax.f32 %v1120, 0.0
        %v1243 = vmax.f32 %v1123, 0.0
        %v1244 = vmax.f32 %v1128, 0.0
        %v1245 = vmax.f32 %v1131, 0.0
        %v1246 = vmax.f32 %v1136, 0.0
        %v1247 = vmax.f32 %v1139, 0.0
        %v1248 = vmax.f32 %v1144, 0.0
        %v1249 = vmax.f32 %v1147, 0.0
        %v1250 = vmax.f32 %v1152, 0.0
        %v1251 = vmax.f32 %v1155, 0.0
        %v1252 = vmax.f32 %v1160, 0.0
        %v1253 = vmax.f32 %v1163, 0.0
        %v1254 = vmax.f32 %v1168, 0.0
        %v1255 = vmax.f32 %v1171, 0.0
        %v1256 = vmax.f32 %v1176, 0.0
        %v1257 = vmax.f32 %v1179, 0.0
        %v1258 = vmax.f32 %v1184, 0.0
        %v1259 = vmax.f32 %v1187, 0.0
        %v1260 = vmax.f32 %v1192, 0.0
        %v1261 = vmax.f32 %v1195, 0.0
        %v1262 = vpack.c.bf16 %v1199, %v1198
        %v1263 = vpack.c.bf16 %v1201, %v1200
        %v1264 = vpack.c.bf16 %v1203, %v1202
        %v1265 = vpack.c.bf16 %v1205, %v1204
        %v1266 = vpack.c.bf16 %v1207, %v1206
        %v1267 = vpack.c.bf16 %v1209, %v1208
        %v1268 = vpack.c.bf16 %v1211, %v1210
        %v1269 = vpack.c.bf16 %v1213, %v1212
        %v1270 = vpack.c.bf16 %v1215, %v1214
        %v1271 = vpack.c.bf16 %v1217, %v1216
        %v1272 = vpack.c.bf16 %v1219, %v1218
        %v1273 = vpack.c.bf16 %v1221, %v1220
        %v1274 = vpack.c.bf16 %v1223, %v1222
        %v1275 = vpack.c.bf16 %v1225, %v1224
        %v1276 = vpack.c.bf16 %v1227, %v1226
        %v1277 = vpack.c.bf16 %v1229, %v1228
        %v1278 = vpack.c.bf16 %v1231, %v1230
        %v1279 = vpack.c.bf16 %v1233, %v1232
        %v1280 = vpack.c.bf16 %v1235, %v1234
        %v1281 = vpack.c.bf16 %v1237, %v1236
        %v1282 = vpack.c.bf16 %v1239, %v1238
        %v1283 = vpack.c.bf16 %v1241, %v1240
        %v1284 = vpack.c.bf16 %v1243, %v1242
        %v1285 = vpack.c.bf16 %v1245, %v1244
        %v1286 = vpack.c.bf16 %v1247, %v1246
        %v1287 = vpack.c.bf16 %v1249, %v1248
        %v1288 = vpack.c.bf16 %v1251, %v1250
        %v1289 = vpack.c.bf16 %v1253, %v1252
        %v1290 = vpack.c.bf16 %v1255, %v1254
        %v1291 = vpack.c.bf16 %v1257, %v1256
        %v1292 = vpack.c.bf16 %v1259, %v1258
        %v1293 = vpack.c.bf16 %v1261, %v1260
        %v1294 = vld [vmem:[%s3] sm:$0xf]
        %v1295 = vld [vmem:[%s3 + $0x4] sm:$0xf]
        %v1296 = vld [vmem:[%s3 + $0x8] sm:$0xf]
        %v1297 = vld [vmem:[%s3 + $0xc] sm:$0xf]
        %v1298 = vld [vmem:[%s3 + $0x10] sm:$0xf]
        %v1299 = vld [vmem:[%s3 + $0x14] sm:$0xf]
        %v1300 = vld [vmem:[%s3 + $0x18] sm:$0xf]
        %v1301 = vld [vmem:[%s3 + $0x1c] sm:$0xf]
        %v1302 = vld [vmem:[%s4] sm:$0x1]
        %v1304 = vlaneseq
        %v1305 = vshrl.u32 %v1304, 7
        %v1306 = vsub.s32 0, %v1305
        %v1307 = vrot.slane %v1302, %v1306
        %v1317 = vunpack.c.l.b16 %v1294
        %v1318 = vunpack.c.l.b16 %v1295
        %v1319 = vunpack.c.l.b16 %v1296
        %v1320 = vunpack.c.l.b16 %v1297
        %v1321 = vunpack.c.l.b16 %v1298
        %v1322 = vunpack.c.l.b16 %v1299
        %v1323 = vunpack.c.l.b16 %v1300
        %v1324 = vunpack.c.l.b16 %v1301
        %v1325 = vpack.c.b16 %v1318, %v1317
        %v1326 = vpack.c.b16 %v1320, %v1319
        %v1327 = vpack.c.b16 %v1322, %v1321
        %v1328 = vpack.c.b16 %v1324, %v1323
        %vm1333 = vcmask 523264
        %v1335 = vsel %vm1333, %v1262, 0
        %v1338 = vsel %vm1333, %v1263, 0
        %v1341 = vsel %vm1333, %v1264, 0
        %v1344 = vsel %vm1333, %v1265, 0
        %v1347 = vsel %vm1333, %v1266, 0
        %v1350 = vsel %vm1333, %v1267, 0
        %v1353 = vsel %vm1333, %v1268, 0
        %v1356 = vsel %vm1333, %v1269, 0
        %v1359 = vsel %vm1333, %v1270, 0
        %v1362 = vsel %vm1333, %v1271, 0
        %v1365 = vsel %vm1333, %v1272, 0
        %v1368 = vsel %vm1333, %v1273, 0
        %v1371 = vsel %vm1333, %v1274, 0
        %v1374 = vsel %vm1333, %v1275, 0
        %v1377 = vsel %vm1333, %v1276, 0
        %v1380 = vsel %vm1333, %v1277, 0
        %v1383 = vsel %vm1333, %v1278, 0
        %v1386 = vsel %vm1333, %v1279, 0
        %v1389 = vsel %vm1333, %v1280, 0
        %v1392 = vsel %vm1333, %v1281, 0
        %v1395 = vsel %vm1333, %v1282, 0
        %v1398 = vsel %vm1333, %v1283, 0
        %v1401 = vsel %vm1333, %v1284, 0
        %v1404 = vsel %vm1333, %v1285, 0
        %v1407 = vsel %vm1333, %v1286, 0
        %v1410 = vsel %vm1333, %v1287, 0
        %v1413 = vsel %vm1333, %v1288, 0
        %v1416 = vsel %vm1333, %v1289, 0
        %v1419 = vsel %vm1333, %v1290, 0
        %v1422 = vsel %vm1333, %v1291, 0
        %v1425 = vsel %vm1333, %v1292, 0
        %v1428 = vsel %vm1333, %v1293, 0
        %1430 = vmatprep.subr.bf16.mxu0 0
        %1431 = vmatpush1.bf16.msra.mxu0 %v1325
        %1432 = vmatprep.subr.bf16.mxu0 0
        %1433 = vmatpush1.bf16.msra.mxu0 %v1326
        %1434 = vmatprep.subr.bf16.mxu0 0
        %1435 = vmatpush1.bf16.msra.mxu0 %v1327
        %1436 = vmatprep.subr.bf16.mxu0 0
        %1437 = vmatpush1.bf16.msra.mxu0 %v1328
        %1438 = vmatprep.subr.bf16.mxu0 0
        %1439 = vmatpush1.bf16.msra.mxu0 0
        %1440 = vmatprep.subr.bf16.mxu0 0
        %1441 = vmatpush1.bf16.msra.mxu0 0
        %1442 = vmatprep.subr.bf16.mxu0 0
        %1443 = vmatpush1.bf16.msra.mxu0 0
        %1444 = vmatprep.subr.bf16.mxu0 0
        %1445 = vmatpush1.bf16.msra.mxu0 0
        %1446 = vmatprep.subr.bf16.mxu0 0
        %1447 = vmatpush1.bf16.msra.mxu0 0
        %1448 = vmatprep.subr.bf16.mxu0 0
        %1449 = vmatpush1.bf16.msra.mxu0 0
        %1450 = vmatprep.subr.bf16.mxu0 0
        %1451 = vmatpush1.bf16.msra.mxu0 0
        %1452 = vmatprep.subr.bf16.mxu0 0
        %1453 = vmatpush1.bf16.msra.mxu0 0
        %1454 = vmatprep.subr.bf16.mxu0 0
        %1455 = vmatpush1.bf16.msra.mxu0 0
        %1456 = vmatprep.subr.bf16.mxu0 0
        %1457 = vmatpush1.bf16.msra.mxu0 0
        %1458 = vmatprep.subr.bf16.mxu0 0
        %1459 = vmatpush1.bf16.msra.mxu0 0
        %1460 = vmatprep.subr.bf16.mxu0 0
        %1461 = vmatpush1.bf16.msra.mxu0 0
        %1462 = vmatprep.mubr.bf16.mxu0 0
        %1463 = vmatmul.mubr.bf16.gmra.mrb[0].mxu0 %v1335
        %v1464 = vpop.f32.mrb[0].mxu0
        %v1465 = vadd.f32 %v1307, %v1464
        %v1466 = vpop.f32.mrb[0].mxu0
        %v1467 = vpop.f32.mrb[0].mxu0
        %v1468 = vadd.f32 %v1307, %v1467
        %v1469 = vpop.f32.mrb[0].mxu0
        %1470 = vmatprep.mubr.bf16.mxu0 0
        %1471 = vmatmul.mubr.bf16.gmra.mrb[0].mxu0 %v1338
        %v1472 = vpop.f32.mrb[0].mxu0
        %v1473 = vadd.f32 %v1307, %v1472
        %v1474 = vpop.f32.mrb[0].mxu0
        %v1475 = vpop.f32.mrb[0].mxu0
        %v1476 = vadd.f32 %v1307, %v1475
        %v1477 = vpop.f32.mrb[0].mxu0
        %1478 = vmatprep.mubr.bf16.mxu0 0
        %1479 = vmatmul.mubr.bf16.gmra.mrb[0].mxu0 %v1341
        %v1480 = vpop.f32.mrb[0].mxu0
        %v1481 = vadd.f32 %v1307, %v1480
        %v1482 = vpop.f32.mrb[0].mxu0
        %v1483 = vpop.f32.mrb[0].mxu0
        %v1484 = vadd.f32 %v1307, %v1483
        %v1485 = vpop.f32.mrb[0].mxu0
        %1486 = vmatprep.mubr.bf16.mxu0 0
        %1487 = vmatmul.mubr.bf16.gmra.mrb[0].mxu0 %v1344
        %v1488 = vpop.f32.mrb[0].mxu0
        %v1489 = vadd.f32 %v1307, %v1488
        %v1490 = vpop.f32.mrb[0].mxu0
        %v1491 = vpop.f32.mrb[0].mxu0
        %v1492 = vadd.f32 %v1307, %v1491
        %v1493 = vpop.f32.mrb[0].mxu0
        %1494 = vmatprep.mubr.bf16.mxu0 0
        %1495 = vmatmul.mubr.bf16.gmra.mrb[0].mxu0 %v1347
        %v1496 = vpop.f32.mrb[0].mxu0
        %v1497 = vadd.f32 %v1307, %v1496
        %v1498 = vpop.f32.mrb[0].mxu0
        %v1499 = vpop.f32.mrb[0].mxu0
        %v1500 = vadd.f32 %v1307, %v1499
        %v1501 = vpop.f32.mrb[0].mxu0
        %1502 = vmatprep.mubr.bf16.mxu0 0
        %1503 = vmatmul.mubr.bf16.gmra.mrb[0].mxu0 %v1350
        %v1504 = vpop.f32.mrb[0].mxu0
        %v1505 = vadd.f32 %v1307, %v1504
        %v1506 = vpop.f32.mrb[0].mxu0
        %v1507 = vpop.f32.mrb[0].mxu0
        %v1508 = vadd.f32 %v1307, %v1507
        %v1509 = vpop.f32.mrb[0].mxu0
        %1510 = vmatprep.mubr.bf16.mxu0 0
        %1511 = vmatmul.mubr.bf16.gmra.mrb[0].mxu0 %v1353
        %v1512 = vpop.f32.mrb[0].mxu0
        %v1513 = vadd.f32 %v1307, %v1512
        %v1514 = vpop.f32.mrb[0].mxu0
        %v1515 = vpop.f32.mrb[0].mxu0
        %v1516 = vadd.f32 %v1307, %v1515
        %v1517 = vpop.f32.mrb[0].mxu0
        %1518 = vmatprep.mubr.bf16.mxu0 0
        %1519 = vmatmul.mubr.bf16.gmra.mrb[0].mxu0 %v1356
        %v1520 = vpop.f32.mrb[0].mxu0
        %v1521 = vadd.f32 %v1307, %v1520
        %v1522 = vpop.f32.mrb[0].mxu0
        %v1523 = vpop.f32.mrb[0].mxu0
        %v1524 = vadd.f32 %v1307, %v1523
        %v1525 = vpop.f32.mrb[0].mxu0
        %1526 = vmatprep.mubr.bf16.mxu0 0
        %1527 = vmatmul.mubr.bf16.gmra.mrb[0].mxu0 %v1359
        %v1528 = vpop.f32.mrb[0].mxu0
        %v1529 = vadd.f32 %v1307, %v1528
        %v1530 = vpop.f32.mrb[0].mxu0
        %v1531 = vpop.f32.mrb[0].mxu0
        %v1532 = vadd.f32 %v1307, %v1531
        %v1533 = vpop.f32.mrb[0].mxu0
        %1534 = vmatprep.mubr.bf16.mxu0 0
        %1535 = vmatmul.mubr.bf16.gmra.mrb[0].mxu0 %v1362
        %v1536 = vpop.f32.mrb[0].mxu0
        %v1537 = vadd.f32 %v1307, %v1536
        %v1538 = vpop.f32.mrb[0].mxu0
        %v1539 = vpop.f32.mrb[0].mxu0
        %v1540 = vadd.f32 %v1307, %v1539
        %v1541 = vpop.f32.mrb[0].mxu0
        %1542 = vmatprep.mubr.bf16.mxu0 0
        %1543 = vmatmul.mubr.bf16.gmra.mrb[0].mxu0 %v1365
        %v1544 = vpop.f32.mrb[0].mxu0
        %v1545 = vadd.f32 %v1307, %v1544
        %v1546 = vpop.f32.mrb[0].mxu0
        %v1547 = vpop.f32.mrb[0].mxu0
        %v1548 = vadd.f32 %v1307, %v1547
        %v1549 = vpop.f32.mrb[0].mxu0
        %1550 = vmatprep.mubr.bf16.mxu0 0
        %1551 = vmatmul.mubr.bf16.gmra.mrb[0].mxu0 %v1368
        %v1552 = vpop.f32.mrb[0].mxu0
        %v1553 = vadd.f32 %v1307, %v1552
        %v1554 = vpop.f32.mrb[0].mxu0
        %v1555 = vpop.f32.mrb[0].mxu0
        %v1556 = vadd.f32 %v1307, %v1555
        %v1557 = vpop.f32.mrb[0].mxu0
        %1558 = vmatprep.mubr.bf16.mxu0 0
        %1559 = vmatmul.mubr.bf16.gmra.mrb[0].mxu0 %v1371
        %v1560 = vpop.f32.mrb[0].mxu0
        %v1561 = vadd.f32 %v1307, %v1560
        %v1562 = vpop.f32.mrb[0].mxu0
        %v1563 = vpop.f32.mrb[0].mxu0
        %v1564 = vadd.f32 %v1307, %v1563
        %v1565 = vpop.f32.mrb[0].mxu0
        %1566 = vmatprep.mubr.bf16.mxu0 0
        %1567 = vmatmul.mubr.bf16.gmra.mrb[0].mxu0 %v1374
        %v1568 = vpop.f32.mrb[0].mxu0
        %v1569 = vadd.f32 %v1307, %v1568
        %v1570 = vpop.f32.mrb[0].mxu0
        %v1571 = vpop.f32.mrb[0].mxu0
        %v1572 = vadd.f32 %v1307, %v1571
        %v1573 = vpop.f32.mrb[0].mxu0
        %1574 = vmatprep.mubr.bf16.mxu0 0
        %1575 = vmatmul.mubr.bf16.gmra.mrb[0].mxu0 %v1377
        %v1576 = vpop.f32.mrb[0].mxu0
        %v1577 = vadd.f32 %v1307, %v1576
        %v1578 = vpop.f32.mrb[0].mxu0
        %v1579 = vpop.f32.mrb[0].mxu0
        %v1580 = vadd.f32 %v1307, %v1579
        %v1581 = vpop.f32.mrb[0].mxu0
        %1582 = vmatprep.mubr.bf16.mxu0 0
        %1583 = vmatmul.mubr.bf16.gmra.mrb[0].mxu0 %v1380
        %v1584 = vpop.f32.mrb[0].mxu0
        %v1585 = vadd.f32 %v1307, %v1584
        %v1586 = vpop.f32.mrb[0].mxu0
        %v1587 = vpop.f32.mrb[0].mxu0
        %v1588 = vadd.f32 %v1307, %v1587
        %v1589 = vpop.f32.mrb[0].mxu0
        %1590 = vmatprep.mubr.bf16.mxu0 0
        %1591 = vmatmul.mubr.bf16.gmra.mrb[0].mxu0 %v1383
        %v1592 = vpop.f32.mrb[0].mxu0
        %v1593 = vadd.f32 %v1307, %v1592
        %v1594 = vpop.f32.mrb[0].mxu0
        %v1595 = vpop.f32.mrb[0].mxu0
        %v1596 = vadd.f32 %v1307, %v1595
        %v1597 = vpop.f32.mrb[0].mxu0
        %1598 = vmatprep.mubr.bf16.mxu0 0
        %1599 = vmatmul.mubr.bf16.gmra.mrb[0].mxu0 %v1386
        %v1600 = vpop.f32.mrb[0].mxu0
        %v1601 = vadd.f32 %v1307, %v1600
        %v1602 = vpop.f32.mrb[0].mxu0
        %v1603 = vpop.f32.mrb[0].mxu0
        %v1604 = vadd.f32 %v1307, %v1603
        %v1605 = vpop.f32.mrb[0].mxu0
        %1606 = vmatprep.mubr.bf16.mxu0 0
        %1607 = vmatmul.mubr.bf16.gmra.mrb[0].mxu0 %v1389
        %v1608 = vpop.f32.mrb[0].mxu0
        %v1609 = vadd.f32 %v1307, %v1608
        %v1610 = vpop.f32.mrb[0].mxu0
        %v1611 = vpop.f32.mrb[0].mxu0
        %v1612 = vadd.f32 %v1307, %v1611
        %v1613 = vpop.f32.mrb[0].mxu0
        %1614 = vmatprep.mubr.bf16.mxu0 0
        %1615 = vmatmul.mubr.bf16.gmra.mrb[0].mxu0 %v1392
        %v1616 = vpop.f32.mrb[0].mxu0
        %v1617 = vadd.f32 %v1307, %v1616
        %v1618 = vpop.f32.mrb[0].mxu0
        %v1619 = vpop.f32.mrb[0].mxu0
        %v1620 = vadd.f32 %v1307, %v1619
        %v1621 = vpop.f32.mrb[0].mxu0
        %1622 = vmatprep.mubr.bf16.mxu0 0
        %1623 = vmatmul.mubr.bf16.gmra.mrb[0].mxu0 %v1395
        %v1624 = vpop.f32.mrb[0].mxu0
        %v1625 = vadd.f32 %v1307, %v1624
        %v1626 = vpop.f32.mrb[0].mxu0
        %v1627 = vpop.f32.mrb[0].mxu0
        %v1628 = vadd.f32 %v1307, %v1627
        %v1629 = vpop.f32.mrb[0].mxu0
        %1630 = vmatprep.mubr.bf16.mxu0 0
        %1631 = vmatmul.mubr.bf16.gmra.mrb[0].mxu0 %v1398
        %v1632 = vpop.f32.mrb[0].mxu0
        %v1633 = vadd.f32 %v1307, %v1632
        %v1634 = vpop.f32.mrb[0].mxu0
        %v1635 = vpop.f32.mrb[0].mxu0
        %v1636 = vadd.f32 %v1307, %v1635
        %v1637 = vpop.f32.mrb[0].mxu0
        %1638 = vmatprep.mubr.bf16.mxu0 0
        %1639 = vmatmul.mubr.bf16.gmra.mrb[0].mxu0 %v1401
        %v1640 = vpop.f32.mrb[0].mxu0
        %v1641 = vadd.f32 %v1307, %v1640
        %v1642 = vpop.f32.mrb[0].mxu0
        %v1643 = vpop.f32.mrb[0].mxu0
        %v1644 = vadd.f32 %v1307, %v1643
        %v1645 = vpop.f32.mrb[0].mxu0
        %1646 = vmatprep.mubr.bf16.mxu0 0
        %1647 = vmatmul.mubr.bf16.gmra.mrb[0].mxu0 %v1404
        %v1648 = vpop.f32.mrb[0].mxu0
        %v1649 = vadd.f32 %v1307, %v1648
        %v1650 = vpop.f32.mrb[0].mxu0
        %v1651 = vpop.f32.mrb[0].mxu0
        %v1652 = vadd.f32 %v1307, %v1651
        %v1653 = vpop.f32.mrb[0].mxu0
        %1654 = vmatprep.mubr.bf16.mxu0 0
        %1655 = vmatmul.mubr.bf16.gmra.mrb[0].mxu0 %v1407
        %v1656 = vpop.f32.mrb[0].mxu0
        %v1657 = vadd.f32 %v1307, %v1656
        %v1658 = vpop.f32.mrb[0].mxu0
        %v1659 = vpop.f32.mrb[0].mxu0
        %v1660 = vadd.f32 %v1307, %v1659
        %v1661 = vpop.f32.mrb[0].mxu0
        %1662 = vmatprep.mubr.bf16.mxu0 0
        %1663 = vmatmul.mubr.bf16.gmra.mrb[0].mxu0 %v1410
        %v1664 = vpop.f32.mrb[0].mxu0
        %v1665 = vadd.f32 %v1307, %v1664
        %v1666 = vpop.f32.mrb[0].mxu0
        %v1667 = vpop.f32.mrb[0].mxu0
        %v1668 = vadd.f32 %v1307, %v1667
        %v1669 = vpop.f32.mrb[0].mxu0
        %1670 = vmatprep.mubr.bf16.mxu0 0
        %1671 = vmatmul.mubr.bf16.gmra.mrb[0].mxu0 %v1413
        %v1672 = vpop.f32.mrb[0].mxu0
        %v1673 = vadd.f32 %v1307, %v1672
        %v1674 = vpop.f32.mrb[0].mxu0
        %v1675 = vpop.f32.mrb[0].mxu0
        %v1676 = vadd.f32 %v1307, %v1675
        %v1677 = vpop.f32.mrb[0].mxu0
        %1678 = vmatprep.mubr.bf16.mxu0 0
        %1679 = vmatmul.mubr.bf16.gmra.mrb[0].mxu0 %v1416
        %v1680 = vpop.f32.mrb[0].mxu0
        %v1681 = vadd.f32 %v1307, %v1680
        %v1682 = vpop.f32.mrb[0].mxu0
        %v1683 = vpop.f32.mrb[0].mxu0
        %v1684 = vadd.f32 %v1307, %v1683
        %v1685 = vpop.f32.mrb[0].mxu0
        %1686 = vmatprep.mubr.bf16.mxu0 0
        %1687 = vmatmul.mubr.bf16.gmra.mrb[0].mxu0 %v1419
        %v1688 = vpop.f32.mrb[0].mxu0
        %v1689 = vadd.f32 %v1307, %v1688
        %v1690 = vpop.f32.mrb[0].mxu0
        %v1691 = vpop.f32.mrb[0].mxu0
        %v1692 = vadd.f32 %v1307, %v1691
        %v1693 = vpop.f32.mrb[0].mxu0
        %1694 = vmatprep.mubr.bf16.mxu0 0
        %1695 = vmatmul.mubr.bf16.gmra.mrb[0].mxu0 %v1422
        %v1696 = vpop.f32.mrb[0].mxu0
        %v1697 = vadd.f32 %v1307, %v1696
        %v1698 = vpop.f32.mrb[0].mxu0
        %v1699 = vpop.f32.mrb[0].mxu0
        %v1700 = vadd.f32 %v1307, %v1699
        %v1701 = vpop.f32.mrb[0].mxu0
        %1702 = vmatprep.mubr.bf16.mxu0 0
        %1703 = vmatmul.mubr.bf16.gmra.mrb[0].mxu0 %v1425
        %v1704 = vpop.f32.mrb[0].mxu0
        %v1705 = vadd.f32 %v1307, %v1704
        %v1706 = vpop.f32.mrb[0].mxu0
        %v1707 = vpop.f32.mrb[0].mxu0
        %v1708 = vadd.f32 %v1307, %v1707
        %v1709 = vpop.f32.mrb[0].mxu0
        %1710 = vmatprep.mubr.bf16.mxu0 0
        %1711 = vmatmul.mubr.bf16.gmra.mrb[0].mxu0 %v1428
        %v1712 = vpop.f32.mrb[0].mxu0
        %v1713 = vadd.f32 %v1307, %v1712
        %v1714 = vpop.f32.mrb[0].mxu0
        %v1715 = vpop.f32.mrb[0].mxu0
        %v1716 = vadd.f32 %v1307, %v1715
        %v1717 = vpop.f32.mrb[0].mxu0
        %1718 = vdwg.mxu0
        %v1719 = vmax.f32 %v1465, 0.0
        %v1720 = vmax.f32 %v1468, 0.0
        %v1721 = vmax.f32 %v1473, 0.0
        %v1722 = vmax.f32 %v1476, 0.0
        %v1723 = vmax.f32 %v1481, 0.0
        %v1724 = vmax.f32 %v1484, 0.0
        %v1725 = vmax.f32 %v1489, 0.0
        %v1726 = vmax.f32 %v1492, 0.0
        %v1727 = vmax.f32 %v1497, 0.0
        %v1728 = vmax.f32 %v1500, 0.0
        %v1729 = vmax.f32 %v1505, 0.0
        %v1730 = vmax.f32 %v1508, 0.0
        %v1731 = vmax.f32 %v1513, 0.0
        %v1732 = vmax.f32 %v1516, 0.0
        %v1733 = vmax.f32 %v1521, 0.0
        %v1734 = vmax.f32 %v1524, 0.0
        %v1735 = vmax.f32 %v1529, 0.0
        %v1736 = vmax.f32 %v1532, 0.0
        %v1737 = vmax.f32 %v1537, 0.0
        %v1738 = vmax.f32 %v1540, 0.0
        %v1739 = vmax.f32 %v1545, 0.0
        %v1740 = vmax.f32 %v1548, 0.0
        %v1741 = vmax.f32 %v1553, 0.0
        %v1742 = vmax.f32 %v1556, 0.0
        %v1743 = vmax.f32 %v1561, 0.0
        %v1744 = vmax.f32 %v1564, 0.0
        %v1745 = vmax.f32 %v1569, 0.0
        %v1746 = vmax.f32 %v1572, 0.0
        %v1747 = vmax.f32 %v1577, 0.0
        %v1748 = vmax.f32 %v1580, 0.0
        %v1749 = vmax.f32 %v1585, 0.0
        %v1750 = vmax.f32 %v1588, 0.0
        %v1751 = vmax.f32 %v1593, 0.0
        %v1752 = vmax.f32 %v1596, 0.0
        %v1753 = vmax.f32 %v1601, 0.0
        %v1754 = vmax.f32 %v1604, 0.0
        %v1755 = vmax.f32 %v1609, 0.0
        %v1756 = vmax.f32 %v1612, 0.0
        %v1757 = vmax.f32 %v1617, 0.0
        %v1758 = vmax.f32 %v1620, 0.0
        %v1759 = vmax.f32 %v1625, 0.0
        %v1760 = vmax.f32 %v1628, 0.0
        %v1761 = vmax.f32 %v1633, 0.0
        %v1762 = vmax.f32 %v1636, 0.0
        %v1763 = vmax.f32 %v1641, 0.0
        %v1764 = vmax.f32 %v1644, 0.0
        %v1765 = vmax.f32 %v1649, 0.0
        %v1766 = vmax.f32 %v1652, 0.0
        %v1767 = vmax.f32 %v1657, 0.0
        %v1768 = vmax.f32 %v1660, 0.0
        %v1769 = vmax.f32 %v1665, 0.0
        %v1770 = vmax.f32 %v1668, 0.0
        %v1771 = vmax.f32 %v1673, 0.0
        %v1772 = vmax.f32 %v1676, 0.0
        %v1773 = vmax.f32 %v1681, 0.0
        %v1774 = vmax.f32 %v1684, 0.0
        %v1775 = vmax.f32 %v1689, 0.0
        %v1776 = vmax.f32 %v1692, 0.0
        %v1777 = vmax.f32 %v1697, 0.0
        %v1778 = vmax.f32 %v1700, 0.0
        %v1779 = vmax.f32 %v1705, 0.0
        %v1780 = vmax.f32 %v1708, 0.0
        %v1781 = vmax.f32 %v1713, 0.0
        %v1782 = vmax.f32 %v1716, 0.0
        %v1783 = vpack.c.bf16 %v1720, %v1719
        %v1784 = vpack.c.bf16 %v1722, %v1721
        %v1785 = vpack.c.bf16 %v1724, %v1723
        %v1786 = vpack.c.bf16 %v1726, %v1725
        %v1787 = vpack.c.bf16 %v1728, %v1727
        %v1788 = vpack.c.bf16 %v1730, %v1729
        %v1789 = vpack.c.bf16 %v1732, %v1731
        %v1790 = vpack.c.bf16 %v1734, %v1733
        %v1791 = vpack.c.bf16 %v1736, %v1735
        %v1792 = vpack.c.bf16 %v1738, %v1737
        %v1793 = vpack.c.bf16 %v1740, %v1739
        %v1794 = vpack.c.bf16 %v1742, %v1741
        %v1795 = vpack.c.bf16 %v1744, %v1743
        %v1796 = vpack.c.bf16 %v1746, %v1745
        %v1797 = vpack.c.bf16 %v1748, %v1747
        %v1798 = vpack.c.bf16 %v1750, %v1749
        %v1799 = vpack.c.bf16 %v1752, %v1751
        %v1800 = vpack.c.bf16 %v1754, %v1753
        %v1801 = vpack.c.bf16 %v1756, %v1755
        %v1802 = vpack.c.bf16 %v1758, %v1757
        %v1803 = vpack.c.bf16 %v1760, %v1759
        %v1804 = vpack.c.bf16 %v1762, %v1761
        %v1805 = vpack.c.bf16 %v1764, %v1763
        %v1806 = vpack.c.bf16 %v1766, %v1765
        %v1807 = vpack.c.bf16 %v1768, %v1767
        %v1808 = vpack.c.bf16 %v1770, %v1769
        %v1809 = vpack.c.bf16 %v1772, %v1771
        %v1810 = vpack.c.bf16 %v1774, %v1773
        %v1811 = vpack.c.bf16 %v1776, %v1775
        %v1812 = vpack.c.bf16 %v1778, %v1777
        %v1813 = vpack.c.bf16 %v1780, %v1779
        %v1814 = vpack.c.bf16 %v1782, %v1781
        %v1815 = vld [vmem:[%s5] sm:$0xf]
        %v1816 = vld [vmem:[%s5 + $0x4] sm:$0xf]
        %v1817 = vld [vmem:[%s5 + $0x8] sm:$0xf]
        %v1818 = vld [vmem:[%s5 + $0xc] sm:$0xf]
        %v1819 = vld [vmem:[%s5 + $0x10] sm:$0xf]
        %v1820 = vld [vmem:[%s5 + $0x14] sm:$0xf]
        %v1821 = vld [vmem:[%s5 + $0x18] sm:$0xf]
        %v1822 = vld [vmem:[%s5 + $0x1c] sm:$0xf]
        %v1823 = vld [vmem:[%s6] sm:$0x1]
        %v1825 = vlaneseq
        %v1826 = vshrl.u32 %v1825, 7
        %v1827 = vsub.s32 0, %v1826
        %v1828 = vrot.slane %v1823, %v1827
        %v1838 = vunpack.c.l.b16 %v1815
        %v1839 = vunpack.c.l.b16 %v1816
        %v1840 = vunpack.c.l.b16 %v1817
        %v1841 = vunpack.c.l.b16 %v1818
        %v1842 = vunpack.c.l.b16 %v1819
        %v1843 = vunpack.c.l.b16 %v1820
        %v1844 = vunpack.c.l.b16 %v1821
        %v1845 = vunpack.c.l.b16 %v1822
        %v1846 = vpack.c.b16 %v1839, %v1838
        %v1847 = vpack.c.b16 %v1841, %v1840
        %v1848 = vpack.c.b16 %v1843, %v1842
        %v1849 = vpack.c.b16 %v1845, %v1844
        %v1855 = vsel %vm1333, %v1783, 0
        %v1858 = vsel %vm1333, %v1784, 0
        %v1861 = vsel %vm1333, %v1785, 0
        %v1864 = vsel %vm1333, %v1786, 0
        %v1867 = vsel %vm1333, %v1787, 0
        %v1870 = vsel %vm1333, %v1788, 0
        %v1873 = vsel %vm1333, %v1789, 0
        %v1876 = vsel %vm1333, %v1790, 0
        %v1879 = vsel %vm1333, %v1791, 0
        %v1882 = vsel %vm1333, %v1792, 0
        %v1885 = vsel %vm1333, %v1793, 0
        %v1888 = vsel %vm1333, %v1794, 0
        %v1891 = vsel %vm1333, %v1795, 0
        %v1894 = vsel %vm1333, %v1796, 0
        %v1897 = vsel %vm1333, %v1797, 0
        %v1900 = vsel %vm1333, %v1798, 0
        %v1903 = vsel %vm1333, %v1799, 0
        %v1906 = vsel %vm1333, %v1800, 0
        %v1909 = vsel %vm1333, %v1801, 0
        %v1912 = vsel %vm1333, %v1802, 0
        %v1915 = vsel %vm1333, %v1803, 0
        %v1918 = vsel %vm1333, %v1804, 0
        %v1921 = vsel %vm1333, %v1805, 0
        %v1924 = vsel %vm1333, %v1806, 0
        %v1927 = vsel %vm1333, %v1807, 0
        %v1930 = vsel %vm1333, %v1808, 0
        %v1933 = vsel %vm1333, %v1809, 0
        %v1936 = vsel %vm1333, %v1810, 0
        %v1939 = vsel %vm1333, %v1811, 0
        %v1942 = vsel %vm1333, %v1812, 0
        %v1945 = vsel %vm1333, %v1813, 0
        %v1948 = vsel %vm1333, %v1814, 0
        %1950 = vmatprep.subr.bf16.mxu0 0
        %1951 = vmatpush1.bf16.msra.mxu0 %v1846
        %1952 = vmatprep.subr.bf16.mxu0 0
        %1953 = vmatpush1.bf16.msra.mxu0 %v1847
        %1954 = vmatprep.subr.bf16.mxu0 0
        %1955 = vmatpush1.bf16.msra.mxu0 %v1848
        %1956 = vmatprep.subr.bf16.mxu0 0
        %1957 = vmatpush1.bf16.msra.mxu0 %v1849
        %1958 = vmatprep.subr.bf16.mxu0 0
        %1959 = vmatpush1.bf16.msra.mxu0 0
        %1960 = vmatprep.subr.bf16.mxu0 0
        %1961 = vmatpush1.bf16.msra.mxu0 0
        %1962 = vmatprep.subr.bf16.mxu0 0
        %1963 = vmatpush1.bf16.msra.mxu0 0
        %1964 = vmatprep.subr.bf16.mxu0 0
        %1965 = vmatpush1.bf16.msra.mxu0 0
        %1966 = vmatprep.subr.bf16.mxu0 0
        %1967 = vmatpush1.bf16.msra.mxu0 0
        %1968 = vmatprep.subr.bf16.mxu0 0
        %1969 = vmatpush1.bf16.msra.mxu0 0
        %1970 = vmatprep.subr.bf16.mxu0 0
        %1971 = vmatpush1.bf16.msra.mxu0 0
        %1972 = vmatprep.subr.bf16.mxu0 0
        %1973 = vmatpush1.bf16.msra.mxu0 0
        %1974 = vmatprep.subr.bf16.mxu0 0
        %1975 = vmatpush1.bf16.msra.mxu0 0
        %1976 = vmatprep.subr.bf16.mxu0 0
        %1977 = vmatpush1.bf16.msra.mxu0 0
        %1978 = vmatprep.subr.bf16.mxu0 0
        %1979 = vmatpush1.bf16.msra.mxu0 0
        %1980 = vmatprep.subr.bf16.mxu0 0
        %1981 = vmatpush1.bf16.msra.mxu0 0
        %1982 = vmatprep.mubr.bf16.mxu0 0
        %1983 = vmatmul.mubr.bf16.gmra.mrb[0].mxu0 %v1855
        %v1984 = vpop.f32.mrb[0].mxu0
        %v1985 = vadd.f32 %v1828, %v1984
        %v1986 = vpop.f32.mrb[0].mxu0
        %v1987 = vpop.f32.mrb[0].mxu0
        %v1988 = vadd.f32 %v1828, %v1987
        %v1989 = vpop.f32.mrb[0].mxu0
        %1990 = vmatprep.mubr.bf16.mxu0 0
        %1991 = vmatmul.mubr.bf16.gmra.mrb[0].mxu0 %v1858
        %v1992 = vpop.f32.mrb[0].mxu0
        %v1993 = vadd.f32 %v1828, %v1992
        %v1994 = vpop.f32.mrb[0].mxu0
        %v1995 = vpop.f32.mrb[0].mxu0
        %v1996 = vadd.f32 %v1828, %v1995
        %v1997 = vpop.f32.mrb[0].mxu0
        %1998 = vmatprep.mubr.bf16.mxu0 0
        %1999 = vmatmul.mubr.bf16.gmra.mrb[0].mxu0 %v1861
        %v2000 = vpop.f32.mrb[0].mxu0
        %v2001 = vadd.f32 %v1828, %v2000
        %v2002 = vpop.f32.mrb[0].mxu0
        %v2003 = vpop.f32.mrb[0].mxu0
        %v2004 = vadd.f32 %v1828, %v2003
        %v2005 = vpop.f32.mrb[0].mxu0
        %2006 = vmatprep.mubr.bf16.mxu0 0
        %2007 = vmatmul.mubr.bf16.gmra.mrb[0].mxu0 %v1864
        %v2008 = vpop.f32.mrb[0].mxu0
        %v2009 = vadd.f32 %v1828, %v2008
        %v2010 = vpop.f32.mrb[0].mxu0
        %v2011 = vpop.f32.mrb[0].mxu0
        %v2012 = vadd.f32 %v1828, %v2011
        %v2013 = vpop.f32.mrb[0].mxu0
        %2014 = vmatprep.mubr.bf16.mxu0 0
        %2015 = vmatmul.mubr.bf16.gmra.mrb[0].mxu0 %v1867
        %v2016 = vpop.f32.mrb[0].mxu0
        %v2017 = vadd.f32 %v1828, %v2016
        %v2018 = vpop.f32.mrb[0].mxu0
        %v2019 = vpop.f32.mrb[0].mxu0
        %v2020 = vadd.f32 %v1828, %v2019
        %v2021 = vpop.f32.mrb[0].mxu0
        %2022 = vmatprep.mubr.bf16.mxu0 0
        %2023 = vmatmul.mubr.bf16.gmra.mrb[0].mxu0 %v1870
        %v2024 = vpop.f32.mrb[0].mxu0
        %v2025 = vadd.f32 %v1828, %v2024
        %v2026 = vpop.f32.mrb[0].mxu0
        %v2027 = vpop.f32.mrb[0].mxu0
        %v2028 = vadd.f32 %v1828, %v2027
        %v2029 = vpop.f32.mrb[0].mxu0
        %2030 = vmatprep.mubr.bf16.mxu0 0
        %2031 = vmatmul.mubr.bf16.gmra.mrb[0].mxu0 %v1873
        %v2032 = vpop.f32.mrb[0].mxu0
        %v2033 = vadd.f32 %v1828, %v2032
        %v2034 = vpop.f32.mrb[0].mxu0
        %v2035 = vpop.f32.mrb[0].mxu0
        %v2036 = vadd.f32 %v1828, %v2035
        %v2037 = vpop.f32.mrb[0].mxu0
        %2038 = vmatprep.mubr.bf16.mxu0 0
        %2039 = vmatmul.mubr.bf16.gmra.mrb[0].mxu0 %v1876
        %v2040 = vpop.f32.mrb[0].mxu0
        %v2041 = vadd.f32 %v1828, %v2040
        %v2042 = vpop.f32.mrb[0].mxu0
        %v2043 = vpop.f32.mrb[0].mxu0
        %v2044 = vadd.f32 %v1828, %v2043
        %v2045 = vpop.f32.mrb[0].mxu0
        %2046 = vmatprep.mubr.bf16.mxu0 0
        %2047 = vmatmul.mubr.bf16.gmra.mrb[0].mxu0 %v1879
        %v2048 = vpop.f32.mrb[0].mxu0
        %v2049 = vadd.f32 %v1828, %v2048
        %v2050 = vpop.f32.mrb[0].mxu0
        %v2051 = vpop.f32.mrb[0].mxu0
        %v2052 = vadd.f32 %v1828, %v2051
        %v2053 = vpop.f32.mrb[0].mxu0
        %2054 = vmatprep.mubr.bf16.mxu0 0
        %2055 = vmatmul.mubr.bf16.gmra.mrb[0].mxu0 %v1882
        %v2056 = vpop.f32.mrb[0].mxu0
        %v2057 = vadd.f32 %v1828, %v2056
        %v2058 = vpop.f32.mrb[0].mxu0
        %v2059 = vpop.f32.mrb[0].mxu0
        %v2060 = vadd.f32 %v1828, %v2059
        %v2061 = vpop.f32.mrb[0].mxu0
        %2062 = vmatprep.mubr.bf16.mxu0 0
        %2063 = vmatmul.mubr.bf16.gmra.mrb[0].mxu0 %v1885
        %v2064 = vpop.f32.mrb[0].mxu0
        %v2065 = vadd.f32 %v1828, %v2064
        %v2066 = vpop.f32.mrb[0].mxu0
        %v2067 = vpop.f32.mrb[0].mxu0
        %v2068 = vadd.f32 %v1828, %v2067
        %v2069 = vpop.f32.mrb[0].mxu0
        %2070 = vmatprep.mubr.bf16.mxu0 0
        %2071 = vmatmul.mubr.bf16.gmra.mrb[0].mxu0 %v1888
        %v2072 = vpop.f32.mrb[0].mxu0
        %v2073 = vadd.f32 %v1828, %v2072
        %v2074 = vpop.f32.mrb[0].mxu0
        %v2075 = vpop.f32.mrb[0].mxu0
        %v2076 = vadd.f32 %v1828, %v2075
        %v2077 = vpop.f32.mrb[0].mxu0
        %2078 = vmatprep.mubr.bf16.mxu0 0
        %2079 = vmatmul.mubr.bf16.gmra.mrb[0].mxu0 %v1891
        %v2080 = vpop.f32.mrb[0].mxu0
        %v2081 = vadd.f32 %v1828, %v2080
        %v2082 = vpop.f32.mrb[0].mxu0
        %v2083 = vpop.f32.mrb[0].mxu0
        %v2084 = vadd.f32 %v1828, %v2083
        %v2085 = vpop.f32.mrb[0].mxu0
        %2086 = vmatprep.mubr.bf16.mxu0 0
        %2087 = vmatmul.mubr.bf16.gmra.mrb[0].mxu0 %v1894
        %v2088 = vpop.f32.mrb[0].mxu0
        %v2089 = vadd.f32 %v1828, %v2088
        %v2090 = vpop.f32.mrb[0].mxu0
        %v2091 = vpop.f32.mrb[0].mxu0
        %v2092 = vadd.f32 %v1828, %v2091
        %v2093 = vpop.f32.mrb[0].mxu0
        %2094 = vmatprep.mubr.bf16.mxu0 0
        %2095 = vmatmul.mubr.bf16.gmra.mrb[0].mxu0 %v1897
        %v2096 = vpop.f32.mrb[0].mxu0
        %v2097 = vadd.f32 %v1828, %v2096
        %v2098 = vpop.f32.mrb[0].mxu0
        %v2099 = vpop.f32.mrb[0].mxu0
        %v2100 = vadd.f32 %v1828, %v2099
        %v2101 = vpop.f32.mrb[0].mxu0
        %2102 = vmatprep.mubr.bf16.mxu0 0
        %2103 = vmatmul.mubr.bf16.gmra.mrb[0].mxu0 %v1900
        %v2104 = vpop.f32.mrb[0].mxu0
        %v2105 = vadd.f32 %v1828, %v2104
        %v2106 = vpop.f32.mrb[0].mxu0
        %v2107 = vpop.f32.mrb[0].mxu0
        %v2108 = vadd.f32 %v1828, %v2107
        %v2109 = vpop.f32.mrb[0].mxu0
        %2110 = vmatprep.mubr.bf16.mxu0 0
        %2111 = vmatmul.mubr.bf16.gmra.mrb[0].mxu0 %v1903
        %v2112 = vpop.f32.mrb[0].mxu0
        %v2113 = vadd.f32 %v1828, %v2112
        %v2114 = vpop.f32.mrb[0].mxu0
        %v2115 = vpop.f32.mrb[0].mxu0
        %v2116 = vadd.f32 %v1828, %v2115
        %v2117 = vpop.f32.mrb[0].mxu0
        %2118 = vmatprep.mubr.bf16.mxu0 0
        %2119 = vmatmul.mubr.bf16.gmra.mrb[0].mxu0 %v1906
        %v2120 = vpop.f32.mrb[0].mxu0
        %v2121 = vadd.f32 %v1828, %v2120
        %v2122 = vpop.f32.mrb[0].mxu0
        %v2123 = vpop.f32.mrb[0].mxu0
        %v2124 = vadd.f32 %v1828, %v2123
        %v2125 = vpop.f32.mrb[0].mxu0
        %2126 = vmatprep.mubr.bf16.mxu0 0
        %2127 = vmatmul.mubr.bf16.gmra.mrb[0].mxu0 %v1909
        %v2128 = vpop.f32.mrb[0].mxu0
        %v2129 = vadd.f32 %v1828, %v2128
        %v2130 = vpop.f32.mrb[0].mxu0
        %v2131 = vpop.f32.mrb[0].mxu0
        %v2132 = vadd.f32 %v1828, %v2131
        %v2133 = vpop.f32.mrb[0].mxu0
        %2134 = vmatprep.mubr.bf16.mxu0 0
        %2135 = vmatmul.mubr.bf16.gmra.mrb[0].mxu0 %v1912
        %v2136 = vpop.f32.mrb[0].mxu0
        %v2137 = vadd.f32 %v1828, %v2136
        %v2138 = vpop.f32.mrb[0].mxu0
        %v2139 = vpop.f32.mrb[0].mxu0
        %v2140 = vadd.f32 %v1828, %v2139
        %v2141 = vpop.f32.mrb[0].mxu0
        %2142 = vmatprep.mubr.bf16.mxu0 0
        %2143 = vmatmul.mubr.bf16.gmra.mrb[0].mxu0 %v1915
        %v2144 = vpop.f32.mrb[0].mxu0
        %v2145 = vadd.f32 %v1828, %v2144
        %v2146 = vpop.f32.mrb[0].mxu0
        %v2147 = vpop.f32.mrb[0].mxu0
        %v2148 = vadd.f32 %v1828, %v2147
        %v2149 = vpop.f32.mrb[0].mxu0
        %2150 = vmatprep.mubr.bf16.mxu0 0
        %2151 = vmatmul.mubr.bf16.gmra.mrb[0].mxu0 %v1918
        %v2152 = vpop.f32.mrb[0].mxu0
        %v2153 = vadd.f32 %v1828, %v2152
        %v2154 = vpop.f32.mrb[0].mxu0
        %v2155 = vpop.f32.mrb[0].mxu0
        %v2156 = vadd.f32 %v1828, %v2155
        %v2157 = vpop.f32.mrb[0].mxu0
        %2158 = vmatprep.mubr.bf16.mxu0 0
        %2159 = vmatmul.mubr.bf16.gmra.mrb[0].mxu0 %v1921
        %v2160 = vpop.f32.mrb[0].mxu0
        %v2161 = vadd.f32 %v1828, %v2160
        %v2162 = vpop.f32.mrb[0].mxu0
        %v2163 = vpop.f32.mrb[0].mxu0
        %v2164 = vadd.f32 %v1828, %v2163
        %v2165 = vpop.f32.mrb[0].mxu0
        %2166 = vmatprep.mubr.bf16.mxu0 0
        %2167 = vmatmul.mubr.bf16.gmra.mrb[0].mxu0 %v1924
        %v2168 = vpop.f32.mrb[0].mxu0
        %v2169 = vadd.f32 %v1828, %v2168
        %v2170 = vpop.f32.mrb[0].mxu0
        %v2171 = vpop.f32.mrb[0].mxu0
        %v2172 = vadd.f32 %v1828, %v2171
        %v2173 = vpop.f32.mrb[0].mxu0
        %2174 = vmatprep.mubr.bf16.mxu0 0
        %2175 = vmatmul.mubr.bf16.gmra.mrb[0].mxu0 %v1927
        %v2176 = vpop.f32.mrb[0].mxu0
        %v2177 = vadd.f32 %v1828, %v2176
        %v2178 = vpop.f32.mrb[0].mxu0
        %v2179 = vpop.f32.mrb[0].mxu0
        %v2180 = vadd.f32 %v1828, %v2179
        %v2181 = vpop.f32.mrb[0].mxu0
        %2182 = vmatprep.mubr.bf16.mxu0 0
        %2183 = vmatmul.mubr.bf16.gmra.mrb[0].mxu0 %v1930
        %v2184 = vpop.f32.mrb[0].mxu0
        %v2185 = vadd.f32 %v1828, %v2184
        %v2186 = vpop.f32.mrb[0].mxu0
        %v2187 = vpop.f32.mrb[0].mxu0
        %v2188 = vadd.f32 %v1828, %v2187
        %v2189 = vpop.f32.mrb[0].mxu0
        %2190 = vmatprep.mubr.bf16.mxu0 0
        %2191 = vmatmul.mubr.bf16.gmra.mrb[0].mxu0 %v1933
        %v2192 = vpop.f32.mrb[0].mxu0
        %v2193 = vadd.f32 %v1828, %v2192
        %v2194 = vpop.f32.mrb[0].mxu0
        %v2195 = vpop.f32.mrb[0].mxu0
        %v2196 = vadd.f32 %v1828, %v2195
        %v2197 = vpop.f32.mrb[0].mxu0
        %2198 = vmatprep.mubr.bf16.mxu0 0
        %2199 = vmatmul.mubr.bf16.gmra.mrb[0].mxu0 %v1936
        %v2200 = vpop.f32.mrb[0].mxu0
        %v2201 = vadd.f32 %v1828, %v2200
        %v2202 = vpop.f32.mrb[0].mxu0
        %v2203 = vpop.f32.mrb[0].mxu0
        %v2204 = vadd.f32 %v1828, %v2203
        %v2205 = vpop.f32.mrb[0].mxu0
        %2206 = vmatprep.mubr.bf16.mxu0 0
        %2207 = vmatmul.mubr.bf16.gmra.mrb[0].mxu0 %v1939
        %v2208 = vpop.f32.mrb[0].mxu0
        %v2209 = vadd.f32 %v1828, %v2208
        %v2210 = vpop.f32.mrb[0].mxu0
        %v2211 = vpop.f32.mrb[0].mxu0
        %v2212 = vadd.f32 %v1828, %v2211
        %v2213 = vpop.f32.mrb[0].mxu0
        %2214 = vmatprep.mubr.bf16.mxu0 0
        %2215 = vmatmul.mubr.bf16.gmra.mrb[0].mxu0 %v1942
        %v2216 = vpop.f32.mrb[0].mxu0
        %v2217 = vadd.f32 %v1828, %v2216
        %v2218 = vpop.f32.mrb[0].mxu0
        %v2219 = vpop.f32.mrb[0].mxu0
        %v2220 = vadd.f32 %v1828, %v2219
        %v2221 = vpop.f32.mrb[0].mxu0
        %2222 = vmatprep.mubr.bf16.mxu0 0
        %2223 = vmatmul.mubr.bf16.gmra.mrb[0].mxu0 %v1945
        %v2224 = vpop.f32.mrb[0].mxu0
        %v2225 = vadd.f32 %v1828, %v2224
        %v2226 = vpop.f32.mrb[0].mxu0
        %v2227 = vpop.f32.mrb[0].mxu0
        %v2228 = vadd.f32 %v1828, %v2227
        %v2229 = vpop.f32.mrb[0].mxu0
        %2230 = vmatprep.mubr.bf16.mxu0 0
        %2231 = vmatmul.mubr.bf16.gmra.mrb[0].mxu0 %v1948
        %v2232 = vpop.f32.mrb[0].mxu0
        %v2233 = vadd.f32 %v1828, %v2232
        %v2234 = vpop.f32.mrb[0].mxu0
        %v2235 = vpop.f32.mrb[0].mxu0
        %v2236 = vadd.f32 %v1828, %v2235
        %v2237 = vpop.f32.mrb[0].mxu0
        %2238 = vdwg.mxu0
        %v2239 = vmax.f32 %v1985, %v2001
        %v2240 = vmax.f32 %v2239, %v2017
        %v2241 = vmax.f32 %v2240, %v2033
        %v2242 = vmax.f32 %v2241, %v2049
        %v2243 = vmax.f32 %v2242, %v2065
        %v2244 = vmax.f32 %v2243, %v2081
        %v2245 = vmax.f32 %v2244, %v2097
        %v2246 = vmax.f32 %v2245, %v2113
        %v2247 = vmax.f32 %v2246, %v2129
        %v2248 = vmax.f32 %v2247, %v2145
        %v2249 = vmax.f32 %v2248, %v2161
        %v2250 = vmax.f32 %v2249, %v2177
        %v2251 = vmax.f32 %v2250, %v2193
        %v2252 = vmax.f32 %v2251, %v2209
        %v2253 = vmax.f32 %v2252, %v2225
        %v2254 = vmax.f32 %v1988, %v2004
        %v2255 = vmax.f32 %v2254, %v2020
        %v2256 = vmax.f32 %v2255, %v2036
        %v2257 = vmax.f32 %v2256, %v2052
        %v2258 = vmax.f32 %v2257, %v2068
        %v2259 = vmax.f32 %v2258, %v2084
        %v2260 = vmax.f32 %v2259, %v2100
        %v2261 = vmax.f32 %v2260, %v2116
        %v2262 = vmax.f32 %v2261, %v2132
        %v2263 = vmax.f32 %v2262, %v2148
        %v2264 = vmax.f32 %v2263, %v2164
        %v2265 = vmax.f32 %v2264, %v2180
        %v2266 = vmax.f32 %v2265, %v2196
        %v2267 = vmax.f32 %v2266, %v2212
        %v2268 = vmax.f32 %v2267, %v2228
        %v2269 = vmax.f32 %v1993, %v2009
        %v2270 = vmax.f32 %v2269, %v2025
        %v2271 = vmax.f32 %v2270, %v2041
        %v2272 = vmax.f32 %v2271, %v2057
        %v2273 = vmax.f32 %v2272, %v2073
        %v2274 = vmax.f32 %v2273, %v2089
        %v2275 = vmax.f32 %v2274, %v2105
        %v2276 = vmax.f32 %v2275, %v2121
        %v2277 = vmax.f32 %v2276, %v2137
        %v2278 = vmax.f32 %v2277, %v2153
        %v2279 = vmax.f32 %v2278, %v2169
        %v2280 = vmax.f32 %v2279, %v2185
        %v2281 = vmax.f32 %v2280, %v2201
        %v2282 = vmax.f32 %v2281, %v2217
        %v2283 = vmax.f32 %v2282, %v2233
        %v2284 = vmax.f32 %v1996, %v2012
        %v2285 = vmax.f32 %v2284, %v2028
        %v2286 = vmax.f32 %v2285, %v2044
        %v2287 = vmax.f32 %v2286, %v2060
        %v2288 = vmax.f32 %v2287, %v2076
        %v2289 = vmax.f32 %v2288, %v2092
        %v2290 = vmax.f32 %v2289, %v2108
        %v2291 = vmax.f32 %v2290, %v2124
        %v2292 = vmax.f32 %v2291, %v2140
        %v2293 = vmax.f32 %v2292, %v2156
        %v2294 = vmax.f32 %v2293, %v2172
        %v2295 = vmax.f32 %v2294, %v2188
        %v2296 = vmax.f32 %v2295, %v2204
        %v2297 = vmax.f32 %v2296, %v2220
        %v2298 = vmax.f32 %v2297, %v2236
        %v2299 = vpack.c.bf16 %v2268, %v2253
        %v2300 = vpack.c.bf16 %v2298, %v2283
        %v2303 = vunpack.c.l.b16 %v2299
        %v2304 = vunpack.c.h.b16 %v2299
        %v2305 = vunpack.c.l.b16 %v2300
        %v2306 = vunpack.c.h.b16 %v2300
        %v2307 = vpack.c.b16 %v2303, %v2303
        %v2308 = vpack.c.b16 %v2304, %v2304
        %v2309 = vpack.c.b16 %v2305, %v2305
        %v2310 = vpack.c.b16 %v2306, %v2306
        %2315 = vst [vmem:[%s573] sm:$0xf] %v2307
        %2316 = vst [vmem:[%s573 + $0x4] sm:$0xf] %v2308
        %2317 = vst [vmem:[%s573 + $0x8] sm:$0xf] %v2309
        %2318 = vst [vmem:[%s573 + $0xc] sm:$0xf] %v2310
        %s2319 = smul.u32 4, %s18
        %p2320 = scmp.lt.s32.totalorder %s2319, 7
        %s2321 = scalar_select %p2320, %s2319, 7
        %s2322 = smul.addr %s2321, 4
        %s2323 = scalar_lea.vmem %s7, %s2322
        // Predicated region
        $region90: #{pointnetpp_forward.4} parent=84 // pred_check
          %p2324 = pneg %p188
        $region91: #{pointnetpp_forward.4} parent=84 // pred_check_branch
          %2326 = sbr.rel (%p2324) target = $region93
        $region92: #{pointnetpp_forward.4} parent=84 // pred_region
          %s2327 = smul.u32 4, %s18
        $region93: #{pointnetpp_forward.4} parent=84 // pred_fallthru
          _
      $region85: #{pointnetpp_forward.4} parent=5 // pred_fallthru
        _
      %p2328 = scmp.le.s32.totalorder 2, %s13
      // Predicated region
      $region94: #{pointnetpp_forward.4} parent=5 // pred_check
        %p2329 = pneg %p2328
      $region95: #{pointnetpp_forward.4} parent=5 // pred_check_branch
        %2331 = sbr.rel (%p2329) target = $region97
      $region96: #{pointnetpp_forward.4} parent=5 // pred_region
        %s2332 = ssub.s32 %s13, 2
        // Predicated region
        $region98: #{pointnetpp_forward.4} parent=96 // pred_check
          %p2333 = pneg %p194
        $region99: #{pointnetpp_forward.4} parent=96 // pred_check_branch
          %2335 = sbr.rel (%p2333) target = $region101
        $region100: #{pointnetpp_forward.4} parent=96 // pred_region
          %s2336 = smul.u32 4, %s19
          %p2337 = scmp.lt.s32.totalorder %s2336, 7
          %s2338 = scalar_select %p2337, %s2336, 7
          %s2339 = smul.addr %s2338, 4
          %s2340 = scalar_lea.vmem %s7, %s2339
        $region101: #{pointnetpp_forward.4} parent=96 // pred_fallthru
          _
      $region97: #{pointnetpp_forward.4} parent=5 // pred_fallthru
        _
    $region6: #{pointnetpp_forward.4} parent=1 // loop_footer
      %s17 = sadd.s32 1, %s13
    $region7: #{pointnetpp_forward.4} parent=1 // loop_footer_branch
      %12 = sbr.rel target = $region3
    $region8: #{pointnetpp_forward.4} parent=1 // loop_exit
      _

// kernel: pointnetpp_forward.5
$region0: #{pointnetpp_forward.5}
  #allocation0 [shape = 'u32[]', space=smem, size = 0x4, offset = 0x4, fixed_abs, tag = 'smem constant byte address 0x4 - core index']
  #allocation1 [shape = 'u32[144,128]{1,0:T(1,128)}', space=vmem, size = 0x12000, scoped, tag = 'internal scratch']
  %s0 = inlined_call_operand.vmem [shape: bf16[16,16,128], index: 0, kind: input, shape index: {}]
  %s1 = inlined_call_operand.vmem [shape: bf16[16,16,8], index: 1, kind: input, shape index: {}]
  %s2 = inlined_call_operand.vmem [shape: bf16[128,128], index: 2, kind: input, shape index: {}]
  %s3 = inlined_call_operand.vmem [shape: bf16[8,128], index: 3, kind: input, shape index: {}]
  %s4 = inlined_call_operand.vmem [shape: f32[1,128], index: 4, kind: input, shape index: {}]
  %s5 = inlined_call_operand.vmem [shape: bf16[128,128], index: 5, kind: input, shape index: {}]
  %s6 = inlined_call_operand.vmem [shape: f32[1,128], index: 6, kind: input, shape index: {}]
  %s7 = inlined_call_operand.vmem [shape: bf16[128,256], index: 7, kind: input, shape index: {}]
  %s8 = inlined_call_operand.vmem [shape: f32[1,256], index: 8, kind: input, shape index: {}]
  %s9 = inlined_call_operand.vmem [shape: bf16[16,256], index: 9, kind: output, shape index: {}]
  %s10 = sld [smem:[#allocation0]]
  $region46: #{pointnetpp_forward.5} parent=0
    _
  %s12 = ssub.s32 1, %s10
  %s13 = scalar_select 0, %s12, %s10
  // Predicated region
  $region2: #{pointnetpp_forward.5} parent=0 // pred_check
    _
  $region3: #{pointnetpp_forward.5} parent=0 // pred_check_branch
    %15 = sbr.rel (0) target = $region5
  $region4: #{pointnetpp_forward.5} parent=0 // pred_region
    _
  $region5: #{pointnetpp_forward.5} parent=0 // pred_fallthru
    _
  // Predicated region
  $region6: #{pointnetpp_forward.5} parent=0 // pred_check
    _
  $region7: #{pointnetpp_forward.5} parent=0 // pred_check_branch
    %17 = sbr.rel (0) target = $region9
  $region8: #{pointnetpp_forward.5} parent=0 // pred_region
    _
  $region9: #{pointnetpp_forward.5} parent=0 // pred_fallthru
    _
  // Predicated region
  $region10: #{pointnetpp_forward.5} parent=0 // pred_check
    _
  $region11: #{pointnetpp_forward.5} parent=0 // pred_check_branch
    %19 = sbr.rel (0) target = $region13
  $region12: #{pointnetpp_forward.5} parent=0 // pred_region
    _
  $region13: #{pointnetpp_forward.5} parent=0 // pred_fallthru
    _
  // Predicated region
  $region14: #{pointnetpp_forward.5} parent=0 // pred_check
    _
  $region15: #{pointnetpp_forward.5} parent=0 // pred_check_branch
    %21 = sbr.rel (0) target = $region17
  $region16: #{pointnetpp_forward.5} parent=0 // pred_region
    _
  $region17: #{pointnetpp_forward.5} parent=0 // pred_fallthru
    _
  // Predicated region
  $region18: #{pointnetpp_forward.5} parent=0 // pred_check
    _
  $region19: #{pointnetpp_forward.5} parent=0 // pred_check_branch
    %23 = sbr.rel (0) target = $region21
  $region20: #{pointnetpp_forward.5} parent=0 // pred_region
    _
  $region21: #{pointnetpp_forward.5} parent=0 // pred_fallthru
    _
  // Predicated region
  $region22: #{pointnetpp_forward.5} parent=0 // pred_check
    _
  $region23: #{pointnetpp_forward.5} parent=0 // pred_check_branch
    %25 = sbr.rel (0) target = $region25
  $region24: #{pointnetpp_forward.5} parent=0 // pred_region
    _
  $region25: #{pointnetpp_forward.5} parent=0 // pred_fallthru
    _
  // Predicated region
  $region26: #{pointnetpp_forward.5} parent=0 // pred_check
    _
  $region27: #{pointnetpp_forward.5} parent=0 // pred_check_branch
    %27 = sbr.rel (0) target = $region29
  $region28: #{pointnetpp_forward.5} parent=0 // pred_region
    _
  $region29: #{pointnetpp_forward.5} parent=0 // pred_fallthru
    _
  // Predicated region
  $region30: #{pointnetpp_forward.5} parent=0 // pred_check
    _
  $region31: #{pointnetpp_forward.5} parent=0 // pred_check_branch
    %29 = sbr.rel (0) target = $region33
  $region32: #{pointnetpp_forward.5} parent=0 // pred_region
    _
  $region33: #{pointnetpp_forward.5} parent=0 // pred_fallthru
    _
  // Predicated region
  $region34: #{pointnetpp_forward.5} parent=0 // pred_check
    _
  $region35: #{pointnetpp_forward.5} parent=0 // pred_check_branch
    %31 = sbr.rel (0) target = $region37
  $region36: #{pointnetpp_forward.5} parent=0 // pred_region
    _
  $region37: #{pointnetpp_forward.5} parent=0 // pred_fallthru
    _
  %v33 = vld [vmem:[%s1] sm:$0xf]
  %v34 = vld [vmem:[%s1 + $0x4] sm:$0xf]
  %v35 = vld [vmem:[%s1 + $0x8] sm:$0xf]
  %v36 = vld [vmem:[%s1 + $0xc] sm:$0xf]
  %v37 = vld [vmem:[%s1 + $0x10] sm:$0xf]
  %v38 = vld [vmem:[%s1 + $0x14] sm:$0xf]
  %v39 = vld [vmem:[%s1 + $0x18] sm:$0xf]
  %v40 = vld [vmem:[%s1 + $0x1c] sm:$0xf]
  %v41 = vld [vmem:[%s1 + $0x20] sm:$0xf]
  %v42 = vld [vmem:[%s1 + $0x24] sm:$0xf]
  %v43 = vld [vmem:[%s1 + $0x28] sm:$0xf]
  %v44 = vld [vmem:[%s1 + $0x2c] sm:$0xf]
  %v45 = vld [vmem:[%s1 + $0x30] sm:$0xf]
  %v46 = vld [vmem:[%s1 + $0x34] sm:$0xf]
  %v47 = vld [vmem:[%s1 + $0x38] sm:$0xf]
  %v48 = vld [vmem:[%s1 + $0x3c] sm:$0xf]
  %v49 = vld [vmem:[%s1 + $0x40] sm:$0xf]
  %v50 = vld [vmem:[%s1 + $0x44] sm:$0xf]
  %v51 = vld [vmem:[%s1 + $0x48] sm:$0xf]
  %v52 = vld [vmem:[%s1 + $0x4c] sm:$0xf]
  %v53 = vld [vmem:[%s1 + $0x50] sm:$0xf]
  %v54 = vld [vmem:[%s1 + $0x54] sm:$0xf]
  %v55 = vld [vmem:[%s1 + $0x58] sm:$0xf]
  %v56 = vld [vmem:[%s1 + $0x5c] sm:$0xf]
  %v57 = vld [vmem:[%s1 + $0x60] sm:$0xf]
  %v58 = vld [vmem:[%s1 + $0x64] sm:$0xf]
  %v59 = vld [vmem:[%s1 + $0x68] sm:$0xf]
  %v60 = vld [vmem:[%s1 + $0x6c] sm:$0xf]
  %v61 = vld [vmem:[%s1 + $0x70] sm:$0xf]
  %v62 = vld [vmem:[%s1 + $0x74] sm:$0xf]
  %v63 = vld [vmem:[%s1 + $0x78] sm:$0xf]
  %v64 = vld [vmem:[%s1 + $0x7c] sm:$0xf]
  %v65 = vld [vmem:[%s0] sm:$0xf]
  %v66 = vld [vmem:[%s0 + $0x4] sm:$0xf]
  %v67 = vld [vmem:[%s0 + $0x8] sm:$0xf]
  %v68 = vld [vmem:[%s0 + $0xc] sm:$0xf]
  %v69 = vld [vmem:[%s0 + $0x10] sm:$0xf]
  %v70 = vld [vmem:[%s0 + $0x14] sm:$0xf]
  %v71 = vld [vmem:[%s0 + $0x18] sm:$0xf]
  %v72 = vld [vmem:[%s0 + $0x1c] sm:$0xf]
  %v73 = vld [vmem:[%s0 + $0x20] sm:$0xf]
  %v74 = vld [vmem:[%s0 + $0x24] sm:$0xf]
  %v75 = vld [vmem:[%s0 + $0x28] sm:$0xf]
  %v76 = vld [vmem:[%s0 + $0x2c] sm:$0xf]
  %v77 = vld [vmem:[%s0 + $0x30] sm:$0xf]
  %v78 = vld [vmem:[%s0 + $0x34] sm:$0xf]
  %v79 = vld [vmem:[%s0 + $0x38] sm:$0xf]
  %v80 = vld [vmem:[%s0 + $0x3c] sm:$0xf]
  %v81 = vld [vmem:[%s0 + $0x40] sm:$0xf]
  %v82 = vld [vmem:[%s0 + $0x44] sm:$0xf]
  %v83 = vld [vmem:[%s0 + $0x48] sm:$0xf]
  %v84 = vld [vmem:[%s0 + $0x4c] sm:$0xf]
  %v85 = vld [vmem:[%s0 + $0x50] sm:$0xf]
  %v86 = vld [vmem:[%s0 + $0x54] sm:$0xf]
  %v87 = vld [vmem:[%s0 + $0x58] sm:$0xf]
  %v88 = vld [vmem:[%s0 + $0x5c] sm:$0xf]
  %v89 = vld [vmem:[%s0 + $0x60] sm:$0xf]
  %v90 = vld [vmem:[%s0 + $0x64] sm:$0xf]
  %v91 = vld [vmem:[%s0 + $0x68] sm:$0xf]
  %v92 = vld [vmem:[%s0 + $0x6c] sm:$0xf]
  %v93 = vld [vmem:[%s0 + $0x70] sm:$0xf]
  %v94 = vld [vmem:[%s0 + $0x74] sm:$0xf]
  %v95 = vld [vmem:[%s0 + $0x78] sm:$0xf]
  %v96 = vld [vmem:[%s0 + $0x7c] sm:$0xf]
  %v97 = vld [vmem:[%s3] sm:$0xf]
  %v98 = vld [vmem:[%s2] sm:$0xf]
  %v99 = vld [vmem:[%s2 + $0x4] sm:$0xf]
  %v100 = vld [vmem:[%s2 + $0x8] sm:$0xf]
  %v101 = vld [vmem:[%s2 + $0xc] sm:$0xf]
  %v102 = vld [vmem:[%s2 + $0x10] sm:$0xf]
  %v103 = vld [vmem:[%s2 + $0x14] sm:$0xf]
  %v104 = vld [vmem:[%s2 + $0x18] sm:$0xf]
  %v105 = vld [vmem:[%s2 + $0x1c] sm:$0xf]
  %v106 = vld [vmem:[%s2 + $0x20] sm:$0xf]
  %v107 = vld [vmem:[%s2 + $0x24] sm:$0xf]
  %v108 = vld [vmem:[%s2 + $0x28] sm:$0xf]
  %v109 = vld [vmem:[%s2 + $0x2c] sm:$0xf]
  %v110 = vld [vmem:[%s2 + $0x30] sm:$0xf]
  %v111 = vld [vmem:[%s2 + $0x34] sm:$0xf]
  %v112 = vld [vmem:[%s2 + $0x38] sm:$0xf]
  %v113 = vld [vmem:[%s2 + $0x3c] sm:$0xf]
  %v146 = vunpack.c.l.b16 %v65
  %v147 = vunpack.c.l.b16 %v66
  %v148 = vunpack.c.l.b16 %v67
  %v149 = vunpack.c.l.b16 %v68
  %v150 = vunpack.c.l.b16 %v69
  %v151 = vunpack.c.l.b16 %v70
  %v152 = vunpack.c.l.b16 %v71
  %v153 = vunpack.c.l.b16 %v72
  %v154 = vunpack.c.l.b16 %v73
  %v155 = vunpack.c.l.b16 %v74
  %v156 = vunpack.c.l.b16 %v75
  %v157 = vunpack.c.l.b16 %v76
  %v158 = vunpack.c.l.b16 %v77
  %v159 = vunpack.c.l.b16 %v78
  %v160 = vunpack.c.l.b16 %v79
  %v161 = vunpack.c.l.b16 %v80
  %v162 = vunpack.c.l.b16 %v81
  %v163 = vunpack.c.l.b16 %v82
  %v164 = vunpack.c.l.b16 %v83
  %v165 = vunpack.c.l.b16 %v84
  %v166 = vunpack.c.l.b16 %v85
  %v167 = vunpack.c.l.b16 %v86
  %v168 = vunpack.c.l.b16 %v87
  %v169 = vunpack.c.l.b16 %v88
  %v170 = vunpack.c.l.b16 %v89
  %v171 = vunpack.c.l.b16 %v90
  %v172 = vunpack.c.l.b16 %v91
  %v173 = vunpack.c.l.b16 %v92
  %v174 = vunpack.c.l.b16 %v93
  %v175 = vunpack.c.l.b16 %v94
  %v176 = vunpack.c.l.b16 %v95
  %v177 = vunpack.c.l.b16 %v96
  %v178 = vpack.c.b16 %v147, %v146
  %v179 = vpack.c.b16 %v149, %v148
  %v180 = vpack.c.b16 %v151, %v150
  %v181 = vpack.c.b16 %v153, %v152
  %v182 = vpack.c.b16 %v155, %v154
  %v183 = vpack.c.b16 %v157, %v156
  %v184 = vpack.c.b16 %v159, %v158
  %v185 = vpack.c.b16 %v161, %v160
  %v186 = vpack.c.b16 %v163, %v162
  %v187 = vpack.c.b16 %v165, %v164
  %v188 = vpack.c.b16 %v167, %v166
  %v189 = vpack.c.b16 %v169, %v168
  %v190 = vpack.c.b16 %v171, %v170
  %v191 = vpack.c.b16 %v173, %v172
  %v192 = vpack.c.b16 %v175, %v174
  %v193 = vpack.c.b16 %v177, %v176
  %v226 = vunpack.c.l.b16 %v98
  %v227 = vunpack.c.l.b16 %v99
  %v228 = vunpack.c.l.b16 %v100
  %v229 = vunpack.c.l.b16 %v101
  %v230 = vunpack.c.l.b16 %v102
  %v231 = vunpack.c.l.b16 %v103
  %v232 = vunpack.c.l.b16 %v104
  %v233 = vunpack.c.l.b16 %v105
  %v234 = vunpack.c.l.b16 %v106
  %v235 = vunpack.c.l.b16 %v107
  %v236 = vunpack.c.l.b16 %v108
  %v237 = vunpack.c.l.b16 %v109
  %v238 = vunpack.c.l.b16 %v110
  %v239 = vunpack.c.l.b16 %v111
  %v240 = vunpack.c.l.b16 %v112
  %v241 = vunpack.c.l.b16 %v113
  %v242 = vpack.c.b16 %v227, %v226
  %v243 = vpack.c.b16 %v229, %v228
  %v244 = vpack.c.b16 %v231, %v230
  %v245 = vpack.c.b16 %v233, %v232
  %v246 = vpack.c.b16 %v235, %v234
  %v247 = vpack.c.b16 %v237, %v236
  %v248 = vpack.c.b16 %v239, %v238
  %v249 = vpack.c.b16 %v241, %v240
  %258 = vmatprep.subr.bf16.mxu0 0
  %259 = vmatpush1.bf16.msra.mxu0 %v242
  %260 = vmatprep.subr.bf16.mxu0 0
  %261 = vmatpush1.bf16.msra.mxu0 %v243
  %262 = vmatprep.subr.bf16.mxu0 0
  %263 = vmatpush1.bf16.msra.mxu0 %v244
  %264 = vmatprep.subr.bf16.mxu0 0
  %265 = vmatpush1.bf16.msra.mxu0 %v245
  %266 = vmatprep.subr.bf16.mxu0 0
  %267 = vmatpush1.bf16.msra.mxu0 %v246
  %268 = vmatprep.subr.bf16.mxu0 0
  %269 = vmatpush1.bf16.msra.mxu0 %v247
  %270 = vmatprep.subr.bf16.mxu0 0
  %271 = vmatpush1.bf16.msra.mxu0 %v248
  %272 = vmatprep.subr.bf16.mxu0 0
  %273 = vmatpush1.bf16.msra.mxu0 %v249
  %274 = vmatprep.subr.bf16.mxu0 0
  %275 = vmatpush1.bf16.msra.mxu0 0
  %276 = vmatprep.subr.bf16.mxu0 0
  %277 = vmatpush1.bf16.msra.mxu0 0
  %278 = vmatprep.subr.bf16.mxu0 0
  %279 = vmatpush1.bf16.msra.mxu0 0
  %280 = vmatprep.subr.bf16.mxu0 0
  %281 = vmatpush1.bf16.msra.mxu0 0
  %282 = vmatprep.subr.bf16.mxu0 0
  %283 = vmatpush1.bf16.msra.mxu0 0
  %284 = vmatprep.subr.bf16.mxu0 0
  %285 = vmatpush1.bf16.msra.mxu0 0
  %286 = vmatprep.subr.bf16.mxu0 0
  %287 = vmatpush1.bf16.msra.mxu0 0
  %288 = vmatprep.subr.bf16.mxu0 0
  %289 = vmatpush1.bf16.msra.mxu0 0
  %290 = vmatprep.mubr.bf16.mxu0 0
  %291 = vmatmul.mubr.bf16.gmra.mrb[0].mxu0 %v178
  %v292 = vpop.f32.mrb[0].mxu0
  %v293 = vadd.f32 0.0, %v292
  %v294 = vpop.f32.mrb[0].mxu0
  %v295 = vpop.f32.mrb[0].mxu0
  %v296 = vadd.f32 0.0, %v295
  %v297 = vpop.f32.mrb[0].mxu0
  %298 = vmatprep.mubr.bf16.mxu0 0
  %299 = vmatmul.mubr.bf16.gmra.mrb[0].mxu0 %v179
  %v300 = vpop.f32.mrb[0].mxu0
  %v301 = vadd.f32 0.0, %v300
  %v302 = vpop.f32.mrb[0].mxu0
  %v303 = vpop.f32.mrb[0].mxu0
  %v304 = vadd.f32 0.0, %v303
  %v305 = vpop.f32.mrb[0].mxu0
  %306 = vmatprep.mubr.bf16.mxu0 0
  %307 = vmatmul.mubr.bf16.gmra.mrb[0].mxu0 %v180
  %v308 = vpop.f32.mrb[0].mxu0
  %v309 = vadd.f32 0.0, %v308
  %v310 = vpop.f32.mrb[0].mxu0
  %v311 = vpop.f32.mrb[0].mxu0
  %v312 = vadd.f32 0.0, %v311
  %v313 = vpop.f32.mrb[0].mxu0
  %314 = vmatprep.mubr.bf16.mxu0 0
  %315 = vmatmul.mubr.bf16.gmra.mrb[0].mxu0 %v181
  %v316 = vpop.f32.mrb[0].mxu0
  %v317 = vadd.f32 0.0, %v316
  %v318 = vpop.f32.mrb[0].mxu0
  %v319 = vpop.f32.mrb[0].mxu0
  %v320 = vadd.f32 0.0, %v319
  %v321 = vpop.f32.mrb[0].mxu0
  %322 = vmatprep.mubr.bf16.mxu0 0
  %323 = vmatmul.mubr.bf16.gmra.mrb[0].mxu0 %v182
  %v324 = vpop.f32.mrb[0].mxu0
  %v325 = vadd.f32 0.0, %v324
  %v326 = vpop.f32.mrb[0].mxu0
  %v327 = vpop.f32.mrb[0].mxu0
  %v328 = vadd.f32 0.0, %v327
  %v329 = vpop.f32.mrb[0].mxu0
  %330 = vmatprep.mubr.bf16.mxu0 0
  %331 = vmatmul.mubr.bf16.gmra.mrb[0].mxu0 %v183
  %v332 = vpop.f32.mrb[0].mxu0
  %v333 = vadd.f32 0.0, %v332
  %v334 = vpop.f32.mrb[0].mxu0
  %v335 = vpop.f32.mrb[0].mxu0
  %v336 = vadd.f32 0.0, %v335
  %v337 = vpop.f32.mrb[0].mxu0
  %338 = vmatprep.mubr.bf16.mxu0 0
  %339 = vmatmul.mubr.bf16.gmra.mrb[0].mxu0 %v184
  %v340 = vpop.f32.mrb[0].mxu0
  %v341 = vadd.f32 0.0, %v340
  %v342 = vpop.f32.mrb[0].mxu0
  %v343 = vpop.f32.mrb[0].mxu0
  %v344 = vadd.f32 0.0, %v343
  %v345 = vpop.f32.mrb[0].mxu0
  %346 = vmatprep.mubr.bf16.mxu0 0
  %347 = vmatmul.mubr.bf16.gmra.mrb[0].mxu0 %v185
  %v348 = vpop.f32.mrb[0].mxu0
  %v349 = vadd.f32 0.0, %v348
  %v350 = vpop.f32.mrb[0].mxu0
  %v351 = vpop.f32.mrb[0].mxu0
  %v352 = vadd.f32 0.0, %v351
  %v353 = vpop.f32.mrb[0].mxu0
  %354 = vmatprep.mubr.bf16.mxu0 0
  %355 = vmatmul.mubr.bf16.gmra.mrb[0].mxu0 %v186
  %v356 = vpop.f32.mrb[0].mxu0
  %v357 = vadd.f32 0.0, %v356
  %v358 = vpop.f32.mrb[0].mxu0
  %v359 = vpop.f32.mrb[0].mxu0
  %v360 = vadd.f32 0.0, %v359
  %v361 = vpop.f32.mrb[0].mxu0
  %362 = vmatprep.mubr.bf16.mxu0 0
  %363 = vmatmul.mubr.bf16.gmra.mrb[0].mxu0 %v187
  %v364 = vpop.f32.mrb[0].mxu0
  %v365 = vadd.f32 0.0, %v364
  %v366 = vpop.f32.mrb[0].mxu0
  %v367 = vpop.f32.mrb[0].mxu0
  %v368 = vadd.f32 0.0, %v367
  %v369 = vpop.f32.mrb[0].mxu0
  %370 = vmatprep.mubr.bf16.mxu0 0
  %371 = vmatmul.mubr.bf16.gmra.mrb[0].mxu0 %v188
  %v372 = vpop.f32.mrb[0].mxu0
  %v373 = vadd.f32 0.0, %v372
  %v374 = vpop.f32.mrb[0].mxu0
  %v375 = vpop.f32.mrb[0].mxu0
  %v376 = vadd.f32 0.0, %v375
  %v377 = vpop.f32.mrb[0].mxu0
  %378 = vmatprep.mubr.bf16.mxu0 0
  %379 = vmatmul.mubr.bf16.gmra.mrb[0].mxu0 %v189
  %v380 = vpop.f32.mrb[0].mxu0
  %v381 = vadd.f32 0.0, %v380
  %v382 = vpop.f32.mrb[0].mxu0
  %v383 = vpop.f32.mrb[0].mxu0
  %v384 = vadd.f32 0.0, %v383
  %v385 = vpop.f32.mrb[0].mxu0
  %386 = vmatprep.mubr.bf16.mxu0 0
  %387 = vmatmul.mubr.bf16.gmra.mrb[0].mxu0 %v190
  %v388 = vpop.f32.mrb[0].mxu0
  %v389 = vadd.f32 0.0, %v388
  %v390 = vpop.f32.mrb[0].mxu0
  %v391 = vpop.f32.mrb[0].mxu0
  %v392 = vadd.f32 0.0, %v391
  %v393 = vpop.f32.mrb[0].mxu0
  %394 = vmatprep.mubr.bf16.mxu0 0
  %395 = vmatmul.mubr.bf16.gmra.mrb[0].mxu0 %v191
  %v396 = vpop.f32.mrb[0].mxu0
  %v397 = vadd.f32 0.0, %v396
  %v398 = vpop.f32.mrb[0].mxu0
  %v399 = vpop.f32.mrb[0].mxu0
  %v400 = vadd.f32 0.0, %v399
  %v401 = vpop.f32.mrb[0].mxu0
  %402 = vmatprep.mubr.bf16.mxu0 0
  %403 = vmatmul.mubr.bf16.gmra.mrb[0].mxu0 %v192
  %v404 = vpop.f32.mrb[0].mxu0
  %v405 = vadd.f32 0.0, %v404
  %v406 = vpop.f32.mrb[0].mxu0
  %v407 = vpop.f32.mrb[0].mxu0
  %v408 = vadd.f32 0.0, %v407
  %v409 = vpop.f32.mrb[0].mxu0
  %410 = vmatprep.mubr.bf16.mxu0 0
  %411 = vmatmul.mubr.bf16.gmra.mrb[0].mxu0 %v193
  %v412 = vpop.f32.mrb[0].mxu0
  %v413 = vadd.f32 0.0, %v412
  %v414 = vpop.f32.mrb[0].mxu0
  %v415 = vpop.f32.mrb[0].mxu0
  %v416 = vadd.f32 0.0, %v415
  %v417 = vpop.f32.mrb[0].mxu0
  %418 = vdwg.mxu0
  %v451 = vunpack.c.l.b16 %v33
  %v452 = vunpack.c.l.b16 %v34
  %v453 = vunpack.c.l.b16 %v35
  %v454 = vunpack.c.l.b16 %v36
  %v455 = vunpack.c.l.b16 %v37
  %v456 = vunpack.c.l.b16 %v38
  %v457 = vunpack.c.l.b16 %v39
  %v458 = vunpack.c.l.b16 %v40
  %v459 = vunpack.c.l.b16 %v41
  %v460 = vunpack.c.l.b16 %v42
  %v461 = vunpack.c.l.b16 %v43
  %v462 = vunpack.c.l.b16 %v44
  %v463 = vunpack.c.l.b16 %v45
  %v464 = vunpack.c.l.b16 %v46
  %v465 = vunpack.c.l.b16 %v47
  %v466 = vunpack.c.l.b16 %v48
  %v467 = vunpack.c.l.b16 %v49
  %v468 = vunpack.c.l.b16 %v50
  %v469 = vunpack.c.l.b16 %v51
  %v470 = vunpack.c.l.b16 %v52
  %v471 = vunpack.c.l.b16 %v53
  %v472 = vunpack.c.l.b16 %v54
  %v473 = vunpack.c.l.b16 %v55
  %v474 = vunpack.c.l.b16 %v56
  %v475 = vunpack.c.l.b16 %v57
  %v476 = vunpack.c.l.b16 %v58
  %v477 = vunpack.c.l.b16 %v59
  %v478 = vunpack.c.l.b16 %v60
  %v479 = vunpack.c.l.b16 %v61
  %v480 = vunpack.c.l.b16 %v62
  %v481 = vunpack.c.l.b16 %v63
  %v482 = vunpack.c.l.b16 %v64
  %v483 = vpack.c.b16 %v452, %v451
  %v484 = vpack.c.b16 %v454, %v453
  %v485 = vpack.c.b16 %v456, %v455
  %v486 = vpack.c.b16 %v458, %v457
  %v487 = vpack.c.b16 %v460, %v459
  %v488 = vpack.c.b16 %v462, %v461
  %v489 = vpack.c.b16 %v464, %v463
  %v490 = vpack.c.b16 %v466, %v465
  %v491 = vpack.c.b16 %v468, %v467
  %v492 = vpack.c.b16 %v470, %v469
  %v493 = vpack.c.b16 %v472, %v471
  %v494 = vpack.c.b16 %v474, %v473
  %v495 = vpack.c.b16 %v476, %v475
  %v496 = vpack.c.b16 %v478, %v477
  %v497 = vpack.c.b16 %v480, %v479
  %v498 = vpack.c.b16 %v482, %v481
  %vm499 = vcmask 64512
  %v501 = vsel %vm499, %v483, 0
  %v504 = vsel %vm499, %v484, 0
  %v507 = vsel %vm499, %v485, 0
  %v510 = vsel %vm499, %v486, 0
  %v513 = vsel %vm499, %v487, 0
  %v516 = vsel %vm499, %v488, 0
  %v519 = vsel %vm499, %v489, 0
  %v522 = vsel %vm499, %v490, 0
  %v525 = vsel %vm499, %v491, 0
  %v528 = vsel %vm499, %v492, 0
  %v531 = vsel %vm499, %v493, 0
  %v534 = vsel %vm499, %v494, 0
  %v537 = vsel %vm499, %v495, 0
  %v540 = vsel %vm499, %v496, 0
  %v543 = vsel %vm499, %v497, 0
  %v546 = vsel %vm499, %v498, 0
  %vm548 = vcmask 1043456
  %v550 = vsel %vm548, %v97, 0
  %552 = vmatprep.subr.bf16.mxu0 0
  %553 = vmatpush1.bf16.msra.mxu0 %v550
  %554 = vmatprep.subr.bf16.mxu0 0
  %555 = vmatpush1.bf16.msra.mxu0 0
  %556 = vmatprep.subr.bf16.mxu0 0
  %557 = vmatpush1.bf16.msra.mxu0 0
  %558 = vmatprep.subr.bf16.mxu0 0
  %559 = vmatpush1.bf16.msra.mxu0 0
  %560 = vmatprep.subr.bf16.mxu0 0
  %561 = vmatpush1.bf16.msra.mxu0 0
  %562 = vmatprep.subr.bf16.mxu0 0
  %563 = vmatpush1.bf16.msra.mxu0 0
  %564 = vmatprep.subr.bf16.mxu0 0
  %565 = vmatpush1.bf16.msra.mxu0 0
  %566 = vmatprep.subr.bf16.mxu0 0
  %567 = vmatpush1.bf16.msra.mxu0 0
  %568 = vmatprep.subr.bf16.mxu0 0
  %569 = vmatpush1.bf16.msra.mxu0 0
  %570 = vmatprep.subr.bf16.mxu0 0
  %571 = vmatpush1.bf16.msra.mxu0 0
  %572 = vmatprep.subr.bf16.mxu0 0
  %573 = vmatpush1.bf16.msra.mxu0 0
  %574 = vmatprep.subr.bf16.mxu0 0
  %575 = vmatpush1.bf16.msra.mxu0 0
  %576 = vmatprep.subr.bf16.mxu0 0
  %577 = vmatpush1.bf16.msra.mxu0 0
  %578 = vmatprep.subr.bf16.mxu0 0
  %579 = vmatpush1.bf16.msra.mxu0 0
  %580 = vmatprep.subr.bf16.mxu0 0
  %581 = vmatpush1.bf16.msra.mxu0 0
  %582 = vmatprep.subr.bf16.mxu0 0
  %583 = vmatpush1.bf16.msra.mxu0 0
  %584 = vmatprep.mubr.bf16.mxu0 0
  %585 = vmatmul.mubr.bf16.gmra.mrb[0].mxu0 %v501
  %v586 = vpop.f32.mrb[0].mxu0
  %v587 = vadd.f32 %v293, %v586
  %v588 = vpop.f32.mrb[0].mxu0
  %v589 = vpop.f32.mrb[0].mxu0
  %v590 = vadd.f32 %v296, %v589
  %v591 = vpop.f32.mrb[0].mxu0
  %592 = vmatprep.mubr.bf16.mxu0 0
  %593 = vmatmul.mubr.bf16.gmra.mrb[0].mxu0 %v504
  %v594 = vpop.f32.mrb[0].mxu0
  %v595 = vadd.f32 %v301, %v594
  %v596 = vpop.f32.mrb[0].mxu0
  %v597 = vpop.f32.mrb[0].mxu0
  %v598 = vadd.f32 %v304, %v597
  %v599 = vpop.f32.mrb[0].mxu0
  %600 = vmatprep.mubr.bf16.mxu0 0
  %601 = vmatmul.mubr.bf16.gmra.mrb[0].mxu0 %v507
  %v602 = vpop.f32.mrb[0].mxu0
  %v603 = vadd.f32 %v309, %v602
  %v604 = vpop.f32.mrb[0].mxu0
  %v605 = vpop.f32.mrb[0].mxu0
  %v606 = vadd.f32 %v312, %v605
  %v607 = vpop.f32.mrb[0].mxu0
  %608 = vmatprep.mubr.bf16.mxu0 0
  %609 = vmatmul.mubr.bf16.gmra.mrb[0].mxu0 %v510
  %v610 = vpop.f32.mrb[0].mxu0
  %v611 = vadd.f32 %v317, %v610
  %v612 = vpop.f32.mrb[0].mxu0
  %v613 = vpop.f32.mrb[0].mxu0
  %v614 = vadd.f32 %v320, %v613
  %v615 = vpop.f32.mrb[0].mxu0
  %616 = vmatprep.mubr.bf16.mxu0 0
  %617 = vmatmul.mubr.bf16.gmra.mrb[0].mxu0 %v513
  %v618 = vpop.f32.mrb[0].mxu0
  %v619 = vadd.f32 %v325, %v618
  %v620 = vpop.f32.mrb[0].mxu0
  %v621 = vpop.f32.mrb[0].mxu0
  %v622 = vadd.f32 %v328, %v621
  %v623 = vpop.f32.mrb[0].mxu0
  %624 = vmatprep.mubr.bf16.mxu0 0
  %625 = vmatmul.mubr.bf16.gmra.mrb[0].mxu0 %v516
  %v626 = vpop.f32.mrb[0].mxu0
  %v627 = vadd.f32 %v333, %v626
  %v628 = vpop.f32.mrb[0].mxu0
  %v629 = vpop.f32.mrb[0].mxu0
  %v630 = vadd.f32 %v336, %v629
  %v631 = vpop.f32.mrb[0].mxu0
  %632 = vmatprep.mubr.bf16.mxu0 0
  %633 = vmatmul.mubr.bf16.gmra.mrb[0].mxu0 %v519
  %v634 = vpop.f32.mrb[0].mxu0
  %v635 = vadd.f32 %v341, %v634
  %v636 = vpop.f32.mrb[0].mxu0
  %v637 = vpop.f32.mrb[0].mxu0
  %v638 = vadd.f32 %v344, %v637
  %v639 = vpop.f32.mrb[0].mxu0
  %640 = vmatprep.mubr.bf16.mxu0 0
  %641 = vmatmul.mubr.bf16.gmra.mrb[0].mxu0 %v522
  %v642 = vpop.f32.mrb[0].mxu0
  %v643 = vadd.f32 %v349, %v642
  %v644 = vpop.f32.mrb[0].mxu0
  %v645 = vpop.f32.mrb[0].mxu0
  %v646 = vadd.f32 %v352, %v645
  %v647 = vpop.f32.mrb[0].mxu0
  %648 = vmatprep.mubr.bf16.mxu0 0
  %649 = vmatmul.mubr.bf16.gmra.mrb[0].mxu0 %v525
  %v650 = vpop.f32.mrb[0].mxu0
  %v651 = vadd.f32 %v357, %v650
  %v652 = vpop.f32.mrb[0].mxu0
  %v653 = vpop.f32.mrb[0].mxu0
  %v654 = vadd.f32 %v360, %v653
  %v655 = vpop.f32.mrb[0].mxu0
  %656 = vmatprep.mubr.bf16.mxu0 0
  %657 = vmatmul.mubr.bf16.gmra.mrb[0].mxu0 %v528
  %v658 = vpop.f32.mrb[0].mxu0
  %v659 = vadd.f32 %v365, %v658
  %v660 = vpop.f32.mrb[0].mxu0
  %v661 = vpop.f32.mrb[0].mxu0
  %v662 = vadd.f32 %v368, %v661
  %v663 = vpop.f32.mrb[0].mxu0
  %664 = vmatprep.mubr.bf16.mxu0 0
  %665 = vmatmul.mubr.bf16.gmra.mrb[0].mxu0 %v531
  %v666 = vpop.f32.mrb[0].mxu0
  %v667 = vadd.f32 %v373, %v666
  %v668 = vpop.f32.mrb[0].mxu0
  %v669 = vpop.f32.mrb[0].mxu0
  %v670 = vadd.f32 %v376, %v669
  %v671 = vpop.f32.mrb[0].mxu0
  %672 = vmatprep.mubr.bf16.mxu0 0
  %673 = vmatmul.mubr.bf16.gmra.mrb[0].mxu0 %v534
  %v674 = vpop.f32.mrb[0].mxu0
  %v675 = vadd.f32 %v381, %v674
  %v676 = vpop.f32.mrb[0].mxu0
  %v677 = vpop.f32.mrb[0].mxu0
  %v678 = vadd.f32 %v384, %v677
  %v679 = vpop.f32.mrb[0].mxu0
  %680 = vmatprep.mubr.bf16.mxu0 0
  %681 = vmatmul.mubr.bf16.gmra.mrb[0].mxu0 %v537
  %v682 = vpop.f32.mrb[0].mxu0
  %v683 = vadd.f32 %v389, %v682
  %v684 = vpop.f32.mrb[0].mxu0
  %v685 = vpop.f32.mrb[0].mxu0
  %v686 = vadd.f32 %v392, %v685
  %v687 = vpop.f32.mrb[0].mxu0
  %688 = vmatprep.mubr.bf16.mxu0 0
  %689 = vmatmul.mubr.bf16.gmra.mrb[0].mxu0 %v540
  %v690 = vpop.f32.mrb[0].mxu0
  %v691 = vadd.f32 %v397, %v690
  %v692 = vpop.f32.mrb[0].mxu0
  %v693 = vpop.f32.mrb[0].mxu0
  %v694 = vadd.f32 %v400, %v693
  %v695 = vpop.f32.mrb[0].mxu0
  %696 = vmatprep.mubr.bf16.mxu0 0
  %697 = vmatmul.mubr.bf16.gmra.mrb[0].mxu0 %v543
  %v698 = vpop.f32.mrb[0].mxu0
  %v699 = vadd.f32 %v405, %v698
  %v700 = vpop.f32.mrb[0].mxu0
  %v701 = vpop.f32.mrb[0].mxu0
  %v702 = vadd.f32 %v408, %v701
  %v703 = vpop.f32.mrb[0].mxu0
  %704 = vmatprep.mubr.bf16.mxu0 0
  %705 = vmatmul.mubr.bf16.gmra.mrb[0].mxu0 %v546
  %v706 = vpop.f32.mrb[0].mxu0
  %v707 = vadd.f32 %v413, %v706
  %v708 = vpop.f32.mrb[0].mxu0
  %v709 = vpop.f32.mrb[0].mxu0
  %v710 = vadd.f32 %v416, %v709
  %v711 = vpop.f32.mrb[0].mxu0
  %712 = vdwg.mxu0
  %v713 = vld [vmem:[%s4] sm:$0x1]
  %v715 = vlaneseq
  %v716 = vshrl.u32 %v715, 7
  %v717 = vsub.s32 0, %v716
  %v718 = vrot.slane %v713, %v717
  %v720 = vadd.f32 %v587, %v718
  %v721 = vadd.f32 %v590, %v718
  %v722 = vadd.f32 %v595, %v718
  %v723 = vadd.f32 %v598, %v718
  %v724 = vadd.f32 %v603, %v718
  %v725 = vadd.f32 %v606, %v718
  %v726 = vadd.f32 %v611, %v718
  %v727 = vadd.f32 %v614, %v718
  %v728 = vadd.f32 %v619, %v718
  %v729 = vadd.f32 %v622, %v718
  %v730 = vadd.f32 %v627, %v718
  %v731 = vadd.f32 %v630, %v718
  %v732 = vadd.f32 %v635, %v718
  %v733 = vadd.f32 %v638, %v718
  %v734 = vadd.f32 %v643, %v718
  %v735 = vadd.f32 %v646, %v718
  %v736 = vadd.f32 %v651, %v718
  %v737 = vadd.f32 %v654, %v718
  %v738 = vadd.f32 %v659, %v718
  %v739 = vadd.f32 %v662, %v718
  %v740 = vadd.f32 %v667, %v718
  %v741 = vadd.f32 %v670, %v718
  %v742 = vadd.f32 %v675, %v718
  %v743 = vadd.f32 %v678, %v718
  %v744 = vadd.f32 %v683, %v718
  %v745 = vadd.f32 %v686, %v718
  %v746 = vadd.f32 %v691, %v718
  %v747 = vadd.f32 %v694, %v718
  %v748 = vadd.f32 %v699, %v718
  %v749 = vadd.f32 %v702, %v718
  %v750 = vadd.f32 %v707, %v718
  %v751 = vadd.f32 %v710, %v718
  %v752 = vmax.f32 %v720, 0.0
  %v753 = vmax.f32 %v721, 0.0
  %v754 = vmax.f32 %v722, 0.0
  %v755 = vmax.f32 %v723, 0.0
  %v756 = vmax.f32 %v724, 0.0
  %v757 = vmax.f32 %v725, 0.0
  %v758 = vmax.f32 %v726, 0.0
  %v759 = vmax.f32 %v727, 0.0
  %v760 = vmax.f32 %v728, 0.0
  %v761 = vmax.f32 %v729, 0.0
  %v762 = vmax.f32 %v730, 0.0
  %v763 = vmax.f32 %v731, 0.0
  %v764 = vmax.f32 %v732, 0.0
  %v765 = vmax.f32 %v733, 0.0
  %v766 = vmax.f32 %v734, 0.0
  %v767 = vmax.f32 %v735, 0.0
  %v768 = vmax.f32 %v736, 0.0
  %v769 = vmax.f32 %v737, 0.0
  %v770 = vmax.f32 %v738, 0.0
  %v771 = vmax.f32 %v739, 0.0
  %v772 = vmax.f32 %v740, 0.0
  %v773 = vmax.f32 %v741, 0.0
  %v774 = vmax.f32 %v742, 0.0
  %v775 = vmax.f32 %v743, 0.0
  %v776 = vmax.f32 %v744, 0.0
  %v777 = vmax.f32 %v745, 0.0
  %v778 = vmax.f32 %v746, 0.0
  %v779 = vmax.f32 %v747, 0.0
  %v780 = vmax.f32 %v748, 0.0
  %v781 = vmax.f32 %v749, 0.0
  %v782 = vmax.f32 %v750, 0.0
  %v783 = vmax.f32 %v751, 0.0
  %v784 = vpack.c.bf16 %v753, %v752
  %v785 = vpack.c.bf16 %v755, %v754
  %v786 = vpack.c.bf16 %v757, %v756
  %v787 = vpack.c.bf16 %v759, %v758
  %v788 = vpack.c.bf16 %v761, %v760
  %v789 = vpack.c.bf16 %v763, %v762
  %v790 = vpack.c.bf16 %v765, %v764
  %v791 = vpack.c.bf16 %v767, %v766
  %v792 = vpack.c.bf16 %v769, %v768
  %v793 = vpack.c.bf16 %v771, %v770
  %v794 = vpack.c.bf16 %v773, %v772
  %v795 = vpack.c.bf16 %v775, %v774
  %v796 = vpack.c.bf16 %v777, %v776
  %v797 = vpack.c.bf16 %v779, %v778
  %v798 = vpack.c.bf16 %v781, %v780
  %v799 = vpack.c.bf16 %v783, %v782
  %v800 = vld [vmem:[%s5] sm:$0xf]
  %v801 = vld [vmem:[%s5 + $0x4] sm:$0xf]
  %v802 = vld [vmem:[%s5 + $0x8] sm:$0xf]
  %v803 = vld [vmem:[%s5 + $0xc] sm:$0xf]
  %v804 = vld [vmem:[%s5 + $0x10] sm:$0xf]
  %v805 = vld [vmem:[%s5 + $0x14] sm:$0xf]
  %v806 = vld [vmem:[%s5 + $0x18] sm:$0xf]
  %v807 = vld [vmem:[%s5 + $0x1c] sm:$0xf]
  %v808 = vld [vmem:[%s5 + $0x20] sm:$0xf]
  %v809 = vld [vmem:[%s5 + $0x24] sm:$0xf]
  %v810 = vld [vmem:[%s5 + $0x28] sm:$0xf]
  %v811 = vld [vmem:[%s5 + $0x2c] sm:$0xf]
  %v812 = vld [vmem:[%s5 + $0x30] sm:$0xf]
  %v813 = vld [vmem:[%s5 + $0x34] sm:$0xf]
  %v814 = vld [vmem:[%s5 + $0x38] sm:$0xf]
  %v815 = vld [vmem:[%s5 + $0x3c] sm:$0xf]
  %v816 = vld [vmem:[%s6] sm:$0x1]
  %v818 = vlaneseq
  %v819 = vshrl.u32 %v818, 7
  %v820 = vsub.s32 0, %v819
  %v821 = vrot.slane %v816, %v820
  %v839 = vunpack.c.l.b16 %v800
  %v840 = vunpack.c.l.b16 %v801
  %v841 = vunpack.c.l.b16 %v802
  %v842 = vunpack.c.l.b16 %v803
  %v843 = vunpack.c.l.b16 %v804
  %v844 = vunpack.c.l.b16 %v805
  %v845 = vunpack.c.l.b16 %v806
  %v846 = vunpack.c.l.b16 %v807
  %v847 = vunpack.c.l.b16 %v808
  %v848 = vunpack.c.l.b16 %v809
  %v849 = vunpack.c.l.b16 %v810
  %v850 = vunpack.c.l.b16 %v811
  %v851 = vunpack.c.l.b16 %v812
  %v852 = vunpack.c.l.b16 %v813
  %v853 = vunpack.c.l.b16 %v814
  %v854 = vunpack.c.l.b16 %v815
  %v855 = vpack.c.b16 %v840, %v839
  %v856 = vpack.c.b16 %v842, %v841
  %v857 = vpack.c.b16 %v844, %v843
  %v858 = vpack.c.b16 %v846, %v845
  %v859 = vpack.c.b16 %v848, %v847
  %v860 = vpack.c.b16 %v850, %v849
  %v861 = vpack.c.b16 %v852, %v851
  %v862 = vpack.c.b16 %v854, %v853
  %871 = vmatprep.subr.bf16.mxu0 0
  %872 = vmatpush1.bf16.msra.mxu0 %v855
  %873 = vmatprep.subr.bf16.mxu0 0
  %874 = vmatpush1.bf16.msra.mxu0 %v856
  %875 = vmatprep.subr.bf16.mxu0 0
  %876 = vmatpush1.bf16.msra.mxu0 %v857
  %877 = vmatprep.subr.bf16.mxu0 0
  %878 = vmatpush1.bf16.msra.mxu0 %v858
  %879 = vmatprep.subr.bf16.mxu0 0
  %880 = vmatpush1.bf16.msra.mxu0 %v859
  %881 = vmatprep.subr.bf16.mxu0 0
  %882 = vmatpush1.bf16.msra.mxu0 %v860
  %883 = vmatprep.subr.bf16.mxu0 0
  %884 = vmatpush1.bf16.msra.mxu0 %v861
  %885 = vmatprep.subr.bf16.mxu0 0
  %886 = vmatpush1.bf16.msra.mxu0 %v862
  %887 = vmatprep.subr.bf16.mxu0 0
  %888 = vmatpush1.bf16.msra.mxu0 0
  %889 = vmatprep.subr.bf16.mxu0 0
  %890 = vmatpush1.bf16.msra.mxu0 0
  %891 = vmatprep.subr.bf16.mxu0 0
  %892 = vmatpush1.bf16.msra.mxu0 0
  %893 = vmatprep.subr.bf16.mxu0 0
  %894 = vmatpush1.bf16.msra.mxu0 0
  %895 = vmatprep.subr.bf16.mxu0 0
  %896 = vmatpush1.bf16.msra.mxu0 0
  %897 = vmatprep.subr.bf16.mxu0 0
  %898 = vmatpush1.bf16.msra.mxu0 0
  %899 = vmatprep.subr.bf16.mxu0 0
  %900 = vmatpush1.bf16.msra.mxu0 0
  %901 = vmatprep.subr.bf16.mxu0 0
  %902 = vmatpush1.bf16.msra.mxu0 0
  %903 = vmatprep.mubr.bf16.mxu0 0
  %904 = vmatmul.mubr.bf16.gmra.mrb[0].mxu0 %v784
  %v905 = vpop.f32.mrb[0].mxu0
  %v906 = vadd.f32 %v821, %v905
  %v907 = vpop.f32.mrb[0].mxu0
  %v908 = vpop.f32.mrb[0].mxu0
  %v909 = vadd.f32 %v821, %v908
  %v910 = vpop.f32.mrb[0].mxu0
  %911 = vmatprep.mubr.bf16.mxu0 0
  %912 = vmatmul.mubr.bf16.gmra.mrb[0].mxu0 %v785
  %v913 = vpop.f32.mrb[0].mxu0
  %v914 = vadd.f32 %v821, %v913
  %v915 = vpop.f32.mrb[0].mxu0
  %v916 = vpop.f32.mrb[0].mxu0
  %v917 = vadd.f32 %v821, %v916
  %v918 = vpop.f32.mrb[0].mxu0
  %919 = vmatprep.mubr.bf16.mxu0 0
  %920 = vmatmul.mubr.bf16.gmra.mrb[0].mxu0 %v786
  %v921 = vpop.f32.mrb[0].mxu0
  %v922 = vadd.f32 %v821, %v921
  %v923 = vpop.f32.mrb[0].mxu0
  %v924 = vpop.f32.mrb[0].mxu0
  %v925 = vadd.f32 %v821, %v924
  %v926 = vpop.f32.mrb[0].mxu0
  %927 = vmatprep.mubr.bf16.mxu0 0
  %928 = vmatmul.mubr.bf16.gmra.mrb[0].mxu0 %v787
  %v929 = vpop.f32.mrb[0].mxu0
  %v930 = vadd.f32 %v821, %v929
  %v931 = vpop.f32.mrb[0].mxu0
  %v932 = vpop.f32.mrb[0].mxu0
  %v933 = vadd.f32 %v821, %v932
  %v934 = vpop.f32.mrb[0].mxu0
  %935 = vmatprep.mubr.bf16.mxu0 0
  %936 = vmatmul.mubr.bf16.gmra.mrb[0].mxu0 %v788
  %v937 = vpop.f32.mrb[0].mxu0
  %v938 = vadd.f32 %v821, %v937
  %v939 = vpop.f32.mrb[0].mxu0
  %v940 = vpop.f32.mrb[0].mxu0
  %v941 = vadd.f32 %v821, %v940
  %v942 = vpop.f32.mrb[0].mxu0
  %943 = vmatprep.mubr.bf16.mxu0 0
  %944 = vmatmul.mubr.bf16.gmra.mrb[0].mxu0 %v789
  %v945 = vpop.f32.mrb[0].mxu0
  %v946 = vadd.f32 %v821, %v945
  %v947 = vpop.f32.mrb[0].mxu0
  %v948 = vpop.f32.mrb[0].mxu0
  %v949 = vadd.f32 %v821, %v948
  %v950 = vpop.f32.mrb[0].mxu0
  %951 = vmatprep.mubr.bf16.mxu0 0
  %952 = vmatmul.mubr.bf16.gmra.mrb[0].mxu0 %v790
  %v953 = vpop.f32.mrb[0].mxu0
  %v954 = vadd.f32 %v821, %v953
  %v955 = vpop.f32.mrb[0].mxu0
  %v956 = vpop.f32.mrb[0].mxu0
  %v957 = vadd.f32 %v821, %v956
  %v958 = vpop.f32.mrb[0].mxu0
  %959 = vmatprep.mubr.bf16.mxu0 0
  %960 = vmatmul.mubr.bf16.gmra.mrb[0].mxu0 %v791
  %v961 = vpop.f32.mrb[0].mxu0
  %v962 = vadd.f32 %v821, %v961
  %v963 = vpop.f32.mrb[0].mxu0
  %v964 = vpop.f32.mrb[0].mxu0
  %v965 = vadd.f32 %v821, %v964
  %v966 = vpop.f32.mrb[0].mxu0
  %967 = vmatprep.mubr.bf16.mxu0 0
  %968 = vmatmul.mubr.bf16.gmra.mrb[0].mxu0 %v792
  %v969 = vpop.f32.mrb[0].mxu0
  %v970 = vadd.f32 %v821, %v969
  %v971 = vpop.f32.mrb[0].mxu0
  %v972 = vpop.f32.mrb[0].mxu0
  %v973 = vadd.f32 %v821, %v972
  %v974 = vpop.f32.mrb[0].mxu0
  %975 = vmatprep.mubr.bf16.mxu0 0
  %976 = vmatmul.mubr.bf16.gmra.mrb[0].mxu0 %v793
  %v977 = vpop.f32.mrb[0].mxu0
  %v978 = vadd.f32 %v821, %v977
  %v979 = vpop.f32.mrb[0].mxu0
  %v980 = vpop.f32.mrb[0].mxu0
  %v981 = vadd.f32 %v821, %v980
  %v982 = vpop.f32.mrb[0].mxu0
  %983 = vmatprep.mubr.bf16.mxu0 0
  %984 = vmatmul.mubr.bf16.gmra.mrb[0].mxu0 %v794
  %v985 = vpop.f32.mrb[0].mxu0
  %v986 = vadd.f32 %v821, %v985
  %v987 = vpop.f32.mrb[0].mxu0
  %v988 = vpop.f32.mrb[0].mxu0
  %v989 = vadd.f32 %v821, %v988
  %v990 = vpop.f32.mrb[0].mxu0
  %991 = vmatprep.mubr.bf16.mxu0 0
  %992 = vmatmul.mubr.bf16.gmra.mrb[0].mxu0 %v795
  %v993 = vpop.f32.mrb[0].mxu0
  %v994 = vadd.f32 %v821, %v993
  %v995 = vpop.f32.mrb[0].mxu0
  %v996 = vpop.f32.mrb[0].mxu0
  %v997 = vadd.f32 %v821, %v996
  %v998 = vpop.f32.mrb[0].mxu0
  %999 = vmatprep.mubr.bf16.mxu0 0
  %1000 = vmatmul.mubr.bf16.gmra.mrb[0].mxu0 %v796
  %v1001 = vpop.f32.mrb[0].mxu0
  %v1002 = vadd.f32 %v821, %v1001
  %v1003 = vpop.f32.mrb[0].mxu0
  %v1004 = vpop.f32.mrb[0].mxu0
  %v1005 = vadd.f32 %v821, %v1004
  %v1006 = vpop.f32.mrb[0].mxu0
  %1007 = vmatprep.mubr.bf16.mxu0 0
  %1008 = vmatmul.mubr.bf16.gmra.mrb[0].mxu0 %v797
  %v1009 = vpop.f32.mrb[0].mxu0
  %v1010 = vadd.f32 %v821, %v1009
  %v1011 = vpop.f32.mrb[0].mxu0
  %v1012 = vpop.f32.mrb[0].mxu0
  %v1013 = vadd.f32 %v821, %v1012
  %v1014 = vpop.f32.mrb[0].mxu0
  %1015 = vmatprep.mubr.bf16.mxu0 0
  %1016 = vmatmul.mubr.bf16.gmra.mrb[0].mxu0 %v798
  %v1017 = vpop.f32.mrb[0].mxu0
  %v1018 = vadd.f32 %v821, %v1017
  %v1019 = vpop.f32.mrb[0].mxu0
  %v1020 = vpop.f32.mrb[0].mxu0
  %v1021 = vadd.f32 %v821, %v1020
  %v1022 = vpop.f32.mrb[0].mxu0
  %1023 = vmatprep.mubr.bf16.mxu0 0
  %1024 = vmatmul.mubr.bf16.gmra.mrb[0].mxu0 %v799
  %v1025 = vpop.f32.mrb[0].mxu0
  %v1026 = vadd.f32 %v821, %v1025
  %v1027 = vpop.f32.mrb[0].mxu0
  %v1028 = vpop.f32.mrb[0].mxu0
  %v1029 = vadd.f32 %v821, %v1028
  %v1030 = vpop.f32.mrb[0].mxu0
  %1031 = vdwg.mxu0
  %v1032 = vmax.f32 %v906, 0.0
  %v1033 = vmax.f32 %v909, 0.0
  %v1034 = vmax.f32 %v914, 0.0
  %v1035 = vmax.f32 %v917, 0.0
  %v1036 = vmax.f32 %v922, 0.0
  %v1037 = vmax.f32 %v925, 0.0
  %v1038 = vmax.f32 %v930, 0.0
  %v1039 = vmax.f32 %v933, 0.0
  %v1040 = vmax.f32 %v938, 0.0
  %v1041 = vmax.f32 %v941, 0.0
  %v1042 = vmax.f32 %v946, 0.0
  %v1043 = vmax.f32 %v949, 0.0
  %v1044 = vmax.f32 %v954, 0.0
  %v1045 = vmax.f32 %v957, 0.0
  %v1046 = vmax.f32 %v962, 0.0
  %v1047 = vmax.f32 %v965, 0.0
  %v1048 = vmax.f32 %v970, 0.0
  %v1049 = vmax.f32 %v973, 0.0
  %v1050 = vmax.f32 %v978, 0.0
  %v1051 = vmax.f32 %v981, 0.0
  %v1052 = vmax.f32 %v986, 0.0
  %v1053 = vmax.f32 %v989, 0.0
  %v1054 = vmax.f32 %v994, 0.0
  %v1055 = vmax.f32 %v997, 0.0
  %v1056 = vmax.f32 %v1002, 0.0
  %v1057 = vmax.f32 %v1005, 0.0
  %v1058 = vmax.f32 %v1010, 0.0
  %v1059 = vmax.f32 %v1013, 0.0
  %v1060 = vmax.f32 %v1018, 0.0
  %v1061 = vmax.f32 %v1021, 0.0
  %v1062 = vmax.f32 %v1026, 0.0
  %v1063 = vmax.f32 %v1029, 0.0
  %v1064 = vpack.c.bf16 %v1033, %v1032
  %v1065 = vpack.c.bf16 %v1035, %v1034
  %v1066 = vpack.c.bf16 %v1037, %v1036
  %v1067 = vpack.c.bf16 %v1039, %v1038
  %v1068 = vpack.c.bf16 %v1041, %v1040
  %v1069 = vpack.c.bf16 %v1043, %v1042
  %v1070 = vpack.c.bf16 %v1045, %v1044
  %v1071 = vpack.c.bf16 %v1047, %v1046
  %v1072 = vpack.c.bf16 %v1049, %v1048
  %v1073 = vpack.c.bf16 %v1051, %v1050
  %v1074 = vpack.c.bf16 %v1053, %v1052
  %v1075 = vpack.c.bf16 %v1055, %v1054
  %v1076 = vpack.c.bf16 %v1057, %v1056
  %v1077 = vpack.c.bf16 %v1059, %v1058
  %v1078 = vpack.c.bf16 %v1061, %v1060
  %v1079 = vpack.c.bf16 %v1063, %v1062
  %v1080 = vld [vmem:[%s7] sm:$0xff]
  %v1081 = vld [vmem:[%s7 + $0x8] sm:$0xff]
  %v1082 = vld [vmem:[%s7 + $0x10] sm:$0xff]
  %v1083 = vld [vmem:[%s7 + $0x18] sm:$0xff]
  %v1084 = vld [vmem:[%s7 + $0x20] sm:$0xff]
  %v1085 = vld [vmem:[%s7 + $0x28] sm:$0xff]
  %v1086 = vld [vmem:[%s7 + $0x30] sm:$0xff]
  %v1087 = vld [vmem:[%s7 + $0x38] sm:$0xff]
  %v1088 = vld [vmem:[%s7 + $0x40] sm:$0xff]
  %v1089 = vld [vmem:[%s7 + $0x48] sm:$0xff]
  %v1090 = vld [vmem:[%s7 + $0x50] sm:$0xff]
  %v1091 = vld [vmem:[%s7 + $0x58] sm:$0xff]
  %v1092 = vld [vmem:[%s7 + $0x60] sm:$0xff]
  %v1093 = vld [vmem:[%s7 + $0x68] sm:$0xff]
  %v1094 = vld [vmem:[%s7 + $0x70] sm:$0xff]
  %v1095 = vld [vmem:[%s7 + $0x78] sm:$0xff]
  %v1096 = vld [vmem:[%s8] sm:$0x3]
  %v1098 = vlaneseq
  %v1099 = vshrl.u32 %v1098, 7
  %v1100 = vsub.s32 0, %v1099
  %v1101 = vrot.slane %v1096, %v1100
  %v1102 = vlaneseq
  %v1103 = vshrl.u32 %v1102, 7
  %v1104 = vsub.s32 1, %v1103
  %v1105 = vrot.slane %v1096, %v1104
  %v1124 = vunpack.c.l.b16 %v1080
  %v1125 = vunpack.c.h.b16 %v1080
  %v1126 = vunpack.c.l.b16 %v1081
  %v1127 = vunpack.c.h.b16 %v1081
  %v1128 = vunpack.c.l.b16 %v1082
  %v1129 = vunpack.c.h.b16 %v1082
  %v1130 = vunpack.c.l.b16 %v1083
  %v1131 = vunpack.c.h.b16 %v1083
  %v1132 = vunpack.c.l.b16 %v1084
  %v1133 = vunpack.c.h.b16 %v1084
  %v1134 = vunpack.c.l.b16 %v1085
  %v1135 = vunpack.c.h.b16 %v1085
  %v1136 = vunpack.c.l.b16 %v1086
  %v1137 = vunpack.c.h.b16 %v1086
  %v1138 = vunpack.c.l.b16 %v1087
  %v1139 = vunpack.c.h.b16 %v1087
  %v1140 = vunpack.c.l.b16 %v1088
  %v1141 = vunpack.c.h.b16 %v1088
  %v1142 = vunpack.c.l.b16 %v1089
  %v1143 = vunpack.c.h.b16 %v1089
  %v1144 = vunpack.c.l.b16 %v1090
  %v1145 = vunpack.c.h.b16 %v1090
  %v1146 = vunpack.c.l.b16 %v1091
  %v1147 = vunpack.c.h.b16 %v1091
  %v1148 = vunpack.c.l.b16 %v1092
  %v1149 = vunpack.c.h.b16 %v1092
  %v1150 = vunpack.c.l.b16 %v1093
  %v1151 = vunpack.c.h.b16 %v1093
  %v1152 = vunpack.c.l.b16 %v1094
  %v1153 = vunpack.c.h.b16 %v1094
  %v1154 = vunpack.c.l.b16 %v1095
  %v1155 = vunpack.c.h.b16 %v1095
  %v1156 = vpack.c.b16 %v1126, %v1124
  %v1157 = vpack.c.b16 %v1127, %v1125
  %v1158 = vpack.c.b16 %v1130, %v1128
  %v1159 = vpack.c.b16 %v1131, %v1129
  %v1160 = vpack.c.b16 %v1134, %v1132
  %v1161 = vpack.c.b16 %v1135, %v1133
  %v1162 = vpack.c.b16 %v1138, %v1136
  %v1163 = vpack.c.b16 %v1139, %v1137
  %v1164 = vpack.c.b16 %v1142, %v1140
  %v1165 = vpack.c.b16 %v1143, %v1141
  %v1166 = vpack.c.b16 %v1146, %v1144
  %v1167 = vpack.c.b16 %v1147, %v1145
  %v1168 = vpack.c.b16 %v1150, %v1148
  %v1169 = vpack.c.b16 %v1151, %v1149
  %v1170 = vpack.c.b16 %v1154, %v1152
  %v1171 = vpack.c.b16 %v1155, %v1153
  %1188 = vmatprep.subr.bf16.mxu0 %v1157
  %1189 = vmatpush1.bf16.msra.mxu0 %v1156
  %1190 = vmatprep.subr.bf16.mxu0 %v1159
  %1191 = vmatpush1.bf16.msra.mxu0 %v1158
  %1192 = vmatprep.subr.bf16.mxu0 %v1161
  %1193 = vmatpush1.bf16.msra.mxu0 %v1160
  %1194 = vmatprep.subr.bf16.mxu0 %v1163
  %1195 = vmatpush1.bf16.msra.mxu0 %v1162
  %1196 = vmatprep.subr.bf16.mxu0 %v1165
  %1197 = vmatpush1.bf16.msra.mxu0 %v1164
  %1198 = vmatprep.subr.bf16.mxu0 %v1167
  %1199 = vmatpush1.bf16.msra.mxu0 %v1166
  %1200 = vmatprep.subr.bf16.mxu0 %v1169
  %1201 = vmatpush1.bf16.msra.mxu0 %v1168
  %1202 = vmatprep.subr.bf16.mxu0 %v1171
  %1203 = vmatpush1.bf16.msra.mxu0 %v1170
  %1204 = vmatprep.subr.bf16.mxu0 0
  %1205 = vmatpush1.bf16.msra.mxu0 0
  %1206 = vmatprep.subr.bf16.mxu0 0
  %1207 = vmatpush1.bf16.msra.mxu0 0
  %1208 = vmatprep.subr.bf16.mxu0 0
  %1209 = vmatpush1.bf16.msra.mxu0 0
  %1210 = vmatprep.subr.bf16.mxu0 0
  %1211 = vmatpush1.bf16.msra.mxu0 0
  %1212 = vmatprep.subr.bf16.mxu0 0
  %1213 = vmatpush1.bf16.msra.mxu0 0
  %1214 = vmatprep.subr.bf16.mxu0 0
  %1215 = vmatpush1.bf16.msra.mxu0 0
  %1216 = vmatprep.subr.bf16.mxu0 0
  %1217 = vmatpush1.bf16.msra.mxu0 0
  %1218 = vmatprep.subr.bf16.mxu0 0
  %1219 = vmatpush1.bf16.msra.mxu0 0
  %1220 = vmatprep.mubr.bf16.mxu0 0
  %1221 = vmatmul.mubr.bf16.gmra.mrb[0].mxu0 %v1064
  %v1222 = vpop.f32.mrb[0].mxu0
  %v1223 = vadd.f32 %v1101, %v1222
  %v1224 = vpop.f32.mrb[0].mxu0
  %v1225 = vadd.f32 %v1105, %v1224
  %v1226 = vpop.f32.mrb[0].mxu0
  %v1227 = vadd.f32 %v1101, %v1226
  %v1228 = vpop.f32.mrb[0].mxu0
  %v1229 = vadd.f32 %v1105, %v1228
  %1230 = vmatprep.mubr.bf16.mxu0 0
  %1231 = vmatmul.mubr.bf16.gmra.mrb[0].mxu0 %v1065
  %v1232 = vpop.f32.mrb[0].mxu0
  %v1233 = vadd.f32 %v1101, %v1232
  %v1234 = vpop.f32.mrb[0].mxu0
  %v1235 = vadd.f32 %v1105, %v1234
  %v1236 = vpop.f32.mrb[0].mxu0
  %v1237 = vadd.f32 %v1101, %v1236
  %v1238 = vpop.f32.mrb[0].mxu0
  %v1239 = vadd.f32 %v1105, %v1238
  %1240 = vmatprep.mubr.bf16.mxu0 0
  %1241 = vmatmul.mubr.bf16.gmra.mrb[0].mxu0 %v1066
  %v1242 = vpop.f32.mrb[0].mxu0
  %v1243 = vadd.f32 %v1101, %v1242
  %v1244 = vpop.f32.mrb[0].mxu0
  %v1245 = vadd.f32 %v1105, %v1244
  %v1246 = vpop.f32.mrb[0].mxu0
  %v1247 = vadd.f32 %v1101, %v1246
  %v1248 = vpop.f32.mrb[0].mxu0
  %v1249 = vadd.f32 %v1105, %v1248
  %1250 = vmatprep.mubr.bf16.mxu0 0
  %1251 = vmatmul.mubr.bf16.gmra.mrb[0].mxu0 %v1067
  %v1252 = vpop.f32.mrb[0].mxu0
  %v1253 = vadd.f32 %v1101, %v1252
  %v1254 = vpop.f32.mrb[0].mxu0
  %v1255 = vadd.f32 %v1105, %v1254
  %v1256 = vpop.f32.mrb[0].mxu0
  %v1257 = vadd.f32 %v1101, %v1256
  %v1258 = vpop.f32.mrb[0].mxu0
  %v1259 = vadd.f32 %v1105, %v1258
  %1260 = vmatprep.mubr.bf16.mxu0 0
  %1261 = vmatmul.mubr.bf16.gmra.mrb[0].mxu0 %v1068
  %v1262 = vpop.f32.mrb[0].mxu0
  %v1263 = vadd.f32 %v1101, %v1262
  %v1264 = vpop.f32.mrb[0].mxu0
  %v1265 = vadd.f32 %v1105, %v1264
  %v1266 = vpop.f32.mrb[0].mxu0
  %v1267 = vadd.f32 %v1101, %v1266
  %v1268 = vpop.f32.mrb[0].mxu0
  %v1269 = vadd.f32 %v1105, %v1268
  %1270 = vmatprep.mubr.bf16.mxu0 0
  %1271 = vmatmul.mubr.bf16.gmra.mrb[0].mxu0 %v1069
  %v1272 = vpop.f32.mrb[0].mxu0
  %v1273 = vadd.f32 %v1101, %v1272
  %v1274 = vpop.f32.mrb[0].mxu0
  %v1275 = vadd.f32 %v1105, %v1274
  %v1276 = vpop.f32.mrb[0].mxu0
  %v1277 = vadd.f32 %v1101, %v1276
  %v1278 = vpop.f32.mrb[0].mxu0
  %v1279 = vadd.f32 %v1105, %v1278
  %1280 = vmatprep.mubr.bf16.mxu0 0
  %1281 = vmatmul.mubr.bf16.gmra.mrb[0].mxu0 %v1070
  %v1282 = vpop.f32.mrb[0].mxu0
  %v1283 = vadd.f32 %v1101, %v1282
  %v1284 = vpop.f32.mrb[0].mxu0
  %v1285 = vadd.f32 %v1105, %v1284
  %v1286 = vpop.f32.mrb[0].mxu0
  %v1287 = vadd.f32 %v1101, %v1286
  %v1288 = vpop.f32.mrb[0].mxu0
  %v1289 = vadd.f32 %v1105, %v1288
  %1290 = vmatprep.mubr.bf16.mxu0 0
  %1291 = vmatmul.mubr.bf16.gmra.mrb[0].mxu0 %v1071
  %v1292 = vpop.f32.mrb[0].mxu0
  %v1293 = vadd.f32 %v1101, %v1292
  %v1294 = vpop.f32.mrb[0].mxu0
  %v1295 = vadd.f32 %v1105, %v1294
  %v1296 = vpop.f32.mrb[0].mxu0
  %v1297 = vadd.f32 %v1101, %v1296
  %v1298 = vpop.f32.mrb[0].mxu0
  %v1299 = vadd.f32 %v1105, %v1298
  %1300 = vmatprep.mubr.bf16.mxu0 0
  %1301 = vmatmul.mubr.bf16.gmra.mrb[0].mxu0 %v1072
  %v1302 = vpop.f32.mrb[0].mxu0
  %v1303 = vadd.f32 %v1101, %v1302
  %v1304 = vpop.f32.mrb[0].mxu0
  %v1305 = vadd.f32 %v1105, %v1304
  %v1306 = vpop.f32.mrb[0].mxu0
  %v1307 = vadd.f32 %v1101, %v1306
  %v1308 = vpop.f32.mrb[0].mxu0
  %v1309 = vadd.f32 %v1105, %v1308
  %1310 = vmatprep.mubr.bf16.mxu0 0
  %1311 = vmatmul.mubr.bf16.gmra.mrb[0].mxu0 %v1073
  %v1312 = vpop.f32.mrb[0].mxu0
  %v1313 = vadd.f32 %v1101, %v1312
  %v1314 = vpop.f32.mrb[0].mxu0
  %v1315 = vadd.f32 %v1105, %v1314
  %v1316 = vpop.f32.mrb[0].mxu0
  %v1317 = vadd.f32 %v1101, %v1316
  %v1318 = vpop.f32.mrb[0].mxu0
  %v1319 = vadd.f32 %v1105, %v1318
  %1320 = vmatprep.mubr.bf16.mxu0 0
  %1321 = vmatmul.mubr.bf16.gmra.mrb[0].mxu0 %v1074
  %v1322 = vpop.f32.mrb[0].mxu0
  %v1323 = vadd.f32 %v1101, %v1322
  %v1324 = vpop.f32.mrb[0].mxu0
  %v1325 = vadd.f32 %v1105, %v1324
  %v1326 = vpop.f32.mrb[0].mxu0
  %v1327 = vadd.f32 %v1101, %v1326
  %v1328 = vpop.f32.mrb[0].mxu0
  %v1329 = vadd.f32 %v1105, %v1328
  %1330 = vmatprep.mubr.bf16.mxu0 0
  %1331 = vmatmul.mubr.bf16.gmra.mrb[0].mxu0 %v1075
  %v1332 = vpop.f32.mrb[0].mxu0
  %v1333 = vadd.f32 %v1101, %v1332
  %v1334 = vpop.f32.mrb[0].mxu0
  %v1335 = vadd.f32 %v1105, %v1334
  %v1336 = vpop.f32.mrb[0].mxu0
  %v1337 = vadd.f32 %v1101, %v1336
  %v1338 = vpop.f32.mrb[0].mxu0
  %v1339 = vadd.f32 %v1105, %v1338
  %1340 = vmatprep.mubr.bf16.mxu0 0
  %1341 = vmatmul.mubr.bf16.gmra.mrb[0].mxu0 %v1076
  %v1342 = vpop.f32.mrb[0].mxu0
  %v1343 = vadd.f32 %v1101, %v1342
  %v1344 = vpop.f32.mrb[0].mxu0
  %v1345 = vadd.f32 %v1105, %v1344
  %v1346 = vpop.f32.mrb[0].mxu0
  %v1347 = vadd.f32 %v1101, %v1346
  %v1348 = vpop.f32.mrb[0].mxu0
  %v1349 = vadd.f32 %v1105, %v1348
  %1350 = vmatprep.mubr.bf16.mxu0 0
  %1351 = vmatmul.mubr.bf16.gmra.mrb[0].mxu0 %v1077
  %v1352 = vpop.f32.mrb[0].mxu0
  %v1353 = vadd.f32 %v1101, %v1352
  %v1354 = vpop.f32.mrb[0].mxu0
  %v1355 = vadd.f32 %v1105, %v1354
  %v1356 = vpop.f32.mrb[0].mxu0
  %v1357 = vadd.f32 %v1101, %v1356
  %v1358 = vpop.f32.mrb[0].mxu0
  %v1359 = vadd.f32 %v1105, %v1358
  %1360 = vmatprep.mubr.bf16.mxu0 0
  %1361 = vmatmul.mubr.bf16.gmra.mrb[0].mxu0 %v1078
  %v1362 = vpop.f32.mrb[0].mxu0
  %v1363 = vadd.f32 %v1101, %v1362
  %v1364 = vpop.f32.mrb[0].mxu0
  %v1365 = vadd.f32 %v1105, %v1364
  %v1366 = vpop.f32.mrb[0].mxu0
  %v1367 = vadd.f32 %v1101, %v1366
  %v1368 = vpop.f32.mrb[0].mxu0
  %v1369 = vadd.f32 %v1105, %v1368
  %1370 = vmatprep.mubr.bf16.mxu0 0
  %1371 = vmatmul.mubr.bf16.gmra.mrb[0].mxu0 %v1079
  %v1372 = vpop.f32.mrb[0].mxu0
  %v1373 = vadd.f32 %v1101, %v1372
  %v1374 = vpop.f32.mrb[0].mxu0
  %v1375 = vadd.f32 %v1105, %v1374
  %v1376 = vpop.f32.mrb[0].mxu0
  %v1377 = vadd.f32 %v1101, %v1376
  %v1378 = vpop.f32.mrb[0].mxu0
  %v1379 = vadd.f32 %v1105, %v1378
  %1380 = vdwg.mxu0
  %v1381 = vmax.f32 %v1223, %v1233
  %v1382 = vmax.f32 %v1381, %v1243
  %v1383 = vmax.f32 %v1382, %v1253
  %v1384 = vmax.f32 %v1383, %v1263
  %v1385 = vmax.f32 %v1384, %v1273
  %v1386 = vmax.f32 %v1385, %v1283
  %v1387 = vmax.f32 %v1386, %v1293
  %v1388 = vmax.f32 %v1387, %v1303
  %v1389 = vmax.f32 %v1388, %v1313
  %v1390 = vmax.f32 %v1389, %v1323
  %v1391 = vmax.f32 %v1390, %v1333
  %v1392 = vmax.f32 %v1391, %v1343
  %v1393 = vmax.f32 %v1392, %v1353
  %v1394 = vmax.f32 %v1393, %v1363
  %v1395 = vmax.f32 %v1394, %v1373
  %v1396 = vmax.f32 %v1225, %v1235
  %v1397 = vmax.f32 %v1396, %v1245
  %v1398 = vmax.f32 %v1397, %v1255
  %v1399 = vmax.f32 %v1398, %v1265
  %v1400 = vmax.f32 %v1399, %v1275
  %v1401 = vmax.f32 %v1400, %v1285
  %v1402 = vmax.f32 %v1401, %v1295
  %v1403 = vmax.f32 %v1402, %v1305
  %v1404 = vmax.f32 %v1403, %v1315
  %v1405 = vmax.f32 %v1404, %v1325
  %v1406 = vmax.f32 %v1405, %v1335
  %v1407 = vmax.f32 %v1406, %v1345
  %v1408 = vmax.f32 %v1407, %v1355
  %v1409 = vmax.f32 %v1408, %v1365
  %v1410 = vmax.f32 %v1409, %v1375
  %v1411 = vmax.f32 %v1227, %v1237
  %v1412 = vmax.f32 %v1411, %v1247
  %v1413 = vmax.f32 %v1412, %v1257
  %v1414 = vmax.f32 %v1413, %v1267
  %v1415 = vmax.f32 %v1414, %v1277
  %v1416 = vmax.f32 %v1415, %v1287
  %v1417 = vmax.f32 %v1416, %v1297
  %v1418 = vmax.f32 %v1417, %v1307
  %v1419 = vmax.f32 %v1418, %v1317
  %v1420 = vmax.f32 %v1419, %v1327
  %v1421 = vmax.f32 %v1420, %v1337
  %v1422 = vmax.f32 %v1421, %v1347
  %v1423 = vmax.f32 %v1422, %v1357
  %v1424 = vmax.f32 %v1423, %v1367
  %v1425 = vmax.f32 %v1424, %v1377
  %v1426 = vmax.f32 %v1229, %v1239
  %v1427 = vmax.f32 %v1426, %v1249
  %v1428 = vmax.f32 %v1427, %v1259
  %v1429 = vmax.f32 %v1428, %v1269
  %v1430 = vmax.f32 %v1429, %v1279
  %v1431 = vmax.f32 %v1430, %v1289
  %v1432 = vmax.f32 %v1431, %v1299
  %v1433 = vmax.f32 %v1432, %v1309
  %v1434 = vmax.f32 %v1433, %v1319
  %v1435 = vmax.f32 %v1434, %v1329
  %v1436 = vmax.f32 %v1435, %v1339
  %v1437 = vmax.f32 %v1436, %v1349
  %v1438 = vmax.f32 %v1437, %v1359
  %v1439 = vmax.f32 %v1438, %v1369
  %v1440 = vmax.f32 %v1439, %v1379
  %v1441 = vpack.c.bf16 %v1425, %v1395
  %v1442 = vpack.c.bf16 %v1440, %v1410
  %v1445 = vunpack.c.l.b16 %v1441
  %v1446 = vunpack.c.l.b16 %v1442
  %v1447 = vunpack.c.h.b16 %v1441
  %v1448 = vunpack.c.h.b16 %v1442
  %v1449 = vpack.c.b16 %v1446, %v1445
  %v1450 = vpack.c.b16 %v1448, %v1447
  %1453 = vst [vmem:[%s9] sm:$0xff] %v1449
  %1454 = vst [vmem:[%s9 + $0x8] sm:$0xff] %v1450
  // Predicated region
  $region38: #{pointnetpp_forward.5} parent=0 // pred_check
    _
  $region39: #{pointnetpp_forward.5} parent=0 // pred_check_branch
    %1456 = sbr.rel (0) target = $region41
  $region40: #{pointnetpp_forward.5} parent=0 // pred_region
    _
  $region41: #{pointnetpp_forward.5} parent=0 // pred_fallthru
    _
  // Predicated region
  $region42: #{pointnetpp_forward.5} parent=0 // pred_check
    _
  $region43: #{pointnetpp_forward.5} parent=0 // pred_check_branch
    %1458 = sbr.rel (0) target = $region45
  $region44: #{pointnetpp_forward.5} parent=0 // pred_region
    _
  $region45: #{pointnetpp_forward.5} parent=0 // pred_fallthru
    _

// kernel: pointnetpp_forward.6
$region0: #{pointnetpp_forward.6}
  #allocation0 [shape = 'u32[]', space=smem, size = 0x4, offset = 0x4, fixed_abs, tag = 'smem constant byte address 0x4 - core index']
  #allocation1 [shape = 'u32[144,128]{1,0:T(1,128)}', space=vmem, size = 0x12000, scoped, tag = 'internal scratch']
  %s0 = inlined_call_operand.vmem [shape: bf16[2,8,256], index: 0, kind: input, shape index: {}]
  %s1 = inlined_call_operand.vmem [shape: bf16[2,8,8], index: 1, kind: input, shape index: {}]
  %s2 = inlined_call_operand.vmem [shape: bf16[256,256], index: 2, kind: input, shape index: {}]
  %s3 = inlined_call_operand.vmem [shape: bf16[8,256], index: 3, kind: input, shape index: {}]
  %s4 = inlined_call_operand.vmem [shape: f32[1,256], index: 4, kind: input, shape index: {}]
  %s5 = inlined_call_operand.vmem [shape: bf16[256,512], index: 5, kind: input, shape index: {}]
  %s6 = inlined_call_operand.vmem [shape: f32[1,512], index: 6, kind: input, shape index: {}]
  %s7 = inlined_call_operand.vmem [shape: bf16[512,1024], index: 7, kind: input, shape index: {}]
  %s8 = inlined_call_operand.vmem [shape: f32[1,1024], index: 8, kind: input, shape index: {}]
  %s9 = inlined_call_operand.vmem [shape: bf16[2,1,1024], index: 9, kind: output, shape index: {}]
  %s10 = sld [smem:[#allocation0]]
  $region69: #{pointnetpp_forward.6} parent=0
    _
  %s12 = ssub.s32 1, %s10
  %s13 = scalar_select 0, %s12, %s10
  loop: start=0, step=1, limit=4
  $region2: #{pointnetpp_forward.6} parent=0 // loop_pre_header
    _
  $region3: #{pointnetpp_forward.6} parent=0 // loop_header
    %s15 = sphi 0, %s19
    %p16 = scmp.ge.s32.totalorder %s15, 4
    %s25 = sphi 0, %s27
    %s28 = sphi 0, %s25
    %s29 = sphi 0, %s28
    %s45 = sphi 0, %s29
    %s51 = sphi 0, %s53
    %s54 = sphi 0, %s51
    %s55 = sphi 0, %s54
    %s71 = sphi 0, %s55
    %s75 = sphi 0, %s75
    %s77 = sphi 0, %s75
    %s78 = sphi 0, %s77
    %s92 = sphi 0, %s78
    %s96 = sphi 0, %s96
    %s98 = sphi 0, %s96
    %s99 = sphi 0, %s98
    %s113 = sphi 0, %s99
    %s117 = sphi 0, %s117
    %s119 = sphi 0, %s117
    %s120 = sphi 0, %s119
    %s134 = sphi 0, %s120
    %s138 = sphi 0, %s138
    %s140 = sphi 0, %s138
    %s141 = sphi 0, %s140
    %s155 = sphi 0, %s141
    %s159 = sphi 0, %s159
    %s161 = sphi 0, %s159
    %s162 = sphi 0, %s161
    %s176 = sphi 0, %s162
    %s180 = sphi 0, %s180
    %s182 = sphi 0, %s180
    %s183 = sphi 0, %s182
    %s197 = sphi 0, %s183
    %s201 = sphi 0, %s201
    %s203 = sphi 0, %s201
    %s204 = sphi 0, %s203
    %s218 = sphi 0, %s204
    %s224 = sphi 0, %s226
    %s227 = sphi 0, %s224
    %s228 = sphi 0, %s227
    %s244 = sphi 0, %s228
  $region4: #{pointnetpp_forward.6} parent=0 // loop_header_branch
    %18 = sbr.rel (%p16) target = $region8
  $region5: #{pointnetpp_forward.6} parent=0 // loop_body
    %s20 = ssub.s32 %s15, 1
    %s21 = ssub.s32 %s15, 2
    %s22 = sadd.s32 %s15, 1
    %s23 = ssub.s32 %s15, %s22
    %p24 = scmp.eq.s32.totalorder %s23, 0
    %s26 = sadd.s32 %s25, 1
    %s27 = scalar_select %p24, %s25, %s26
    %p30 = pneg %p24
    %p31 = scmp.eq.s32.totalorder %s15, 1
    %p32 = por %p30, %p31
    %p33 = scmp.ne.s32.totalorder %s25, %s28
    %p34 = scmp.eq.s32.totalorder %s15, 0
    %p35 = por %p33, %p34
    %p36 = scmp.ne.s32.totalorder %s25, %s28
    %p37 = scmp.eq.s32.totalorder %s20, 1
    %p38 = por %p36, %p37
    %p39 = scmp.ne.s32.totalorder %s28, %s29
    %p40 = scmp.eq.s32.totalorder %s20, 0
    %p41 = por %p39, %p40
    %p42 = scmp.ne.s32.totalorder %s28, %s29
    %p43 = scmp.eq.s32.totalorder %s21, 1
    %p44 = por %p42, %p43
    %p46 = scmp.ne.s32.totalorder %s29, %s45
    %p47 = scmp.eq.s32.totalorder %s21, 0
    %p48 = por %p46, %p47
    %s49 = ssub.s32 %s15, %s22
    %p50 = scmp.eq.s32.totalorder %s49, 0
    %s52 = sadd.s32 %s51, 1
    %s53 = scalar_select %p50, %s51, %s52
    %p56 = pneg %p50
    %p57 = scmp.eq.s32.totalorder %s15, 1
    %p58 = por %p56, %p57
    %p59 = scmp.ne.s32.totalorder %s51, %s54
    %p60 = scmp.eq.s32.totalorder %s15, 0
    %p61 = por %p59, %p60
    %p62 = scmp.ne.s32.totalorder %s51, %s54
    %p63 = scmp.eq.s32.totalorder %s20, 1
    %p64 = por %p62, %p63
    %p65 = scmp.ne.s32.totalorder %s54, %s55
    %p66 = scmp.eq.s32.totalorder %s20, 0
    %p67 = por %p65, %p66
    %p68 = scmp.ne.s32.totalorder %s54, %s55
    %p69 = scmp.eq.s32.totalorder %s21, 1
    %p70 = por %p68, %p69
    %p72 = scmp.ne.s32.totalorder %s55, %s71
    %p73 = scmp.eq.s32.totalorder %s21, 0
    %p74 = por %p72, %p73
    %s76 = sadd.s32 %s75, 1
    %p79 = scmp.eq.s32.totalorder %s15, 1
    %p80 = scmp.ne.s32.totalorder %s75, %s77
    %p81 = scmp.eq.s32.totalorder %s15, 0
    %p82 = por %p80, %p81
    %p83 = scmp.ne.s32.totalorder %s75, %s77
    %p84 = scmp.eq.s32.totalorder %s20, 1
    %p85 = por %p83, %p84
    %p86 = scmp.ne.s32.totalorder %s77, %s78
    %p87 = scmp.eq.s32.totalorder %s20, 0
    %p88 = por %p86, %p87
    %p89 = scmp.ne.s32.totalorder %s77, %s78
    %p90 = scmp.eq.s32.totalorder %s21, 1
    %p91 = por %p89, %p90
    %p93 = scmp.ne.s32.totalorder %s78, %s92
    %p94 = scmp.eq.s32.totalorder %s21, 0
    %p95 = por %p93, %p94
    %s97 = sadd.s32 %s96, 1
    %p100 = scmp.eq.s32.totalorder %s15, 1
    %p101 = scmp.ne.s32.totalorder %s96, %s98
    %p102 = scmp.eq.s32.totalorder %s15, 0
    %p103 = por %p101, %p102
    %p104 = scmp.ne.s32.totalorder %s96, %s98
    %p105 = scmp.eq.s32.totalorder %s20, 1
    %p106 = por %p104, %p105
    %p107 = scmp.ne.s32.totalorder %s98, %s99
    %p108 = scmp.eq.s32.totalorder %s20, 0
    %p109 = por %p107, %p108
    %p110 = scmp.ne.s32.totalorder %s98, %s99
    %p111 = scmp.eq.s32.totalorder %s21, 1
    %p112 = por %p110, %p111
    %p114 = scmp.ne.s32.totalorder %s99, %s113
    %p115 = scmp.eq.s32.totalorder %s21, 0
    %p116 = por %p114, %p115
    %s118 = sadd.s32 %s117, 1
    %p121 = scmp.eq.s32.totalorder %s15, 1
    %p122 = scmp.ne.s32.totalorder %s117, %s119
    %p123 = scmp.eq.s32.totalorder %s15, 0
    %p124 = por %p122, %p123
    %p125 = scmp.ne.s32.totalorder %s117, %s119
    %p126 = scmp.eq.s32.totalorder %s20, 1
    %p127 = por %p125, %p126
    %p128 = scmp.ne.s32.totalorder %s119, %s120
    %p129 = scmp.eq.s32.totalorder %s20, 0
    %p130 = por %p128, %p129
    %p131 = scmp.ne.s32.totalorder %s119, %s120
    %p132 = scmp.eq.s32.totalorder %s21, 1
    %p133 = por %p131, %p132
    %p135 = scmp.ne.s32.totalorder %s120, %s134
    %p136 = scmp.eq.s32.totalorder %s21, 0
    %p137 = por %p135, %p136
    %s139 = sadd.s32 %s138, 1
    %p142 = scmp.eq.s32.totalorder %s15, 1
    %p143 = scmp.ne.s32.totalorder %s138, %s140
    %p144 = scmp.eq.s32.totalorder %s15, 0
    %p145 = por %p143, %p144
    %p146 = scmp.ne.s32.totalorder %s138, %s140
    %p147 = scmp.eq.s32.totalorder %s20, 1
    %p148 = por %p146, %p147
    %p149 = scmp.ne.s32.totalorder %s140, %s141
    %p150 = scmp.eq.s32.totalorder %s20, 0
    %p151 = por %p149, %p150
    %p152 = scmp.ne.s32.totalorder %s140, %s141
    %p153 = scmp.eq.s32.totalorder %s21, 1
    %p154 = por %p152, %p153
    %p156 = scmp.ne.s32.totalorder %s141, %s155
    %p157 = scmp.eq.s32.totalorder %s21, 0
    %p158 = por %p156, %p157
    %s160 = sadd.s32 %s159, 1
    %p163 = scmp.eq.s32.totalorder %s15, 1
    %p164 = scmp.ne.s32.totalorder %s159, %s161
    %p165 = scmp.eq.s32.totalorder %s15, 0
    %p166 = por %p164, %p165
    %p167 = scmp.ne.s32.totalorder %s159, %s161
    %p168 = scmp.eq.s32.totalorder %s20, 1
    %p169 = por %p167, %p168
    %p170 = scmp.ne.s32.totalorder %s161, %s162
    %p171 = scmp.eq.s32.totalorder %s20, 0
    %p172 = por %p170, %p171
    %p173 = scmp.ne.s32.totalorder %s161, %s162
    %p174 = scmp.eq.s32.totalorder %s21, 1
    %p175 = por %p173, %p174
    %p177 = scmp.ne.s32.totalorder %s162, %s176
    %p178 = scmp.eq.s32.totalorder %s21, 0
    %p179 = por %p177, %p178
    %s181 = sadd.s32 %s180, 1
    %p184 = scmp.eq.s32.totalorder %s15, 1
    %p185 = scmp.ne.s32.totalorder %s180, %s182
    %p186 = scmp.eq.s32.totalorder %s15, 0
    %p187 = por %p185, %p186
    %p188 = scmp.ne.s32.totalorder %s180, %s182
    %p189 = scmp.eq.s32.totalorder %s20, 1
    %p190 = por %p188, %p189
    %p191 = scmp.ne.s32.totalorder %s182, %s183
    %p192 = scmp.eq.s32.totalorder %s20, 0
    %p193 = por %p191, %p192
    %p194 = scmp.ne.s32.totalorder %s182, %s183
    %p195 = scmp.eq.s32.totalorder %s21, 1
    %p196 = por %p194, %p195
    %p198 = scmp.ne.s32.totalorder %s183, %s197
    %p199 = scmp.eq.s32.totalorder %s21, 0
    %p200 = por %p198, %p199
    %s202 = sadd.s32 %s201, 1
    %p205 = scmp.eq.s32.totalorder %s15, 1
    %p206 = scmp.ne.s32.totalorder %s201, %s203
    %p207 = scmp.eq.s32.totalorder %s15, 0
    %p208 = por %p206, %p207
    %p209 = scmp.ne.s32.totalorder %s201, %s203
    %p210 = scmp.eq.s32.totalorder %s20, 1
    %p211 = por %p209, %p210
    %p212 = scmp.ne.s32.totalorder %s203, %s204
    %p213 = scmp.eq.s32.totalorder %s20, 0
    %p214 = por %p212, %p213
    %p215 = scmp.ne.s32.totalorder %s203, %s204
    %p216 = scmp.eq.s32.totalorder %s21, 1
    %p217 = por %p215, %p216
    %p219 = scmp.ne.s32.totalorder %s204, %s218
    %p220 = scmp.eq.s32.totalorder %s21, 0
    %p221 = por %p219, %p220
    %s222 = ssub.s32 %s15, %s22
    %p223 = scmp.eq.s32.totalorder %s222, 0
    %s225 = sadd.s32 %s224, 1
    %s226 = scalar_select %p223, %s224, %s225
    %p229 = pneg %p223
    %p230 = scmp.eq.s32.totalorder %s15, 1
    %p231 = por %p229, %p230
    %p232 = scmp.ne.s32.totalorder %s224, %s227
    %p233 = scmp.eq.s32.totalorder %s15, 0
    %p234 = por %p232, %p233
    %p235 = scmp.ne.s32.totalorder %s224, %s227
    %p236 = scmp.eq.s32.totalorder %s20, 1
    %p237 = por %p235, %p236
    %p238 = scmp.ne.s32.totalorder %s227, %s228
    %p239 = scmp.eq.s32.totalorder %s20, 0
    %p240 = por %p238, %p239
    %p241 = scmp.ne.s32.totalorder %s227, %s228
    %p242 = scmp.eq.s32.totalorder %s21, 1
    %p243 = por %p241, %p242
    %p245 = scmp.ne.s32.totalorder %s228, %s244
    %p246 = scmp.eq.s32.totalorder %s21, 0
    %p247 = por %p245, %p246
    %p248 = scmp.le.s32.totalorder 1, %s15
    %p249 = scmp.lt.s32.totalorder %s15, 3
    %p250 = pnand %p248, %p249
    %p251 = pneg %p250
    // Predicated region
    $region9: #{pointnetpp_forward.6} parent=5 // pred_check
      _
    $region10: #{pointnetpp_forward.6} parent=5 // pred_check_branch
      %253 = sbr.rel (%p250) target = $region12
    $region11: #{pointnetpp_forward.6} parent=5 // pred_region
      %s254 = ssub.s32 %s15, 1
      // Predicated region
      $region13: #{pointnetpp_forward.6} parent=11 // pred_check
        %p255 = pneg %p88
      $region14: #{pointnetpp_forward.6} parent=11 // pred_check_branch
        %257 = sbr.rel (%p255) target = $region16
      $region15: #{pointnetpp_forward.6} parent=11 // pred_region
        _
      $region16: #{pointnetpp_forward.6} parent=11 // pred_fallthru
        _
      // Predicated region
      $region17: #{pointnetpp_forward.6} parent=11 // pred_check
        %p258 = pneg %p109
      $region18: #{pointnetpp_forward.6} parent=11 // pred_check_branch
        %260 = sbr.rel (%p258) target = $region20
      $region19: #{pointnetpp_forward.6} parent=11 // pred_region
        _
      $region20: #{pointnetpp_forward.6} parent=11 // pred_fallthru
        _
      // Predicated region
      $region21: #{pointnetpp_forward.6} parent=11 // pred_check
        %p261 = pneg %p130
      $region22: #{pointnetpp_forward.6} parent=11 // pred_check_branch
        %263 = sbr.rel (%p261) target = $region24
      $region23: #{pointnetpp_forward.6} parent=11 // pred_region
        _
      $region24: #{pointnetpp_forward.6} parent=11 // pred_fallthru
        _
      // Predicated region
      $region25: #{pointnetpp_forward.6} parent=11 // pred_check
        %p264 = pneg %p151
      $region26: #{pointnetpp_forward.6} parent=11 // pred_check_branch
        %266 = sbr.rel (%p264) target = $region28
      $region27: #{pointnetpp_forward.6} parent=11 // pred_region
        _
      $region28: #{pointnetpp_forward.6} parent=11 // pred_fallthru
        _
      // Predicated region
      $region29: #{pointnetpp_forward.6} parent=11 // pred_check
        %p267 = pneg %p172
      $region30: #{pointnetpp_forward.6} parent=11 // pred_check_branch
        %269 = sbr.rel (%p267) target = $region32
      $region31: #{pointnetpp_forward.6} parent=11 // pred_region
        _
      $region32: #{pointnetpp_forward.6} parent=11 // pred_fallthru
        _
      // Predicated region
      $region33: #{pointnetpp_forward.6} parent=11 // pred_check
        %p270 = pneg %p193
      $region34: #{pointnetpp_forward.6} parent=11 // pred_check_branch
        %272 = sbr.rel (%p270) target = $region36
      $region35: #{pointnetpp_forward.6} parent=11 // pred_region
        _
      $region36: #{pointnetpp_forward.6} parent=11 // pred_fallthru
        _
      // Predicated region
      $region37: #{pointnetpp_forward.6} parent=11 // pred_check
        %p273 = pneg %p214
      $region38: #{pointnetpp_forward.6} parent=11 // pred_check_branch
        %275 = sbr.rel (%p273) target = $region40
      $region39: #{pointnetpp_forward.6} parent=11 // pred_region
        _
      $region40: #{pointnetpp_forward.6} parent=11 // pred_fallthru
        _
    $region12: #{pointnetpp_forward.6} parent=5 // pred_fallthru
      _
    %p276 = scmp.lt.s32.totalorder %s15, 2
    // Predicated region
    $region41: #{pointnetpp_forward.6} parent=5 // pred_check
      %p277 = pneg %p276
    $region42: #{pointnetpp_forward.6} parent=5 // pred_check_branch
      %279 = sbr.rel (%p277) target = $region44
    $region43: #{pointnetpp_forward.6} parent=5 // pred_region
      // Predicated region
      $region45: #{pointnetpp_forward.6} parent=43 // pred_check
        %p280 = pneg %p35
      $region46: #{pointnetpp_forward.6} parent=43 // pred_check_branch
        %282 = sbr.rel (%p280) target = $region48
      $region47: #{pointnetpp_forward.6} parent=43 // pred_region
        %p283 = scmp.lt.s32.totalorder %s15, 1
        %s284 = scalar_select %p283, %s15, 1
        %s285 = smul.addr %s284, 2
        %s286 = smul.addr %s285, 4
        %s287 = scalar_lea.vmem %s0, %s286
      $region48: #{pointnetpp_forward.6} parent=43 // pred_fallthru
        _
      // Predicated region
      $region49: #{pointnetpp_forward.6} parent=43 // pred_check
        %p288 = pneg %p61
      $region50: #{pointnetpp_forward.6} parent=43 // pred_check_branch
        %290 = sbr.rel (%p288) target = $region52
      $region51: #{pointnetpp_forward.6} parent=43 // pred_region
        %p291 = scmp.lt.s32.totalorder %s15, 1
        %s292 = scalar_select %p291, %s15, 1
        %s293 = smul.addr %s292, 4
        %s294 = scalar_lea.vmem %s1, %s293
      $region52: #{pointnetpp_forward.6} parent=43 // pred_fallthru
        _
    $region44: #{pointnetpp_forward.6} parent=5 // pred_fallthru
      _
    %p295 = scmp.le.s32.totalorder 1, %s15
    %p296 = scmp.lt.s32.totalorder %s15, 3
    %p297 = pnand %p295, %p296
    %p298 = pneg %p297
    // Predicated region
    $region53: #{pointnetpp_forward.6} parent=5 // pred_check
      _
    $region54: #{pointnetpp_forward.6} parent=5 // pred_check_branch
      %300 = sbr.rel (%p297) target = $region56
    $region55: #{pointnetpp_forward.6} parent=5 // pred_region
      %s301 = ssub.s32 %s15, 1
      %p302 = scmp.lt.s32.totalorder %s20, 1
      %s303 = scalar_select %p302, %s20, 1
      %s304 = smul.addr %s303, 2
      %s305 = smul.addr %s304, 4
      %s306 = scalar_lea.vmem %s0, %s305
      %p307 = pneg %p41
      %p308 = pneg %p38
      %p309 = scmp.lt.s32.totalorder %s20, 1
      %s310 = scalar_select %p309, %s20, 1
      %s311 = smul.addr %s310, 4
      %s312 = scalar_lea.vmem %s1, %s311
      %p313 = pneg %p67
      %p314 = pneg %p64
      %p315 = pneg %p88
      %p316 = pneg %p85
      %p317 = pneg %p109
      %p318 = pneg %p106
      %p319 = pneg %p130
      %p320 = pneg %p127
      %p321 = pneg %p151
      %p322 = pneg %p148
      %p323 = pneg %p172
      %p324 = pneg %p169
      %p325 = pneg %p193
      %p326 = pneg %p190
      %p327 = pneg %p214
      %p328 = pneg %p211
      %p329 = pneg %p240
      %p330 = pneg %p237
      %p331 = scmp.lt.s32.totalorder %s20, 1
      %s332 = scalar_select %p331, %s20, 1
      %s333 = smul.addr %s332, 8
      %s334 = scalar_lea.vmem %s9, %s333
      %p335 = scmp.lt.s32.totalorder %s20, 1
      %s336 = scalar_select %p335, %s20, 1
      %s337 = smul.addr %s336, 2
      %s338 = smul.addr %s337, 4
      %s339 = scalar_lea.vmem %s0, %s338
      %p340 = scmp.lt.s32.totalorder %s20, 1
      %s341 = scalar_select %p340, %s20, 1
      %s342 = smul.addr %s341, 4
      %s343 = scalar_lea.vmem %s1, %s342
      %p344 = scmp.lt.s32.totalorder %s20, 1
      %s345 = scalar_select %p344, %s20, 1
      %s346 = smul.addr %s345, 8
      %s347 = scalar_lea.vmem %s9, %s346
      %v349 = vld [vmem:[%s339] sm:$0xff]
      %v350 = vld [vmem:[%s343] sm:$0xf]
      %v351 = vld [vmem:[%s2] sm:$0xff]
      %v352 = vld [vmem:[%s2 + $0x8] sm:$0xff]
      %v353 = vld [vmem:[%s2 + $0x10] sm:$0xff]
      %v354 = vld [vmem:[%s2 + $0x18] sm:$0xff]
      %v355 = vld [vmem:[%s2 + $0x20] sm:$0xff]
      %v356 = vld [vmem:[%s2 + $0x28] sm:$0xff]
      %v357 = vld [vmem:[%s2 + $0x30] sm:$0xff]
      %v358 = vld [vmem:[%s2 + $0x38] sm:$0xff]
      %v359 = vld [vmem:[%s2 + $0x40] sm:$0xff]
      %v360 = vld [vmem:[%s2 + $0x48] sm:$0xff]
      %v361 = vld [vmem:[%s2 + $0x50] sm:$0xff]
      %v362 = vld [vmem:[%s2 + $0x58] sm:$0xff]
      %v363 = vld [vmem:[%s2 + $0x60] sm:$0xff]
      %v364 = vld [vmem:[%s2 + $0x68] sm:$0xff]
      %v365 = vld [vmem:[%s2 + $0x70] sm:$0xff]
      %v366 = vld [vmem:[%s2 + $0x78] sm:$0xff]
      %v367 = vld [vmem:[%s2 + $0x80] sm:$0xff]
      %v368 = vld [vmem:[%s2 + $0x88] sm:$0xff]
      %v369 = vld [vmem:[%s2 + $0x90] sm:$0xff]
      %v370 = vld [vmem:[%s2 + $0x98] sm:$0xff]
      %v371 = vld [vmem:[%s2 + $0xa0] sm:$0xff]
      %v372 = vld [vmem:[%s2 + $0xa8] sm:$0xff]
      %v373 = vld [vmem:[%s2 + $0xb0] sm:$0xff]
      %v374 = vld [vmem:[%s2 + $0xb8] sm:$0xff]
      %v375 = vld [vmem:[%s2 + $0xc0] sm:$0xff]
      %v376 = vld [vmem:[%s2 + $0xc8] sm:$0xff]
      %v377 = vld [vmem:[%s2 + $0xd0] sm:$0xff]
      %v378 = vld [vmem:[%s2 + $0xd8] sm:$0xff]
      %v379 = vld [vmem:[%s2 + $0xe0] sm:$0xff]
      %v380 = vld [vmem:[%s2 + $0xe8] sm:$0xff]
      %v381 = vld [vmem:[%s2 + $0xf0] sm:$0xff]
      %v382 = vld [vmem:[%s2 + $0xf8] sm:$0xff]
      %v383 = vld [vmem:[%s3] sm:$0xff]
      %v385 = vunpack.c.l.b16 %v383
      %v386 = vunpack.c.h.b16 %v383
      %v387 = vpack.c.b16 %v385, %v385
      %v388 = vpack.c.b16 %v386, %v386
      %vm389 = vcmask 64512
      %v391 = vsel %vm389, %v350, 0
      %vm393 = vcmask 1043456
      %v395 = vsel %vm393, %v387, 0
      %v398 = vsel %vm393, %v388, 0
      %400 = vmatprep.subr.bf16.mxu0 %v398
      %401 = vmatpush1.bf16.msra.mxu0 %v395
      %402 = vmatprep.subr.bf16.mxu0 0
      %403 = vmatpush1.bf16.msra.mxu0 0
      %404 = vmatprep.subr.bf16.mxu0 0
      %405 = vmatpush1.bf16.msra.mxu0 0
      %406 = vmatprep.subr.bf16.mxu0 0
      %407 = vmatpush1.bf16.msra.mxu0 0
      %408 = vmatprep.subr.bf16.mxu0 0
      %409 = vmatpush1.bf16.msra.mxu0 0
      %410 = vmatprep.subr.bf16.mxu0 0
      %411 = vmatpush1.bf16.msra.mxu0 0
      %412 = vmatprep.subr.bf16.mxu0 0
      %413 = vmatpush1.bf16.msra.mxu0 0
      %414 = vmatprep.subr.bf16.mxu0 0
      %415 = vmatpush1.bf16.msra.mxu0 0
      %416 = vmatprep.subr.bf16.mxu0 0
      %417 = vmatpush1.bf16.msra.mxu0 0
      %418 = vmatprep.subr.bf16.mxu0 0
      %419 = vmatpush1.bf16.msra.mxu0 0
      %420 = vmatprep.subr.bf16.mxu0 0
      %421 = vmatpush1.bf16.msra.mxu0 0
      %422 = vmatprep.subr.bf16.mxu0 0
      %423 = vmatpush1.bf16.msra.mxu0 0
      %424 = vmatprep.subr.bf16.mxu0 0
      %425 = vmatpush1.bf16.msra.mxu0 0
      %426 = vmatprep.subr.bf16.mxu0 0
      %427 = vmatpush1.bf16.msra.mxu0 0
      %428 = vmatprep.subr.bf16.mxu0 0
      %429 = vmatpush1.bf16.msra.mxu0 0
      %430 = vmatprep.subr.bf16.mxu0 0
      %431 = vmatpush1.bf16.msra.mxu0 0
      %432 = vmatprep.mubr.bf16.mxu0 0
      %433 = vmatmul.mubr.bf16.gmra.mrb[0].mxu0 %v391
      %v434 = vpop.f32.mrb[0].mxu0
      %v435 = vadd.f32 0.0, %v434
      %v436 = vpop.f32.mrb[0].mxu0
      %v437 = vadd.f32 0.0, %v436
      %v438 = vpop.f32.mrb[0].mxu0
      %v439 = vpop.f32.mrb[0].mxu0
      %440 = vdwg.mxu0
      %v442 = vunpack.c.l.b16 %v349
      %v443 = vunpack.c.h.b16 %v349
      %v444 = vpack.c.b16 %v442, %v442
      %v445 = vpack.c.b16 %v443, %v443
      %v480 = vunpack.c.l.b16 %v351
      %v481 = vunpack.c.h.b16 %v351
      %v482 = vunpack.c.l.b16 %v352
      %v483 = vunpack.c.h.b16 %v352
      %v484 = vunpack.c.l.b16 %v353
      %v485 = vunpack.c.h.b16 %v353
      %v486 = vunpack.c.l.b16 %v354
      %v487 = vunpack.c.h.b16 %v354
      %v488 = vunpack.c.l.b16 %v355
      %v489 = vunpack.c.h.b16 %v355
      %v490 = vunpack.c.l.b16 %v356
      %v491 = vunpack.c.h.b16 %v356
      %v492 = vunpack.c.l.b16 %v357
      %v493 = vunpack.c.h.b16 %v357
      %v494 = vunpack.c.l.b16 %v358
      %v495 = vunpack.c.h.b16 %v358
      %v496 = vunpack.c.l.b16 %v359
      %v497 = vunpack.c.h.b16 %v359
      %v498 = vunpack.c.l.b16 %v360
      %v499 = vunpack.c.h.b16 %v360
      %v500 = vunpack.c.l.b16 %v361
      %v501 = vunpack.c.h.b16 %v361
      %v502 = vunpack.c.l.b16 %v362
      %v503 = vunpack.c.h.b16 %v362
      %v504 = vunpack.c.l.b16 %v363
      %v505 = vunpack.c.h.b16 %v363
      %v506 = vunpack.c.l.b16 %v364
      %v507 = vunpack.c.h.b16 %v364
      %v508 = vunpack.c.l.b16 %v365
      %v509 = vunpack.c.h.b16 %v365
      %v510 = vunpack.c.l.b16 %v366
      %v511 = vunpack.c.h.b16 %v366
      %v512 = vunpack.c.l.b16 %v367
      %v513 = vunpack.c.h.b16 %v367
      %v514 = vunpack.c.l.b16 %v368
      %v515 = vunpack.c.h.b16 %v368
      %v516 = vunpack.c.l.b16 %v369
      %v517 = vunpack.c.h.b16 %v369
      %v518 = vunpack.c.l.b16 %v370
      %v519 = vunpack.c.h.b16 %v370
      %v520 = vunpack.c.l.b16 %v371
      %v521 = vunpack.c.h.b16 %v371
      %v522 = vunpack.c.l.b16 %v372
      %v523 = vunpack.c.h.b16 %v372
      %v524 = vunpack.c.l.b16 %v373
      %v525 = vunpack.c.h.b16 %v373
      %v526 = vunpack.c.l.b16 %v374
      %v527 = vunpack.c.h.b16 %v374
      %v528 = vunpack.c.l.b16 %v375
      %v529 = vunpack.c.h.b16 %v375
      %v530 = vunpack.c.l.b16 %v376
      %v531 = vunpack.c.h.b16 %v376
      %v532 = vunpack.c.l.b16 %v377
      %v533 = vunpack.c.h.b16 %v377
      %v534 = vunpack.c.l.b16 %v378
      %v535 = vunpack.c.h.b16 %v378
      %v536 = vunpack.c.l.b16 %v379
      %v537 = vunpack.c.h.b16 %v379
      %v538 = vunpack.c.l.b16 %v380
      %v539 = vunpack.c.h.b16 %v380
      %v540 = vunpack.c.l.b16 %v381
      %v541 = vunpack.c.h.b16 %v381
      %v542 = vunpack.c.l.b16 %v382
      %v543 = vunpack.c.h.b16 %v382
      %v544 = vpack.c.b16 %v482, %v480
      %v545 = vpack.c.b16 %v483, %v481
      %v546 = vpack.c.b16 %v486, %v484
      %v547 = vpack.c.b16 %v487, %v485
      %v548 = vpack.c.b16 %v490, %v488
      %v549 = vpack.c.b16 %v491, %v489
      %v550 = vpack.c.b16 %v494, %v492
      %v551 = vpack.c.b16 %v495, %v493
      %v552 = vpack.c.b16 %v498, %v496
      %v553 = vpack.c.b16 %v499, %v497
      %v554 = vpack.c.b16 %v502, %v500
      %v555 = vpack.c.b16 %v503, %v501
      %v556 = vpack.c.b16 %v506, %v504
      %v557 = vpack.c.b16 %v507, %v505
      %v558 = vpack.c.b16 %v510, %v508
      %v559 = vpack.c.b16 %v511, %v509
      %v560 = vpack.c.b16 %v514, %v512
      %v561 = vpack.c.b16 %v515, %v513
      %v562 = vpack.c.b16 %v518, %v516
      %v563 = vpack.c.b16 %v519, %v517
      %v564 = vpack.c.b16 %v522, %v520
      %v565 = vpack.c.b16 %v523, %v521
      %v566 = vpack.c.b16 %v526, %v524
      %v567 = vpack.c.b16 %v527, %v525
      %v568 = vpack.c.b16 %v530, %v528
      %v569 = vpack.c.b16 %v531, %v529
      %v570 = vpack.c.b16 %v534, %v532
      %v571 = vpack.c.b16 %v535, %v533
      %v572 = vpack.c.b16 %v538, %v536
      %v573 = vpack.c.b16 %v539, %v537
      %v574 = vpack.c.b16 %v542, %v540
      %v575 = vpack.c.b16 %v543, %v541
      %608 = vmatprep.subr.bf16.mxu0 %v545
      %609 = vmatpush1.bf16.msra.mxu0 %v544
      %610 = vmatprep.subr.bf16.mxu0 %v547
      %611 = vmatpush1.bf16.msra.mxu0 %v546
      %612 = vmatprep.subr.bf16.mxu0 %v549
      %613 = vmatpush1.bf16.msra.mxu0 %v548
      %614 = vmatprep.subr.bf16.mxu0 %v551
      %615 = vmatpush1.bf16.msra.mxu0 %v550
      %616 = vmatprep.subr.bf16.mxu0 %v553
      %617 = vmatpush1.bf16.msra.mxu0 %v552
      %618 = vmatprep.subr.bf16.mxu0 %v555
      %619 = vmatpush1.bf16.msra.mxu0 %v554
      %620 = vmatprep.subr.bf16.mxu0 %v557
      %621 = vmatpush1.bf16.msra.mxu0 %v556
      %622 = vmatprep.subr.bf16.mxu0 %v559
      %623 = vmatpush1.bf16.msra.mxu0 %v558
      %624 = vmatprep.subr.bf16.mxu0 %v561
      %625 = vmatpush1.bf16.msra.mxu0 %v560
      %626 = vmatprep.subr.bf16.mxu0 %v563
      %627 = vmatpush1.bf16.msra.mxu0 %v562
      %628 = vmatprep.subr.bf16.mxu0 %v565
      %629 = vmatpush1.bf16.msra.mxu0 %v564
      %630 = vmatprep.subr.bf16.mxu0 %v567
      %631 = vmatpush1.bf16.msra.mxu0 %v566
      %632 = vmatprep.subr.bf16.mxu0 %v569
      %633 = vmatpush1.bf16.msra.mxu0 %v568
      %634 = vmatprep.subr.bf16.mxu0 %v571
      %635 = vmatpush1.bf16.msra.mxu0 %v570
      %636 = vmatprep.subr.bf16.mxu0 %v573
      %637 = vmatpush1.bf16.msra.mxu0 %v572
      %638 = vmatprep.subr.bf16.mxu0 %v575
      %639 = vmatpush1.bf16.msra.mxu0 %v574
      %640 = vmatprep.mubr.bf16.mxu0 %v445
      %641 = vmatmul.mubr.bf16.gmra.mrb[0].mxu0 %v444
      %v642 = vpop.f32.mrb[0].mxu0
      %v643 = vadd.f32 %v435, %v642
      %v644 = vpop.f32.mrb[0].mxu0
      %v645 = vadd.f32 %v437, %v644
      %v646 = vpop.f32.mrb[0].mxu0
      %v647 = vpop.f32.mrb[0].mxu0
      %648 = vdwg.mxu0
      %v649 = vld [vmem:[%s4] sm:$0x3]
      %v651 = vlaneseq
      %v652 = vshrl.u32 %v651, 7
      %v653 = vsub.s32 0, %v652
      %v654 = vrot.slane %v649, %v653
      %v655 = vlaneseq
      %v656 = vshrl.u32 %v655, 7
      %v657 = vsub.s32 1, %v656
      %v658 = vrot.slane %v649, %v657
      %v661 = vadd.f32 %v643, %v654
      %v662 = vadd.f32 %v645, %v658
      %v663 = vmax.f32 %v661, 0.0
      %v664 = vmax.f32 %v662, 0.0
      %v665 = vpack.c.bf16 %v663, %v663
      %v666 = vpack.c.bf16 %v664, %v664
      %v667 = vld [vmem:[%s5] sm:$0xff]
      %v668 = vld [vmem:[%s5 + $0x8] sm:$0xff]
      %v669 = vld [vmem:[%s5 + $0x10] sm:$0xff]
      %v670 = vld [vmem:[%s5 + $0x18] sm:$0xff]
      %v671 = vld [vmem:[%s5 + $0x20] sm:$0xff]
      %v672 = vld [vmem:[%s5 + $0x28] sm:$0xff]
      %v673 = vld [vmem:[%s5 + $0x30] sm:$0xff]
      %v674 = vld [vmem:[%s5 + $0x38] sm:$0xff]
      %v675 = vld [vmem:[%s5 + $0x40] sm:$0xff]
      %v676 = vld [vmem:[%s5 + $0x48] sm:$0xff]
      %v677 = vld [vmem:[%s5 + $0x50] sm:$0xff]
      %v678 = vld [vmem:[%s5 + $0x58] sm:$0xff]
      %v679 = vld [vmem:[%s5 + $0x60] sm:$0xff]
      %v680 = vld [vmem:[%s5 + $0x68] sm:$0xff]
      %v681 = vld [vmem:[%s5 + $0x70] sm:$0xff]
      %v682 = vld [vmem:[%s5 + $0x78] sm:$0xff]
      %v683 = vld [vmem:[%s5 + $0x80] sm:$0xff]
      %v684 = vld [vmem:[%s5 + $0x88] sm:$0xff]
      %v685 = vld [vmem:[%s5 + $0x90] sm:$0xff]
      %v686 = vld [vmem:[%s5 + $0x98] sm:$0xff]
      %v687 = vld [vmem:[%s5 + $0xa0] sm:$0xff]
      %v688 = vld [vmem:[%s5 + $0xa8] sm:$0xff]
      %v689 = vld [vmem:[%s5 + $0xb0] sm:$0xff]
      %v690 = vld [vmem:[%s5 + $0xb8] sm:$0xff]
      %v691 = vld [vmem:[%s5 + $0xc0] sm:$0xff]
      %v692 = vld [vmem:[%s5 + $0xc8] sm:$0xff]
      %v693 = vld [vmem:[%s5 + $0xd0] sm:$0xff]
      %v694 = vld [vmem:[%s5 + $0xd8] sm:$0xff]
      %v695 = vld [vmem:[%s5 + $0xe0] sm:$0xff]
      %v696 = vld [vmem:[%s5 + $0xe8] sm:$0xff]
      %v697 = vld [vmem:[%s5 + $0xf0] sm:$0xff]
      %v698 = vld [vmem:[%s5 + $0xf8] sm:$0xff]
      %v699 = vld [vmem:[%s5 + $0x100] sm:$0xff]
      %v700 = vld [vmem:[%s5 + $0x108] sm:$0xff]
      %v701 = vld [vmem:[%s5 + $0x110] sm:$0xff]
      %v702 = vld [vmem:[%s5 + $0x118] sm:$0xff]
      %v703 = vld [vmem:[%s5 + $0x120] sm:$0xff]
      %v704 = vld [vmem:[%s5 + $0x128] sm:$0xff]
      %v705 = vld [vmem:[%s5 + $0x130] sm:$0xff]
      %v706 = vld [vmem:[%s5 + $0x138] sm:$0xff]
      %v707 = vld [vmem:[%s5 + $0x140] sm:$0xff]
      %v708 = vld [vmem:[%s5 + $0x148] sm:$0xff]
      %v709 = vld [vmem:[%s5 + $0x150] sm:$0xff]
      %v710 = vld [vmem:[%s5 + $0x158] sm:$0xff]
      %v711 = vld [vmem:[%s5 + $0x160] sm:$0xff]
      %v712 = vld [vmem:[%s5 + $0x168] sm:$0xff]
      %v713 = vld [vmem:[%s5 + $0x170] sm:$0xff]
      %v714 = vld [vmem:[%s5 + $0x178] sm:$0xff]
      %v715 = vld [vmem:[%s5 + $0x180] sm:$0xff]
      %v716 = vld [vmem:[%s5 + $0x188] sm:$0xff]
      %v717 = vld [vmem:[%s5 + $0x190] sm:$0xff]
      %v718 = vld [vmem:[%s5 + $0x198] sm:$0xff]
      %v719 = vld [vmem:[%s5 + $0x1a0] sm:$0xff]
      %v720 = vld [vmem:[%s5 + $0x1a8] sm:$0xff]
      %v721 = vld [vmem:[%s5 + $0x1b0] sm:$0xff]
      %v722 = vld [vmem:[%s5 + $0x1b8] sm:$0xff]
      %v723 = vld [vmem:[%s5 + $0x1c0] sm:$0xff]
      %v724 = vld [vmem:[%s5 + $0x1c8] sm:$0xff]
      %v725 = vld [vmem:[%s5 + $0x1d0] sm:$0xff]
      %v726 = vld [vmem:[%s5 + $0x1d8] sm:$0xff]
      %v727 = vld [vmem:[%s5 + $0x1e0] sm:$0xff]
      %v728 = vld [vmem:[%s5 + $0x1e8] sm:$0xff]
      %v729 = vld [vmem:[%s5 + $0x1f0] sm:$0xff]
      %v730 = vld [vmem:[%s5 + $0x1f8] sm:$0xff]
      %v731 = vld [vmem:[%s6] sm:$0xf]
      %v733 = vlaneseq
      %v734 = vshrl.u32 %v733, 7
      %v735 = vsub.s32 0, %v734
      %v736 = vrot.slane %v731, %v735
      %v737 = vlaneseq
      %v738 = vshrl.u32 %v737, 7
      %v739 = vsub.s32 1, %v738
      %v740 = vrot.slane %v731, %v739
      %v741 = vlaneseq
      %v742 = vshrl.u32 %v741, 7
      %v743 = vsub.s32 2, %v742
      %v744 = vrot.slane %v731, %v743
      %v745 = vlaneseq
      %v746 = vshrl.u32 %v745, 7
      %v747 = vsub.s32 3, %v746
      %v748 = vrot.slane %v731, %v747
      %v817 = vunpack.c.l.b16 %v667
      %v818 = vunpack.c.h.b16 %v667
      %v819 = vunpack.c.l.b16 %v668
      %v820 = vunpack.c.h.b16 %v668
      %v821 = vunpack.c.l.b16 %v669
      %v822 = vunpack.c.h.b16 %v669
      %v823 = vunpack.c.l.b16 %v670
      %v824 = vunpack.c.h.b16 %v670
      %v825 = vunpack.c.l.b16 %v671
      %v826 = vunpack.c.h.b16 %v671
      %v827 = vunpack.c.l.b16 %v672
      %v828 = vunpack.c.h.b16 %v672
      %v829 = vunpack.c.l.b16 %v673
      %v830 = vunpack.c.h.b16 %v673
      %v831 = vunpack.c.l.b16 %v674
      %v832 = vunpack.c.h.b16 %v674
      %v833 = vunpack.c.l.b16 %v675
      %v834 = vunpack.c.h.b16 %v675
      %v835 = vunpack.c.l.b16 %v676
      %v836 = vunpack.c.h.b16 %v676
      %v837 = vunpack.c.l.b16 %v677
      %v838 = vunpack.c.h.b16 %v677
      %v839 = vunpack.c.l.b16 %v678
      %v840 = vunpack.c.h.b16 %v678
      %v841 = vunpack.c.l.b16 %v679
      %v842 = vunpack.c.h.b16 %v679
      %v843 = vunpack.c.l.b16 %v680
      %v844 = vunpack.c.h.b16 %v680
      %v845 = vunpack.c.l.b16 %v681
      %v846 = vunpack.c.h.b16 %v681
      %v847 = vunpack.c.l.b16 %v682
      %v848 = vunpack.c.h.b16 %v682
      %v849 = vunpack.c.l.b16 %v683
      %v850 = vunpack.c.h.b16 %v683
      %v851 = vunpack.c.l.b16 %v684
      %v852 = vunpack.c.h.b16 %v684
      %v853 = vunpack.c.l.b16 %v685
      %v854 = vunpack.c.h.b16 %v685
      %v855 = vunpack.c.l.b16 %v686
      %v856 = vunpack.c.h.b16 %v686
      %v857 = vunpack.c.l.b16 %v687
      %v858 = vunpack.c.h.b16 %v687
      %v859 = vunpack.c.l.b16 %v688
      %v860 = vunpack.c.h.b16 %v688
      %v861 = vunpack.c.l.b16 %v689
      %v862 = vunpack.c.h.b16 %v689
      %v863 = vunpack.c.l.b16 %v690
      %v864 = vunpack.c.h.b16 %v690
      %v865 = vunpack.c.l.b16 %v691
      %v866 = vunpack.c.h.b16 %v691
      %v867 = vunpack.c.l.b16 %v692
      %v868 = vunpack.c.h.b16 %v692
      %v869 = vunpack.c.l.b16 %v693
      %v870 = vunpack.c.h.b16 %v693
      %v871 = vunpack.c.l.b16 %v694
      %v872 = vunpack.c.h.b16 %v694
      %v873 = vunpack.c.l.b16 %v695
      %v874 = vunpack.c.h.b16 %v695
      %v875 = vunpack.c.l.b16 %v696
      %v876 = vunpack.c.h.b16 %v696
      %v877 = vunpack.c.l.b16 %v697
      %v878 = vunpack.c.h.b16 %v697
      %v879 = vunpack.c.l.b16 %v698
      %v880 = vunpack.c.h.b16 %v698
      %v881 = vunpack.c.l.b16 %v699
      %v882 = vunpack.c.h.b16 %v699
      %v883 = vunpack.c.l.b16 %v700
      %v884 = vunpack.c.h.b16 %v700
      %v885 = vunpack.c.l.b16 %v701
      %v886 = vunpack.c.h.b16 %v701
      %v887 = vunpack.c.l.b16 %v702
      %v888 = vunpack.c.h.b16 %v702
      %v889 = vunpack.c.l.b16 %v703
      %v890 = vunpack.c.h.b16 %v703
      %v891 = vunpack.c.l.b16 %v704
      %v892 = vunpack.c.h.b16 %v704
      %v893 = vunpack.c.l.b16 %v705
      %v894 = vunpack.c.h.b16 %v705
      %v895 = vunpack.c.l.b16 %v706
      %v896 = vunpack.c.h.b16 %v706
      %v897 = vunpack.c.l.b16 %v707
      %v898 = vunpack.c.h.b16 %v707
      %v899 = vunpack.c.l.b16 %v708
      %v900 = vunpack.c.h.b16 %v708
      %v901 = vunpack.c.l.b16 %v709
      %v902 = vunpack.c.h.b16 %v709
      %v903 = vunpack.c.l.b16 %v710
      %v904 = vunpack.c.h.b16 %v710
      %v905 = vunpack.c.l.b16 %v711
      %v906 = vunpack.c.h.b16 %v711
      %v907 = vunpack.c.l.b16 %v712
      %v908 = vunpack.c.h.b16 %v712
      %v909 = vunpack.c.l.b16 %v713
      %v910 = vunpack.c.h.b16 %v713
      %v911 = vunpack.c.l.b16 %v714
      %v912 = vunpack.c.h.b16 %v714
      %v913 = vunpack.c.l.b16 %v715
      %v914 = vunpack.c.h.b16 %v715
      %v915 = vunpack.c.l.b16 %v716
      %v916 = vunpack.c.h.b16 %v716
      %v917 = vunpack.c.l.b16 %v717
      %v918 = vunpack.c.h.b16 %v717
      %v919 = vunpack.c.l.b16 %v718
      %v920 = vunpack.c.h.b16 %v718
      %v921 = vunpack.c.l.b16 %v719
      %v922 = vunpack.c.h.b16 %v719
      %v923 = vunpack.c.l.b16 %v720
      %v924 = vunpack.c.h.b16 %v720
      %v925 = vunpack.c.l.b16 %v721
      %v926 = vunpack.c.h.b16 %v721
      %v927 = vunpack.c.l.b16 %v722
      %v928 = vunpack.c.h.b16 %v722
      %v929 = vunpack.c.l.b16 %v723
      %v930 = vunpack.c.h.b16 %v723
      %v931 = vunpack.c.l.b16 %v724
      %v932 = vunpack.c.h.b16 %v724
      %v933 = vunpack.c.l.b16 %v725
      %v934 = vunpack.c.h.b16 %v725
      %v935 = vunpack.c.l.b16 %v726
      %v936 = vunpack.c.h.b16 %v726
      %v937 = vunpack.c.l.b16 %v727
      %v938 = vunpack.c.h.b16 %v727
      %v939 = vunpack.c.l.b16 %v728
      %v940 = vunpack.c.h.b16 %v728
      %v941 = vunpack.c.l.b16 %v729
      %v942 = vunpack.c.h.b16 %v729
      %v943 = vunpack.c.l.b16 %v730
      %v944 = vunpack.c.h.b16 %v730
      %v945 = vpack.c.b16 %v821, %v817
      %v946 = vpack.c.b16 %v822, %v818
      %v947 = vpack.c.b16 %v823, %v819
      %v948 = vpack.c.b16 %v824, %v820
      %v949 = vpack.c.b16 %v829, %v825
      %v950 = vpack.c.b16 %v830, %v826
      %v951 = vpack.c.b16 %v831, %v827
      %v952 = vpack.c.b16 %v832, %v828
      %v953 = vpack.c.b16 %v837, %v833
      %v954 = vpack.c.b16 %v838, %v834
      %v955 = vpack.c.b16 %v839, %v835
      %v956 = vpack.c.b16 %v840, %v836
      %v957 = vpack.c.b16 %v845, %v841
      %v958 = vpack.c.b16 %v846, %v842
      %v959 = vpack.c.b16 %v847, %v843
      %v960 = vpack.c.b16 %v848, %v844
      %v961 = vpack.c.b16 %v853, %v849
      %v962 = vpack.c.b16 %v854, %v850
      %v963 = vpack.c.b16 %v855, %v851
      %v964 = vpack.c.b16 %v856, %v852
      %v965 = vpack.c.b16 %v861, %v857
      %v966 = vpack.c.b16 %v862, %v858
      %v967 = vpack.c.b16 %v863, %v859
      %v968 = vpack.c.b16 %v864, %v860
      %v969 = vpack.c.b16 %v869, %v865
      %v970 = vpack.c.b16 %v870, %v866
      %v971 = vpack.c.b16 %v871, %v867
      %v972 = vpack.c.b16 %v872, %v868
      %v973 = vpack.c.b16 %v877, %v873
      %v974 = vpack.c.b16 %v878, %v874
      %v975 = vpack.c.b16 %v879, %v875
      %v976 = vpack.c.b16 %v880, %v876
      %v977 = vpack.c.b16 %v885, %v881
      %v978 = vpack.c.b16 %v886, %v882
      %v979 = vpack.c.b16 %v887, %v883
      %v980 = vpack.c.b16 %v888, %v884
      %v981 = vpack.c.b16 %v893, %v889
      %v982 = vpack.c.b16 %v894, %v890
      %v983 = vpack.c.b16 %v895, %v891
      %v984 = vpack.c.b16 %v896, %v892
      %v985 = vpack.c.b16 %v901, %v897
      %v986 = vpack.c.b16 %v902, %v898
      %v987 = vpack.c.b16 %v903, %v899
      %v988 = vpack.c.b16 %v904, %v900
      %v989 = vpack.c.b16 %v909, %v905
      %v990 = vpack.c.b16 %v910, %v906
      %v991 = vpack.c.b16 %v911, %v907
      %v992 = vpack.c.b16 %v912, %v908
      %v993 = vpack.c.b16 %v917, %v913
      %v994 = vpack.c.b16 %v918, %v914
      %v995 = vpack.c.b16 %v919, %v915
      %v996 = vpack.c.b16 %v920, %v916
      %v997 = vpack.c.b16 %v925, %v921
      %v998 = vpack.c.b16 %v926, %v922
      %v999 = vpack.c.b16 %v927, %v923
      %v1000 = vpack.c.b16 %v928, %v924
      %v1001 = vpack.c.b16 %v933, %v929
      %v1002 = vpack.c.b16 %v934, %v930
      %v1003 = vpack.c.b16 %v935, %v931
      %v1004 = vpack.c.b16 %v936, %v932
      %v1005 = vpack.c.b16 %v941, %v937
      %v1006 = vpack.c.b16 %v942, %v938
      %v1007 = vpack.c.b16 %v943, %v939
      %v1008 = vpack.c.b16 %v944, %v940
      %1073 = vmatprep.subr.bf16.mxu0 %v946
      %1074 = vmatpush1.bf16.msra.mxu0 %v945
      %1075 = vmatprep.subr.bf16.mxu0 %v950
      %1076 = vmatpush1.bf16.msra.mxu0 %v949
      %1077 = vmatprep.subr.bf16.mxu0 %v954
      %1078 = vmatpush1.bf16.msra.mxu0 %v953
      %1079 = vmatprep.subr.bf16.mxu0 %v958
      %1080 = vmatpush1.bf16.msra.mxu0 %v957
      %1081 = vmatprep.subr.bf16.mxu0 %v962
      %1082 = vmatpush1.bf16.msra.mxu0 %v961
      %1083 = vmatprep.subr.bf16.mxu0 %v966
      %1084 = vmatpush1.bf16.msra.mxu0 %v965
      %1085 = vmatprep.subr.bf16.mxu0 %v970
      %1086 = vmatpush1.bf16.msra.mxu0 %v969
      %1087 = vmatprep.subr.bf16.mxu0 %v974
      %1088 = vmatpush1.bf16.msra.mxu0 %v973
      %1089 = vmatprep.subr.bf16.mxu0 %v978
      %1090 = vmatpush1.bf16.msra.mxu0 %v977
      %1091 = vmatprep.subr.bf16.mxu0 %v982
      %1092 = vmatpush1.bf16.msra.mxu0 %v981
      %1093 = vmatprep.subr.bf16.mxu0 %v986
      %1094 = vmatpush1.bf16.msra.mxu0 %v985
      %1095 = vmatprep.subr.bf16.mxu0 %v990
      %1096 = vmatpush1.bf16.msra.mxu0 %v989
      %1097 = vmatprep.subr.bf16.mxu0 %v994
      %1098 = vmatpush1.bf16.msra.mxu0 %v993
      %1099 = vmatprep.subr.bf16.mxu0 %v998
      %1100 = vmatpush1.bf16.msra.mxu0 %v997
      %1101 = vmatprep.subr.bf16.mxu0 %v1002
      %1102 = vmatpush1.bf16.msra.mxu0 %v1001
      %1103 = vmatprep.subr.bf16.mxu0 %v1006
      %1104 = vmatpush1.bf16.msra.mxu0 %v1005
      %1105 = vmatprep.mubr.bf16.mxu0 %v666
      %1106 = vmatmul.mubr.bf16.gmra.mrb[0].mxu0 %v665
      %v1107 = vpop.f32.mrb[0].mxu0
      %v1108 = vadd.f32 %v736, %v1107
      %v1109 = vpop.f32.mrb[0].mxu0
      %v1110 = vadd.f32 %v740, %v1109
      %v1111 = vpop.f32.mrb[0].mxu0
      %v1112 = vpop.f32.mrb[0].mxu0
      %1113 = vdwg.mxu0
      %1114 = vmatprep.subr.bf16.mxu0 %v948
      %1115 = vmatpush1.bf16.msra.mxu0 %v947
      %1116 = vmatprep.subr.bf16.mxu0 %v952
      %1117 = vmatpush1.bf16.msra.mxu0 %v951
      %1118 = vmatprep.subr.bf16.mxu0 %v956
      %1119 = vmatpush1.bf16.msra.mxu0 %v955
      %1120 = vmatprep.subr.bf16.mxu0 %v960
      %1121 = vmatpush1.bf16.msra.mxu0 %v959
      %1122 = vmatprep.subr.bf16.mxu0 %v964
      %1123 = vmatpush1.bf16.msra.mxu0 %v963
      %1124 = vmatprep.subr.bf16.mxu0 %v968
      %1125 = vmatpush1.bf16.msra.mxu0 %v967
      %1126 = vmatprep.subr.bf16.mxu0 %v972
      %1127 = vmatpush1.bf16.msra.mxu0 %v971
      %1128 = vmatprep.subr.bf16.mxu0 %v976
      %1129 = vmatpush1.bf16.msra.mxu0 %v975
      %1130 = vmatprep.subr.bf16.mxu0 %v980
      %1131 = vmatpush1.bf16.msra.mxu0 %v979
      %1132 = vmatprep.subr.bf16.mxu0 %v984
      %1133 = vmatpush1.bf16.msra.mxu0 %v983
      %1134 = vmatprep.subr.bf16.mxu0 %v988
      %1135 = vmatpush1.bf16.msra.mxu0 %v987
      %1136 = vmatprep.subr.bf16.mxu0 %v992
      %1137 = vmatpush1.bf16.msra.mxu0 %v991
      %1138 = vmatprep.subr.bf16.mxu0 %v996
      %1139 = vmatpush1.bf16.msra.mxu0 %v995
      %1140 = vmatprep.subr.bf16.mxu0 %v1000
      %1141 = vmatpush1.bf16.msra.mxu0 %v999
      %1142 = vmatprep.subr.bf16.mxu0 %v1004
      %1143 = vmatpush1.bf16.msra.mxu0 %v1003
      %1144 = vmatprep.subr.bf16.mxu0 %v1008
      %1145 = vmatpush1.bf16.msra.mxu0 %v1007
      %1146 = vmatprep.mubr.bf16.mxu0 %v666
      %1147 = vmatmul.mubr.bf16.gmra.mrb[0].mxu0 %v665
      %v1148 = vpop.f32.mrb[0].mxu0
      %v1149 = vadd.f32 %v744, %v1148
      %v1150 = vpop.f32.mrb[0].mxu0
      %v1151 = vadd.f32 %v748, %v1150
      %v1152 = vpop.f32.mrb[0].mxu0
      %v1153 = vpop.f32.mrb[0].mxu0
      %1154 = vdwg.mxu0
      %v1155 = vmax.f32 %v1108, 0.0
      %v1156 = vmax.f32 %v1110, 0.0
      %v1157 = vmax.f32 %v1149, 0.0
      %v1158 = vmax.f32 %v1151, 0.0
      %v1159 = vpack.c.bf16 %v1155, %v1155
      %v1160 = vpack.c.bf16 %v1156, %v1156
      %v1161 = vpack.c.bf16 %v1157, %v1157
      %v1162 = vpack.c.bf16 %v1158, %v1158
      %v1163 = vld [vmem:[%s7] sm:$0xff]
      %v1164 = vld [vmem:[%s7 + $0x8] sm:$0xff]
      %v1165 = vld [vmem:[%s7 + $0x10] sm:$0xff]
      %v1166 = vld [vmem:[%s7 + $0x18] sm:$0xff]
      %v1167 = vld [vmem:[%s7 + $0x20] sm:$0xff]
      %v1168 = vld [vmem:[%s7 + $0x28] sm:$0xff]
      %v1169 = vld [vmem:[%s7 + $0x30] sm:$0xff]
      %v1170 = vld [vmem:[%s7 + $0x38] sm:$0xff]
      %v1171 = vld [vmem:[%s7 + $0x40] sm:$0xff]
      %v1172 = vld [vmem:[%s7 + $0x48] sm:$0xff]
      %v1173 = vld [vmem:[%s7 + $0x50] sm:$0xff]
      %v1174 = vld [vmem:[%s7 + $0x58] sm:$0xff]
      %v1175 = vld [vmem:[%s7 + $0x60] sm:$0xff]
      %v1176 = vld [vmem:[%s7 + $0x68] sm:$0xff]
      %v1177 = vld [vmem:[%s7 + $0x70] sm:$0xff]
      %v1178 = vld [vmem:[%s7 + $0x78] sm:$0xff]
      %v1179 = vld [vmem:[%s7 + $0x80] sm:$0xff]
      %v1180 = vld [vmem:[%s7 + $0x88] sm:$0xff]
      %v1181 = vld [vmem:[%s7 + $0x90] sm:$0xff]
      %v1182 = vld [vmem:[%s7 + $0x98] sm:$0xff]
      %v1183 = vld [vmem:[%s7 + $0xa0] sm:$0xff]
      %v1184 = vld [vmem:[%s7 + $0xa8] sm:$0xff]
      %v1185 = vld [vmem:[%s7 + $0xb0] sm:$0xff]
      %v1186 = vld [vmem:[%s7 + $0xb8] sm:$0xff]
      %v1187 = vld [vmem:[%s7 + $0xc0] sm:$0xff]
      %v1188 = vld [vmem:[%s7 + $0xc8] sm:$0xff]
      %v1189 = vld [vmem:[%s7 + $0xd0] sm:$0xff]
      %v1190 = vld [vmem:[%s7 + $0xd8] sm:$0xff]
      %v1191 = vld [vmem:[%s7 + $0xe0] sm:$0xff]
      %v1192 = vld [vmem:[%s7 + $0xe8] sm:$0xff]
      %v1193 = vld [vmem:[%s7 + $0xf0] sm:$0xff]
      %v1194 = vld [vmem:[%s7 + $0xf8] sm:$0xff]
      %v1195 = vld [vmem:[%s7 + $0x100] sm:$0xff]
      %v1196 = vld [vmem:[%s7 + $0x108] sm:$0xff]
      %v1197 = vld [vmem:[%s7 + $0x110] sm:$0xff]
      %v1198 = vld [vmem:[%s7 + $0x118] sm:$0xff]
      %v1199 = vld [vmem:[%s7 + $0x120] sm:$0xff]
      %v1200 = vld [vmem:[%s7 + $0x128] sm:$0xff]
      %v1201 = vld [vmem:[%s7 + $0x130] sm:$0xff]
      %v1202 = vld [vmem:[%s7 + $0x138] sm:$0xff]
      %v1203 = vld [vmem:[%s7 + $0x140] sm:$0xff]
      %v1204 = vld [vmem:[%s7 + $0x148] sm:$0xff]
      %v1205 = vld [vmem:[%s7 + $0x150] sm:$0xff]
      %v1206 = vld [vmem:[%s7 + $0x158] sm:$0xff]
      %v1207 = vld [vmem:[%s7 + $0x160] sm:$0xff]
      %v1208 = vld [vmem:[%s7 + $0x168] sm:$0xff]
      %v1209 = vld [vmem:[%s7 + $0x170] sm:$0xff]
      %v1210 = vld [vmem:[%s7 + $0x178] sm:$0xff]
      %v1211 = vld [vmem:[%s7 + $0x180] sm:$0xff]
      %v1212 = vld [vmem:[%s7 + $0x188] sm:$0xff]
      %v1213 = vld [vmem:[%s7 + $0x190] sm:$0xff]
      %v1214 = vld [vmem:[%s7 + $0x198] sm:$0xff]
      %v1215 = vld [vmem:[%s7 + $0x1a0] sm:$0xff]
      %v1216 = vld [vmem:[%s7 + $0x1a8] sm:$0xff]
      %v1217 = vld [vmem:[%s7 + $0x1b0] sm:$0xff]
      %v1218 = vld [vmem:[%s7 + $0x1b8] sm:$0xff]
      %v1219 = vld [vmem:[%s7 + $0x1c0] sm:$0xff]
      %v1220 = vld [vmem:[%s7 + $0x1c8] sm:$0xff]
      %v1221 = vld [vmem:[%s7 + $0x1d0] sm:$0xff]
      %v1222 = vld [vmem:[%s7 + $0x1d8] sm:$0xff]
      %v1223 = vld [vmem:[%s7 + $0x1e0] sm:$0xff]
      %v1224 = vld [vmem:[%s7 + $0x1e8] sm:$0xff]
      %v1225 = vld [vmem:[%s7 + $0x1f0] sm:$0xff]
      %v1226 = vld [vmem:[%s7 + $0x1f8] sm:$0xff]
      %v1227 = vld [vmem:[%s7 + $0x200] sm:$0xff]
      %v1228 = vld [vmem:[%s7 + $0x208] sm:$0xff]
      %v1229 = vld [vmem:[%s7 + $0x210] sm:$0xff]
      %v1230 = vld [vmem:[%s7 + $0x218] sm:$0xff]
      %v1231 = vld [vmem:[%s7 + $0x220] sm:$0xff]
      %v1232 = vld [vmem:[%s7 + $0x228] sm:$0xff]
      %v1233 = vld [vmem:[%s7 + $0x230] sm:$0xff]
      %v1234 = vld [vmem:[%s7 + $0x238] sm:$0xff]
      %v1235 = vld [vmem:[%s7 + $0x240] sm:$0xff]
      %v1236 = vld [vmem:[%s7 + $0x248] sm:$0xff]
      %v1237 = vld [vmem:[%s7 + $0x250] sm:$0xff]
      %v1238 = vld [vmem:[%s7 + $0x258] sm:$0xff]
      %v1239 = vld [vmem:[%s7 + $0x260] sm:$0xff]
      %v1240 = vld [vmem:[%s7 + $0x268] sm:$0xff]
      %v1241 = vld [vmem:[%s7 + $0x270] sm:$0xff]
      %v1242 = vld [vmem:[%s7 + $0x278] sm:$0xff]
      %v1243 = vld [vmem:[%s7 + $0x280] sm:$0xff]
      %v1244 = vld [vmem:[%s7 + $0x288] sm:$0xff]
      %v1245 = vld [vmem:[%s7 + $0x290] sm:$0xff]
      %v1246 = vld [vmem:[%s7 + $0x298] sm:$0xff]
      %v1247 = vld [vmem:[%s7 + $0x2a0] sm:$0xff]
      %v1248 = vld [vmem:[%s7 + $0x2a8] sm:$0xff]
      %v1249 = vld [vmem:[%s7 + $0x2b0] sm:$0xff]
      %v1250 = vld [vmem:[%s7 + $0x2b8] sm:$0xff]
      %v1251 = vld [vmem:[%s7 + $0x2c0] sm:$0xff]
      %v1252 = vld [vmem:[%s7 + $0x2c8] sm:$0xff]
      %v1253 = vld [vmem:[%s7 + $0x2d0] sm:$0xff]
      %v1254 = vld [vmem:[%s7 + $0x2d8] sm:$0xff]
      %v1255 = vld [vmem:[%s7 + $0x2e0] sm:$0xff]
      %v1256 = vld [vmem:[%s7 + $0x2e8] sm:$0xff]
      %v1257 = vld [vmem:[%s7 + $0x2f0] sm:$0xff]
      %v1258 = vld [vmem:[%s7 + $0x2f8] sm:$0xff]
      %v1259 = vld [vmem:[%s7 + $0x300] sm:$0xff]
      %v1260 = vld [vmem:[%s7 + $0x308] sm:$0xff]
      %v1261 = vld [vmem:[%s7 + $0x310] sm:$0xff]
      %v1262 = vld [vmem:[%s7 + $0x318] sm:$0xff]
      %v1263 = vld [vmem:[%s7 + $0x320] sm:$0xff]
      %v1264 = vld [vmem:[%s7 + $0x328] sm:$0xff]
      %v1265 = vld [vmem:[%s7 + $0x330] sm:$0xff]
      %v1266 = vld [vmem:[%s7 + $0x338] sm:$0xff]
      %v1267 = vld [vmem:[%s7 + $0x340] sm:$0xff]
      %v1268 = vld [vmem:[%s7 + $0x348] sm:$0xff]
      %v1269 = vld [vmem:[%s7 + $0x350] sm:$0xff]
      %v1270 = vld [vmem:[%s7 + $0x358] sm:$0xff]
      %v1271 = vld [vmem:[%s7 + $0x360] sm:$0xff]
      %v1272 = vld [vmem:[%s7 + $0x368] sm:$0xff]
      %v1273 = vld [vmem:[%s7 + $0x370] sm:$0xff]
      %v1274 = vld [vmem:[%s7 + $0x378] sm:$0xff]
      %v1275 = vld [vmem:[%s7 + $0x380] sm:$0xff]
      %v1276 = vld [vmem:[%s7 + $0x388] sm:$0xff]
      %v1277 = vld [vmem:[%s7 + $0x390] sm:$0xff]
      %v1278 = vld [vmem:[%s7 + $0x398] sm:$0xff]
      %v1279 = vld [vmem:[%s7 + $0x3a0] sm:$0xff]
      %v1280 = vld [vmem:[%s7 + $0x3a8] sm:$0xff]
      %v1281 = vld [vmem:[%s7 + $0x3b0] sm:$0xff]
      %v1282 = vld [vmem:[%s7 + $0x3b8] sm:$0xff]
      %v1283 = vld [vmem:[%s7 + $0x3c0] sm:$0xff]
      %v1284 = vld [vmem:[%s7 + $0x3c8] sm:$0xff]
      %v1285 = vld [vmem:[%s7 + $0x3d0] sm:$0xff]
      %v1286 = vld [vmem:[%s7 + $0x3d8] sm:$0xff]
      %v1287 = vld [vmem:[%s7 + $0x3e0] sm:$0xff]
      %v1288 = vld [vmem:[%s7 + $0x3e8] sm:$0xff]
      %v1289 = vld [vmem:[%s7 + $0x3f0] sm:$0xff]
      %v1290 = vld [vmem:[%s7 + $0x3f8] sm:$0xff]
      %v1291 = vld [vmem:[%s7 + $0x400] sm:$0xff]
      %v1292 = vld [vmem:[%s7 + $0x408] sm:$0xff]
      %v1293 = vld [vmem:[%s7 + $0x410] sm:$0xff]
      %v1294 = vld [vmem:[%s7 + $0x418] sm:$0xff]
      %v1295 = vld [vmem:[%s7 + $0x420] sm:$0xff]
      %v1296 = vld [vmem:[%s7 + $0x428] sm:$0xff]
      %v1297 = vld [vmem:[%s7 + $0x430] sm:$0xff]
      %v1298 = vld [vmem:[%s7 + $0x438] sm:$0xff]
      %v1299 = vld [vmem:[%s7 + $0x440] sm:$0xff]
      %v1300 = vld [vmem:[%s7 + $0x448] sm:$0xff]
      %v1301 = vld [vmem:[%s7 + $0x450] sm:$0xff]
      %v1302 = vld [vmem:[%s7 + $0x458] sm:$0xff]
      %v1303 = vld [vmem:[%s7 + $0x460] sm:$0xff]
      %v1304 = vld [vmem:[%s7 + $0x468] sm:$0xff]
      %v1305 = vld [vmem:[%s7 + $0x470] sm:$0xff]
      %v1306 = vld [vmem:[%s7 + $0x478] sm:$0xff]
      %v1307 = vld [vmem:[%s7 + $0x480] sm:$0xff]
      %v1308 = vld [vmem:[%s7 + $0x488] sm:$0xff]
      %v1309 = vld [vmem:[%s7 + $0x490] sm:$0xff]
      %v1310 = vld [vmem:[%s7 + $0x498] sm:$0xff]
      %v1311 = vld [vmem:[%s7 + $0x4a0] sm:$0xff]
      %v1312 = vld [vmem:[%s7 + $0x4a8] sm:$0xff]
      %v1313 = vld [vmem:[%s7 + $0x4b0] sm:$0xff]
      %v1314 = vld [vmem:[%s7 + $0x4b8] sm:$0xff]
      %v1315 = vld [vmem:[%s7 + $0x4c0] sm:$0xff]
      %v1316 = vld [vmem:[%s7 + $0x4c8] sm:$0xff]
      %v1317 = vld [vmem:[%s7 + $0x4d0] sm:$0xff]
      %v1318 = vld [vmem:[%s7 + $0x4d8] sm:$0xff]
      %v1319 = vld [vmem:[%s7 + $0x4e0] sm:$0xff]
      %v1320 = vld [vmem:[%s7 + $0x4e8] sm:$0xff]
      %v1321 = vld [vmem:[%s7 + $0x4f0] sm:$0xff]
      %v1322 = vld [vmem:[%s7 + $0x4f8] sm:$0xff]
      %v1323 = vld [vmem:[%s7 + $0x500] sm:$0xff]
      %v1324 = vld [vmem:[%s7 + $0x508] sm:$0xff]
      %v1325 = vld [vmem:[%s7 + $0x510] sm:$0xff]
      %v1326 = vld [vmem:[%s7 + $0x518] sm:$0xff]
      %v1327 = vld [vmem:[%s7 + $0x520] sm:$0xff]
      %v1328 = vld [vmem:[%s7 + $0x528] sm:$0xff]
      %v1329 = vld [vmem:[%s7 + $0x530] sm:$0xff]
      %v1330 = vld [vmem:[%s7 + $0x538] sm:$0xff]
      %v1331 = vld [vmem:[%s7 + $0x540] sm:$0xff]
      %v1332 = vld [vmem:[%s7 + $0x548] sm:$0xff]
      %v1333 = vld [vmem:[%s7 + $0x550] sm:$0xff]
      %v1334 = vld [vmem:[%s7 + $0x558] sm:$0xff]
      %v1335 = vld [vmem:[%s7 + $0x560] sm:$0xff]
      %v1336 = vld [vmem:[%s7 + $0x568] sm:$0xff]
      %v1337 = vld [vmem:[%s7 + $0x570] sm:$0xff]
      %v1338 = vld [vmem:[%s7 + $0x578] sm:$0xff]
      %v1339 = vld [vmem:[%s7 + $0x580] sm:$0xff]
      %v1340 = vld [vmem:[%s7 + $0x588] sm:$0xff]
      %v1341 = vld [vmem:[%s7 + $0x590] sm:$0xff]
      %v1342 = vld [vmem:[%s7 + $0x598] sm:$0xff]
      %v1343 = vld [vmem:[%s7 + $0x5a0] sm:$0xff]
      %v1344 = vld [vmem:[%s7 + $0x5a8] sm:$0xff]
      %v1345 = vld [vmem:[%s7 + $0x5b0] sm:$0xff]
      %v1346 = vld [vmem:[%s7 + $0x5b8] sm:$0xff]
      %v1347 = vld [vmem:[%s7 + $0x5c0] sm:$0xff]
      %v1348 = vld [vmem:[%s7 + $0x5c8] sm:$0xff]
      %v1349 = vld [vmem:[%s7 + $0x5d0] sm:$0xff]
      %v1350 = vld [vmem:[%s7 + $0x5d8] sm:$0xff]
      %v1351 = vld [vmem:[%s7 + $0x5e0] sm:$0xff]
      %v1352 = vld [vmem:[%s7 + $0x5e8] sm:$0xff]
      %v1353 = vld [vmem:[%s7 + $0x5f0] sm:$0xff]
      %v1354 = vld [vmem:[%s7 + $0x5f8] sm:$0xff]
      %v1355 = vld [vmem:[%s7 + $0x600] sm:$0xff]
      %v1356 = vld [vmem:[%s7 + $0x608] sm:$0xff]
      %v1357 = vld [vmem:[%s7 + $0x610] sm:$0xff]
      %v1358 = vld [vmem:[%s7 + $0x618] sm:$0xff]
      %v1359 = vld [vmem:[%s7 + $0x620] sm:$0xff]
      %v1360 = vld [vmem:[%s7 + $0x628] sm:$0xff]
      %v1361 = vld [vmem:[%s7 + $0x630] sm:$0xff]
      %v1362 = vld [vmem:[%s7 + $0x638] sm:$0xff]
      %v1363 = vld [vmem:[%s7 + $0x640] sm:$0xff]
      %v1364 = vld [vmem:[%s7 + $0x648] sm:$0xff]
      %v1365 = vld [vmem:[%s7 + $0x650] sm:$0xff]
      %v1366 = vld [vmem:[%s7 + $0x658] sm:$0xff]
      %v1367 = vld [vmem:[%s7 + $0x660] sm:$0xff]
      %v1368 = vld [vmem:[%s7 + $0x668] sm:$0xff]
      %v1369 = vld [vmem:[%s7 + $0x670] sm:$0xff]
      %v1370 = vld [vmem:[%s7 + $0x678] sm:$0xff]
      %v1371 = vld [vmem:[%s7 + $0x680] sm:$0xff]
      %v1372 = vld [vmem:[%s7 + $0x688] sm:$0xff]
      %v1373 = vld [vmem:[%s7 + $0x690] sm:$0xff]
      %v1374 = vld [vmem:[%s7 + $0x698] sm:$0xff]
      %v1375 = vld [vmem:[%s7 + $0x6a0] sm:$0xff]
      %v1376 = vld [vmem:[%s7 + $0x6a8] sm:$0xff]
      %v1377 = vld [vmem:[%s7 + $0x6b0] sm:$0xff]
      %v1378 = vld [vmem:[%s7 + $0x6b8] sm:$0xff]
      %v1379 = vld [vmem:[%s7 + $0x6c0] sm:$0xff]
      %v1380 = vld [vmem:[%s7 + $0x6c8] sm:$0xff]
      %v1381 = vld [vmem:[%s7 + $0x6d0] sm:$0xff]
      %v1382 = vld [vmem:[%s7 + $0x6d8] sm:$0xff]
      %v1383 = vld [vmem:[%s7 + $0x6e0] sm:$0xff]
      %v1384 = vld [vmem:[%s7 + $0x6e8] sm:$0xff]
      %v1385 = vld [vmem:[%s7 + $0x6f0] sm:$0xff]
      %v1386 = vld [vmem:[%s7 + $0x6f8] sm:$0xff]
      %v1387 = vld [vmem:[%s7 + $0x700] sm:$0xff]
      %v1388 = vld [vmem:[%s7 + $0x708] sm:$0xff]
      %v1389 = vld [vmem:[%s7 + $0x710] sm:$0xff]
      %v1390 = vld [vmem:[%s7 + $0x718] sm:$0xff]
      %v1391 = vld [vmem:[%s7 + $0x720] sm:$0xff]
      %v1392 = vld [vmem:[%s7 + $0x728] sm:$0xff]
      %v1393 = vld [vmem:[%s7 + $0x730] sm:$0xff]
      %v1394 = vld [vmem:[%s7 + $0x738] sm:$0xff]
      %v1395 = vld [vmem:[%s7 + $0x740] sm:$0xff]
      %v1396 = vld [vmem:[%s7 + $0x748] sm:$0xff]
      %v1397 = vld [vmem:[%s7 + $0x750] sm:$0xff]
      %v1398 = vld [vmem:[%s7 + $0x758] sm:$0xff]
      %v1399 = vld [vmem:[%s7 + $0x760] sm:$0xff]
      %v1400 = vld [vmem:[%s7 + $0x768] sm:$0xff]
      %v1401 = vld [vmem:[%s7 + $0x770] sm:$0xff]
      %v1402 = vld [vmem:[%s7 + $0x778] sm:$0xff]
      %v1403 = vld [vmem:[%s7 + $0x780] sm:$0xff]
      %v1404 = vld [vmem:[%s7 + $0x788] sm:$0xff]
      %v1405 = vld [vmem:[%s7 + $0x790] sm:$0xff]
      %v1406 = vld [vmem:[%s7 + $0x798] sm:$0xff]
      %v1407 = vld [vmem:[%s7 + $0x7a0] sm:$0xff]
      %v1408 = vld [vmem:[%s7 + $0x7a8] sm:$0xff]
      %v1409 = vld [vmem:[%s7 + $0x7b0] sm:$0xff]
      %v1410 = vld [vmem:[%s7 + $0x7b8] sm:$0xff]
      %v1411 = vld [vmem:[%s7 + $0x7c0] sm:$0xff]
      %v1412 = vld [vmem:[%s7 + $0x7c8] sm:$0xff]
      %v1413 = vld [vmem:[%s7 + $0x7d0] sm:$0xff]
      %v1414 = vld [vmem:[%s7 + $0x7d8] sm:$0xff]
      %v1415 = vld [vmem:[%s7 + $0x7e0] sm:$0xff]
      %v1416 = vld [vmem:[%s7 + $0x7e8] sm:$0xff]
      %v1417 = vld [vmem:[%s7 + $0x7f0] sm:$0xff]
      %v1418 = vld [vmem:[%s7 + $0x7f8] sm:$0xff]
      %v1419 = vld [vmem:[%s8] sm:$0xff]
      %v1421 = vlaneseq
      %v1422 = vshrl.u32 %v1421, 7
      %v1423 = vsub.s32 0, %v1422
      %v1424 = vrot.slane %v1419, %v1423
      %v1425 = vlaneseq
      %v1426 = vshrl.u32 %v1425, 7
      %v1427 = vsub.s32 1, %v1426
      %v1428 = vrot.slane %v1419, %v1427
      %v1429 = vlaneseq
      %v1430 = vshrl.u32 %v1429, 7
      %v1431 = vsub.s32 2, %v1430
      %v1432 = vrot.slane %v1419, %v1431
      %v1433 = vlaneseq
      %v1434 = vshrl.u32 %v1433, 7
      %v1435 = vsub.s32 3, %v1434
      %v1436 = vrot.slane %v1419, %v1435
      %v1437 = vlaneseq
      %v1438 = vshrl.u32 %v1437, 7
      %v1439 = vsub.s32 4, %v1438
      %v1440 = vrot.slane %v1419, %v1439
      %v1441 = vlaneseq
      %v1442 = vshrl.u32 %v1441, 7
      %v1443 = vsub.s32 5, %v1442
      %v1444 = vrot.slane %v1419, %v1443
      %v1445 = vlaneseq
      %v1446 = vshrl.u32 %v1445, 7
      %v1447 = vsub.s32 6, %v1446
      %v1448 = vrot.slane %v1419, %v1447
      %v1449 = vlaneseq
      %v1450 = vshrl.u32 %v1449, 7
      %v1451 = vsub.s32 7, %v1450
      %v1452 = vrot.slane %v1419, %v1451
      %v1717 = vunpack.c.l.b16 %v1163
      %v1718 = vunpack.c.h.b16 %v1163
      %v1719 = vunpack.c.l.b16 %v1164
      %v1720 = vunpack.c.h.b16 %v1164
      %v1721 = vunpack.c.l.b16 %v1165
      %v1722 = vunpack.c.h.b16 %v1165
      %v1723 = vunpack.c.l.b16 %v1166
      %v1724 = vunpack.c.h.b16 %v1166
      %v1725 = vunpack.c.l.b16 %v1167
      %v1726 = vunpack.c.h.b16 %v1167
      %v1727 = vunpack.c.l.b16 %v1168
      %v1728 = vunpack.c.h.b16 %v1168
      %v1729 = vunpack.c.l.b16 %v1169
      %v1730 = vunpack.c.h.b16 %v1169
      %v1731 = vunpack.c.l.b16 %v1170
      %v1732 = vunpack.c.h.b16 %v1170
      %v1733 = vunpack.c.l.b16 %v1171
      %v1734 = vunpack.c.h.b16 %v1171
      %v1735 = vunpack.c.l.b16 %v1172
      %v1736 = vunpack.c.h.b16 %v1172
      %v1737 = vunpack.c.l.b16 %v1173
      %v1738 = vunpack.c.h.b16 %v1173
      %v1739 = vunpack.c.l.b16 %v1174
      %v1740 = vunpack.c.h.b16 %v1174
      %v1741 = vunpack.c.l.b16 %v1175
      %v1742 = vunpack.c.h.b16 %v1175
      %v1743 = vunpack.c.l.b16 %v1176
      %v1744 = vunpack.c.h.b16 %v1176
      %v1745 = vunpack.c.l.b16 %v1177
      %v1746 = vunpack.c.h.b16 %v1177
      %v1747 = vunpack.c.l.b16 %v1178
      %v1748 = vunpack.c.h.b16 %v1178
      %v1749 = vunpack.c.l.b16 %v1179
      %v1750 = vunpack.c.h.b16 %v1179
      %v1751 = vunpack.c.l.b16 %v1180
      %v1752 = vunpack.c.h.b16 %v1180
      %v1753 = vunpack.c.l.b16 %v1181
      %v1754 = vunpack.c.h.b16 %v1181
      %v1755 = vunpack.c.l.b16 %v1182
      %v1756 = vunpack.c.h.b16 %v1182
      %v1757 = vunpack.c.l.b16 %v1183
      %v1758 = vunpack.c.h.b16 %v1183
      %v1759 = vunpack.c.l.b16 %v1184
      %v1760 = vunpack.c.h.b16 %v1184
      %v1761 = vunpack.c.l.b16 %v1185
      %v1762 = vunpack.c.h.b16 %v1185
      %v1763 = vunpack.c.l.b16 %v1186
      %v1764 = vunpack.c.h.b16 %v1186
      %v1765 = vunpack.c.l.b16 %v1187
      %v1766 = vunpack.c.h.b16 %v1187
      %v1767 = vunpack.c.l.b16 %v1188
      %v1768 = vunpack.c.h.b16 %v1188
      %v1769 = vunpack.c.l.b16 %v1189
      %v1770 = vunpack.c.h.b16 %v1189
      %v1771 = vunpack.c.l.b16 %v1190
      %v1772 = vunpack.c.h.b16 %v1190
      %v1773 = vunpack.c.l.b16 %v1191
      %v1774 = vunpack.c.h.b16 %v1191
      %v1775 = vunpack.c.l.b16 %v1192
      %v1776 = vunpack.c.h.b16 %v1192
      %v1777 = vunpack.c.l.b16 %v1193
      %v1778 = vunpack.c.h.b16 %v1193
      %v1779 = vunpack.c.l.b16 %v1194
      %v1780 = vunpack.c.h.b16 %v1194
      %v1781 = vunpack.c.l.b16 %v1195
      %v1782 = vunpack.c.h.b16 %v1195
      %v1783 = vunpack.c.l.b16 %v1196
      %v1784 = vunpack.c.h.b16 %v1196
      %v1785 = vunpack.c.l.b16 %v1197
      %v1786 = vunpack.c.h.b16 %v1197
      %v1787 = vunpack.c.l.b16 %v1198
      %v1788 = vunpack.c.h.b16 %v1198
      %v1789 = vunpack.c.l.b16 %v1199
      %v1790 = vunpack.c.h.b16 %v1199
      %v1791 = vunpack.c.l.b16 %v1200
      %v1792 = vunpack.c.h.b16 %v1200
      %v1793 = vunpack.c.l.b16 %v1201
      %v1794 = vunpack.c.h.b16 %v1201
      %v1795 = vunpack.c.l.b16 %v1202
      %v1796 = vunpack.c.h.b16 %v1202
      %v1797 = vunpack.c.l.b16 %v1203
      %v1798 = vunpack.c.h.b16 %v1203
      %v1799 = vunpack.c.l.b16 %v1204
      %v1800 = vunpack.c.h.b16 %v1204
      %v1801 = vunpack.c.l.b16 %v1205
      %v1802 = vunpack.c.h.b16 %v1205
      %v1803 = vunpack.c.l.b16 %v1206
      %v1804 = vunpack.c.h.b16 %v1206
      %v1805 = vunpack.c.l.b16 %v1207
      %v1806 = vunpack.c.h.b16 %v1207
      %v1807 = vunpack.c.l.b16 %v1208
      %v1808 = vunpack.c.h.b16 %v1208
      %v1809 = vunpack.c.l.b16 %v1209
      %v1810 = vunpack.c.h.b16 %v1209
      %v1811 = vunpack.c.l.b16 %v1210
      %v1812 = vunpack.c.h.b16 %v1210
      %v1813 = vunpack.c.l.b16 %v1211
      %v1814 = vunpack.c.h.b16 %v1211
      %v1815 = vunpack.c.l.b16 %v1212
      %v1816 = vunpack.c.h.b16 %v1212
      %v1817 = vunpack.c.l.b16 %v1213
      %v1818 = vunpack.c.h.b16 %v1213
      %v1819 = vunpack.c.l.b16 %v1214
      %v1820 = vunpack.c.h.b16 %v1214
      %v1821 = vunpack.c.l.b16 %v1215
      %v1822 = vunpack.c.h.b16 %v1215
      %v1823 = vunpack.c.l.b16 %v1216
      %v1824 = vunpack.c.h.b16 %v1216
      %v1825 = vunpack.c.l.b16 %v1217
      %v1826 = vunpack.c.h.b16 %v1217
      %v1827 = vunpack.c.l.b16 %v1218
      %v1828 = vunpack.c.h.b16 %v1218
      %v1829 = vunpack.c.l.b16 %v1219
      %v1830 = vunpack.c.h.b16 %v1219
      %v1831 = vunpack.c.l.b16 %v1220
      %v1832 = vunpack.c.h.b16 %v1220
      %v1833 = vunpack.c.l.b16 %v1221
      %v1834 = vunpack.c.h.b16 %v1221
      %v1835 = vunpack.c.l.b16 %v1222
      %v1836 = vunpack.c.h.b16 %v1222
      %v1837 = vunpack.c.l.b16 %v1223
      %v1838 = vunpack.c.h.b16 %v1223
      %v1839 = vunpack.c.l.b16 %v1224
      %v1840 = vunpack.c.h.b16 %v1224
      %v1841 = vunpack.c.l.b16 %v1225
      %v1842 = vunpack.c.h.b16 %v1225
      %v1843 = vunpack.c.l.b16 %v1226
      %v1844 = vunpack.c.h.b16 %v1226
      %v1845 = vunpack.c.l.b16 %v1227
      %v1846 = vunpack.c.h.b16 %v1227
      %v1847 = vunpack.c.l.b16 %v1228
      %v1848 = vunpack.c.h.b16 %v1228
      %v1849 = vunpack.c.l.b16 %v1229
      %v1850 = vunpack.c.h.b16 %v1229
      %v1851 = vunpack.c.l.b16 %v1230
      %v1852 = vunpack.c.h.b16 %v1230
      %v1853 = vunpack.c.l.b16 %v1231
      %v1854 = vunpack.c.h.b16 %v1231
      %v1855 = vunpack.c.l.b16 %v1232
      %v1856 = vunpack.c.h.b16 %v1232
      %v1857 = vunpack.c.l.b16 %v1233
      %v1858 = vunpack.c.h.b16 %v1233
      %v1859 = vunpack.c.l.b16 %v1234
      %v1860 = vunpack.c.h.b16 %v1234
      %v1861 = vunpack.c.l.b16 %v1235
      %v1862 = vunpack.c.h.b16 %v1235
      %v1863 = vunpack.c.l.b16 %v1236
      %v1864 = vunpack.c.h.b16 %v1236
      %v1865 = vunpack.c.l.b16 %v1237
      %v1866 = vunpack.c.h.b16 %v1237
      %v1867 = vunpack.c.l.b16 %v1238
      %v1868 = vunpack.c.h.b16 %v1238
      %v1869 = vunpack.c.l.b16 %v1239
      %v1870 = vunpack.c.h.b16 %v1239
      %v1871 = vunpack.c.l.b16 %v1240
      %v1872 = vunpack.c.h.b16 %v1240
      %v1873 = vunpack.c.l.b16 %v1241
      %v1874 = vunpack.c.h.b16 %v1241
      %v1875 = vunpack.c.l.b16 %v1242
      %v1876 = vunpack.c.h.b16 %v1242
      %v1877 = vunpack.c.l.b16 %v1243
      %v1878 = vunpack.c.h.b16 %v1243
      %v1879 = vunpack.c.l.b16 %v1244
      %v1880 = vunpack.c.h.b16 %v1244
      %v1881 = vunpack.c.l.b16 %v1245
      %v1882 = vunpack.c.h.b16 %v1245
      %v1883 = vunpack.c.l.b16 %v1246
      %v1884 = vunpack.c.h.b16 %v1246
      %v1885 = vunpack.c.l.b16 %v1247
      %v1886 = vunpack.c.h.b16 %v1247
      %v1887 = vunpack.c.l.b16 %v1248
      %v1888 = vunpack.c.h.b16 %v1248
      %v1889 = vunpack.c.l.b16 %v1249
      %v1890 = vunpack.c.h.b16 %v1249
      %v1891 = vunpack.c.l.b16 %v1250
      %v1892 = vunpack.c.h.b16 %v1250
      %v1893 = vunpack.c.l.b16 %v1251
      %v1894 = vunpack.c.h.b16 %v1251
      %v1895 = vunpack.c.l.b16 %v1252
      %v1896 = vunpack.c.h.b16 %v1252
      %v1897 = vunpack.c.l.b16 %v1253
      %v1898 = vunpack.c.h.b16 %v1253
      %v1899 = vunpack.c.l.b16 %v1254
      %v1900 = vunpack.c.h.b16 %v1254
      %v1901 = vunpack.c.l.b16 %v1255
      %v1902 = vunpack.c.h.b16 %v1255
      %v1903 = vunpack.c.l.b16 %v1256
      %v1904 = vunpack.c.h.b16 %v1256
      %v1905 = vunpack.c.l.b16 %v1257
      %v1906 = vunpack.c.h.b16 %v1257
      %v1907 = vunpack.c.l.b16 %v1258
      %v1908 = vunpack.c.h.b16 %v1258
      %v1909 = vunpack.c.l.b16 %v1259
      %v1910 = vunpack.c.h.b16 %v1259
      %v1911 = vunpack.c.l.b16 %v1260
      %v1912 = vunpack.c.h.b16 %v1260
      %v1913 = vunpack.c.l.b16 %v1261
      %v1914 = vunpack.c.h.b16 %v1261
      %v1915 = vunpack.c.l.b16 %v1262
      %v1916 = vunpack.c.h.b16 %v1262
      %v1917 = vunpack.c.l.b16 %v1263
      %v1918 = vunpack.c.h.b16 %v1263
      %v1919 = vunpack.c.l.b16 %v1264
      %v1920 = vunpack.c.h.b16 %v1264
      %v1921 = vunpack.c.l.b16 %v1265
      %v1922 = vunpack.c.h.b16 %v1265
      %v1923 = vunpack.c.l.b16 %v1266
      %v1924 = vunpack.c.h.b16 %v1266
      %v1925 = vunpack.c.l.b16 %v1267
      %v1926 = vunpack.c.h.b16 %v1267
      %v1927 = vunpack.c.l.b16 %v1268
      %v1928 = vunpack.c.h.b16 %v1268
      %v1929 = vunpack.c.l.b16 %v1269
      %v1930 = vunpack.c.h.b16 %v1269
      %v1931 = vunpack.c.l.b16 %v1270
      %v1932 = vunpack.c.h.b16 %v1270
      %v1933 = vunpack.c.l.b16 %v1271
      %v1934 = vunpack.c.h.b16 %v1271
      %v1935 = vunpack.c.l.b16 %v1272
      %v1936 = vunpack.c.h.b16 %v1272
      %v1937 = vunpack.c.l.b16 %v1273
      %v1938 = vunpack.c.h.b16 %v1273
      %v1939 = vunpack.c.l.b16 %v1274
      %v1940 = vunpack.c.h.b16 %v1274
      %v1941 = vunpack.c.l.b16 %v1275
      %v1942 = vunpack.c.h.b16 %v1275
      %v1943 = vunpack.c.l.b16 %v1276
      %v1944 = vunpack.c.h.b16 %v1276
      %v1945 = vunpack.c.l.b16 %v1277
      %v1946 = vunpack.c.h.b16 %v1277
      %v1947 = vunpack.c.l.b16 %v1278
      %v1948 = vunpack.c.h.b16 %v1278
      %v1949 = vunpack.c.l.b16 %v1279
      %v1950 = vunpack.c.h.b16 %v1279
      %v1951 = vunpack.c.l.b16 %v1280
      %v1952 = vunpack.c.h.b16 %v1280
      %v1953 = vunpack.c.l.b16 %v1281
      %v1954 = vunpack.c.h.b16 %v1281
      %v1955 = vunpack.c.l.b16 %v1282
      %v1956 = vunpack.c.h.b16 %v1282
      %v1957 = vunpack.c.l.b16 %v1283
      %v1958 = vunpack.c.h.b16 %v1283
      %v1959 = vunpack.c.l.b16 %v1284
      %v1960 = vunpack.c.h.b16 %v1284
      %v1961 = vunpack.c.l.b16 %v1285
      %v1962 = vunpack.c.h.b16 %v1285
      %v1963 = vunpack.c.l.b16 %v1286
      %v1964 = vunpack.c.h.b16 %v1286
      %v1965 = vunpack.c.l.b16 %v1287
      %v1966 = vunpack.c.h.b16 %v1287
      %v1967 = vunpack.c.l.b16 %v1288
      %v1968 = vunpack.c.h.b16 %v1288
      %v1969 = vunpack.c.l.b16 %v1289
      %v1970 = vunpack.c.h.b16 %v1289
      %v1971 = vunpack.c.l.b16 %v1290
      %v1972 = vunpack.c.h.b16 %v1290
      %v1973 = vunpack.c.l.b16 %v1291
      %v1974 = vunpack.c.h.b16 %v1291
      %v1975 = vunpack.c.l.b16 %v1292
      %v1976 = vunpack.c.h.b16 %v1292
      %v1977 = vunpack.c.l.b16 %v1293
      %v1978 = vunpack.c.h.b16 %v1293
      %v1979 = vunpack.c.l.b16 %v1294
      %v1980 = vunpack.c.h.b16 %v1294
      %v1981 = vunpack.c.l.b16 %v1295
      %v1982 = vunpack.c.h.b16 %v1295
      %v1983 = vunpack.c.l.b16 %v1296
      %v1984 = vunpack.c.h.b16 %v1296
      %v1985 = vunpack.c.l.b16 %v1297
      %v1986 = vunpack.c.h.b16 %v1297
      %v1987 = vunpack.c.l.b16 %v1298
      %v1988 = vunpack.c.h.b16 %v1298
      %v1989 = vunpack.c.l.b16 %v1299
      %v1990 = vunpack.c.h.b16 %v1299
      %v1991 = vunpack.c.l.b16 %v1300
      %v1992 = vunpack.c.h.b16 %v1300
      %v1993 = vunpack.c.l.b16 %v1301
      %v1994 = vunpack.c.h.b16 %v1301
      %v1995 = vunpack.c.l.b16 %v1302
      %v1996 = vunpack.c.h.b16 %v1302
      %v1997 = vunpack.c.l.b16 %v1303
      %v1998 = vunpack.c.h.b16 %v1303
      %v1999 = vunpack.c.l.b16 %v1304
      %v2000 = vunpack.c.h.b16 %v1304
      %v2001 = vunpack.c.l.b16 %v1305
      %v2002 = vunpack.c.h.b16 %v1305
      %v2003 = vunpack.c.l.b16 %v1306
      %v2004 = vunpack.c.h.b16 %v1306
      %v2005 = vunpack.c.l.b16 %v1307
      %v2006 = vunpack.c.h.b16 %v1307
      %v2007 = vunpack.c.l.b16 %v1308
      %v2008 = vunpack.c.h.b16 %v1308
      %v2009 = vunpack.c.l.b16 %v1309
      %v2010 = vunpack.c.h.b16 %v1309
      %v2011 = vunpack.c.l.b16 %v1310
      %v2012 = vunpack.c.h.b16 %v1310
      %v2013 = vunpack.c.l.b16 %v1311
      %v2014 = vunpack.c.h.b16 %v1311
      %v2015 = vunpack.c.l.b16 %v1312
      %v2016 = vunpack.c.h.b16 %v1312
      %v2017 = vunpack.c.l.b16 %v1313
      %v2018 = vunpack.c.h.b16 %v1313
      %v2019 = vunpack.c.l.b16 %v1314
      %v2020 = vunpack.c.h.b16 %v1314
      %v2021 = vunpack.c.l.b16 %v1315
      %v2022 = vunpack.c.h.b16 %v1315
      %v2023 = vunpack.c.l.b16 %v1316
      %v2024 = vunpack.c.h.b16 %v1316
      %v2025 = vunpack.c.l.b16 %v1317
      %v2026 = vunpack.c.h.b16 %v1317
      %v2027 = vunpack.c.l.b16 %v1318
      %v2028 = vunpack.c.h.b16 %v1318
      %v2029 = vunpack.c.l.b16 %v1319
      %v2030 = vunpack.c.h.b16 %v1319
      %v2031 = vunpack.c.l.b16 %v1320
      %v2032 = vunpack.c.h.b16 %v1320
      %v2033 = vunpack.c.l.b16 %v1321
      %v2034 = vunpack.c.h.b16 %v1321
      %v2035 = vunpack.c.l.b16 %v1322
      %v2036 = vunpack.c.h.b16 %v1322
      %v2037 = vunpack.c.l.b16 %v1323
      %v2038 = vunpack.c.h.b16 %v1323
      %v2039 = vunpack.c.l.b16 %v1324
      %v2040 = vunpack.c.h.b16 %v1324
      %v2041 = vunpack.c.l.b16 %v1325
      %v2042 = vunpack.c.h.b16 %v1325
      %v2043 = vunpack.c.l.b16 %v1326
      %v2044 = vunpack.c.h.b16 %v1326
      %v2045 = vunpack.c.l.b16 %v1327
      %v2046 = vunpack.c.h.b16 %v1327
      %v2047 = vunpack.c.l.b16 %v1328
      %v2048 = vunpack.c.h.b16 %v1328
      %v2049 = vunpack.c.l.b16 %v1329
      %v2050 = vunpack.c.h.b16 %v1329
      %v2051 = vunpack.c.l.b16 %v1330
      %v2052 = vunpack.c.h.b16 %v1330
      %v2053 = vunpack.c.l.b16 %v1331
      %v2054 = vunpack.c.h.b16 %v1331
      %v2055 = vunpack.c.l.b16 %v1332
      %v2056 = vunpack.c.h.b16 %v1332
      %v2057 = vunpack.c.l.b16 %v1333
      %v2058 = vunpack.c.h.b16 %v1333
      %v2059 = vunpack.c.l.b16 %v1334
      %v2060 = vunpack.c.h.b16 %v1334
      %v2061 = vunpack.c.l.b16 %v1335
      %v2062 = vunpack.c.h.b16 %v1335
      %v2063 = vunpack.c.l.b16 %v1336
      %v2064 = vunpack.c.h.b16 %v1336
      %v2065 = vunpack.c.l.b16 %v1337
      %v2066 = vunpack.c.h.b16 %v1337
      %v2067 = vunpack.c.l.b16 %v1338
      %v2068 = vunpack.c.h.b16 %v1338
      %v2069 = vunpack.c.l.b16 %v1339
      %v2070 = vunpack.c.h.b16 %v1339
      %v2071 = vunpack.c.l.b16 %v1340
      %v2072 = vunpack.c.h.b16 %v1340
      %v2073 = vunpack.c.l.b16 %v1341
      %v2074 = vunpack.c.h.b16 %v1341
      %v2075 = vunpack.c.l.b16 %v1342
      %v2076 = vunpack.c.h.b16 %v1342
      %v2077 = vunpack.c.l.b16 %v1343
      %v2078 = vunpack.c.h.b16 %v1343
      %v2079 = vunpack.c.l.b16 %v1344
      %v2080 = vunpack.c.h.b16 %v1344
      %v2081 = vunpack.c.l.b16 %v1345
      %v2082 = vunpack.c.h.b16 %v1345
      %v2083 = vunpack.c.l.b16 %v1346
      %v2084 = vunpack.c.h.b16 %v1346
      %v2085 = vunpack.c.l.b16 %v1347
      %v2086 = vunpack.c.h.b16 %v1347
      %v2087 = vunpack.c.l.b16 %v1348
      %v2088 = vunpack.c.h.b16 %v1348
      %v2089 = vunpack.c.l.b16 %v1349
      %v2090 = vunpack.c.h.b16 %v1349
      %v2091 = vunpack.c.l.b16 %v1350
      %v2092 = vunpack.c.h.b16 %v1350
      %v2093 = vunpack.c.l.b16 %v1351
      %v2094 = vunpack.c.h.b16 %v1351
      %v2095 = vunpack.c.l.b16 %v1352
      %v2096 = vunpack.c.h.b16 %v1352
      %v2097 = vunpack.c.l.b16 %v1353
      %v2098 = vunpack.c.h.b16 %v1353
      %v2099 = vunpack.c.l.b16 %v1354
      %v2100 = vunpack.c.h.b16 %v1354
      %v2101 = vunpack.c.l.b16 %v1355
      %v2102 = vunpack.c.h.b16 %v1355
      %v2103 = vunpack.c.l.b16 %v1356
      %v2104 = vunpack.c.h.b16 %v1356
      %v2105 = vunpack.c.l.b16 %v1357
      %v2106 = vunpack.c.h.b16 %v1357
      %v2107 = vunpack.c.l.b16 %v1358
      %v2108 = vunpack.c.h.b16 %v1358
      %v2109 = vunpack.c.l.b16 %v1359
      %v2110 = vunpack.c.h.b16 %v1359
      %v2111 = vunpack.c.l.b16 %v1360
      %v2112 = vunpack.c.h.b16 %v1360
      %v2113 = vunpack.c.l.b16 %v1361
      %v2114 = vunpack.c.h.b16 %v1361
      %v2115 = vunpack.c.l.b16 %v1362
      %v2116 = vunpack.c.h.b16 %v1362
      %v2117 = vunpack.c.l.b16 %v1363
      %v2118 = vunpack.c.h.b16 %v1363
      %v2119 = vunpack.c.l.b16 %v1364
      %v2120 = vunpack.c.h.b16 %v1364
      %v2121 = vunpack.c.l.b16 %v1365
      %v2122 = vunpack.c.h.b16 %v1365
      %v2123 = vunpack.c.l.b16 %v1366
      %v2124 = vunpack.c.h.b16 %v1366
      %v2125 = vunpack.c.l.b16 %v1367
      %v2126 = vunpack.c.h.b16 %v1367
      %v2127 = vunpack.c.l.b16 %v1368
      %v2128 = vunpack.c.h.b16 %v1368
      %v2129 = vunpack.c.l.b16 %v1369
      %v2130 = vunpack.c.h.b16 %v1369
      %v2131 = vunpack.c.l.b16 %v1370
      %v2132 = vunpack.c.h.b16 %v1370
      %v2133 = vunpack.c.l.b16 %v1371
      %v2134 = vunpack.c.h.b16 %v1371
      %v2135 = vunpack.c.l.b16 %v1372
      %v2136 = vunpack.c.h.b16 %v1372
      %v2137 = vunpack.c.l.b16 %v1373
      %v2138 = vunpack.c.h.b16 %v1373
      %v2139 = vunpack.c.l.b16 %v1374
      %v2140 = vunpack.c.h.b16 %v1374
      %v2141 = vunpack.c.l.b16 %v1375
      %v2142 = vunpack.c.h.b16 %v1375
      %v2143 = vunpack.c.l.b16 %v1376
      %v2144 = vunpack.c.h.b16 %v1376
      %v2145 = vunpack.c.l.b16 %v1377
      %v2146 = vunpack.c.h.b16 %v1377
      %v2147 = vunpack.c.l.b16 %v1378
      %v2148 = vunpack.c.h.b16 %v1378
      %v2149 = vunpack.c.l.b16 %v1379
      %v2150 = vunpack.c.h.b16 %v1379
      %v2151 = vunpack.c.l.b16 %v1380
      %v2152 = vunpack.c.h.b16 %v1380
      %v2153 = vunpack.c.l.b16 %v1381
      %v2154 = vunpack.c.h.b16 %v1381
      %v2155 = vunpack.c.l.b16 %v1382
      %v2156 = vunpack.c.h.b16 %v1382
      %v2157 = vunpack.c.l.b16 %v1383
      %v2158 = vunpack.c.h.b16 %v1383
      %v2159 = vunpack.c.l.b16 %v1384
      %v2160 = vunpack.c.h.b16 %v1384
      %v2161 = vunpack.c.l.b16 %v1385
      %v2162 = vunpack.c.h.b16 %v1385
      %v2163 = vunpack.c.l.b16 %v1386
      %v2164 = vunpack.c.h.b16 %v1386
      %v2165 = vunpack.c.l.b16 %v1387
      %v2166 = vunpack.c.h.b16 %v1387
      %v2167 = vunpack.c.l.b16 %v1388
      %v2168 = vunpack.c.h.b16 %v1388
      %v2169 = vunpack.c.l.b16 %v1389
      %v2170 = vunpack.c.h.b16 %v1389
      %v2171 = vunpack.c.l.b16 %v1390
      %v2172 = vunpack.c.h.b16 %v1390
      %v2173 = vunpack.c.l.b16 %v1391
      %v2174 = vunpack.c.h.b16 %v1391
      %v2175 = vunpack.c.l.b16 %v1392
      %v2176 = vunpack.c.h.b16 %v1392
      %v2177 = vunpack.c.l.b16 %v1393
      %v2178 = vunpack.c.h.b16 %v1393
      %v2179 = vunpack.c.l.b16 %v1394
      %v2180 = vunpack.c.h.b16 %v1394
      %v2181 = vunpack.c.l.b16 %v1395
      %v2182 = vunpack.c.h.b16 %v1395
      %v2183 = vunpack.c.l.b16 %v1396
      %v2184 = vunpack.c.h.b16 %v1396
      %v2185 = vunpack.c.l.b16 %v1397
      %v2186 = vunpack.c.h.b16 %v1397
      %v2187 = vunpack.c.l.b16 %v1398
      %v2188 = vunpack.c.h.b16 %v1398
      %v2189 = vunpack.c.l.b16 %v1399
      %v2190 = vunpack.c.h.b16 %v1399
      %v2191 = vunpack.c.l.b16 %v1400
      %v2192 = vunpack.c.h.b16 %v1400
      %v2193 = vunpack.c.l.b16 %v1401
      %v2194 = vunpack.c.h.b16 %v1401
      %v2195 = vunpack.c.l.b16 %v1402
      %v2196 = vunpack.c.h.b16 %v1402
      %v2197 = vunpack.c.l.b16 %v1403
      %v2198 = vunpack.c.h.b16 %v1403
      %v2199 = vunpack.c.l.b16 %v1404
      %v2200 = vunpack.c.h.b16 %v1404
      %v2201 = vunpack.c.l.b16 %v1405
      %v2202 = vunpack.c.h.b16 %v1405
      %v2203 = vunpack.c.l.b16 %v1406
      %v2204 = vunpack.c.h.b16 %v1406
      %v2205 = vunpack.c.l.b16 %v1407
      %v2206 = vunpack.c.h.b16 %v1407
      %v2207 = vunpack.c.l.b16 %v1408
      %v2208 = vunpack.c.h.b16 %v1408
      %v2209 = vunpack.c.l.b16 %v1409
      %v2210 = vunpack.c.h.b16 %v1409
      %v2211 = vunpack.c.l.b16 %v1410
      %v2212 = vunpack.c.h.b16 %v1410
      %v2213 = vunpack.c.l.b16 %v1411
      %v2214 = vunpack.c.h.b16 %v1411
      %v2215 = vunpack.c.l.b16 %v1412
      %v2216 = vunpack.c.h.b16 %v1412
      %v2217 = vunpack.c.l.b16 %v1413
      %v2218 = vunpack.c.h.b16 %v1413
      %v2219 = vunpack.c.l.b16 %v1414
      %v2220 = vunpack.c.h.b16 %v1414
      %v2221 = vunpack.c.l.b16 %v1415
      %v2222 = vunpack.c.h.b16 %v1415
      %v2223 = vunpack.c.l.b16 %v1416
      %v2224 = vunpack.c.h.b16 %v1416
      %v2225 = vunpack.c.l.b16 %v1417
      %v2226 = vunpack.c.h.b16 %v1417
      %v2227 = vunpack.c.l.b16 %v1418
      %v2228 = vunpack.c.h.b16 %v1418
      %v2229 = vpack.c.b16 %v1725, %v1717
      %v2230 = vpack.c.b16 %v1726, %v1718
      %v2231 = vpack.c.b16 %v1727, %v1719
      %v2232 = vpack.c.b16 %v1728, %v1720
      %v2233 = vpack.c.b16 %v1729, %v1721
      %v2234 = vpack.c.b16 %v1730, %v1722
      %v2235 = vpack.c.b16 %v1731, %v1723
      %v2236 = vpack.c.b16 %v1732, %v1724
      %v2237 = vpack.c.b16 %v1741, %v1733
      %v2238 = vpack.c.b16 %v1742, %v1734
      %v2239 = vpack.c.b16 %v1743, %v1735
      %v2240 = vpack.c.b16 %v1744, %v1736
      %v2241 = vpack.c.b16 %v1745, %v1737
      %v2242 = vpack.c.b16 %v1746, %v1738
      %v2243 = vpack.c.b16 %v1747, %v1739
      %v2244 = vpack.c.b16 %v1748, %v1740
      %v2245 = vpack.c.b16 %v1757, %v1749
      %v2246 = vpack.c.b16 %v1758, %v1750
      %v2247 = vpack.c.b16 %v1759, %v1751
      %v2248 = vpack.c.b16 %v1760, %v1752
      %v2249 = vpack.c.b16 %v1761, %v1753
      %v2250 = vpack.c.b16 %v1762, %v1754
      %v2251 = vpack.c.b16 %v1763, %v1755
      %v2252 = vpack.c.b16 %v1764, %v1756
      %v2253 = vpack.c.b16 %v1773, %v1765
      %v2254 = vpack.c.b16 %v1774, %v1766
      %v2255 = vpack.c.b16 %v1775, %v1767
      %v2256 = vpack.c.b16 %v1776, %v1768
      %v2257 = vpack.c.b16 %v1777, %v1769
      %v2258 = vpack.c.b16 %v1778, %v1770
      %v2259 = vpack.c.b16 %v1779, %v1771
      %v2260 = vpack.c.b16 %v1780, %v1772
      %v2261 = vpack.c.b16 %v1789, %v1781
      %v2262 = vpack.c.b16 %v1790, %v1782
      %v2263 = vpack.c.b16 %v1791, %v1783
      %v2264 = vpack.c.b16 %v1792, %v1784
      %v2265 = vpack.c.b16 %v1793, %v1785
      %v2266 = vpack.c.b16 %v1794, %v1786
      %v2267 = vpack.c.b16 %v1795, %v1787
      %v2268 = vpack.c.b16 %v1796, %v1788
      %v2269 = vpack.c.b16 %v1805, %v1797
      %v2270 = vpack.c.b16 %v1806, %v1798
      %v2271 = vpack.c.b16 %v1807, %v1799
      %v2272 = vpack.c.b16 %v1808, %v1800
      %v2273 = vpack.c.b16 %v1809, %v1801
      %v2274 = vpack.c.b16 %v1810, %v1802
      %v2275 = vpack.c.b16 %v1811, %v1803
      %v2276 = vpack.c.b16 %v1812, %v1804
      %v2277 = vpack.c.b16 %v1821, %v1813
      %v2278 = vpack.c.b16 %v1822, %v1814
      %v2279 = vpack.c.b16 %v1823, %v1815
      %v2280 = vpack.c.b16 %v1824, %v1816
      %v2281 = vpack.c.b16 %v1825, %v1817
      %v2282 = vpack.c.b16 %v1826, %v1818
      %v2283 = vpack.c.b16 %v1827, %v1819
      %v2284 = vpack.c.b16 %v1828, %v1820
      %v2285 = vpack.c.b16 %v1837, %v1829
      %v2286 = vpack.c.b16 %v1838, %v1830
      %v2287 = vpack.c.b16 %v1839, %v1831
      %v2288 = vpack.c.b16 %v1840, %v1832
      %v2289 = vpack.c.b16 %v1841, %v1833
      %v2290 = vpack.c.b16 %v1842, %v1834
      %v2291 = vpack.c.b16 %v1843, %v1835
      %v2292 = vpack.c.b16 %v1844, %v1836
      %v2293 = vpack.c.b16 %v1853, %v1845
      %v2294 = vpack.c.b16 %v1854, %v1846
      %v2295 = vpack.c.b16 %v1855, %v1847
      %v2296 = vpack.c.b16 %v1856, %v1848
      %v2297 = vpack.c.b16 %v1857, %v1849
      %v2298 = vpack.c.b16 %v1858, %v1850
      %v2299 = vpack.c.b16 %v1859, %v1851
      %v2300 = vpack.c.b16 %v1860, %v1852
      %v2301 = vpack.c.b16 %v1869, %v1861
      %v2302 = vpack.c.b16 %v1870, %v1862
      %v2303 = vpack.c.b16 %v1871, %v1863
      %v2304 = vpack.c.b16 %v1872, %v1864
      %v2305 = vpack.c.b16 %v1873, %v1865
      %v2306 = vpack.c.b16 %v1874, %v1866
      %v2307 = vpack.c.b16 %v1875, %v1867
      %v2308 = vpack.c.b16 %v1876, %v1868
      %v2309 = vpack.c.b16 %v1885, %v1877
      %v2310 = vpack.c.b16 %v1886, %v1878
      %v2311 = vpack.c.b16 %v1887, %v1879
      %v2312 = vpack.c.b16 %v1888, %v1880
      %v2313 = vpack.c.b16 %v1889, %v1881
      %v2314 = vpack.c.b16 %v1890, %v1882
      %v2315 = vpack.c.b16 %v1891, %v1883
      %v2316 = vpack.c.b16 %v1892, %v1884
      %v2317 = vpack.c.b16 %v1901, %v1893
      %v2318 = vpack.c.b16 %v1902, %v1894
      %v2319 = vpack.c.b16 %v1903, %v1895
      %v2320 = vpack.c.b16 %v1904, %v1896
      %v2321 = vpack.c.b16 %v1905, %v1897
      %v2322 = vpack.c.b16 %v1906, %v1898
      %v2323 = vpack.c.b16 %v1907, %v1899
      %v2324 = vpack.c.b16 %v1908, %v1900
      %v2325 = vpack.c.b16 %v1917, %v1909
      %v2326 = vpack.c.b16 %v1918, %v1910
      %v2327 = vpack.c.b16 %v1919, %v1911
      %v2328 = vpack.c.b16 %v1920, %v1912
      %v2329 = vpack.c.b16 %v1921, %v1913
      %v2330 = vpack.c.b16 %v1922, %v1914
      %v2331 = vpack.c.b16 %v1923, %v1915
      %v2332 = vpack.c.b16 %v1924, %v1916
      %v2333 = vpack.c.b16 %v1933, %v1925
      %v2334 = vpack.c.b16 %v1934, %v1926
      %v2335 = vpack.c.b16 %v1935, %v1927
      %v2336 = vpack.c.b16 %v1936, %v1928
      %v2337 = vpack.c.b16 %v1937, %v1929
      %v2338 = vpack.c.b16 %v1938, %v1930
      %v2339 = vpack.c.b16 %v1939, %v1931
      %v2340 = vpack.c.b16 %v1940, %v1932
      %v2341 = vpack.c.b16 %v1949, %v1941
      %v2342 = vpack.c.b16 %v1950, %v1942
      %v2343 = vpack.c.b16 %v1951, %v1943
      %v2344 = vpack.c.b16 %v1952, %v1944
      %v2345 = vpack.c.b16 %v1953, %v1945
      %v2346 = vpack.c.b16 %v1954, %v1946
      %v2347 = vpack.c.b16 %v1955, %v1947
      %v2348 = vpack.c.b16 %v1956, %v1948
      %v2349 = vpack.c.b16 %v1965, %v1957
      %v2350 = vpack.c.b16 %v1966, %v1958
      %v2351 = vpack.c.b16 %v1967, %v1959
      %v2352 = vpack.c.b16 %v1968, %v1960
      %v2353 = vpack.c.b16 %v1969, %v1961
      %v2354 = vpack.c.b16 %v1970, %v1962
      %v2355 = vpack.c.b16 %v1971, %v1963
      %v2356 = vpack.c.b16 %v1972, %v1964
      %v2357 = vpack.c.b16 %v1981, %v1973
      %v2358 = vpack.c.b16 %v1982, %v1974
      %v2359 = vpack.c.b16 %v1983, %v1975
      %v2360 = vpack.c.b16 %v1984, %v1976
      %v2361 = vpack.c.b16 %v1985, %v1977
      %v2362 = vpack.c.b16 %v1986, %v1978
      %v2363 = vpack.c.b16 %v1987, %v1979
      %v2364 = vpack.c.b16 %v1988, %v1980
      %v2365 = vpack.c.b16 %v1997, %v1989
      %v2366 = vpack.c.b16 %v1998, %v1990
      %v2367 = vpack.c.b16 %v1999, %v1991
      %v2368 = vpack.c.b16 %v2000, %v1992
      %v2369 = vpack.c.b16 %v2001, %v1993
      %v2370 = vpack.c.b16 %v2002, %v1994
      %v2371 = vpack.c.b16 %v2003, %v1995
      %v2372 = vpack.c.b16 %v2004, %v1996
      %v2373 = vpack.c.b16 %v2013, %v2005
      %v2374 = vpack.c.b16 %v2014, %v2006
      %v2375 = vpack.c.b16 %v2015, %v2007
      %v2376 = vpack.c.b16 %v2016, %v2008
      %v2377 = vpack.c.b16 %v2017, %v2009
      %v2378 = vpack.c.b16 %v2018, %v2010
      %v2379 = vpack.c.b16 %v2019, %v2011
      %v2380 = vpack.c.b16 %v2020, %v2012
      %v2381 = vpack.c.b16 %v2029, %v2021
      %v2382 = vpack.c.b16 %v2030, %v2022
      %v2383 = vpack.c.b16 %v2031, %v2023
      %v2384 = vpack.c.b16 %v2032, %v2024
      %v2385 = vpack.c.b16 %v2033, %v2025
      %v2386 = vpack.c.b16 %v2034, %v2026
      %v2387 = vpack.c.b16 %v2035, %v2027
      %v2388 = vpack.c.b16 %v2036, %v2028
      %v2389 = vpack.c.b16 %v2045, %v2037
      %v2390 = vpack.c.b16 %v2046, %v2038
      %v2391 = vpack.c.b16 %v2047, %v2039
      %v2392 = vpack.c.b16 %v2048, %v2040
      %v2393 = vpack.c.b16 %v2049, %v2041
      %v2394 = vpack.c.b16 %v2050, %v2042
      %v2395 = vpack.c.b16 %v2051, %v2043
      %v2396 = vpack.c.b16 %v2052, %v2044
      %v2397 = vpack.c.b16 %v2061, %v2053
      %v2398 = vpack.c.b16 %v2062, %v2054
      %v2399 = vpack.c.b16 %v2063, %v2055
      %v2400 = vpack.c.b16 %v2064, %v2056
      %v2401 = vpack.c.b16 %v2065, %v2057
      %v2402 = vpack.c.b16 %v2066, %v2058
      %v2403 = vpack.c.b16 %v2067, %v2059
      %v2404 = vpack.c.b16 %v2068, %v2060
      %v2405 = vpack.c.b16 %v2077, %v2069
      %v2406 = vpack.c.b16 %v2078, %v2070
      %v2407 = vpack.c.b16 %v2079, %v2071
      %v2408 = vpack.c.b16 %v2080, %v2072
      %v2409 = vpack.c.b16 %v2081, %v2073
      %v2410 = vpack.c.b16 %v2082, %v2074
      %v2411 = vpack.c.b16 %v2083, %v2075
      %v2412 = vpack.c.b16 %v2084, %v2076
      %v2413 = vpack.c.b16 %v2093, %v2085
      %v2414 = vpack.c.b16 %v2094, %v2086
      %v2415 = vpack.c.b16 %v2095, %v2087
      %v2416 = vpack.c.b16 %v2096, %v2088
      %v2417 = vpack.c.b16 %v2097, %v2089
      %v2418 = vpack.c.b16 %v2098, %v2090
      %v2419 = vpack.c.b16 %v2099, %v2091
      %v2420 = vpack.c.b16 %v2100, %v2092
      %v2421 = vpack.c.b16 %v2109, %v2101
      %v2422 = vpack.c.b16 %v2110, %v2102
      %v2423 = vpack.c.b16 %v2111, %v2103
      %v2424 = vpack.c.b16 %v2112, %v2104
      %v2425 = vpack.c.b16 %v2113, %v2105
      %v2426 = vpack.c.b16 %v2114, %v2106
      %v2427 = vpack.c.b16 %v2115, %v2107
      %v2428 = vpack.c.b16 %v2116, %v2108
      %v2429 = vpack.c.b16 %v2125, %v2117
      %v2430 = vpack.c.b16 %v2126, %v2118
      %v2431 = vpack.c.b16 %v2127, %v2119
      %v2432 = vpack.c.b16 %v2128, %v2120
      %v2433 = vpack.c.b16 %v2129, %v2121
      %v2434 = vpack.c.b16 %v2130, %v2122
      %v2435 = vpack.c.b16 %v2131, %v2123
      %v2436 = vpack.c.b16 %v2132, %v2124
      %v2437 = vpack.c.b16 %v2141, %v2133
      %v2438 = vpack.c.b16 %v2142, %v2134
      %v2439 = vpack.c.b16 %v2143, %v2135
      %v2440 = vpack.c.b16 %v2144, %v2136
      %v2441 = vpack.c.b16 %v2145, %v2137
      %v2442 = vpack.c.b16 %v2146, %v2138
      %v2443 = vpack.c.b16 %v2147, %v2139
      %v2444 = vpack.c.b16 %v2148, %v2140
      %v2445 = vpack.c.b16 %v2157, %v2149
      %v2446 = vpack.c.b16 %v2158, %v2150
      %v2447 = vpack.c.b16 %v2159, %v2151
      %v2448 = vpack.c.b16 %v2160, %v2152
      %v2449 = vpack.c.b16 %v2161, %v2153
      %v2450 = vpack.c.b16 %v2162, %v2154
      %v2451 = vpack.c.b16 %v2163, %v2155
      %v2452 = vpack.c.b16 %v2164, %v2156
      %v2453 = vpack.c.b16 %v2173, %v2165
      %v2454 = vpack.c.b16 %v2174, %v2166
      %v2455 = vpack.c.b16 %v2175, %v2167
      %v2456 = vpack.c.b16 %v2176, %v2168
      %v2457 = vpack.c.b16 %v2177, %v2169
      %v2458 = vpack.c.b16 %v2178, %v2170
      %v2459 = vpack.c.b16 %v2179, %v2171
      %v2460 = vpack.c.b16 %v2180, %v2172
      %v2461 = vpack.c.b16 %v2189, %v2181
      %v2462 = vpack.c.b16 %v2190, %v2182
      %v2463 = vpack.c.b16 %v2191, %v2183
      %v2464 = vpack.c.b16 %v2192, %v2184
      %v2465 = vpack.c.b16 %v2193, %v2185
      %v2466 = vpack.c.b16 %v2194, %v2186
      %v2467 = vpack.c.b16 %v2195, %v2187
      %v2468 = vpack.c.b16 %v2196, %v2188
      %v2469 = vpack.c.b16 %v2205, %v2197
      %v2470 = vpack.c.b16 %v2206, %v2198
      %v2471 = vpack.c.b16 %v2207, %v2199
      %v2472 = vpack.c.b16 %v2208, %v2200
      %v2473 = vpack.c.b16 %v2209, %v2201
      %v2474 = vpack.c.b16 %v2210, %v2202
      %v2475 = vpack.c.b16 %v2211, %v2203
      %v2476 = vpack.c.b16 %v2212, %v2204
      %v2477 = vpack.c.b16 %v2221, %v2213
      %v2478 = vpack.c.b16 %v2222, %v2214
      %v2479 = vpack.c.b16 %v2223, %v2215
      %v2480 = vpack.c.b16 %v2224, %v2216
      %v2481 = vpack.c.b16 %v2225, %v2217
      %v2482 = vpack.c.b16 %v2226, %v2218
      %v2483 = vpack.c.b16 %v2227, %v2219
      %v2484 = vpack.c.b16 %v2228, %v2220
      %2741 = vmatprep.subr.bf16.mxu0 %v2230
      %2742 = vmatpush1.bf16.msra.mxu0 %v2229
      %2743 = vmatprep.subr.bf16.mxu0 %v2238
      %2744 = vmatpush1.bf16.msra.mxu0 %v2237
      %2745 = vmatprep.subr.bf16.mxu0 %v2246
      %2746 = vmatpush1.bf16.msra.mxu0 %v2245
      %2747 = vmatprep.subr.bf16.mxu0 %v2254
      %2748 = vmatpush1.bf16.msra.mxu0 %v2253
      %2749 = vmatprep.subr.bf16.mxu0 %v2262
      %2750 = vmatpush1.bf16.msra.mxu0 %v2261
      %2751 = vmatprep.subr.bf16.mxu0 %v2270
      %2752 = vmatpush1.bf16.msra.mxu0 %v2269
      %2753 = vmatprep.subr.bf16.mxu0 %v2278
      %2754 = vmatpush1.bf16.msra.mxu0 %v2277
      %2755 = vmatprep.subr.bf16.mxu0 %v2286
      %2756 = vmatpush1.bf16.msra.mxu0 %v2285
      %2757 = vmatprep.subr.bf16.mxu0 %v2294
      %2758 = vmatpush1.bf16.msra.mxu0 %v2293
      %2759 = vmatprep.subr.bf16.mxu0 %v2302
      %2760 = vmatpush1.bf16.msra.mxu0 %v2301
      %2761 = vmatprep.subr.bf16.mxu0 %v2310
      %2762 = vmatpush1.bf16.msra.mxu0 %v2309
      %2763 = vmatprep.subr.bf16.mxu0 %v2318
      %2764 = vmatpush1.bf16.msra.mxu0 %v2317
      %2765 = vmatprep.subr.bf16.mxu0 %v2326
      %2766 = vmatpush1.bf16.msra.mxu0 %v2325
      %2767 = vmatprep.subr.bf16.mxu0 %v2334
      %2768 = vmatpush1.bf16.msra.mxu0 %v2333
      %2769 = vmatprep.subr.bf16.mxu0 %v2342
      %2770 = vmatpush1.bf16.msra.mxu0 %v2341
      %2771 = vmatprep.subr.bf16.mxu0 %v2350
      %2772 = vmatpush1.bf16.msra.mxu0 %v2349
      %2773 = vmatprep.mubr.bf16.mxu0 %v1160
      %2774 = vmatmul.mubr.bf16.gmra.mrb[0].mxu0 %v1159
      %v2775 = vpop.f32.mrb[0].mxu0
      %v2776 = vadd.f32 %v1424, %v2775
      %v2777 = vpop.f32.mrb[0].mxu0
      %v2778 = vadd.f32 %v1428, %v2777
      %v2779 = vpop.f32.mrb[0].mxu0
      %v2780 = vpop.f32.mrb[0].mxu0
      %2781 = vdwg.mxu0
      %2782 = vmatprep.subr.bf16.mxu0 %v2358
      %2783 = vmatpush1.bf16.msra.mxu0 %v2357
      %2784 = vmatprep.subr.bf16.mxu0 %v2366
      %2785 = vmatpush1.bf16.msra.mxu0 %v2365
      %2786 = vmatprep.subr.bf16.mxu0 %v2374
      %2787 = vmatpush1.bf16.msra.mxu0 %v2373
      %2788 = vmatprep.subr.bf16.mxu0 %v2382
      %2789 = vmatpush1.bf16.msra.mxu0 %v2381
      %2790 = vmatprep.subr.bf16.mxu0 %v2390
      %2791 = vmatpush1.bf16.msra.mxu0 %v2389
      %2792 = vmatprep.subr.bf16.mxu0 %v2398
      %2793 = vmatpush1.bf16.msra.mxu0 %v2397
      %2794 = vmatprep.subr.bf16.mxu0 %v2406
      %2795 = vmatpush1.bf16.msra.mxu0 %v2405
      %2796 = vmatprep.subr.bf16.mxu0 %v2414
      %2797 = vmatpush1.bf16.msra.mxu0 %v2413
      %2798 = vmatprep.subr.bf16.mxu0 %v2422
      %2799 = vmatpush1.bf16.msra.mxu0 %v2421
      %2800 = vmatprep.subr.bf16.mxu0 %v2430
      %2801 = vmatpush1.bf16.msra.mxu0 %v2429
      %2802 = vmatprep.subr.bf16.mxu0 %v2438
      %2803 = vmatpush1.bf16.msra.mxu0 %v2437
      %2804 = vmatprep.subr.bf16.mxu0 %v2446
      %2805 = vmatpush1.bf16.msra.mxu0 %v2445
      %2806 = vmatprep.subr.bf16.mxu0 %v2454
      %2807 = vmatpush1.bf16.msra.mxu0 %v2453
      %2808 = vmatprep.subr.bf16.mxu0 %v2462
      %2809 = vmatpush1.bf16.msra.mxu0 %v2461
      %2810 = vmatprep.subr.bf16.mxu0 %v2470
      %2811 = vmatpush1.bf16.msra.mxu0 %v2469
      %2812 = vmatprep.subr.bf16.mxu0 %v2478
      %2813 = vmatpush1.bf16.msra.mxu0 %v2477
      %2814 = vmatprep.mubr.bf16.mxu0 %v1162
      %2815 = vmatmul.mubr.bf16.gmra.mrb[0].mxu0 %v1161
      %v2816 = vpop.f32.mrb[0].mxu0
      %v2817 = vadd.f32 %v2776, %v2816
      %v2818 = vpop.f32.mrb[0].mxu0
      %v2819 = vadd.f32 %v2778, %v2818
      %v2820 = vpop.f32.mrb[0].mxu0
      %v2821 = vpop.f32.mrb[0].mxu0
      %2822 = vdwg.mxu0
      %2823 = vmatprep.subr.bf16.mxu0 %v2232
      %2824 = vmatpush1.bf16.msra.mxu0 %v2231
      %2825 = vmatprep.subr.bf16.mxu0 %v2240
      %2826 = vmatpush1.bf16.msra.mxu0 %v2239
      %2827 = vmatprep.subr.bf16.mxu0 %v2248
      %2828 = vmatpush1.bf16.msra.mxu0 %v2247
      %2829 = vmatprep.subr.bf16.mxu0 %v2256
      %2830 = vmatpush1.bf16.msra.mxu0 %v2255
      %2831 = vmatprep.subr.bf16.mxu0 %v2264
      %2832 = vmatpush1.bf16.msra.mxu0 %v2263
      %2833 = vmatprep.subr.bf16.mxu0 %v2272
      %2834 = vmatpush1.bf16.msra.mxu0 %v2271
      %2835 = vmatprep.subr.bf16.mxu0 %v2280
      %2836 = vmatpush1.bf16.msra.mxu0 %v2279
      %2837 = vmatprep.subr.bf16.mxu0 %v2288
      %2838 = vmatpush1.bf16.msra.mxu0 %v2287
      %2839 = vmatprep.subr.bf16.mxu0 %v2296
      %2840 = vmatpush1.bf16.msra.mxu0 %v2295
      %2841 = vmatprep.subr.bf16.mxu0 %v2304
      %2842 = vmatpush1.bf16.msra.mxu0 %v2303
      %2843 = vmatprep.subr.bf16.mxu0 %v2312
      %2844 = vmatpush1.bf16.msra.mxu0 %v2311
      %2845 = vmatprep.subr.bf16.mxu0 %v2320
      %2846 = vmatpush1.bf16.msra.mxu0 %v2319
      %2847 = vmatprep.subr.bf16.mxu0 %v2328
      %2848 = vmatpush1.bf16.msra.mxu0 %v2327
      %2849 = vmatprep.subr.bf16.mxu0 %v2336
      %2850 = vmatpush1.bf16.msra.mxu0 %v2335
      %2851 = vmatprep.subr.bf16.mxu0 %v2344
      %2852 = vmatpush1.bf16.msra.mxu0 %v2343
      %2853 = vmatprep.subr.bf16.mxu0 %v2352
      %2854 = vmatpush1.bf16.msra.mxu0 %v2351
      %2855 = vmatprep.mubr.bf16.mxu0 %v1160
      %2856 = vmatmul.mubr.bf16.gmra.mrb[0].mxu0 %v1159
      %v2857 = vpop.f32.mrb[0].mxu0
      %v2858 = vadd.f32 %v1432, %v2857
      %v2859 = vpop.f32.mrb[0].mxu0
      %v2860 = vadd.f32 %v1436, %v2859
      %v2861 = vpop.f32.mrb[0].mxu0
      %v2862 = vpop.f32.mrb[0].mxu0
      %2863 = vdwg.mxu0
      %2864 = vmatprep.subr.bf16.mxu0 %v2360
      %2865 = vmatpush1.bf16.msra.mxu0 %v2359
      %2866 = vmatprep.subr.bf16.mxu0 %v2368
      %2867 = vmatpush1.bf16.msra.mxu0 %v2367
      %2868 = vmatprep.subr.bf16.mxu0 %v2376
      %2869 = vmatpush1.bf16.msra.mxu0 %v2375
      %2870 = vmatprep.subr.bf16.mxu0 %v2384
      %2871 = vmatpush1.bf16.msra.mxu0 %v2383
      %2872 = vmatprep.subr.bf16.mxu0 %v2392
      %2873 = vmatpush1.bf16.msra.mxu0 %v2391
      %2874 = vmatprep.subr.bf16.mxu0 %v2400
      %2875 = vmatpush1.bf16.msra.mxu0 %v2399
      %2876 = vmatprep.subr.bf16.mxu0 %v2408
      %2877 = vmatpush1.bf16.msra.mxu0 %v2407
      %2878 = vmatprep.subr.bf16.mxu0 %v2416
      %2879 = vmatpush1.bf16.msra.mxu0 %v2415
      %2880 = vmatprep.subr.bf16.mxu0 %v2424
      %2881 = vmatpush1.bf16.msra.mxu0 %v2423
      %2882 = vmatprep.subr.bf16.mxu0 %v2432
      %2883 = vmatpush1.bf16.msra.mxu0 %v2431
      %2884 = vmatprep.subr.bf16.mxu0 %v2440
      %2885 = vmatpush1.bf16.msra.mxu0 %v2439
      %2886 = vmatprep.subr.bf16.mxu0 %v2448
      %2887 = vmatpush1.bf16.msra.mxu0 %v2447
      %2888 = vmatprep.subr.bf16.mxu0 %v2456
      %2889 = vmatpush1.bf16.msra.mxu0 %v2455
      %2890 = vmatprep.subr.bf16.mxu0 %v2464
      %2891 = vmatpush1.bf16.msra.mxu0 %v2463
      %2892 = vmatprep.subr.bf16.mxu0 %v2472
      %2893 = vmatpush1.bf16.msra.mxu0 %v2471
      %2894 = vmatprep.subr.bf16.mxu0 %v2480
      %2895 = vmatpush1.bf16.msra.mxu0 %v2479
      %2896 = vmatprep.mubr.bf16.mxu0 %v1162
      %2897 = vmatmul.mubr.bf16.gmra.mrb[0].mxu0 %v1161
      %v2898 = vpop.f32.mrb[0].mxu0
      %v2899 = vadd.f32 %v2858, %v2898
      %v2900 = vpop.f32.mrb[0].mxu0
      %v2901 = vadd.f32 %v2860, %v2900
      %v2902 = vpop.f32.mrb[0].mxu0
      %v2903 = vpop.f32.mrb[0].mxu0
      %2904 = vdwg.mxu0
      %2905 = vmatprep.subr.bf16.mxu0 %v2234
      %2906 = vmatpush1.bf16.msra.mxu0 %v2233
      %2907 = vmatprep.subr.bf16.mxu0 %v2242
      %2908 = vmatpush1.bf16.msra.mxu0 %v2241
      %2909 = vmatprep.subr.bf16.mxu0 %v2250
      %2910 = vmatpush1.bf16.msra.mxu0 %v2249
      %2911 = vmatprep.subr.bf16.mxu0 %v2258
      %2912 = vmatpush1.bf16.msra.mxu0 %v2257
      %2913 = vmatprep.subr.bf16.mxu0 %v2266
      %2914 = vmatpush1.bf16.msra.mxu0 %v2265
      %2915 = vmatprep.subr.bf16.mxu0 %v2274
      %2916 = vmatpush1.bf16.msra.mxu0 %v2273
      %2917 = vmatprep.subr.bf16.mxu0 %v2282
      %2918 = vmatpush1.bf16.msra.mxu0 %v2281
      %2919 = vmatprep.subr.bf16.mxu0 %v2290
      %2920 = vmatpush1.bf16.msra.mxu0 %v2289
      %2921 = vmatprep.subr.bf16.mxu0 %v2298
      %2922 = vmatpush1.bf16.msra.mxu0 %v2297
      %2923 = vmatprep.subr.bf16.mxu0 %v2306
      %2924 = vmatpush1.bf16.msra.mxu0 %v2305
      %2925 = vmatprep.subr.bf16.mxu0 %v2314
      %2926 = vmatpush1.bf16.msra.mxu0 %v2313
      %2927 = vmatprep.subr.bf16.mxu0 %v2322
      %2928 = vmatpush1.bf16.msra.mxu0 %v2321
      %2929 = vmatprep.subr.bf16.mxu0 %v2330
      %2930 = vmatpush1.bf16.msra.mxu0 %v2329
      %2931 = vmatprep.subr.bf16.mxu0 %v2338
      %2932 = vmatpush1.bf16.msra.mxu0 %v2337
      %2933 = vmatprep.subr.bf16.mxu0 %v2346
      %2934 = vmatpush1.bf16.msra.mxu0 %v2345
      %2935 = vmatprep.subr.bf16.mxu0 %v2354
      %2936 = vmatpush1.bf16.msra.mxu0 %v2353
      %2937 = vmatprep.mubr.bf16.mxu0 %v1160
      %2938 = vmatmul.mubr.bf16.gmra.mrb[0].mxu0 %v1159
      %v2939 = vpop.f32.mrb[0].mxu0
      %v2940 = vadd.f32 %v1440, %v2939
      %v2941 = vpop.f32.mrb[0].mxu0
      %v2942 = vadd.f32 %v1444, %v2941
      %v2943 = vpop.f32.mrb[0].mxu0
      %v2944 = vpop.f32.mrb[0].mxu0
      %2945 = vdwg.mxu0
      %2946 = vmatprep.subr.bf16.mxu0 %v2362
      %2947 = vmatpush1.bf16.msra.mxu0 %v2361
      %2948 = vmatprep.subr.bf16.mxu0 %v2370
      %2949 = vmatpush1.bf16.msra.mxu0 %v2369
      %2950 = vmatprep.subr.bf16.mxu0 %v2378
      %2951 = vmatpush1.bf16.msra.mxu0 %v2377
      %2952 = vmatprep.subr.bf16.mxu0 %v2386
      %2953 = vmatpush1.bf16.msra.mxu0 %v2385
      %2954 = vmatprep.subr.bf16.mxu0 %v2394
      %2955 = vmatpush1.bf16.msra.mxu0 %v2393
      %2956 = vmatprep.subr.bf16.mxu0 %v2402
      %2957 = vmatpush1.bf16.msra.mxu0 %v2401
      %2958 = vmatprep.subr.bf16.mxu0 %v2410
      %2959 = vmatpush1.bf16.msra.mxu0 %v2409
      %2960 = vmatprep.subr.bf16.mxu0 %v2418
      %2961 = vmatpush1.bf16.msra.mxu0 %v2417
      %2962 = vmatprep.subr.bf16.mxu0 %v2426
      %2963 = vmatpush1.bf16.msra.mxu0 %v2425
      %2964 = vmatprep.subr.bf16.mxu0 %v2434
      %2965 = vmatpush1.bf16.msra.mxu0 %v2433
      %2966 = vmatprep.subr.bf16.mxu0 %v2442
      %2967 = vmatpush1.bf16.msra.mxu0 %v2441
      %2968 = vmatprep.subr.bf16.mxu0 %v2450
      %2969 = vmatpush1.bf16.msra.mxu0 %v2449
      %2970 = vmatprep.subr.bf16.mxu0 %v2458
      %2971 = vmatpush1.bf16.msra.mxu0 %v2457
      %2972 = vmatprep.subr.bf16.mxu0 %v2466
      %2973 = vmatpush1.bf16.msra.mxu0 %v2465
      %2974 = vmatprep.subr.bf16.mxu0 %v2474
      %2975 = vmatpush1.bf16.msra.mxu0 %v2473
      %2976 = vmatprep.subr.bf16.mxu0 %v2482
      %2977 = vmatpush1.bf16.msra.mxu0 %v2481
      %2978 = vmatprep.mubr.bf16.mxu0 %v1162
      %2979 = vmatmul.mubr.bf16.gmra.mrb[0].mxu0 %v1161
      %v2980 = vpop.f32.mrb[0].mxu0
      %v2981 = vadd.f32 %v2940, %v2980
      %v2982 = vpop.f32.mrb[0].mxu0
      %v2983 = vadd.f32 %v2942, %v2982
      %v2984 = vpop.f32.mrb[0].mxu0
      %v2985 = vpop.f32.mrb[0].mxu0
      %2986 = vdwg.mxu0
      %2987 = vmatprep.subr.bf16.mxu0 %v2236
      %2988 = vmatpush1.bf16.msra.mxu0 %v2235
      %2989 = vmatprep.subr.bf16.mxu0 %v2244
      %2990 = vmatpush1.bf16.msra.mxu0 %v2243
      %2991 = vmatprep.subr.bf16.mxu0 %v2252
      %2992 = vmatpush1.bf16.msra.mxu0 %v2251
      %2993 = vmatprep.subr.bf16.mxu0 %v2260
      %2994 = vmatpush1.bf16.msra.mxu0 %v2259
      %2995 = vmatprep.subr.bf16.mxu0 %v2268
      %2996 = vmatpush1.bf16.msra.mxu0 %v2267
      %2997 = vmatprep.subr.bf16.mxu0 %v2276
      %2998 = vmatpush1.bf16.msra.mxu0 %v2275
      %2999 = vmatprep.subr.bf16.mxu0 %v2284
      %3000 = vmatpush1.bf16.msra.mxu0 %v2283
      %3001 = vmatprep.subr.bf16.mxu0 %v2292
      %3002 = vmatpush1.bf16.msra.mxu0 %v2291
      %3003 = vmatprep.subr.bf16.mxu0 %v2300
      %3004 = vmatpush1.bf16.msra.mxu0 %v2299
      %3005 = vmatprep.subr.bf16.mxu0 %v2308
      %3006 = vmatpush1.bf16.msra.mxu0 %v2307
      %3007 = vmatprep.subr.bf16.mxu0 %v2316
      %3008 = vmatpush1.bf16.msra.mxu0 %v2315
      %3009 = vmatprep.subr.bf16.mxu0 %v2324
      %3010 = vmatpush1.bf16.msra.mxu0 %v2323
      %3011 = vmatprep.subr.bf16.mxu0 %v2332
      %3012 = vmatpush1.bf16.msra.mxu0 %v2331
      %3013 = vmatprep.subr.bf16.mxu0 %v2340
      %3014 = vmatpush1.bf16.msra.mxu0 %v2339
      %3015 = vmatprep.subr.bf16.mxu0 %v2348
      %3016 = vmatpush1.bf16.msra.mxu0 %v2347
      %3017 = vmatprep.subr.bf16.mxu0 %v2356
      %3018 = vmatpush1.bf16.msra.mxu0 %v2355
      %3019 = vmatprep.mubr.bf16.mxu0 %v1160
      %3020 = vmatmul.mubr.bf16.gmra.mrb[0].mxu0 %v1159
      %v3021 = vpop.f32.mrb[0].mxu0
      %v3022 = vadd.f32 %v1448, %v3021
      %v3023 = vpop.f32.mrb[0].mxu0
      %v3024 = vadd.f32 %v1452, %v3023
      %v3025 = vpop.f32.mrb[0].mxu0
      %v3026 = vpop.f32.mrb[0].mxu0
      %3027 = vdwg.mxu0
      %3028 = vmatprep.subr.bf16.mxu0 %v2364
      %3029 = vmatpush1.bf16.msra.mxu0 %v2363
      %3030 = vmatprep.subr.bf16.mxu0 %v2372
      %3031 = vmatpush1.bf16.msra.mxu0 %v2371
      %3032 = vmatprep.subr.bf16.mxu0 %v2380
      %3033 = vmatpush1.bf16.msra.mxu0 %v2379
      %3034 = vmatprep.subr.bf16.mxu0 %v2388
      %3035 = vmatpush1.bf16.msra.mxu0 %v2387
      %3036 = vmatprep.subr.bf16.mxu0 %v2396
      %3037 = vmatpush1.bf16.msra.mxu0 %v2395
      %3038 = vmatprep.subr.bf16.mxu0 %v2404
      %3039 = vmatpush1.bf16.msra.mxu0 %v2403
      %3040 = vmatprep.subr.bf16.mxu0 %v2412
      %3041 = vmatpush1.bf16.msra.mxu0 %v2411
      %3042 = vmatprep.subr.bf16.mxu0 %v2420
      %3043 = vmatpush1.bf16.msra.mxu0 %v2419
      %3044 = vmatprep.subr.bf16.mxu0 %v2428
      %3045 = vmatpush1.bf16.msra.mxu0 %v2427
      %3046 = vmatprep.subr.bf16.mxu0 %v2436
      %3047 = vmatpush1.bf16.msra.mxu0 %v2435
      %3048 = vmatprep.subr.bf16.mxu0 %v2444
      %3049 = vmatpush1.bf16.msra.mxu0 %v2443
      %3050 = vmatprep.subr.bf16.mxu0 %v2452
      %3051 = vmatpush1.bf16.msra.mxu0 %v2451
      %3052 = vmatprep.subr.bf16.mxu0 %v2460
      %3053 = vmatpush1.bf16.msra.mxu0 %v2459
      %3054 = vmatprep.subr.bf16.mxu0 %v2468
      %3055 = vmatpush1.bf16.msra.mxu0 %v2467
      %3056 = vmatprep.subr.bf16.mxu0 %v2476
      %3057 = vmatpush1.bf16.msra.mxu0 %v2475
      %3058 = vmatprep.subr.bf16.mxu0 %v2484
      %3059 = vmatpush1.bf16.msra.mxu0 %v2483
      %3060 = vmatprep.mubr.bf16.mxu0 %v1162
      %3061 = vmatmul.mubr.bf16.gmra.mrb[0].mxu0 %v1161
      %v3062 = vpop.f32.mrb[0].mxu0
      %v3063 = vadd.f32 %v3022, %v3062
      %v3064 = vpop.f32.mrb[0].mxu0
      %v3065 = vadd.f32 %v3024, %v3064
      %v3066 = vpop.f32.mrb[0].mxu0
      %v3067 = vpop.f32.mrb[0].mxu0
      %3068 = vdwg.mxu0
      %v3069 = vrot.slane %v2817, 4
      %v3070 = vmax.f32 %v2817, %v3069
      %v3071 = vrot.slane %v3070, 2
      %v3072 = vmax.f32 %v3070, %v3071
      %v3073 = vrot.slane %v3072, 1
      %v3074 = vmax.f32 %v3072, %v3073
      %v3075 = vrot.slane %v2819, 4
      %v3076 = vmax.f32 %v2819, %v3075
      %v3077 = vrot.slane %v3076, 2
      %v3078 = vmax.f32 %v3076, %v3077
      %v3079 = vrot.slane %v3078, 1
      %v3080 = vmax.f32 %v3078, %v3079
      %v3081 = vrot.slane %v2899, 4
      %v3082 = vmax.f32 %v2899, %v3081
      %v3083 = vrot.slane %v3082, 2
      %v3084 = vmax.f32 %v3082, %v3083
      %v3085 = vrot.slane %v3084, 1
      %v3086 = vmax.f32 %v3084, %v3085
      %v3087 = vrot.slane %v2901, 4
      %v3088 = vmax.f32 %v2901, %v3087
      %v3089 = vrot.slane %v3088, 2
      %v3090 = vmax.f32 %v3088, %v3089
      %v3091 = vrot.slane %v3090, 1
      %v3092 = vmax.f32 %v3090, %v3091
      %v3093 = vrot.slane %v2981, 4
      %v3094 = vmax.f32 %v2981, %v3093
      %v3095 = vrot.slane %v3094, 2
      %v3096 = vmax.f32 %v3094, %v3095
      %v3097 = vrot.slane %v3096, 1
      %v3098 = vmax.f32 %v3096, %v3097
      %v3099 = vrot.slane %v2983, 4
      %v3100 = vmax.f32 %v2983, %v3099
      %v3101 = vrot.slane %v3100, 2
      %v3102 = vmax.f32 %v3100, %v3101
      %v3103 = vrot.slane %v3102, 1
      %v3104 = vmax.f32 %v3102, %v3103
      %v3105 = vrot.slane %v3063, 4
      %v3106 = vmax.f32 %v3063, %v3105
      %v3107 = vrot.slane %v3106, 2
      %v3108 = vmax.f32 %v3106, %v3107
      %v3109 = vrot.slane %v3108, 1
      %v3110 = vmax.f32 %v3108, %v3109
      %v3111 = vrot.slane %v3065, 4
      %v3112 = vmax.f32 %v3065, %v3111
      %v3113 = vrot.slane %v3112, 2
      %v3114 = vmax.f32 %v3112, %v3113
      %v3115 = vrot.slane %v3114, 1
      %v3116 = vmax.f32 %v3114, %v3115
      %v3117 = vpack.c.bf16 %v3074, %v3074
      %v3118 = vpack.c.bf16 %v3080, %v3080
      %v3119 = vpack.c.bf16 %v3086, %v3086
      %v3120 = vpack.c.bf16 %v3092, %v3092
      %v3121 = vpack.c.bf16 %v3098, %v3098
      %v3122 = vpack.c.bf16 %v3104, %v3104
      %v3123 = vpack.c.bf16 %v3110, %v3110
      %v3124 = vpack.c.bf16 %v3116, %v3116
      %v3133 = vcombine.low %v3117, %v3118
      %v3134 = vcombine.low %v3119, %v3120
      %v3135 = vcombine.low %v3121, %v3122
      %v3136 = vcombine.low %v3123, %v3124
      %v3138 = vunpack.c.l.s4 1966171168
      %v3139 = vunpack.c.0.s8 %v3138
      %v3140 = vlaneseq
      %v3141 = vshrl.u32 %v3140, 7
      %v3142 = vsub.s32 %v3139, %v3141
      %v3143 = vrot.slane %v3133, %v3142
      %v3145 = vunpack.c.l.s4 1966171168
      %v3146 = vunpack.c.0.s8 %v3145
      %v3147 = vlaneseq
      %v3148 = vshrl.u32 %v3147, 7
      %v3149 = vsub.s32 %v3146, %v3148
      %v3150 = vrot.slane %v3134, %v3149
      %v3152 = vunpack.c.l.s4 1966171168
      %v3153 = vunpack.c.0.s8 %v3152
      %v3154 = vlaneseq
      %v3155 = vshrl.u32 %v3154, 7
      %v3156 = vsub.s32 %v3153, %v3155
      %v3157 = vrot.slane %v3135, %v3156
      %v3159 = vunpack.c.l.s4 1966171168
      %v3160 = vunpack.c.0.s8 %v3159
      %v3161 = vlaneseq
      %v3162 = vshrl.u32 %v3161, 7
      %v3163 = vsub.s32 %v3160, %v3162
      %v3164 = vrot.slane %v3136, %v3163
      %v3165 = vcombine.low %v3143, %v3150
      %v3166 = vcombine.low %v3157, %v3164
      %v3168 = vunpack.c.l.s4 1966171168
      %v3169 = vunpack.c.0.s8 %v3168
      %v3170 = vlaneseq
      %v3171 = vshrl.u32 %v3170, 7
      %v3172 = vsub.s32 %v3169, %v3171
      %v3173 = vrot.slane %v3165, %v3172
      %v3175 = vunpack.c.l.s4 1966171168
      %v3176 = vunpack.c.0.s8 %v3175
      %v3177 = vlaneseq
      %v3178 = vshrl.u32 %v3177, 7
      %v3179 = vsub.s32 %v3176, %v3178
      %v3180 = vrot.slane %v3166, %v3179
      %v3181 = vcombine.low %v3173, %v3180
      %vm3183 = vcmask 1040384
      %vm3184 = vsmask.f32 256
      %vm3185 = vmand %vm3183, %vm3184
      %vm3186 = vcmask 1041409
      %vm3187 = vsmask.f32 1280
      %vm3188 = vmand %vm3186, %vm3187
      %vm3189 = vmor %vm3188, %vm3185
      %vm3190 = vcmask 1042434
      %vm3191 = vsmask.f32 2304
      %vm3192 = vmand %vm3190, %vm3191
      %vm3193 = vmor %vm3192, %vm3189
      %vm3194 = vcmask 1043459
      %vm3195 = vsmask.f32 3328
      %vm3196 = vmand %vm3194, %vm3195
      %vm3197 = vmor %vm3196, %vm3193
      %vm3198 = vcmask 1044484
      %vm3199 = vsmask.f32 4352
      %vm3200 = vmand %vm3198, %vm3199
      %vm3201 = vmor %vm3200, %vm3197
      %vm3202 = vcmask 1045509
      %vm3203 = vsmask.f32 5376
      %vm3204 = vmand %vm3202, %vm3203
      %vm3205 = vmor %vm3204, %vm3201
      %vm3206 = vcmask 1046534
      %vm3207 = vsmask.f32 6400
      %vm3208 = vmand %vm3206, %vm3207
      %vm3209 = vmor %vm3208, %vm3205
      %vm3210 = vcmask 1047559
      %vm3211 = vsmask.f32 7424
      %vm3212 = vmand %vm3210, %vm3211
      %vm3213 = vmor %vm3212, %vm3209
      %v3214 = vld [vmem:[%s347] sm:$0xff]
      %v3215 = vsel %vm3213, %v3181, %v3214
      %3216 = vst [vmem:[%s347] sm:$0xff] %v3215
      %p3217 = scmp.lt.s32.totalorder %s20, 1
      %s3218 = scalar_select %p3217, %s20, 1
      %s3219 = smul.addr %s3218, 8
      %s3220 = scalar_lea.vmem %s9, %s3219
      // Predicated region
      $region57: #{pointnetpp_forward.6} parent=55 // pred_check
        %p3221 = pneg %p237
      $region58: #{pointnetpp_forward.6} parent=55 // pred_check_branch
        %3223 = sbr.rel (%p3221) target = $region60
      $region59: #{pointnetpp_forward.6} parent=55 // pred_region
        _
      $region60: #{pointnetpp_forward.6} parent=55 // pred_fallthru
        _
    $region56: #{pointnetpp_forward.6} parent=5 // pred_fallthru
      _
    %p3224 = scmp.le.s32.totalorder 2, %s15
    // Predicated region
    $region61: #{pointnetpp_forward.6} parent=5 // pred_check
      %p3225 = pneg %p3224
    $region62: #{pointnetpp_forward.6} parent=5 // pred_check_branch
      %3227 = sbr.rel (%p3225) target = $region64
    $region63: #{pointnetpp_forward.6} parent=5 // pred_region
      %s3228 = ssub.s32 %s15, 2
      // Predicated region
      $region65: #{pointnetpp_forward.6} parent=63 // pred_check
        %p3229 = pneg %p243
      $region66: #{pointnetpp_forward.6} parent=63 // pred_check_branch
        %3231 = sbr.rel (%p3229) target = $region68
      $region67: #{pointnetpp_forward.6} parent=63 // pred_region
        %p3232 = scmp.lt.s32.totalorder %s21, 1
        %s3233 = scalar_select %p3232, %s21, 1
        %s3234 = smul.addr %s3233, 8
        %s3235 = scalar_lea.vmem %s9, %s3234
      $region68: #{pointnetpp_forward.6} parent=63 // pred_fallthru
        _
    $region64: #{pointnetpp_forward.6} parent=5 // pred_fallthru
      _
  $region6: #{pointnetpp_forward.6} parent=0 // loop_footer
    %s19 = sadd.s32 1, %s15
  $region7: #{pointnetpp_forward.6} parent=0 // loop_footer_branch
    %14 = sbr.rel target = $region3
  $region8: #{pointnetpp_forward.6} parent=0 // loop_exit
    _

// kernel: pointnetpp_forward.7
$region0: #{pointnetpp_forward.7}
  #allocation0 [shape = 'u32[]', space=smem, size = 0x4, offset = 0x4, fixed_abs, tag = 'smem constant byte address 0x4 - core index']
  #allocation1 [shape = 'u32[144,128]{1,0:T(1,128)}', space=vmem, size = 0x12000, scoped, tag = 'internal scratch']
  %s0 = inlined_call_operand.vmem [shape: bf16[2,1024], index: 0, kind: input, shape index: {}]
  %s1 = inlined_call_operand.vmem [shape: bf16[1024,512], index: 1, kind: input, shape index: {}]
  %s2 = inlined_call_operand.vmem [shape: f32[1,512], index: 2, kind: input, shape index: {}]
  %s3 = inlined_call_operand.vmem [shape: bf16[512,256], index: 3, kind: input, shape index: {}]
  %s4 = inlined_call_operand.vmem [shape: f32[1,256], index: 4, kind: input, shape index: {}]
  %s5 = inlined_call_operand.vmem [shape: bf16[256,128], index: 5, kind: input, shape index: {}]
  %s6 = inlined_call_operand.vmem [shape: f32[1,128], index: 6, kind: input, shape index: {}]
  %s7 = inlined_call_operand.hbm [shape: f32[2,128], index: 7, kind: output, shape index: {}]
  %s8 = sld [smem:[#allocation0]]
  $region38: #{pointnetpp_forward.7} parent=0
    _
  %s10 = ssub.s32 1, %s8
  %s11 = scalar_select 0, %s10, %s8
  $region1: #{pointnetpp_forward.7} parent=0
    #allocation2 [shape = 'u8[1024]{0}', space=vmem, size = 0x400, scoped, tag = 'output window, operand 0, single buffered']
    #allocation3 [shape = 's32[1]{0}', space=sflag, size = 0x4, scoped, tag = 'scoped memory for pointnetpp_forward.7']
    %12 = vsyncpa [#allocation3], 0
    // Predicated region
    $region2: #{pointnetpp_forward.7} parent=1 // pred_check
      _
    $region3: #{pointnetpp_forward.7} parent=1 // pred_check_branch
      %14 = sbr.rel (0) target = $region5
    $region4: #{pointnetpp_forward.7} parent=1 // pred_region
      _
    $region5: #{pointnetpp_forward.7} parent=1 // pred_fallthru
      _
    // Predicated region
    $region6: #{pointnetpp_forward.7} parent=1 // pred_check
      _
    $region7: #{pointnetpp_forward.7} parent=1 // pred_check_branch
      %16 = sbr.rel (0) target = $region9
    $region8: #{pointnetpp_forward.7} parent=1 // pred_region
      _
    $region9: #{pointnetpp_forward.7} parent=1 // pred_fallthru
      _
    // Predicated region
    $region10: #{pointnetpp_forward.7} parent=1 // pred_check
      _
    $region11: #{pointnetpp_forward.7} parent=1 // pred_check_branch
      %18 = sbr.rel (0) target = $region13
    $region12: #{pointnetpp_forward.7} parent=1 // pred_region
      _
    $region13: #{pointnetpp_forward.7} parent=1 // pred_fallthru
      _
    // Predicated region
    $region14: #{pointnetpp_forward.7} parent=1 // pred_check
      _
    $region15: #{pointnetpp_forward.7} parent=1 // pred_check_branch
      %20 = sbr.rel (0) target = $region17
    $region16: #{pointnetpp_forward.7} parent=1 // pred_region
      _
    $region17: #{pointnetpp_forward.7} parent=1 // pred_fallthru
      _
    // Predicated region
    $region18: #{pointnetpp_forward.7} parent=1 // pred_check
      _
    $region19: #{pointnetpp_forward.7} parent=1 // pred_check_branch
      %22 = sbr.rel (0) target = $region21
    $region20: #{pointnetpp_forward.7} parent=1 // pred_region
      _
    $region21: #{pointnetpp_forward.7} parent=1 // pred_fallthru
      _
    // Predicated region
    $region22: #{pointnetpp_forward.7} parent=1 // pred_check
      _
    $region23: #{pointnetpp_forward.7} parent=1 // pred_check_branch
      %24 = sbr.rel (0) target = $region25
    $region24: #{pointnetpp_forward.7} parent=1 // pred_region
      _
    $region25: #{pointnetpp_forward.7} parent=1 // pred_fallthru
      _
    // Predicated region
    $region26: #{pointnetpp_forward.7} parent=1 // pred_check
      _
    $region27: #{pointnetpp_forward.7} parent=1 // pred_check_branch
      %26 = sbr.rel (0) target = $region29
    $region28: #{pointnetpp_forward.7} parent=1 // pred_region
      _
    $region29: #{pointnetpp_forward.7} parent=1 // pred_fallthru
      _
    %v28 = vld [vmem:[%s0] sm:$0xff]
    %v29 = vld [vmem:[%s1] sm:$0xff]
    %v30 = vld [vmem:[%s1 + $0x8] sm:$0xff]
    %v31 = vld [vmem:[%s1 + $0x10] sm:$0xff]
    %v32 = vld [vmem:[%s1 + $0x18] sm:$0xff]
    %v33 = vld [vmem:[%s1 + $0x20] sm:$0xff]
    %v34 = vld [vmem:[%s1 + $0x28] sm:$0xff]
    %v35 = vld [vmem:[%s1 + $0x30] sm:$0xff]
    %v36 = vld [vmem:[%s1 + $0x38] sm:$0xff]
    %v37 = vld [vmem:[%s1 + $0x40] sm:$0xff]
    %v38 = vld [vmem:[%s1 + $0x48] sm:$0xff]
    %v39 = vld [vmem:[%s1 + $0x50] sm:$0xff]
    %v40 = vld [vmem:[%s1 + $0x58] sm:$0xff]
    %v41 = vld [vmem:[%s1 + $0x60] sm:$0xff]
    %v42 = vld [vmem:[%s1 + $0x68] sm:$0xff]
    %v43 = vld [vmem:[%s1 + $0x70] sm:$0xff]
    %v44 = vld [vmem:[%s1 + $0x78] sm:$0xff]
    %v45 = vld [vmem:[%s1 + $0x80] sm:$0xff]
    %v46 = vld [vmem:[%s1 + $0x88] sm:$0xff]
    %v47 = vld [vmem:[%s1 + $0x90] sm:$0xff]
    %v48 = vld [vmem:[%s1 + $0x98] sm:$0xff]
    %v49 = vld [vmem:[%s1 + $0xa0] sm:$0xff]
    %v50 = vld [vmem:[%s1 + $0xa8] sm:$0xff]
    %v51 = vld [vmem:[%s1 + $0xb0] sm:$0xff]
    %v52 = vld [vmem:[%s1 + $0xb8] sm:$0xff]
    %v53 = vld [vmem:[%s1 + $0xc0] sm:$0xff]
    %v54 = vld [vmem:[%s1 + $0xc8] sm:$0xff]
    %v55 = vld [vmem:[%s1 + $0xd0] sm:$0xff]
    %v56 = vld [vmem:[%s1 + $0xd8] sm:$0xff]
    %v57 = vld [vmem:[%s1 + $0xe0] sm:$0xff]
    %v58 = vld [vmem:[%s1 + $0xe8] sm:$0xff]
    %v59 = vld [vmem:[%s1 + $0xf0] sm:$0xff]
    %v60 = vld [vmem:[%s1 + $0xf8] sm:$0xff]
    %v61 = vld [vmem:[%s1 + $0x100] sm:$0xff]
    %v62 = vld [vmem:[%s1 + $0x108] sm:$0xff]
    %v63 = vld [vmem:[%s1 + $0x110] sm:$0xff]
    %v64 = vld [vmem:[%s1 + $0x118] sm:$0xff]
    %v65 = vld [vmem:[%s1 + $0x120] sm:$0xff]
    %v66 = vld [vmem:[%s1 + $0x128] sm:$0xff]
    %v67 = vld [vmem:[%s1 + $0x130] sm:$0xff]
    %v68 = vld [vmem:[%s1 + $0x138] sm:$0xff]
    %v69 = vld [vmem:[%s1 + $0x140] sm:$0xff]
    %v70 = vld [vmem:[%s1 + $0x148] sm:$0xff]
    %v71 = vld [vmem:[%s1 + $0x150] sm:$0xff]
    %v72 = vld [vmem:[%s1 + $0x158] sm:$0xff]
    %v73 = vld [vmem:[%s1 + $0x160] sm:$0xff]
    %v74 = vld [vmem:[%s1 + $0x168] sm:$0xff]
    %v75 = vld [vmem:[%s1 + $0x170] sm:$0xff]
    %v76 = vld [vmem:[%s1 + $0x178] sm:$0xff]
    %v77 = vld [vmem:[%s1 + $0x180] sm:$0xff]
    %v78 = vld [vmem:[%s1 + $0x188] sm:$0xff]
    %v79 = vld [vmem:[%s1 + $0x190] sm:$0xff]
    %v80 = vld [vmem:[%s1 + $0x198] sm:$0xff]
    %v81 = vld [vmem:[%s1 + $0x1a0] sm:$0xff]
    %v82 = vld [vmem:[%s1 + $0x1a8] sm:$0xff]
    %v83 = vld [vmem:[%s1 + $0x1b0] sm:$0xff]
    %v84 = vld [vmem:[%s1 + $0x1b8] sm:$0xff]
    %v85 = vld [vmem:[%s1 + $0x1c0] sm:$0xff]
    %v86 = vld [vmem:[%s1 + $0x1c8] sm:$0xff]
    %v87 = vld [vmem:[%s1 + $0x1d0] sm:$0xff]
    %v88 = vld [vmem:[%s1 + $0x1d8] sm:$0xff]
    %v89 = vld [vmem:[%s1 + $0x1e0] sm:$0xff]
    %v90 = vld [vmem:[%s1 + $0x1e8] sm:$0xff]
    %v91 = vld [vmem:[%s1 + $0x1f0] sm:$0xff]
    %v92 = vld [vmem:[%s1 + $0x1f8] sm:$0xff]
    %v93 = vld [vmem:[%s1 + $0x200] sm:$0xff]
    %v94 = vld [vmem:[%s1 + $0x208] sm:$0xff]
    %v95 = vld [vmem:[%s1 + $0x210] sm:$0xff]
    %v96 = vld [vmem:[%s1 + $0x218] sm:$0xff]
    %v97 = vld [vmem:[%s1 + $0x220] sm:$0xff]
    %v98 = vld [vmem:[%s1 + $0x228] sm:$0xff]
    %v99 = vld [vmem:[%s1 + $0x230] sm:$0xff]
    %v100 = vld [vmem:[%s1 + $0x238] sm:$0xff]
    %v101 = vld [vmem:[%s1 + $0x240] sm:$0xff]
    %v102 = vld [vmem:[%s1 + $0x248] sm:$0xff]
    %v103 = vld [vmem:[%s1 + $0x250] sm:$0xff]
    %v104 = vld [vmem:[%s1 + $0x258] sm:$0xff]
    %v105 = vld [vmem:[%s1 + $0x260] sm:$0xff]
    %v106 = vld [vmem:[%s1 + $0x268] sm:$0xff]
    %v107 = vld [vmem:[%s1 + $0x270] sm:$0xff]
    %v108 = vld [vmem:[%s1 + $0x278] sm:$0xff]
    %v109 = vld [vmem:[%s1 + $0x280] sm:$0xff]
    %v110 = vld [vmem:[%s1 + $0x288] sm:$0xff]
    %v111 = vld [vmem:[%s1 + $0x290] sm:$0xff]
    %v112 = vld [vmem:[%s1 + $0x298] sm:$0xff]
    %v113 = vld [vmem:[%s1 + $0x2a0] sm:$0xff]
    %v114 = vld [vmem:[%s1 + $0x2a8] sm:$0xff]
    %v115 = vld [vmem:[%s1 + $0x2b0] sm:$0xff]
    %v116 = vld [vmem:[%s1 + $0x2b8] sm:$0xff]
    %v117 = vld [vmem:[%s1 + $0x2c0] sm:$0xff]
    %v118 = vld [vmem:[%s1 + $0x2c8] sm:$0xff]
    %v119 = vld [vmem:[%s1 + $0x2d0] sm:$0xff]
    %v120 = vld [vmem:[%s1 + $0x2d8] sm:$0xff]
    %v121 = vld [vmem:[%s1 + $0x2e0] sm:$0xff]
    %v122 = vld [vmem:[%s1 + $0x2e8] sm:$0xff]
    %v123 = vld [vmem:[%s1 + $0x2f0] sm:$0xff]
    %v124 = vld [vmem:[%s1 + $0x2f8] sm:$0xff]
    %v125 = vld [vmem:[%s1 + $0x300] sm:$0xff]
    %v126 = vld [vmem:[%s1 + $0x308] sm:$0xff]
    %v127 = vld [vmem:[%s1 + $0x310] sm:$0xff]
    %v128 = vld [vmem:[%s1 + $0x318] sm:$0xff]
    %v129 = vld [vmem:[%s1 + $0x320] sm:$0xff]
    %v130 = vld [vmem:[%s1 + $0x328] sm:$0xff]
    %v131 = vld [vmem:[%s1 + $0x330] sm:$0xff]
    %v132 = vld [vmem:[%s1 + $0x338] sm:$0xff]
    %v133 = vld [vmem:[%s1 + $0x340] sm:$0xff]
    %v134 = vld [vmem:[%s1 + $0x348] sm:$0xff]
    %v135 = vld [vmem:[%s1 + $0x350] sm:$0xff]
    %v136 = vld [vmem:[%s1 + $0x358] sm:$0xff]
    %v137 = vld [vmem:[%s1 + $0x360] sm:$0xff]
    %v138 = vld [vmem:[%s1 + $0x368] sm:$0xff]
    %v139 = vld [vmem:[%s1 + $0x370] sm:$0xff]
    %v140 = vld [vmem:[%s1 + $0x378] sm:$0xff]
    %v141 = vld [vmem:[%s1 + $0x380] sm:$0xff]
    %v142 = vld [vmem:[%s1 + $0x388] sm:$0xff]
    %v143 = vld [vmem:[%s1 + $0x390] sm:$0xff]
    %v144 = vld [vmem:[%s1 + $0x398] sm:$0xff]
    %v145 = vld [vmem:[%s1 + $0x3a0] sm:$0xff]
    %v146 = vld [vmem:[%s1 + $0x3a8] sm:$0xff]
    %v147 = vld [vmem:[%s1 + $0x3b0] sm:$0xff]
    %v148 = vld [vmem:[%s1 + $0x3b8] sm:$0xff]
    %v149 = vld [vmem:[%s1 + $0x3c0] sm:$0xff]
    %v150 = vld [vmem:[%s1 + $0x3c8] sm:$0xff]
    %v151 = vld [vmem:[%s1 + $0x3d0] sm:$0xff]
    %v152 = vld [vmem:[%s1 + $0x3d8] sm:$0xff]
    %v153 = vld [vmem:[%s1 + $0x3e0] sm:$0xff]
    %v154 = vld [vmem:[%s1 + $0x3e8] sm:$0xff]
    %v155 = vld [vmem:[%s1 + $0x3f0] sm:$0xff]
    %v156 = vld [vmem:[%s1 + $0x3f8] sm:$0xff]
    %v157 = vld [vmem:[%s1 + $0x400] sm:$0xff]
    %v158 = vld [vmem:[%s1 + $0x408] sm:$0xff]
    %v159 = vld [vmem:[%s1 + $0x410] sm:$0xff]
    %v160 = vld [vmem:[%s1 + $0x418] sm:$0xff]
    %v161 = vld [vmem:[%s1 + $0x420] sm:$0xff]
    %v162 = vld [vmem:[%s1 + $0x428] sm:$0xff]
    %v163 = vld [vmem:[%s1 + $0x430] sm:$0xff]
    %v164 = vld [vmem:[%s1 + $0x438] sm:$0xff]
    %v165 = vld [vmem:[%s1 + $0x440] sm:$0xff]
    %v166 = vld [vmem:[%s1 + $0x448] sm:$0xff]
    %v167 = vld [vmem:[%s1 + $0x450] sm:$0xff]
    %v168 = vld [vmem:[%s1 + $0x458] sm:$0xff]
    %v169 = vld [vmem:[%s1 + $0x460] sm:$0xff]
    %v170 = vld [vmem:[%s1 + $0x468] sm:$0xff]
    %v171 = vld [vmem:[%s1 + $0x470] sm:$0xff]
    %v172 = vld [vmem:[%s1 + $0x478] sm:$0xff]
    %v173 = vld [vmem:[%s1 + $0x480] sm:$0xff]
    %v174 = vld [vmem:[%s1 + $0x488] sm:$0xff]
    %v175 = vld [vmem:[%s1 + $0x490] sm:$0xff]
    %v176 = vld [vmem:[%s1 + $0x498] sm:$0xff]
    %v177 = vld [vmem:[%s1 + $0x4a0] sm:$0xff]
    %v178 = vld [vmem:[%s1 + $0x4a8] sm:$0xff]
    %v179 = vld [vmem:[%s1 + $0x4b0] sm:$0xff]
    %v180 = vld [vmem:[%s1 + $0x4b8] sm:$0xff]
    %v181 = vld [vmem:[%s1 + $0x4c0] sm:$0xff]
    %v182 = vld [vmem:[%s1 + $0x4c8] sm:$0xff]
    %v183 = vld [vmem:[%s1 + $0x4d0] sm:$0xff]
    %v184 = vld [vmem:[%s1 + $0x4d8] sm:$0xff]
    %v185 = vld [vmem:[%s1 + $0x4e0] sm:$0xff]
    %v186 = vld [vmem:[%s1 + $0x4e8] sm:$0xff]
    %v187 = vld [vmem:[%s1 + $0x4f0] sm:$0xff]
    %v188 = vld [vmem:[%s1 + $0x4f8] sm:$0xff]
    %v189 = vld [vmem:[%s1 + $0x500] sm:$0xff]
    %v190 = vld [vmem:[%s1 + $0x508] sm:$0xff]
    %v191 = vld [vmem:[%s1 + $0x510] sm:$0xff]
    %v192 = vld [vmem:[%s1 + $0x518] sm:$0xff]
    %v193 = vld [vmem:[%s1 + $0x520] sm:$0xff]
    %v194 = vld [vmem:[%s1 + $0x528] sm:$0xff]
    %v195 = vld [vmem:[%s1 + $0x530] sm:$0xff]
    %v196 = vld [vmem:[%s1 + $0x538] sm:$0xff]
    %v197 = vld [vmem:[%s1 + $0x540] sm:$0xff]
    %v198 = vld [vmem:[%s1 + $0x548] sm:$0xff]
    %v199 = vld [vmem:[%s1 + $0x550] sm:$0xff]
    %v200 = vld [vmem:[%s1 + $0x558] sm:$0xff]
    %v201 = vld [vmem:[%s1 + $0x560] sm:$0xff]
    %v202 = vld [vmem:[%s1 + $0x568] sm:$0xff]
    %v203 = vld [vmem:[%s1 + $0x570] sm:$0xff]
    %v204 = vld [vmem:[%s1 + $0x578] sm:$0xff]
    %v205 = vld [vmem:[%s1 + $0x580] sm:$0xff]
    %v206 = vld [vmem:[%s1 + $0x588] sm:$0xff]
    %v207 = vld [vmem:[%s1 + $0x590] sm:$0xff]
    %v208 = vld [vmem:[%s1 + $0x598] sm:$0xff]
    %v209 = vld [vmem:[%s1 + $0x5a0] sm:$0xff]
    %v210 = vld [vmem:[%s1 + $0x5a8] sm:$0xff]
    %v211 = vld [vmem:[%s1 + $0x5b0] sm:$0xff]
    %v212 = vld [vmem:[%s1 + $0x5b8] sm:$0xff]
    %v213 = vld [vmem:[%s1 + $0x5c0] sm:$0xff]
    %v214 = vld [vmem:[%s1 + $0x5c8] sm:$0xff]
    %v215 = vld [vmem:[%s1 + $0x5d0] sm:$0xff]
    %v216 = vld [vmem:[%s1 + $0x5d8] sm:$0xff]
    %v217 = vld [vmem:[%s1 + $0x5e0] sm:$0xff]
    %v218 = vld [vmem:[%s1 + $0x5e8] sm:$0xff]
    %v219 = vld [vmem:[%s1 + $0x5f0] sm:$0xff]
    %v220 = vld [vmem:[%s1 + $0x5f8] sm:$0xff]
    %v221 = vld [vmem:[%s1 + $0x600] sm:$0xff]
    %v222 = vld [vmem:[%s1 + $0x608] sm:$0xff]
    %v223 = vld [vmem:[%s1 + $0x610] sm:$0xff]
    %v224 = vld [vmem:[%s1 + $0x618] sm:$0xff]
    %v225 = vld [vmem:[%s1 + $0x620] sm:$0xff]
    %v226 = vld [vmem:[%s1 + $0x628] sm:$0xff]
    %v227 = vld [vmem:[%s1 + $0x630] sm:$0xff]
    %v228 = vld [vmem:[%s1 + $0x638] sm:$0xff]
    %v229 = vld [vmem:[%s1 + $0x640] sm:$0xff]
    %v230 = vld [vmem:[%s1 + $0x648] sm:$0xff]
    %v231 = vld [vmem:[%s1 + $0x650] sm:$0xff]
    %v232 = vld [vmem:[%s1 + $0x658] sm:$0xff]
    %v233 = vld [vmem:[%s1 + $0x660] sm:$0xff]
    %v234 = vld [vmem:[%s1 + $0x668] sm:$0xff]
    %v235 = vld [vmem:[%s1 + $0x670] sm:$0xff]
    %v236 = vld [vmem:[%s1 + $0x678] sm:$0xff]
    %v237 = vld [vmem:[%s1 + $0x680] sm:$0xff]
    %v238 = vld [vmem:[%s1 + $0x688] sm:$0xff]
    %v239 = vld [vmem:[%s1 + $0x690] sm:$0xff]
    %v240 = vld [vmem:[%s1 + $0x698] sm:$0xff]
    %v241 = vld [vmem:[%s1 + $0x6a0] sm:$0xff]
    %v242 = vld [vmem:[%s1 + $0x6a8] sm:$0xff]
    %v243 = vld [vmem:[%s1 + $0x6b0] sm:$0xff]
    %v244 = vld [vmem:[%s1 + $0x6b8] sm:$0xff]
    %v245 = vld [vmem:[%s1 + $0x6c0] sm:$0xff]
    %v246 = vld [vmem:[%s1 + $0x6c8] sm:$0xff]
    %v247 = vld [vmem:[%s1 + $0x6d0] sm:$0xff]
    %v248 = vld [vmem:[%s1 + $0x6d8] sm:$0xff]
    %v249 = vld [vmem:[%s1 + $0x6e0] sm:$0xff]
    %v250 = vld [vmem:[%s1 + $0x6e8] sm:$0xff]
    %v251 = vld [vmem:[%s1 + $0x6f0] sm:$0xff]
    %v252 = vld [vmem:[%s1 + $0x6f8] sm:$0xff]
    %v253 = vld [vmem:[%s1 + $0x700] sm:$0xff]
    %v254 = vld [vmem:[%s1 + $0x708] sm:$0xff]
    %v255 = vld [vmem:[%s1 + $0x710] sm:$0xff]
    %v256 = vld [vmem:[%s1 + $0x718] sm:$0xff]
    %v257 = vld [vmem:[%s1 + $0x720] sm:$0xff]
    %v258 = vld [vmem:[%s1 + $0x728] sm:$0xff]
    %v259 = vld [vmem:[%s1 + $0x730] sm:$0xff]
    %v260 = vld [vmem:[%s1 + $0x738] sm:$0xff]
    %v261 = vld [vmem:[%s1 + $0x740] sm:$0xff]
    %v262 = vld [vmem:[%s1 + $0x748] sm:$0xff]
    %v263 = vld [vmem:[%s1 + $0x750] sm:$0xff]
    %v264 = vld [vmem:[%s1 + $0x758] sm:$0xff]
    %v265 = vld [vmem:[%s1 + $0x760] sm:$0xff]
    %v266 = vld [vmem:[%s1 + $0x768] sm:$0xff]
    %v267 = vld [vmem:[%s1 + $0x770] sm:$0xff]
    %v268 = vld [vmem:[%s1 + $0x778] sm:$0xff]
    %v269 = vld [vmem:[%s1 + $0x780] sm:$0xff]
    %v270 = vld [vmem:[%s1 + $0x788] sm:$0xff]
    %v271 = vld [vmem:[%s1 + $0x790] sm:$0xff]
    %v272 = vld [vmem:[%s1 + $0x798] sm:$0xff]
    %v273 = vld [vmem:[%s1 + $0x7a0] sm:$0xff]
    %v274 = vld [vmem:[%s1 + $0x7a8] sm:$0xff]
    %v275 = vld [vmem:[%s1 + $0x7b0] sm:$0xff]
    %v276 = vld [vmem:[%s1 + $0x7b8] sm:$0xff]
    %v277 = vld [vmem:[%s1 + $0x7c0] sm:$0xff]
    %v278 = vld [vmem:[%s1 + $0x7c8] sm:$0xff]
    %v279 = vld [vmem:[%s1 + $0x7d0] sm:$0xff]
    %v280 = vld [vmem:[%s1 + $0x7d8] sm:$0xff]
    %v281 = vld [vmem:[%s1 + $0x7e0] sm:$0xff]
    %v282 = vld [vmem:[%s1 + $0x7e8] sm:$0xff]
    %v283 = vld [vmem:[%s1 + $0x7f0] sm:$0xff]
    %v284 = vld [vmem:[%s1 + $0x7f8] sm:$0xff]
    %v285 = vld [vmem:[%s2] sm:$0xf]
    %v287 = vlaneseq
    %v288 = vshrl.u32 %v287, 7
    %v289 = vsub.s32 0, %v288
    %v290 = vrot.slane %v285, %v289
    %v291 = vlaneseq
    %v292 = vshrl.u32 %v291, 7
    %v293 = vsub.s32 1, %v292
    %v294 = vrot.slane %v285, %v293
    %v295 = vlaneseq
    %v296 = vshrl.u32 %v295, 7
    %v297 = vsub.s32 2, %v296
    %v298 = vrot.slane %v285, %v297
    %v299 = vlaneseq
    %v300 = vshrl.u32 %v299, 7
    %v301 = vsub.s32 3, %v300
    %v302 = vrot.slane %v285, %v301
    %v308 = vcombine.high %v28, %v28
    %v310 = vunpack.c.l.s4 1966171168
    %v311 = vunpack.c.0.s8 %v310
    %v312 = vlaneseq
    %v313 = vshrl.u32 %v312, 7
    %v314 = vsub.s32 %v311, %v313
    %v315 = vrot.slane %v28, %v314
    %v317 = vunpack.c.l.s4 1966171168
    %v318 = vunpack.c.0.s8 %v317
    %v319 = vlaneseq
    %v320 = vshrl.u32 %v319, 7
    %v321 = vsub.s32 %v318, %v320
    %v322 = vrot.slane %v308, %v321
    %v323 = vcombine.high %v315, %v315
    %v324 = vcombine.high %v322, %v322
    %v326 = vunpack.c.l.s4 1966171168
    %v327 = vunpack.c.0.s8 %v326
    %v328 = vlaneseq
    %v329 = vshrl.u32 %v328, 7
    %v330 = vsub.s32 %v327, %v329
    %v331 = vrot.slane %v315, %v330
    %v333 = vunpack.c.l.s4 1966171168
    %v334 = vunpack.c.0.s8 %v333
    %v335 = vlaneseq
    %v336 = vshrl.u32 %v335, 7
    %v337 = vsub.s32 %v334, %v336
    %v338 = vrot.slane %v322, %v337
    %v340 = vunpack.c.l.s4 1966171168
    %v341 = vunpack.c.0.s8 %v340
    %v342 = vlaneseq
    %v343 = vshrl.u32 %v342, 7
    %v344 = vsub.s32 %v341, %v343
    %v345 = vrot.slane %v323, %v344
    %v347 = vunpack.c.l.s4 1966171168
    %v348 = vunpack.c.0.s8 %v347
    %v349 = vlaneseq
    %v350 = vshrl.u32 %v349, 7
    %v351 = vsub.s32 %v348, %v350
    %v352 = vrot.slane %v324, %v351
    %v353 = vcombine.high %v331, %v331
    %v354 = vcombine.high %v338, %v338
    %v355 = vcombine.high %v345, %v345
    %v356 = vcombine.high %v352, %v352
    %v621 = vunpack.c.l.b16 %v29
    %v622 = vunpack.c.h.b16 %v29
    %v623 = vunpack.c.l.b16 %v30
    %v624 = vunpack.c.h.b16 %v30
    %v625 = vunpack.c.l.b16 %v31
    %v626 = vunpack.c.h.b16 %v31
    %v627 = vunpack.c.l.b16 %v32
    %v628 = vunpack.c.h.b16 %v32
    %v629 = vunpack.c.l.b16 %v33
    %v630 = vunpack.c.h.b16 %v33
    %v631 = vunpack.c.l.b16 %v34
    %v632 = vunpack.c.h.b16 %v34
    %v633 = vunpack.c.l.b16 %v35
    %v634 = vunpack.c.h.b16 %v35
    %v635 = vunpack.c.l.b16 %v36
    %v636 = vunpack.c.h.b16 %v36
    %v637 = vunpack.c.l.b16 %v37
    %v638 = vunpack.c.h.b16 %v37
    %v639 = vunpack.c.l.b16 %v38
    %v640 = vunpack.c.h.b16 %v38
    %v641 = vunpack.c.l.b16 %v39
    %v642 = vunpack.c.h.b16 %v39
    %v643 = vunpack.c.l.b16 %v40
    %v644 = vunpack.c.h.b16 %v40
    %v645 = vunpack.c.l.b16 %v41
    %v646 = vunpack.c.h.b16 %v41
    %v647 = vunpack.c.l.b16 %v42
    %v648 = vunpack.c.h.b16 %v42
    %v649 = vunpack.c.l.b16 %v43
    %v650 = vunpack.c.h.b16 %v43
    %v651 = vunpack.c.l.b16 %v44
    %v652 = vunpack.c.h.b16 %v44
    %v653 = vunpack.c.l.b16 %v45
    %v654 = vunpack.c.h.b16 %v45
    %v655 = vunpack.c.l.b16 %v46
    %v656 = vunpack.c.h.b16 %v46
    %v657 = vunpack.c.l.b16 %v47
    %v658 = vunpack.c.h.b16 %v47
    %v659 = vunpack.c.l.b16 %v48
    %v660 = vunpack.c.h.b16 %v48
    %v661 = vunpack.c.l.b16 %v49
    %v662 = vunpack.c.h.b16 %v49
    %v663 = vunpack.c.l.b16 %v50
    %v664 = vunpack.c.h.b16 %v50
    %v665 = vunpack.c.l.b16 %v51
    %v666 = vunpack.c.h.b16 %v51
    %v667 = vunpack.c.l.b16 %v52
    %v668 = vunpack.c.h.b16 %v52
    %v669 = vunpack.c.l.b16 %v53
    %v670 = vunpack.c.h.b16 %v53
    %v671 = vunpack.c.l.b16 %v54
    %v672 = vunpack.c.h.b16 %v54
    %v673 = vunpack.c.l.b16 %v55
    %v674 = vunpack.c.h.b16 %v55
    %v675 = vunpack.c.l.b16 %v56
    %v676 = vunpack.c.h.b16 %v56
    %v677 = vunpack.c.l.b16 %v57
    %v678 = vunpack.c.h.b16 %v57
    %v679 = vunpack.c.l.b16 %v58
    %v680 = vunpack.c.h.b16 %v58
    %v681 = vunpack.c.l.b16 %v59
    %v682 = vunpack.c.h.b16 %v59
    %v683 = vunpack.c.l.b16 %v60
    %v684 = vunpack.c.h.b16 %v60
    %v685 = vunpack.c.l.b16 %v61
    %v686 = vunpack.c.h.b16 %v61
    %v687 = vunpack.c.l.b16 %v62
    %v688 = vunpack.c.h.b16 %v62
    %v689 = vunpack.c.l.b16 %v63
    %v690 = vunpack.c.h.b16 %v63
    %v691 = vunpack.c.l.b16 %v64
    %v692 = vunpack.c.h.b16 %v64
    %v693 = vunpack.c.l.b16 %v65
    %v694 = vunpack.c.h.b16 %v65
    %v695 = vunpack.c.l.b16 %v66
    %v696 = vunpack.c.h.b16 %v66
    %v697 = vunpack.c.l.b16 %v67
    %v698 = vunpack.c.h.b16 %v67
    %v699 = vunpack.c.l.b16 %v68
    %v700 = vunpack.c.h.b16 %v68
    %v701 = vunpack.c.l.b16 %v69
    %v702 = vunpack.c.h.b16 %v69
    %v703 = vunpack.c.l.b16 %v70
    %v704 = vunpack.c.h.b16 %v70
    %v705 = vunpack.c.l.b16 %v71
    %v706 = vunpack.c.h.b16 %v71
    %v707 = vunpack.c.l.b16 %v72
    %v708 = vunpack.c.h.b16 %v72
    %v709 = vunpack.c.l.b16 %v73
    %v710 = vunpack.c.h.b16 %v73
    %v711 = vunpack.c.l.b16 %v74
    %v712 = vunpack.c.h.b16 %v74
    %v713 = vunpack.c.l.b16 %v75
    %v714 = vunpack.c.h.b16 %v75
    %v715 = vunpack.c.l.b16 %v76
    %v716 = vunpack.c.h.b16 %v76
    %v717 = vunpack.c.l.b16 %v77
    %v718 = vunpack.c.h.b16 %v77
    %v719 = vunpack.c.l.b16 %v78
    %v720 = vunpack.c.h.b16 %v78
    %v721 = vunpack.c.l.b16 %v79
    %v722 = vunpack.c.h.b16 %v79
    %v723 = vunpack.c.l.b16 %v80
    %v724 = vunpack.c.h.b16 %v80
    %v725 = vunpack.c.l.b16 %v81
    %v726 = vunpack.c.h.b16 %v81
    %v727 = vunpack.c.l.b16 %v82
    %v728 = vunpack.c.h.b16 %v82
    %v729 = vunpack.c.l.b16 %v83
    %v730 = vunpack.c.h.b16 %v83
    %v731 = vunpack.c.l.b16 %v84
    %v732 = vunpack.c.h.b16 %v84
    %v733 = vunpack.c.l.b16 %v85
    %v734 = vunpack.c.h.b16 %v85
    %v735 = vunpack.c.l.b16 %v86
    %v736 = vunpack.c.h.b16 %v86
    %v737 = vunpack.c.l.b16 %v87
    %v738 = vunpack.c.h.b16 %v87
    %v739 = vunpack.c.l.b16 %v88
    %v740 = vunpack.c.h.b16 %v88
    %v741 = vunpack.c.l.b16 %v89
    %v742 = vunpack.c.h.b16 %v89
    %v743 = vunpack.c.l.b16 %v90
    %v744 = vunpack.c.h.b16 %v90
    %v745 = vunpack.c.l.b16 %v91
    %v746 = vunpack.c.h.b16 %v91
    %v747 = vunpack.c.l.b16 %v92
    %v748 = vunpack.c.h.b16 %v92
    %v749 = vunpack.c.l.b16 %v93
    %v750 = vunpack.c.h.b16 %v93
    %v751 = vunpack.c.l.b16 %v94
    %v752 = vunpack.c.h.b16 %v94
    %v753 = vunpack.c.l.b16 %v95
    %v754 = vunpack.c.h.b16 %v95
    %v755 = vunpack.c.l.b16 %v96
    %v756 = vunpack.c.h.b16 %v96
    %v757 = vunpack.c.l.b16 %v97
    %v758 = vunpack.c.h.b16 %v97
    %v759 = vunpack.c.l.b16 %v98
    %v760 = vunpack.c.h.b16 %v98
    %v761 = vunpack.c.l.b16 %v99
    %v762 = vunpack.c.h.b16 %v99
    %v763 = vunpack.c.l.b16 %v100
    %v764 = vunpack.c.h.b16 %v100
    %v765 = vunpack.c.l.b16 %v101
    %v766 = vunpack.c.h.b16 %v101
    %v767 = vunpack.c.l.b16 %v102
    %v768 = vunpack.c.h.b16 %v102
    %v769 = vunpack.c.l.b16 %v103
    %v770 = vunpack.c.h.b16 %v103
    %v771 = vunpack.c.l.b16 %v104
    %v772 = vunpack.c.h.b16 %v104
    %v773 = vunpack.c.l.b16 %v105
    %v774 = vunpack.c.h.b16 %v105
    %v775 = vunpack.c.l.b16 %v106
    %v776 = vunpack.c.h.b16 %v106
    %v777 = vunpack.c.l.b16 %v107
    %v778 = vunpack.c.h.b16 %v107
    %v779 = vunpack.c.l.b16 %v108
    %v780 = vunpack.c.h.b16 %v108
    %v781 = vunpack.c.l.b16 %v109
    %v782 = vunpack.c.h.b16 %v109
    %v783 = vunpack.c.l.b16 %v110
    %v784 = vunpack.c.h.b16 %v110
    %v785 = vunpack.c.l.b16 %v111
    %v786 = vunpack.c.h.b16 %v111
    %v787 = vunpack.c.l.b16 %v112
    %v788 = vunpack.c.h.b16 %v112
    %v789 = vunpack.c.l.b16 %v113
    %v790 = vunpack.c.h.b16 %v113
    %v791 = vunpack.c.l.b16 %v114
    %v792 = vunpack.c.h.b16 %v114
    %v793 = vunpack.c.l.b16 %v115
    %v794 = vunpack.c.h.b16 %v115
    %v795 = vunpack.c.l.b16 %v116
    %v796 = vunpack.c.h.b16 %v116
    %v797 = vunpack.c.l.b16 %v117
    %v798 = vunpack.c.h.b16 %v117
    %v799 = vunpack.c.l.b16 %v118
    %v800 = vunpack.c.h.b16 %v118
    %v801 = vunpack.c.l.b16 %v119
    %v802 = vunpack.c.h.b16 %v119
    %v803 = vunpack.c.l.b16 %v120
    %v804 = vunpack.c.h.b16 %v120
    %v805 = vunpack.c.l.b16 %v121
    %v806 = vunpack.c.h.b16 %v121
    %v807 = vunpack.c.l.b16 %v122
    %v808 = vunpack.c.h.b16 %v122
    %v809 = vunpack.c.l.b16 %v123
    %v810 = vunpack.c.h.b16 %v123
    %v811 = vunpack.c.l.b16 %v124
    %v812 = vunpack.c.h.b16 %v124
    %v813 = vunpack.c.l.b16 %v125
    %v814 = vunpack.c.h.b16 %v125
    %v815 = vunpack.c.l.b16 %v126
    %v816 = vunpack.c.h.b16 %v126
    %v817 = vunpack.c.l.b16 %v127
    %v818 = vunpack.c.h.b16 %v127
    %v819 = vunpack.c.l.b16 %v128
    %v820 = vunpack.c.h.b16 %v128
    %v821 = vunpack.c.l.b16 %v129
    %v822 = vunpack.c.h.b16 %v129
    %v823 = vunpack.c.l.b16 %v130
    %v824 = vunpack.c.h.b16 %v130
    %v825 = vunpack.c.l.b16 %v131
    %v826 = vunpack.c.h.b16 %v131
    %v827 = vunpack.c.l.b16 %v132
    %v828 = vunpack.c.h.b16 %v132
    %v829 = vunpack.c.l.b16 %v133
    %v830 = vunpack.c.h.b16 %v133
    %v831 = vunpack.c.l.b16 %v134
    %v832 = vunpack.c.h.b16 %v134
    %v833 = vunpack.c.l.b16 %v135
    %v834 = vunpack.c.h.b16 %v135
    %v835 = vunpack.c.l.b16 %v136
    %v836 = vunpack.c.h.b16 %v136
    %v837 = vunpack.c.l.b16 %v137
    %v838 = vunpack.c.h.b16 %v137
    %v839 = vunpack.c.l.b16 %v138
    %v840 = vunpack.c.h.b16 %v138
    %v841 = vunpack.c.l.b16 %v139
    %v842 = vunpack.c.h.b16 %v139
    %v843 = vunpack.c.l.b16 %v140
    %v844 = vunpack.c.h.b16 %v140
    %v845 = vunpack.c.l.b16 %v141
    %v846 = vunpack.c.h.b16 %v141
    %v847 = vunpack.c.l.b16 %v142
    %v848 = vunpack.c.h.b16 %v142
    %v849 = vunpack.c.l.b16 %v143
    %v850 = vunpack.c.h.b16 %v143
    %v851 = vunpack.c.l.b16 %v144
    %v852 = vunpack.c.h.b16 %v144
    %v853 = vunpack.c.l.b16 %v145
    %v854 = vunpack.c.h.b16 %v145
    %v855 = vunpack.c.l.b16 %v146
    %v856 = vunpack.c.h.b16 %v146
    %v857 = vunpack.c.l.b16 %v147
    %v858 = vunpack.c.h.b16 %v147
    %v859 = vunpack.c.l.b16 %v148
    %v860 = vunpack.c.h.b16 %v148
    %v861 = vunpack.c.l.b16 %v149
    %v862 = vunpack.c.h.b16 %v149
    %v863 = vunpack.c.l.b16 %v150
    %v864 = vunpack.c.h.b16 %v150
    %v865 = vunpack.c.l.b16 %v151
    %v866 = vunpack.c.h.b16 %v151
    %v867 = vunpack.c.l.b16 %v152
    %v868 = vunpack.c.h.b16 %v152
    %v869 = vunpack.c.l.b16 %v153
    %v870 = vunpack.c.h.b16 %v153
    %v871 = vunpack.c.l.b16 %v154
    %v872 = vunpack.c.h.b16 %v154
    %v873 = vunpack.c.l.b16 %v155
    %v874 = vunpack.c.h.b16 %v155
    %v875 = vunpack.c.l.b16 %v156
    %v876 = vunpack.c.h.b16 %v156
    %v877 = vunpack.c.l.b16 %v157
    %v878 = vunpack.c.h.b16 %v157
    %v879 = vunpack.c.l.b16 %v158
    %v880 = vunpack.c.h.b16 %v158
    %v881 = vunpack.c.l.b16 %v159
    %v882 = vunpack.c.h.b16 %v159
    %v883 = vunpack.c.l.b16 %v160
    %v884 = vunpack.c.h.b16 %v160
    %v885 = vunpack.c.l.b16 %v161
    %v886 = vunpack.c.h.b16 %v161
    %v887 = vunpack.c.l.b16 %v162
    %v888 = vunpack.c.h.b16 %v162
    %v889 = vunpack.c.l.b16 %v163
    %v890 = vunpack.c.h.b16 %v163
    %v891 = vunpack.c.l.b16 %v164
    %v892 = vunpack.c.h.b16 %v164
    %v893 = vunpack.c.l.b16 %v165
    %v894 = vunpack.c.h.b16 %v165
    %v895 = vunpack.c.l.b16 %v166
    %v896 = vunpack.c.h.b16 %v166
    %v897 = vunpack.c.l.b16 %v167
    %v898 = vunpack.c.h.b16 %v167
    %v899 = vunpack.c.l.b16 %v168
    %v900 = vunpack.c.h.b16 %v168
    %v901 = vunpack.c.l.b16 %v169
    %v902 = vunpack.c.h.b16 %v169
    %v903 = vunpack.c.l.b16 %v170
    %v904 = vunpack.c.h.b16 %v170
    %v905 = vunpack.c.l.b16 %v171
    %v906 = vunpack.c.h.b16 %v171
    %v907 = vunpack.c.l.b16 %v172
    %v908 = vunpack.c.h.b16 %v172
    %v909 = vunpack.c.l.b16 %v173
    %v910 = vunpack.c.h.b16 %v173
    %v911 = vunpack.c.l.b16 %v174
    %v912 = vunpack.c.h.b16 %v174
    %v913 = vunpack.c.l.b16 %v175
    %v914 = vunpack.c.h.b16 %v175
    %v915 = vunpack.c.l.b16 %v176
    %v916 = vunpack.c.h.b16 %v176
    %v917 = vunpack.c.l.b16 %v177
    %v918 = vunpack.c.h.b16 %v177
    %v919 = vunpack.c.l.b16 %v178
    %v920 = vunpack.c.h.b16 %v178
    %v921 = vunpack.c.l.b16 %v179
    %v922 = vunpack.c.h.b16 %v179
    %v923 = vunpack.c.l.b16 %v180
    %v924 = vunpack.c.h.b16 %v180
    %v925 = vunpack.c.l.b16 %v181
    %v926 = vunpack.c.h.b16 %v181
    %v927 = vunpack.c.l.b16 %v182
    %v928 = vunpack.c.h.b16 %v182
    %v929 = vunpack.c.l.b16 %v183
    %v930 = vunpack.c.h.b16 %v183
    %v931 = vunpack.c.l.b16 %v184
    %v932 = vunpack.c.h.b16 %v184
    %v933 = vunpack.c.l.b16 %v185
    %v934 = vunpack.c.h.b16 %v185
    %v935 = vunpack.c.l.b16 %v186
    %v936 = vunpack.c.h.b16 %v186
    %v937 = vunpack.c.l.b16 %v187
    %v938 = vunpack.c.h.b16 %v187
    %v939 = vunpack.c.l.b16 %v188
    %v940 = vunpack.c.h.b16 %v188
    %v941 = vunpack.c.l.b16 %v189
    %v942 = vunpack.c.h.b16 %v189
    %v943 = vunpack.c.l.b16 %v190
    %v944 = vunpack.c.h.b16 %v190
    %v945 = vunpack.c.l.b16 %v191
    %v946 = vunpack.c.h.b16 %v191
    %v947 = vunpack.c.l.b16 %v192
    %v948 = vunpack.c.h.b16 %v192
    %v949 = vunpack.c.l.b16 %v193
    %v950 = vunpack.c.h.b16 %v193
    %v951 = vunpack.c.l.b16 %v194
    %v952 = vunpack.c.h.b16 %v194
    %v953 = vunpack.c.l.b16 %v195
    %v954 = vunpack.c.h.b16 %v195
    %v955 = vunpack.c.l.b16 %v196
    %v956 = vunpack.c.h.b16 %v196
    %v957 = vunpack.c.l.b16 %v197
    %v958 = vunpack.c.h.b16 %v197
    %v959 = vunpack.c.l.b16 %v198
    %v960 = vunpack.c.h.b16 %v198
    %v961 = vunpack.c.l.b16 %v199
    %v962 = vunpack.c.h.b16 %v199
    %v963 = vunpack.c.l.b16 %v200
    %v964 = vunpack.c.h.b16 %v200
    %v965 = vunpack.c.l.b16 %v201
    %v966 = vunpack.c.h.b16 %v201
    %v967 = vunpack.c.l.b16 %v202
    %v968 = vunpack.c.h.b16 %v202
    %v969 = vunpack.c.l.b16 %v203
    %v970 = vunpack.c.h.b16 %v203
    %v971 = vunpack.c.l.b16 %v204
    %v972 = vunpack.c.h.b16 %v204
    %v973 = vunpack.c.l.b16 %v205
    %v974 = vunpack.c.h.b16 %v205
    %v975 = vunpack.c.l.b16 %v206
    %v976 = vunpack.c.h.b16 %v206
    %v977 = vunpack.c.l.b16 %v207
    %v978 = vunpack.c.h.b16 %v207
    %v979 = vunpack.c.l.b16 %v208
    %v980 = vunpack.c.h.b16 %v208
    %v981 = vunpack.c.l.b16 %v209
    %v982 = vunpack.c.h.b16 %v209
    %v983 = vunpack.c.l.b16 %v210
    %v984 = vunpack.c.h.b16 %v210
    %v985 = vunpack.c.l.b16 %v211
    %v986 = vunpack.c.h.b16 %v211
    %v987 = vunpack.c.l.b16 %v212
    %v988 = vunpack.c.h.b16 %v212
    %v989 = vunpack.c.l.b16 %v213
    %v990 = vunpack.c.h.b16 %v213
    %v991 = vunpack.c.l.b16 %v214
    %v992 = vunpack.c.h.b16 %v214
    %v993 = vunpack.c.l.b16 %v215
    %v994 = vunpack.c.h.b16 %v215
    %v995 = vunpack.c.l.b16 %v216
    %v996 = vunpack.c.h.b16 %v216
    %v997 = vunpack.c.l.b16 %v217
    %v998 = vunpack.c.h.b16 %v217
    %v999 = vunpack.c.l.b16 %v218
    %v1000 = vunpack.c.h.b16 %v218
    %v1001 = vunpack.c.l.b16 %v219
    %v1002 = vunpack.c.h.b16 %v219
    %v1003 = vunpack.c.l.b16 %v220
    %v1004 = vunpack.c.h.b16 %v220
    %v1005 = vunpack.c.l.b16 %v221
    %v1006 = vunpack.c.h.b16 %v221
    %v1007 = vunpack.c.l.b16 %v222
    %v1008 = vunpack.c.h.b16 %v222
    %v1009 = vunpack.c.l.b16 %v223
    %v1010 = vunpack.c.h.b16 %v223
    %v1011 = vunpack.c.l.b16 %v224
    %v1012 = vunpack.c.h.b16 %v224
    %v1013 = vunpack.c.l.b16 %v225
    %v1014 = vunpack.c.h.b16 %v225
    %v1015 = vunpack.c.l.b16 %v226
    %v1016 = vunpack.c.h.b16 %v226
    %v1017 = vunpack.c.l.b16 %v227
    %v1018 = vunpack.c.h.b16 %v227
    %v1019 = vunpack.c.l.b16 %v228
    %v1020 = vunpack.c.h.b16 %v228
    %v1021 = vunpack.c.l.b16 %v229
    %v1022 = vunpack.c.h.b16 %v229
    %v1023 = vunpack.c.l.b16 %v230
    %v1024 = vunpack.c.h.b16 %v230
    %v1025 = vunpack.c.l.b16 %v231
    %v1026 = vunpack.c.h.b16 %v231
    %v1027 = vunpack.c.l.b16 %v232
    %v1028 = vunpack.c.h.b16 %v232
    %v1029 = vunpack.c.l.b16 %v233
    %v1030 = vunpack.c.h.b16 %v233
    %v1031 = vunpack.c.l.b16 %v234
    %v1032 = vunpack.c.h.b16 %v234
    %v1033 = vunpack.c.l.b16 %v235
    %v1034 = vunpack.c.h.b16 %v235
    %v1035 = vunpack.c.l.b16 %v236
    %v1036 = vunpack.c.h.b16 %v236
    %v1037 = vunpack.c.l.b16 %v237
    %v1038 = vunpack.c.h.b16 %v237
    %v1039 = vunpack.c.l.b16 %v238
    %v1040 = vunpack.c.h.b16 %v238
    %v1041 = vunpack.c.l.b16 %v239
    %v1042 = vunpack.c.h.b16 %v239
    %v1043 = vunpack.c.l.b16 %v240
    %v1044 = vunpack.c.h.b16 %v240
    %v1045 = vunpack.c.l.b16 %v241
    %v1046 = vunpack.c.h.b16 %v241
    %v1047 = vunpack.c.l.b16 %v242
    %v1048 = vunpack.c.h.b16 %v242
    %v1049 = vunpack.c.l.b16 %v243
    %v1050 = vunpack.c.h.b16 %v243
    %v1051 = vunpack.c.l.b16 %v244
    %v1052 = vunpack.c.h.b16 %v244
    %v1053 = vunpack.c.l.b16 %v245
    %v1054 = vunpack.c.h.b16 %v245
    %v1055 = vunpack.c.l.b16 %v246
    %v1056 = vunpack.c.h.b16 %v246
    %v1057 = vunpack.c.l.b16 %v247
    %v1058 = vunpack.c.h.b16 %v247
    %v1059 = vunpack.c.l.b16 %v248
    %v1060 = vunpack.c.h.b16 %v248
    %v1061 = vunpack.c.l.b16 %v249
    %v1062 = vunpack.c.h.b16 %v249
    %v1063 = vunpack.c.l.b16 %v250
    %v1064 = vunpack.c.h.b16 %v250
    %v1065 = vunpack.c.l.b16 %v251
    %v1066 = vunpack.c.h.b16 %v251
    %v1067 = vunpack.c.l.b16 %v252
    %v1068 = vunpack.c.h.b16 %v252
    %v1069 = vunpack.c.l.b16 %v253
    %v1070 = vunpack.c.h.b16 %v253
    %v1071 = vunpack.c.l.b16 %v254
    %v1072 = vunpack.c.h.b16 %v254
    %v1073 = vunpack.c.l.b16 %v255
    %v1074 = vunpack.c.h.b16 %v255
    %v1075 = vunpack.c.l.b16 %v256
    %v1076 = vunpack.c.h.b16 %v256
    %v1077 = vunpack.c.l.b16 %v257
    %v1078 = vunpack.c.h.b16 %v257
    %v1079 = vunpack.c.l.b16 %v258
    %v1080 = vunpack.c.h.b16 %v258
    %v1081 = vunpack.c.l.b16 %v259
    %v1082 = vunpack.c.h.b16 %v259
    %v1083 = vunpack.c.l.b16 %v260
    %v1084 = vunpack.c.h.b16 %v260
    %v1085 = vunpack.c.l.b16 %v261
    %v1086 = vunpack.c.h.b16 %v261
    %v1087 = vunpack.c.l.b16 %v262
    %v1088 = vunpack.c.h.b16 %v262
    %v1089 = vunpack.c.l.b16 %v263
    %v1090 = vunpack.c.h.b16 %v263
    %v1091 = vunpack.c.l.b16 %v264
    %v1092 = vunpack.c.h.b16 %v264
    %v1093 = vunpack.c.l.b16 %v265
    %v1094 = vunpack.c.h.b16 %v265
    %v1095 = vunpack.c.l.b16 %v266
    %v1096 = vunpack.c.h.b16 %v266
    %v1097 = vunpack.c.l.b16 %v267
    %v1098 = vunpack.c.h.b16 %v267
    %v1099 = vunpack.c.l.b16 %v268
    %v1100 = vunpack.c.h.b16 %v268
    %v1101 = vunpack.c.l.b16 %v269
    %v1102 = vunpack.c.h.b16 %v269
    %v1103 = vunpack.c.l.b16 %v270
    %v1104 = vunpack.c.h.b16 %v270
    %v1105 = vunpack.c.l.b16 %v271
    %v1106 = vunpack.c.h.b16 %v271
    %v1107 = vunpack.c.l.b16 %v272
    %v1108 = vunpack.c.h.b16 %v272
    %v1109 = vunpack.c.l.b16 %v273
    %v1110 = vunpack.c.h.b16 %v273
    %v1111 = vunpack.c.l.b16 %v274
    %v1112 = vunpack.c.h.b16 %v274
    %v1113 = vunpack.c.l.b16 %v275
    %v1114 = vunpack.c.h.b16 %v275
    %v1115 = vunpack.c.l.b16 %v276
    %v1116 = vunpack.c.h.b16 %v276
    %v1117 = vunpack.c.l.b16 %v277
    %v1118 = vunpack.c.h.b16 %v277
    %v1119 = vunpack.c.l.b16 %v278
    %v1120 = vunpack.c.h.b16 %v278
    %v1121 = vunpack.c.l.b16 %v279
    %v1122 = vunpack.c.h.b16 %v279
    %v1123 = vunpack.c.l.b16 %v280
    %v1124 = vunpack.c.h.b16 %v280
    %v1125 = vunpack.c.l.b16 %v281
    %v1126 = vunpack.c.h.b16 %v281
    %v1127 = vunpack.c.l.b16 %v282
    %v1128 = vunpack.c.h.b16 %v282
    %v1129 = vunpack.c.l.b16 %v283
    %v1130 = vunpack.c.h.b16 %v283
    %v1131 = vunpack.c.l.b16 %v284
    %v1132 = vunpack.c.h.b16 %v284
    %v1133 = vpack.c.b16 %v625, %v621
    %v1134 = vpack.c.b16 %v626, %v622
    %v1135 = vpack.c.b16 %v627, %v623
    %v1136 = vpack.c.b16 %v628, %v624
    %v1137 = vpack.c.b16 %v633, %v629
    %v1138 = vpack.c.b16 %v634, %v630
    %v1139 = vpack.c.b16 %v635, %v631
    %v1140 = vpack.c.b16 %v636, %v632
    %v1141 = vpack.c.b16 %v641, %v637
    %v1142 = vpack.c.b16 %v642, %v638
    %v1143 = vpack.c.b16 %v643, %v639
    %v1144 = vpack.c.b16 %v644, %v640
    %v1145 = vpack.c.b16 %v649, %v645
    %v1146 = vpack.c.b16 %v650, %v646
    %v1147 = vpack.c.b16 %v651, %v647
    %v1148 = vpack.c.b16 %v652, %v648
    %v1149 = vpack.c.b16 %v657, %v653
    %v1150 = vpack.c.b16 %v658, %v654
    %v1151 = vpack.c.b16 %v659, %v655
    %v1152 = vpack.c.b16 %v660, %v656
    %v1153 = vpack.c.b16 %v665, %v661
    %v1154 = vpack.c.b16 %v666, %v662
    %v1155 = vpack.c.b16 %v667, %v663
    %v1156 = vpack.c.b16 %v668, %v664
    %v1157 = vpack.c.b16 %v673, %v669
    %v1158 = vpack.c.b16 %v674, %v670
    %v1159 = vpack.c.b16 %v675, %v671
    %v1160 = vpack.c.b16 %v676, %v672
    %v1161 = vpack.c.b16 %v681, %v677
    %v1162 = vpack.c.b16 %v682, %v678
    %v1163 = vpack.c.b16 %v683, %v679
    %v1164 = vpack.c.b16 %v684, %v680
    %v1165 = vpack.c.b16 %v689, %v685
    %v1166 = vpack.c.b16 %v690, %v686
    %v1167 = vpack.c.b16 %v691, %v687
    %v1168 = vpack.c.b16 %v692, %v688
    %v1169 = vpack.c.b16 %v697, %v693
    %v1170 = vpack.c.b16 %v698, %v694
    %v1171 = vpack.c.b16 %v699, %v695
    %v1172 = vpack.c.b16 %v700, %v696
    %v1173 = vpack.c.b16 %v705, %v701
    %v1174 = vpack.c.b16 %v706, %v702
    %v1175 = vpack.c.b16 %v707, %v703
    %v1176 = vpack.c.b16 %v708, %v704
    %v1177 = vpack.c.b16 %v713, %v709
    %v1178 = vpack.c.b16 %v714, %v710
    %v1179 = vpack.c.b16 %v715, %v711
    %v1180 = vpack.c.b16 %v716, %v712
    %v1181 = vpack.c.b16 %v721, %v717
    %v1182 = vpack.c.b16 %v722, %v718
    %v1183 = vpack.c.b16 %v723, %v719
    %v1184 = vpack.c.b16 %v724, %v720
    %v1185 = vpack.c.b16 %v729, %v725
    %v1186 = vpack.c.b16 %v730, %v726
    %v1187 = vpack.c.b16 %v731, %v727
    %v1188 = vpack.c.b16 %v732, %v728
    %v1189 = vpack.c.b16 %v737, %v733
    %v1190 = vpack.c.b16 %v738, %v734
    %v1191 = vpack.c.b16 %v739, %v735
    %v1192 = vpack.c.b16 %v740, %v736
    %v1193 = vpack.c.b16 %v745, %v741
    %v1194 = vpack.c.b16 %v746, %v742
    %v1195 = vpack.c.b16 %v747, %v743
    %v1196 = vpack.c.b16 %v748, %v744
    %v1197 = vpack.c.b16 %v753, %v749
    %v1198 = vpack.c.b16 %v754, %v750
    %v1199 = vpack.c.b16 %v755, %v751
    %v1200 = vpack.c.b16 %v756, %v752
    %v1201 = vpack.c.b16 %v761, %v757
    %v1202 = vpack.c.b16 %v762, %v758
    %v1203 = vpack.c.b16 %v763, %v759
    %v1204 = vpack.c.b16 %v764, %v760
    %v1205 = vpack.c.b16 %v769, %v765
    %v1206 = vpack.c.b16 %v770, %v766
    %v1207 = vpack.c.b16 %v771, %v767
    %v1208 = vpack.c.b16 %v772, %v768
    %v1209 = vpack.c.b16 %v777, %v773
    %v1210 = vpack.c.b16 %v778, %v774
    %v1211 = vpack.c.b16 %v779, %v775
    %v1212 = vpack.c.b16 %v780, %v776
    %v1213 = vpack.c.b16 %v785, %v781
    %v1214 = vpack.c.b16 %v786, %v782
    %v1215 = vpack.c.b16 %v787, %v783
    %v1216 = vpack.c.b16 %v788, %v784
    %v1217 = vpack.c.b16 %v793, %v789
    %v1218 = vpack.c.b16 %v794, %v790
    %v1219 = vpack.c.b16 %v795, %v791
    %v1220 = vpack.c.b16 %v796, %v792
    %v1221 = vpack.c.b16 %v801, %v797
    %v1222 = vpack.c.b16 %v802, %v798
    %v1223 = vpack.c.b16 %v803, %v799
    %v1224 = vpack.c.b16 %v804, %v800
    %v1225 = vpack.c.b16 %v809, %v805
    %v1226 = vpack.c.b16 %v810, %v806
    %v1227 = vpack.c.b16 %v811, %v807
    %v1228 = vpack.c.b16 %v812, %v808
    %v1229 = vpack.c.b16 %v817, %v813
    %v1230 = vpack.c.b16 %v818, %v814
    %v1231 = vpack.c.b16 %v819, %v815
    %v1232 = vpack.c.b16 %v820, %v816
    %v1233 = vpack.c.b16 %v825, %v821
    %v1234 = vpack.c.b16 %v826, %v822
    %v1235 = vpack.c.b16 %v827, %v823
    %v1236 = vpack.c.b16 %v828, %v824
    %v1237 = vpack.c.b16 %v833, %v829
    %v1238 = vpack.c.b16 %v834, %v830
    %v1239 = vpack.c.b16 %v835, %v831
    %v1240 = vpack.c.b16 %v836, %v832
    %v1241 = vpack.c.b16 %v841, %v837
    %v1242 = vpack.c.b16 %v842, %v838
    %v1243 = vpack.c.b16 %v843, %v839
    %v1244 = vpack.c.b16 %v844, %v840
    %v1245 = vpack.c.b16 %v849, %v845
    %v1246 = vpack.c.b16 %v850, %v846
    %v1247 = vpack.c.b16 %v851, %v847
    %v1248 = vpack.c.b16 %v852, %v848
    %v1249 = vpack.c.b16 %v857, %v853
    %v1250 = vpack.c.b16 %v858, %v854
    %v1251 = vpack.c.b16 %v859, %v855
    %v1252 = vpack.c.b16 %v860, %v856
    %v1253 = vpack.c.b16 %v865, %v861
    %v1254 = vpack.c.b16 %v866, %v862
    %v1255 = vpack.c.b16 %v867, %v863
    %v1256 = vpack.c.b16 %v868, %v864
    %v1257 = vpack.c.b16 %v873, %v869
    %v1258 = vpack.c.b16 %v874, %v870
    %v1259 = vpack.c.b16 %v875, %v871
    %v1260 = vpack.c.b16 %v876, %v872
    %v1261 = vpack.c.b16 %v881, %v877
    %v1262 = vpack.c.b16 %v882, %v878
    %v1263 = vpack.c.b16 %v883, %v879
    %v1264 = vpack.c.b16 %v884, %v880
    %v1265 = vpack.c.b16 %v889, %v885
    %v1266 = vpack.c.b16 %v890, %v886
    %v1267 = vpack.c.b16 %v891, %v887
    %v1268 = vpack.c.b16 %v892, %v888
    %v1269 = vpack.c.b16 %v897, %v893
    %v1270 = vpack.c.b16 %v898, %v894
    %v1271 = vpack.c.b16 %v899, %v895
    %v1272 = vpack.c.b16 %v900, %v896
    %v1273 = vpack.c.b16 %v905, %v901
    %v1274 = vpack.c.b16 %v906, %v902
    %v1275 = vpack.c.b16 %v907, %v903
    %v1276 = vpack.c.b16 %v908, %v904
    %v1277 = vpack.c.b16 %v913, %v909
    %v1278 = vpack.c.b16 %v914, %v910
    %v1279 = vpack.c.b16 %v915, %v911
    %v1280 = vpack.c.b16 %v916, %v912
    %v1281 = vpack.c.b16 %v921, %v917
    %v1282 = vpack.c.b16 %v922, %v918
    %v1283 = vpack.c.b16 %v923, %v919
    %v1284 = vpack.c.b16 %v924, %v920
    %v1285 = vpack.c.b16 %v929, %v925
    %v1286 = vpack.c.b16 %v930, %v926
    %v1287 = vpack.c.b16 %v931, %v927
    %v1288 = vpack.c.b16 %v932, %v928
    %v1289 = vpack.c.b16 %v937, %v933
    %v1290 = vpack.c.b16 %v938, %v934
    %v1291 = vpack.c.b16 %v939, %v935
    %v1292 = vpack.c.b16 %v940, %v936
    %v1293 = vpack.c.b16 %v945, %v941
    %v1294 = vpack.c.b16 %v946, %v942
    %v1295 = vpack.c.b16 %v947, %v943
    %v1296 = vpack.c.b16 %v948, %v944
    %v1297 = vpack.c.b16 %v953, %v949
    %v1298 = vpack.c.b16 %v954, %v950
    %v1299 = vpack.c.b16 %v955, %v951
    %v1300 = vpack.c.b16 %v956, %v952
    %v1301 = vpack.c.b16 %v961, %v957
    %v1302 = vpack.c.b16 %v962, %v958
    %v1303 = vpack.c.b16 %v963, %v959
    %v1304 = vpack.c.b16 %v964, %v960
    %v1305 = vpack.c.b16 %v969, %v965
    %v1306 = vpack.c.b16 %v970, %v966
    %v1307 = vpack.c.b16 %v971, %v967
    %v1308 = vpack.c.b16 %v972, %v968
    %v1309 = vpack.c.b16 %v977, %v973
    %v1310 = vpack.c.b16 %v978, %v974
    %v1311 = vpack.c.b16 %v979, %v975
    %v1312 = vpack.c.b16 %v980, %v976
    %v1313 = vpack.c.b16 %v985, %v981
    %v1314 = vpack.c.b16 %v986, %v982
    %v1315 = vpack.c.b16 %v987, %v983
    %v1316 = vpack.c.b16 %v988, %v984
    %v1317 = vpack.c.b16 %v993, %v989
    %v1318 = vpack.c.b16 %v994, %v990
    %v1319 = vpack.c.b16 %v995, %v991
    %v1320 = vpack.c.b16 %v996, %v992
    %v1321 = vpack.c.b16 %v1001, %v997
    %v1322 = vpack.c.b16 %v1002, %v998
    %v1323 = vpack.c.b16 %v1003, %v999
    %v1324 = vpack.c.b16 %v1004, %v1000
    %v1325 = vpack.c.b16 %v1009, %v1005
    %v1326 = vpack.c.b16 %v1010, %v1006
    %v1327 = vpack.c.b16 %v1011, %v1007
    %v1328 = vpack.c.b16 %v1012, %v1008
    %v1329 = vpack.c.b16 %v1017, %v1013
    %v1330 = vpack.c.b16 %v1018, %v1014
    %v1331 = vpack.c.b16 %v1019, %v1015
    %v1332 = vpack.c.b16 %v1020, %v1016
    %v1333 = vpack.c.b16 %v1025, %v1021
    %v1334 = vpack.c.b16 %v1026, %v1022
    %v1335 = vpack.c.b16 %v1027, %v1023
    %v1336 = vpack.c.b16 %v1028, %v1024
    %v1337 = vpack.c.b16 %v1033, %v1029
    %v1338 = vpack.c.b16 %v1034, %v1030
    %v1339 = vpack.c.b16 %v1035, %v1031
    %v1340 = vpack.c.b16 %v1036, %v1032
    %v1341 = vpack.c.b16 %v1041, %v1037
    %v1342 = vpack.c.b16 %v1042, %v1038
    %v1343 = vpack.c.b16 %v1043, %v1039
    %v1344 = vpack.c.b16 %v1044, %v1040
    %v1345 = vpack.c.b16 %v1049, %v1045
    %v1346 = vpack.c.b16 %v1050, %v1046
    %v1347 = vpack.c.b16 %v1051, %v1047
    %v1348 = vpack.c.b16 %v1052, %v1048
    %v1349 = vpack.c.b16 %v1057, %v1053
    %v1350 = vpack.c.b16 %v1058, %v1054
    %v1351 = vpack.c.b16 %v1059, %v1055
    %v1352 = vpack.c.b16 %v1060, %v1056
    %v1353 = vpack.c.b16 %v1065, %v1061
    %v1354 = vpack.c.b16 %v1066, %v1062
    %v1355 = vpack.c.b16 %v1067, %v1063
    %v1356 = vpack.c.b16 %v1068, %v1064
    %v1357 = vpack.c.b16 %v1073, %v1069
    %v1358 = vpack.c.b16 %v1074, %v1070
    %v1359 = vpack.c.b16 %v1075, %v1071
    %v1360 = vpack.c.b16 %v1076, %v1072
    %v1361 = vpack.c.b16 %v1081, %v1077
    %v1362 = vpack.c.b16 %v1082, %v1078
    %v1363 = vpack.c.b16 %v1083, %v1079
    %v1364 = vpack.c.b16 %v1084, %v1080
    %v1365 = vpack.c.b16 %v1089, %v1085
    %v1366 = vpack.c.b16 %v1090, %v1086
    %v1367 = vpack.c.b16 %v1091, %v1087
    %v1368 = vpack.c.b16 %v1092, %v1088
    %v1369 = vpack.c.b16 %v1097, %v1093
    %v1370 = vpack.c.b16 %v1098, %v1094
    %v1371 = vpack.c.b16 %v1099, %v1095
    %v1372 = vpack.c.b16 %v1100, %v1096
    %v1373 = vpack.c.b16 %v1105, %v1101
    %v1374 = vpack.c.b16 %v1106, %v1102
    %v1375 = vpack.c.b16 %v1107, %v1103
    %v1376 = vpack.c.b16 %v1108, %v1104
    %v1377 = vpack.c.b16 %v1113, %v1109
    %v1378 = vpack.c.b16 %v1114, %v1110
    %v1379 = vpack.c.b16 %v1115, %v1111
    %v1380 = vpack.c.b16 %v1116, %v1112
    %v1381 = vpack.c.b16 %v1121, %v1117
    %v1382 = vpack.c.b16 %v1122, %v1118
    %v1383 = vpack.c.b16 %v1123, %v1119
    %v1384 = vpack.c.b16 %v1124, %v1120
    %v1385 = vpack.c.b16 %v1129, %v1125
    %v1386 = vpack.c.b16 %v1130, %v1126
    %v1387 = vpack.c.b16 %v1131, %v1127
    %v1388 = vpack.c.b16 %v1132, %v1128
    %1645 = vmatprep.subr.bf16.mxu0 %v1134
    %1646 = vmatpush1.bf16.msra.mxu0 %v1133
    %1647 = vmatprep.subr.bf16.mxu0 %v1138
    %1648 = vmatpush1.bf16.msra.mxu0 %v1137
    %1649 = vmatprep.subr.bf16.mxu0 %v1142
    %1650 = vmatpush1.bf16.msra.mxu0 %v1141
    %1651 = vmatprep.subr.bf16.mxu0 %v1146
    %1652 = vmatpush1.bf16.msra.mxu0 %v1145
    %1653 = vmatprep.subr.bf16.mxu0 %v1150
    %1654 = vmatpush1.bf16.msra.mxu0 %v1149
    %1655 = vmatprep.subr.bf16.mxu0 %v1154
    %1656 = vmatpush1.bf16.msra.mxu0 %v1153
    %1657 = vmatprep.subr.bf16.mxu0 %v1158
    %1658 = vmatpush1.bf16.msra.mxu0 %v1157
    %1659 = vmatprep.subr.bf16.mxu0 %v1162
    %1660 = vmatpush1.bf16.msra.mxu0 %v1161
    %1661 = vmatprep.subr.bf16.mxu0 %v1166
    %1662 = vmatpush1.bf16.msra.mxu0 %v1165
    %1663 = vmatprep.subr.bf16.mxu0 %v1170
    %1664 = vmatpush1.bf16.msra.mxu0 %v1169
    %1665 = vmatprep.subr.bf16.mxu0 %v1174
    %1666 = vmatpush1.bf16.msra.mxu0 %v1173
    %1667 = vmatprep.subr.bf16.mxu0 %v1178
    %1668 = vmatpush1.bf16.msra.mxu0 %v1177
    %1669 = vmatprep.subr.bf16.mxu0 %v1182
    %1670 = vmatpush1.bf16.msra.mxu0 %v1181
    %1671 = vmatprep.subr.bf16.mxu0 %v1186
    %1672 = vmatpush1.bf16.msra.mxu0 %v1185
    %1673 = vmatprep.subr.bf16.mxu0 %v1190
    %1674 = vmatpush1.bf16.msra.mxu0 %v1189
    %1675 = vmatprep.subr.bf16.mxu0 %v1194
    %1676 = vmatpush1.bf16.msra.mxu0 %v1193
    %1677 = vmatprep.mubr.bf16.mxu0 %v345
    %1678 = vmatmul.mubr.bf16.gmra.mrb[0].mxu0 %v331
    %v1679 = vpop.f32.mrb[0].mxu0
    %v1680 = vadd.f32 %v290, %v1679
    %v1681 = vpop.f32.mrb[0].mxu0
    %v1682 = vadd.f32 %v294, %v1681
    %v1683 = vpop.f32.mrb[0].mxu0
    %v1684 = vpop.f32.mrb[0].mxu0
    %1685 = vdwg.mxu0
    %1686 = vmatprep.subr.bf16.mxu0 %v1198
    %1687 = vmatpush1.bf16.msra.mxu0 %v1197
    %1688 = vmatprep.subr.bf16.mxu0 %v1202
    %1689 = vmatpush1.bf16.msra.mxu0 %v1201
    %1690 = vmatprep.subr.bf16.mxu0 %v1206
    %1691 = vmatpush1.bf16.msra.mxu0 %v1205
    %1692 = vmatprep.subr.bf16.mxu0 %v1210
    %1693 = vmatpush1.bf16.msra.mxu0 %v1209
    %1694 = vmatprep.subr.bf16.mxu0 %v1214
    %1695 = vmatpush1.bf16.msra.mxu0 %v1213
    %1696 = vmatprep.subr.bf16.mxu0 %v1218
    %1697 = vmatpush1.bf16.msra.mxu0 %v1217
    %1698 = vmatprep.subr.bf16.mxu0 %v1222
    %1699 = vmatpush1.bf16.msra.mxu0 %v1221
    %1700 = vmatprep.subr.bf16.mxu0 %v1226
    %1701 = vmatpush1.bf16.msra.mxu0 %v1225
    %1702 = vmatprep.subr.bf16.mxu0 %v1230
    %1703 = vmatpush1.bf16.msra.mxu0 %v1229
    %1704 = vmatprep.subr.bf16.mxu0 %v1234
    %1705 = vmatpush1.bf16.msra.mxu0 %v1233
    %1706 = vmatprep.subr.bf16.mxu0 %v1238
    %1707 = vmatpush1.bf16.msra.mxu0 %v1237
    %1708 = vmatprep.subr.bf16.mxu0 %v1242
    %1709 = vmatpush1.bf16.msra.mxu0 %v1241
    %1710 = vmatprep.subr.bf16.mxu0 %v1246
    %1711 = vmatpush1.bf16.msra.mxu0 %v1245
    %1712 = vmatprep.subr.bf16.mxu0 %v1250
    %1713 = vmatpush1.bf16.msra.mxu0 %v1249
    %1714 = vmatprep.subr.bf16.mxu0 %v1254
    %1715 = vmatpush1.bf16.msra.mxu0 %v1253
    %1716 = vmatprep.subr.bf16.mxu0 %v1258
    %1717 = vmatpush1.bf16.msra.mxu0 %v1257
    %1718 = vmatprep.mubr.bf16.mxu0 %v355
    %1719 = vmatmul.mubr.bf16.gmra.mrb[0].mxu0 %v353
    %v1720 = vpop.f32.mrb[0].mxu0
    %v1721 = vadd.f32 %v1680, %v1720
    %v1722 = vpop.f32.mrb[0].mxu0
    %v1723 = vadd.f32 %v1682, %v1722
    %v1724 = vpop.f32.mrb[0].mxu0
    %v1725 = vpop.f32.mrb[0].mxu0
    %1726 = vdwg.mxu0
    %1727 = vmatprep.subr.bf16.mxu0 %v1262
    %1728 = vmatpush1.bf16.msra.mxu0 %v1261
    %1729 = vmatprep.subr.bf16.mxu0 %v1266
    %1730 = vmatpush1.bf16.msra.mxu0 %v1265
    %1731 = vmatprep.subr.bf16.mxu0 %v1270
    %1732 = vmatpush1.bf16.msra.mxu0 %v1269
    %1733 = vmatprep.subr.bf16.mxu0 %v1274
    %1734 = vmatpush1.bf16.msra.mxu0 %v1273
    %1735 = vmatprep.subr.bf16.mxu0 %v1278
    %1736 = vmatpush1.bf16.msra.mxu0 %v1277
    %1737 = vmatprep.subr.bf16.mxu0 %v1282
    %1738 = vmatpush1.bf16.msra.mxu0 %v1281
    %1739 = vmatprep.subr.bf16.mxu0 %v1286
    %1740 = vmatpush1.bf16.msra.mxu0 %v1285
    %1741 = vmatprep.subr.bf16.mxu0 %v1290
    %1742 = vmatpush1.bf16.msra.mxu0 %v1289
    %1743 = vmatprep.subr.bf16.mxu0 %v1294
    %1744 = vmatpush1.bf16.msra.mxu0 %v1293
    %1745 = vmatprep.subr.bf16.mxu0 %v1298
    %1746 = vmatpush1.bf16.msra.mxu0 %v1297
    %1747 = vmatprep.subr.bf16.mxu0 %v1302
    %1748 = vmatpush1.bf16.msra.mxu0 %v1301
    %1749 = vmatprep.subr.bf16.mxu0 %v1306
    %1750 = vmatpush1.bf16.msra.mxu0 %v1305
    %1751 = vmatprep.subr.bf16.mxu0 %v1310
    %1752 = vmatpush1.bf16.msra.mxu0 %v1309
    %1753 = vmatprep.subr.bf16.mxu0 %v1314
    %1754 = vmatpush1.bf16.msra.mxu0 %v1313
    %1755 = vmatprep.subr.bf16.mxu0 %v1318
    %1756 = vmatpush1.bf16.msra.mxu0 %v1317
    %1757 = vmatprep.subr.bf16.mxu0 %v1322
    %1758 = vmatpush1.bf16.msra.mxu0 %v1321
    %1759 = vmatprep.mubr.bf16.mxu0 %v352
    %1760 = vmatmul.mubr.bf16.gmra.mrb[0].mxu0 %v338
    %v1761 = vpop.f32.mrb[0].mxu0
    %v1762 = vadd.f32 %v1721, %v1761
    %v1763 = vpop.f32.mrb[0].mxu0
    %v1764 = vadd.f32 %v1723, %v1763
    %v1765 = vpop.f32.mrb[0].mxu0
    %v1766 = vpop.f32.mrb[0].mxu0
    %1767 = vdwg.mxu0
    %1768 = vmatprep.subr.bf16.mxu0 %v1326
    %1769 = vmatpush1.bf16.msra.mxu0 %v1325
    %1770 = vmatprep.subr.bf16.mxu0 %v1330
    %1771 = vmatpush1.bf16.msra.mxu0 %v1329
    %1772 = vmatprep.subr.bf16.mxu0 %v1334
    %1773 = vmatpush1.bf16.msra.mxu0 %v1333
    %1774 = vmatprep.subr.bf16.mxu0 %v1338
    %1775 = vmatpush1.bf16.msra.mxu0 %v1337
    %1776 = vmatprep.subr.bf16.mxu0 %v1342
    %1777 = vmatpush1.bf16.msra.mxu0 %v1341
    %1778 = vmatprep.subr.bf16.mxu0 %v1346
    %1779 = vmatpush1.bf16.msra.mxu0 %v1345
    %1780 = vmatprep.subr.bf16.mxu0 %v1350
    %1781 = vmatpush1.bf16.msra.mxu0 %v1349
    %1782 = vmatprep.subr.bf16.mxu0 %v1354
    %1783 = vmatpush1.bf16.msra.mxu0 %v1353
    %1784 = vmatprep.subr.bf16.mxu0 %v1358
    %1785 = vmatpush1.bf16.msra.mxu0 %v1357
    %1786 = vmatprep.subr.bf16.mxu0 %v1362
    %1787 = vmatpush1.bf16.msra.mxu0 %v1361
    %1788 = vmatprep.subr.bf16.mxu0 %v1366
    %1789 = vmatpush1.bf16.msra.mxu0 %v1365
    %1790 = vmatprep.subr.bf16.mxu0 %v1370
    %1791 = vmatpush1.bf16.msra.mxu0 %v1369
    %1792 = vmatprep.subr.bf16.mxu0 %v1374
    %1793 = vmatpush1.bf16.msra.mxu0 %v1373
    %1794 = vmatprep.subr.bf16.mxu0 %v1378
    %1795 = vmatpush1.bf16.msra.mxu0 %v1377
    %1796 = vmatprep.subr.bf16.mxu0 %v1382
    %1797 = vmatpush1.bf16.msra.mxu0 %v1381
    %1798 = vmatprep.subr.bf16.mxu0 %v1386
    %1799 = vmatpush1.bf16.msra.mxu0 %v1385
    %1800 = vmatprep.mubr.bf16.mxu0 %v356
    %1801 = vmatmul.mubr.bf16.gmra.mrb[0].mxu0 %v354
    %v1802 = vpop.f32.mrb[0].mxu0
    %v1803 = vadd.f32 %v1762, %v1802
    %v1804 = vpop.f32.mrb[0].mxu0
    %v1805 = vadd.f32 %v1764, %v1804
    %v1806 = vpop.f32.mrb[0].mxu0
    %v1807 = vpop.f32.mrb[0].mxu0
    %1808 = vdwg.mxu0
    %1809 = vmatprep.subr.bf16.mxu0 %v1136
    %1810 = vmatpush1.bf16.msra.mxu0 %v1135
    %1811 = vmatprep.subr.bf16.mxu0 %v1140
    %1812 = vmatpush1.bf16.msra.mxu0 %v1139
    %1813 = vmatprep.subr.bf16.mxu0 %v1144
    %1814 = vmatpush1.bf16.msra.mxu0 %v1143
    %1815 = vmatprep.subr.bf16.mxu0 %v1148
    %1816 = vmatpush1.bf16.msra.mxu0 %v1147
    %1817 = vmatprep.subr.bf16.mxu0 %v1152
    %1818 = vmatpush1.bf16.msra.mxu0 %v1151
    %1819 = vmatprep.subr.bf16.mxu0 %v1156
    %1820 = vmatpush1.bf16.msra.mxu0 %v1155
    %1821 = vmatprep.subr.bf16.mxu0 %v1160
    %1822 = vmatpush1.bf16.msra.mxu0 %v1159
    %1823 = vmatprep.subr.bf16.mxu0 %v1164
    %1824 = vmatpush1.bf16.msra.mxu0 %v1163
    %1825 = vmatprep.subr.bf16.mxu0 %v1168
    %1826 = vmatpush1.bf16.msra.mxu0 %v1167
    %1827 = vmatprep.subr.bf16.mxu0 %v1172
    %1828 = vmatpush1.bf16.msra.mxu0 %v1171
    %1829 = vmatprep.subr.bf16.mxu0 %v1176
    %1830 = vmatpush1.bf16.msra.mxu0 %v1175
    %1831 = vmatprep.subr.bf16.mxu0 %v1180
    %1832 = vmatpush1.bf16.msra.mxu0 %v1179
    %1833 = vmatprep.subr.bf16.mxu0 %v1184
    %1834 = vmatpush1.bf16.msra.mxu0 %v1183
    %1835 = vmatprep.subr.bf16.mxu0 %v1188
    %1836 = vmatpush1.bf16.msra.mxu0 %v1187
    %1837 = vmatprep.subr.bf16.mxu0 %v1192
    %1838 = vmatpush1.bf16.msra.mxu0 %v1191
    %1839 = vmatprep.subr.bf16.mxu0 %v1196
    %1840 = vmatpush1.bf16.msra.mxu0 %v1195
    %1841 = vmatprep.mubr.bf16.mxu0 %v345
    %1842 = vmatmul.mubr.bf16.gmra.mrb[0].mxu0 %v331
    %v1843 = vpop.f32.mrb[0].mxu0
    %v1844 = vadd.f32 %v298, %v1843
    %v1845 = vpop.f32.mrb[0].mxu0
    %v1846 = vadd.f32 %v302, %v1845
    %v1847 = vpop.f32.mrb[0].mxu0
    %v1848 = vpop.f32.mrb[0].mxu0
    %1849 = vdwg.mxu0
    %1850 = vmatprep.subr.bf16.mxu0 %v1200
    %1851 = vmatpush1.bf16.msra.mxu0 %v1199
    %1852 = vmatprep.subr.bf16.mxu0 %v1204
    %1853 = vmatpush1.bf16.msra.mxu0 %v1203
    %1854 = vmatprep.subr.bf16.mxu0 %v1208
    %1855 = vmatpush1.bf16.msra.mxu0 %v1207
    %1856 = vmatprep.subr.bf16.mxu0 %v1212
    %1857 = vmatpush1.bf16.msra.mxu0 %v1211
    %1858 = vmatprep.subr.bf16.mxu0 %v1216
    %1859 = vmatpush1.bf16.msra.mxu0 %v1215
    %1860 = vmatprep.subr.bf16.mxu0 %v1220
    %1861 = vmatpush1.bf16.msra.mxu0 %v1219
    %1862 = vmatprep.subr.bf16.mxu0 %v1224
    %1863 = vmatpush1.bf16.msra.mxu0 %v1223
    %1864 = vmatprep.subr.bf16.mxu0 %v1228
    %1865 = vmatpush1.bf16.msra.mxu0 %v1227
    %1866 = vmatprep.subr.bf16.mxu0 %v1232
    %1867 = vmatpush1.bf16.msra.mxu0 %v1231
    %1868 = vmatprep.subr.bf16.mxu0 %v1236
    %1869 = vmatpush1.bf16.msra.mxu0 %v1235
    %1870 = vmatprep.subr.bf16.mxu0 %v1240
    %1871 = vmatpush1.bf16.msra.mxu0 %v1239
    %1872 = vmatprep.subr.bf16.mxu0 %v1244
    %1873 = vmatpush1.bf16.msra.mxu0 %v1243
    %1874 = vmatprep.subr.bf16.mxu0 %v1248
    %1875 = vmatpush1.bf16.msra.mxu0 %v1247
    %1876 = vmatprep.subr.bf16.mxu0 %v1252
    %1877 = vmatpush1.bf16.msra.mxu0 %v1251
    %1878 = vmatprep.subr.bf16.mxu0 %v1256
    %1879 = vmatpush1.bf16.msra.mxu0 %v1255
    %1880 = vmatprep.subr.bf16.mxu0 %v1260
    %1881 = vmatpush1.bf16.msra.mxu0 %v1259
    %1882 = vmatprep.mubr.bf16.mxu0 %v355
    %1883 = vmatmul.mubr.bf16.gmra.mrb[0].mxu0 %v353
    %v1884 = vpop.f32.mrb[0].mxu0
    %v1885 = vadd.f32 %v1844, %v1884
    %v1886 = vpop.f32.mrb[0].mxu0
    %v1887 = vadd.f32 %v1846, %v1886
    %v1888 = vpop.f32.mrb[0].mxu0
    %v1889 = vpop.f32.mrb[0].mxu0
    %1890 = vdwg.mxu0
    %1891 = vmatprep.subr.bf16.mxu0 %v1264
    %1892 = vmatpush1.bf16.msra.mxu0 %v1263
    %1893 = vmatprep.subr.bf16.mxu0 %v1268
    %1894 = vmatpush1.bf16.msra.mxu0 %v1267
    %1895 = vmatprep.subr.bf16.mxu0 %v1272
    %1896 = vmatpush1.bf16.msra.mxu0 %v1271
    %1897 = vmatprep.subr.bf16.mxu0 %v1276
    %1898 = vmatpush1.bf16.msra.mxu0 %v1275
    %1899 = vmatprep.subr.bf16.mxu0 %v1280
    %1900 = vmatpush1.bf16.msra.mxu0 %v1279
    %1901 = vmatprep.subr.bf16.mxu0 %v1284
    %1902 = vmatpush1.bf16.msra.mxu0 %v1283
    %1903 = vmatprep.subr.bf16.mxu0 %v1288
    %1904 = vmatpush1.bf16.msra.mxu0 %v1287
    %1905 = vmatprep.subr.bf16.mxu0 %v1292
    %1906 = vmatpush1.bf16.msra.mxu0 %v1291
    %1907 = vmatprep.subr.bf16.mxu0 %v1296
    %1908 = vmatpush1.bf16.msra.mxu0 %v1295
    %1909 = vmatprep.subr.bf16.mxu0 %v1300
    %1910 = vmatpush1.bf16.msra.mxu0 %v1299
    %1911 = vmatprep.subr.bf16.mxu0 %v1304
    %1912 = vmatpush1.bf16.msra.mxu0 %v1303
    %1913 = vmatprep.subr.bf16.mxu0 %v1308
    %1914 = vmatpush1.bf16.msra.mxu0 %v1307
    %1915 = vmatprep.subr.bf16.mxu0 %v1312
    %1916 = vmatpush1.bf16.msra.mxu0 %v1311
    %1917 = vmatprep.subr.bf16.mxu0 %v1316
    %1918 = vmatpush1.bf16.msra.mxu0 %v1315
    %1919 = vmatprep.subr.bf16.mxu0 %v1320
    %1920 = vmatpush1.bf16.msra.mxu0 %v1319
    %1921 = vmatprep.subr.bf16.mxu0 %v1324
    %1922 = vmatpush1.bf16.msra.mxu0 %v1323
    %1923 = vmatprep.mubr.bf16.mxu0 %v352
    %1924 = vmatmul.mubr.bf16.gmra.mrb[0].mxu0 %v338
    %v1925 = vpop.f32.mrb[0].mxu0
    %v1926 = vadd.f32 %v1885, %v1925
    %v1927 = vpop.f32.mrb[0].mxu0
    %v1928 = vadd.f32 %v1887, %v1927
    %v1929 = vpop.f32.mrb[0].mxu0
    %v1930 = vpop.f32.mrb[0].mxu0
    %1931 = vdwg.mxu0
    %1932 = vmatprep.subr.bf16.mxu0 %v1328
    %1933 = vmatpush1.bf16.msra.mxu0 %v1327
    %1934 = vmatprep.subr.bf16.mxu0 %v1332
    %1935 = vmatpush1.bf16.msra.mxu0 %v1331
    %1936 = vmatprep.subr.bf16.mxu0 %v1336
    %1937 = vmatpush1.bf16.msra.mxu0 %v1335
    %1938 = vmatprep.subr.bf16.mxu0 %v1340
    %1939 = vmatpush1.bf16.msra.mxu0 %v1339
    %1940 = vmatprep.subr.bf16.mxu0 %v1344
    %1941 = vmatpush1.bf16.msra.mxu0 %v1343
    %1942 = vmatprep.subr.bf16.mxu0 %v1348
    %1943 = vmatpush1.bf16.msra.mxu0 %v1347
    %1944 = vmatprep.subr.bf16.mxu0 %v1352
    %1945 = vmatpush1.bf16.msra.mxu0 %v1351
    %1946 = vmatprep.subr.bf16.mxu0 %v1356
    %1947 = vmatpush1.bf16.msra.mxu0 %v1355
    %1948 = vmatprep.subr.bf16.mxu0 %v1360
    %1949 = vmatpush1.bf16.msra.mxu0 %v1359
    %1950 = vmatprep.subr.bf16.mxu0 %v1364
    %1951 = vmatpush1.bf16.msra.mxu0 %v1363
    %1952 = vmatprep.subr.bf16.mxu0 %v1368
    %1953 = vmatpush1.bf16.msra.mxu0 %v1367
    %1954 = vmatprep.subr.bf16.mxu0 %v1372
    %1955 = vmatpush1.bf16.msra.mxu0 %v1371
    %1956 = vmatprep.subr.bf16.mxu0 %v1376
    %1957 = vmatpush1.bf16.msra.mxu0 %v1375
    %1958 = vmatprep.subr.bf16.mxu0 %v1380
    %1959 = vmatpush1.bf16.msra.mxu0 %v1379
    %1960 = vmatprep.subr.bf16.mxu0 %v1384
    %1961 = vmatpush1.bf16.msra.mxu0 %v1383
    %1962 = vmatprep.subr.bf16.mxu0 %v1388
    %1963 = vmatpush1.bf16.msra.mxu0 %v1387
    %1964 = vmatprep.mubr.bf16.mxu0 %v356
    %1965 = vmatmul.mubr.bf16.gmra.mrb[0].mxu0 %v354
    %v1966 = vpop.f32.mrb[0].mxu0
    %v1967 = vadd.f32 %v1926, %v1966
    %v1968 = vpop.f32.mrb[0].mxu0
    %v1969 = vadd.f32 %v1928, %v1968
    %v1970 = vpop.f32.mrb[0].mxu0
    %v1971 = vpop.f32.mrb[0].mxu0
    %1972 = vdwg.mxu0
    %v1973 = vmax.f32 %v1803, 0.0
    %v1974 = vmax.f32 %v1805, 0.0
    %v1975 = vmax.f32 %v1967, 0.0
    %v1976 = vmax.f32 %v1969, 0.0
    %v1977 = vpack.c.bf16 %v1973, %v1973
    %v1978 = vpack.c.bf16 %v1974, %v1974
    %v1979 = vpack.c.bf16 %v1975, %v1975
    %v1980 = vpack.c.bf16 %v1976, %v1976
    %v1981 = vld [vmem:[%s3] sm:$0xff]
    %v1982 = vld [vmem:[%s3 + $0x8] sm:$0xff]
    %v1983 = vld [vmem:[%s3 + $0x10] sm:$0xff]
    %v1984 = vld [vmem:[%s3 + $0x18] sm:$0xff]
    %v1985 = vld [vmem:[%s3 + $0x20] sm:$0xff]
    %v1986 = vld [vmem:[%s3 + $0x28] sm:$0xff]
    %v1987 = vld [vmem:[%s3 + $0x30] sm:$0xff]
    %v1988 = vld [vmem:[%s3 + $0x38] sm:$0xff]
    %v1989 = vld [vmem:[%s3 + $0x40] sm:$0xff]
    %v1990 = vld [vmem:[%s3 + $0x48] sm:$0xff]
    %v1991 = vld [vmem:[%s3 + $0x50] sm:$0xff]
    %v1992 = vld [vmem:[%s3 + $0x58] sm:$0xff]
    %v1993 = vld [vmem:[%s3 + $0x60] sm:$0xff]
    %v1994 = vld [vmem:[%s3 + $0x68] sm:$0xff]
    %v1995 = vld [vmem:[%s3 + $0x70] sm:$0xff]
    %v1996 = vld [vmem:[%s3 + $0x78] sm:$0xff]
    %v1997 = vld [vmem:[%s3 + $0x80] sm:$0xff]
    %v1998 = vld [vmem:[%s3 + $0x88] sm:$0xff]
    %v1999 = vld [vmem:[%s3 + $0x90] sm:$0xff]
    %v2000 = vld [vmem:[%s3 + $0x98] sm:$0xff]
    %v2001 = vld [vmem:[%s3 + $0xa0] sm:$0xff]
    %v2002 = vld [vmem:[%s3 + $0xa8] sm:$0xff]
    %v2003 = vld [vmem:[%s3 + $0xb0] sm:$0xff]
    %v2004 = vld [vmem:[%s3 + $0xb8] sm:$0xff]
    %v2005 = vld [vmem:[%s3 + $0xc0] sm:$0xff]
    %v2006 = vld [vmem:[%s3 + $0xc8] sm:$0xff]
    %v2007 = vld [vmem:[%s3 + $0xd0] sm:$0xff]
    %v2008 = vld [vmem:[%s3 + $0xd8] sm:$0xff]
    %v2009 = vld [vmem:[%s3 + $0xe0] sm:$0xff]
    %v2010 = vld [vmem:[%s3 + $0xe8] sm:$0xff]
    %v2011 = vld [vmem:[%s3 + $0xf0] sm:$0xff]
    %v2012 = vld [vmem:[%s3 + $0xf8] sm:$0xff]
    %v2013 = vld [vmem:[%s3 + $0x100] sm:$0xff]
    %v2014 = vld [vmem:[%s3 + $0x108] sm:$0xff]
    %v2015 = vld [vmem:[%s3 + $0x110] sm:$0xff]
    %v2016 = vld [vmem:[%s3 + $0x118] sm:$0xff]
    %v2017 = vld [vmem:[%s3 + $0x120] sm:$0xff]
    %v2018 = vld [vmem:[%s3 + $0x128] sm:$0xff]
    %v2019 = vld [vmem:[%s3 + $0x130] sm:$0xff]
    %v2020 = vld [vmem:[%s3 + $0x138] sm:$0xff]
    %v2021 = vld [vmem:[%s3 + $0x140] sm:$0xff]
    %v2022 = vld [vmem:[%s3 + $0x148] sm:$0xff]
    %v2023 = vld [vmem:[%s3 + $0x150] sm:$0xff]
    %v2024 = vld [vmem:[%s3 + $0x158] sm:$0xff]
    %v2025 = vld [vmem:[%s3 + $0x160] sm:$0xff]
    %v2026 = vld [vmem:[%s3 + $0x168] sm:$0xff]
    %v2027 = vld [vmem:[%s3 + $0x170] sm:$0xff]
    %v2028 = vld [vmem:[%s3 + $0x178] sm:$0xff]
    %v2029 = vld [vmem:[%s3 + $0x180] sm:$0xff]
    %v2030 = vld [vmem:[%s3 + $0x188] sm:$0xff]
    %v2031 = vld [vmem:[%s3 + $0x190] sm:$0xff]
    %v2032 = vld [vmem:[%s3 + $0x198] sm:$0xff]
    %v2033 = vld [vmem:[%s3 + $0x1a0] sm:$0xff]
    %v2034 = vld [vmem:[%s3 + $0x1a8] sm:$0xff]
    %v2035 = vld [vmem:[%s3 + $0x1b0] sm:$0xff]
    %v2036 = vld [vmem:[%s3 + $0x1b8] sm:$0xff]
    %v2037 = vld [vmem:[%s3 + $0x1c0] sm:$0xff]
    %v2038 = vld [vmem:[%s3 + $0x1c8] sm:$0xff]
    %v2039 = vld [vmem:[%s3 + $0x1d0] sm:$0xff]
    %v2040 = vld [vmem:[%s3 + $0x1d8] sm:$0xff]
    %v2041 = vld [vmem:[%s3 + $0x1e0] sm:$0xff]
    %v2042 = vld [vmem:[%s3 + $0x1e8] sm:$0xff]
    %v2043 = vld [vmem:[%s3 + $0x1f0] sm:$0xff]
    %v2044 = vld [vmem:[%s3 + $0x1f8] sm:$0xff]
    %v2045 = vld [vmem:[%s4] sm:$0x3]
    %v2047 = vlaneseq
    %v2048 = vshrl.u32 %v2047, 7
    %v2049 = vsub.s32 0, %v2048
    %v2050 = vrot.slane %v2045, %v2049
    %v2051 = vlaneseq
    %v2052 = vshrl.u32 %v2051, 7
    %v2053 = vsub.s32 1, %v2052
    %v2054 = vrot.slane %v2045, %v2053
    %v2121 = vunpack.c.l.b16 %v1981
    %v2122 = vunpack.c.h.b16 %v1981
    %v2123 = vunpack.c.l.b16 %v1982
    %v2124 = vunpack.c.h.b16 %v1982
    %v2125 = vunpack.c.l.b16 %v1983
    %v2126 = vunpack.c.h.b16 %v1983
    %v2127 = vunpack.c.l.b16 %v1984
    %v2128 = vunpack.c.h.b16 %v1984
    %v2129 = vunpack.c.l.b16 %v1985
    %v2130 = vunpack.c.h.b16 %v1985
    %v2131 = vunpack.c.l.b16 %v1986
    %v2132 = vunpack.c.h.b16 %v1986
    %v2133 = vunpack.c.l.b16 %v1987
    %v2134 = vunpack.c.h.b16 %v1987
    %v2135 = vunpack.c.l.b16 %v1988
    %v2136 = vunpack.c.h.b16 %v1988
    %v2137 = vunpack.c.l.b16 %v1989
    %v2138 = vunpack.c.h.b16 %v1989
    %v2139 = vunpack.c.l.b16 %v1990
    %v2140 = vunpack.c.h.b16 %v1990
    %v2141 = vunpack.c.l.b16 %v1991
    %v2142 = vunpack.c.h.b16 %v1991
    %v2143 = vunpack.c.l.b16 %v1992
    %v2144 = vunpack.c.h.b16 %v1992
    %v2145 = vunpack.c.l.b16 %v1993
    %v2146 = vunpack.c.h.b16 %v1993
    %v2147 = vunpack.c.l.b16 %v1994
    %v2148 = vunpack.c.h.b16 %v1994
    %v2149 = vunpack.c.l.b16 %v1995
    %v2150 = vunpack.c.h.b16 %v1995
    %v2151 = vunpack.c.l.b16 %v1996
    %v2152 = vunpack.c.h.b16 %v1996
    %v2153 = vunpack.c.l.b16 %v1997
    %v2154 = vunpack.c.h.b16 %v1997
    %v2155 = vunpack.c.l.b16 %v1998
    %v2156 = vunpack.c.h.b16 %v1998
    %v2157 = vunpack.c.l.b16 %v1999
    %v2158 = vunpack.c.h.b16 %v1999
    %v2159 = vunpack.c.l.b16 %v2000
    %v2160 = vunpack.c.h.b16 %v2000
    %v2161 = vunpack.c.l.b16 %v2001
    %v2162 = vunpack.c.h.b16 %v2001
    %v2163 = vunpack.c.l.b16 %v2002
    %v2164 = vunpack.c.h.b16 %v2002
    %v2165 = vunpack.c.l.b16 %v2003
    %v2166 = vunpack.c.h.b16 %v2003
    %v2167 = vunpack.c.l.b16 %v2004
    %v2168 = vunpack.c.h.b16 %v2004
    %v2169 = vunpack.c.l.b16 %v2005
    %v2170 = vunpack.c.h.b16 %v2005
    %v2171 = vunpack.c.l.b16 %v2006
    %v2172 = vunpack.c.h.b16 %v2006
    %v2173 = vunpack.c.l.b16 %v2007
    %v2174 = vunpack.c.h.b16 %v2007
    %v2175 = vunpack.c.l.b16 %v2008
    %v2176 = vunpack.c.h.b16 %v2008
    %v2177 = vunpack.c.l.b16 %v2009
    %v2178 = vunpack.c.h.b16 %v2009
    %v2179 = vunpack.c.l.b16 %v2010
    %v2180 = vunpack.c.h.b16 %v2010
    %v2181 = vunpack.c.l.b16 %v2011
    %v2182 = vunpack.c.h.b16 %v2011
    %v2183 = vunpack.c.l.b16 %v2012
    %v2184 = vunpack.c.h.b16 %v2012
    %v2185 = vunpack.c.l.b16 %v2013
    %v2186 = vunpack.c.h.b16 %v2013
    %v2187 = vunpack.c.l.b16 %v2014
    %v2188 = vunpack.c.h.b16 %v2014
    %v2189 = vunpack.c.l.b16 %v2015
    %v2190 = vunpack.c.h.b16 %v2015
    %v2191 = vunpack.c.l.b16 %v2016
    %v2192 = vunpack.c.h.b16 %v2016
    %v2193 = vunpack.c.l.b16 %v2017
    %v2194 = vunpack.c.h.b16 %v2017
    %v2195 = vunpack.c.l.b16 %v2018
    %v2196 = vunpack.c.h.b16 %v2018
    %v2197 = vunpack.c.l.b16 %v2019
    %v2198 = vunpack.c.h.b16 %v2019
    %v2199 = vunpack.c.l.b16 %v2020
    %v2200 = vunpack.c.h.b16 %v2020
    %v2201 = vunpack.c.l.b16 %v2021
    %v2202 = vunpack.c.h.b16 %v2021
    %v2203 = vunpack.c.l.b16 %v2022
    %v2204 = vunpack.c.h.b16 %v2022
    %v2205 = vunpack.c.l.b16 %v2023
    %v2206 = vunpack.c.h.b16 %v2023
    %v2207 = vunpack.c.l.b16 %v2024
    %v2208 = vunpack.c.h.b16 %v2024
    %v2209 = vunpack.c.l.b16 %v2025
    %v2210 = vunpack.c.h.b16 %v2025
    %v2211 = vunpack.c.l.b16 %v2026
    %v2212 = vunpack.c.h.b16 %v2026
    %v2213 = vunpack.c.l.b16 %v2027
    %v2214 = vunpack.c.h.b16 %v2027
    %v2215 = vunpack.c.l.b16 %v2028
    %v2216 = vunpack.c.h.b16 %v2028
    %v2217 = vunpack.c.l.b16 %v2029
    %v2218 = vunpack.c.h.b16 %v2029
    %v2219 = vunpack.c.l.b16 %v2030
    %v2220 = vunpack.c.h.b16 %v2030
    %v2221 = vunpack.c.l.b16 %v2031
    %v2222 = vunpack.c.h.b16 %v2031
    %v2223 = vunpack.c.l.b16 %v2032
    %v2224 = vunpack.c.h.b16 %v2032
    %v2225 = vunpack.c.l.b16 %v2033
    %v2226 = vunpack.c.h.b16 %v2033
    %v2227 = vunpack.c.l.b16 %v2034
    %v2228 = vunpack.c.h.b16 %v2034
    %v2229 = vunpack.c.l.b16 %v2035
    %v2230 = vunpack.c.h.b16 %v2035
    %v2231 = vunpack.c.l.b16 %v2036
    %v2232 = vunpack.c.h.b16 %v2036
    %v2233 = vunpack.c.l.b16 %v2037
    %v2234 = vunpack.c.h.b16 %v2037
    %v2235 = vunpack.c.l.b16 %v2038
    %v2236 = vunpack.c.h.b16 %v2038
    %v2237 = vunpack.c.l.b16 %v2039
    %v2238 = vunpack.c.h.b16 %v2039
    %v2239 = vunpack.c.l.b16 %v2040
    %v2240 = vunpack.c.h.b16 %v2040
    %v2241 = vunpack.c.l.b16 %v2041
    %v2242 = vunpack.c.h.b16 %v2041
    %v2243 = vunpack.c.l.b16 %v2042
    %v2244 = vunpack.c.h.b16 %v2042
    %v2245 = vunpack.c.l.b16 %v2043
    %v2246 = vunpack.c.h.b16 %v2043
    %v2247 = vunpack.c.l.b16 %v2044
    %v2248 = vunpack.c.h.b16 %v2044
    %v2249 = vpack.c.b16 %v2123, %v2121
    %v2250 = vpack.c.b16 %v2124, %v2122
    %v2251 = vpack.c.b16 %v2127, %v2125
    %v2252 = vpack.c.b16 %v2128, %v2126
    %v2253 = vpack.c.b16 %v2131, %v2129
    %v2254 = vpack.c.b16 %v2132, %v2130
    %v2255 = vpack.c.b16 %v2135, %v2133
    %v2256 = vpack.c.b16 %v2136, %v2134
    %v2257 = vpack.c.b16 %v2139, %v2137
    %v2258 = vpack.c.b16 %v2140, %v2138
    %v2259 = vpack.c.b16 %v2143, %v2141
    %v2260 = vpack.c.b16 %v2144, %v2142
    %v2261 = vpack.c.b16 %v2147, %v2145
    %v2262 = vpack.c.b16 %v2148, %v2146
    %v2263 = vpack.c.b16 %v2151, %v2149
    %v2264 = vpack.c.b16 %v2152, %v2150
    %v2265 = vpack.c.b16 %v2155, %v2153
    %v2266 = vpack.c.b16 %v2156, %v2154
    %v2267 = vpack.c.b16 %v2159, %v2157
    %v2268 = vpack.c.b16 %v2160, %v2158
    %v2269 = vpack.c.b16 %v2163, %v2161
    %v2270 = vpack.c.b16 %v2164, %v2162
    %v2271 = vpack.c.b16 %v2167, %v2165
    %v2272 = vpack.c.b16 %v2168, %v2166
    %v2273 = vpack.c.b16 %v2171, %v2169
    %v2274 = vpack.c.b16 %v2172, %v2170
    %v2275 = vpack.c.b16 %v2175, %v2173
    %v2276 = vpack.c.b16 %v2176, %v2174
    %v2277 = vpack.c.b16 %v2179, %v2177
    %v2278 = vpack.c.b16 %v2180, %v2178
    %v2279 = vpack.c.b16 %v2183, %v2181
    %v2280 = vpack.c.b16 %v2184, %v2182
    %v2281 = vpack.c.b16 %v2187, %v2185
    %v2282 = vpack.c.b16 %v2188, %v2186
    %v2283 = vpack.c.b16 %v2191, %v2189
    %v2284 = vpack.c.b16 %v2192, %v2190
    %v2285 = vpack.c.b16 %v2195, %v2193
    %v2286 = vpack.c.b16 %v2196, %v2194
    %v2287 = vpack.c.b16 %v2199, %v2197
    %v2288 = vpack.c.b16 %v2200, %v2198
    %v2289 = vpack.c.b16 %v2203, %v2201
    %v2290 = vpack.c.b16 %v2204, %v2202
    %v2291 = vpack.c.b16 %v2207, %v2205
    %v2292 = vpack.c.b16 %v2208, %v2206
    %v2293 = vpack.c.b16 %v2211, %v2209
    %v2294 = vpack.c.b16 %v2212, %v2210
    %v2295 = vpack.c.b16 %v2215, %v2213
    %v2296 = vpack.c.b16 %v2216, %v2214
    %v2297 = vpack.c.b16 %v2219, %v2217
    %v2298 = vpack.c.b16 %v2220, %v2218
    %v2299 = vpack.c.b16 %v2223, %v2221
    %v2300 = vpack.c.b16 %v2224, %v2222
    %v2301 = vpack.c.b16 %v2227, %v2225
    %v2302 = vpack.c.b16 %v2228, %v2226
    %v2303 = vpack.c.b16 %v2231, %v2229
    %v2304 = vpack.c.b16 %v2232, %v2230
    %v2305 = vpack.c.b16 %v2235, %v2233
    %v2306 = vpack.c.b16 %v2236, %v2234
    %v2307 = vpack.c.b16 %v2239, %v2237
    %v2308 = vpack.c.b16 %v2240, %v2238
    %v2309 = vpack.c.b16 %v2243, %v2241
    %v2310 = vpack.c.b16 %v2244, %v2242
    %v2311 = vpack.c.b16 %v2247, %v2245
    %v2312 = vpack.c.b16 %v2248, %v2246
    %2377 = vmatprep.subr.bf16.mxu0 %v2250
    %2378 = vmatpush1.bf16.msra.mxu0 %v2249
    %2379 = vmatprep.subr.bf16.mxu0 %v2252
    %2380 = vmatpush1.bf16.msra.mxu0 %v2251
    %2381 = vmatprep.subr.bf16.mxu0 %v2254
    %2382 = vmatpush1.bf16.msra.mxu0 %v2253
    %2383 = vmatprep.subr.bf16.mxu0 %v2256
    %2384 = vmatpush1.bf16.msra.mxu0 %v2255
    %2385 = vmatprep.subr.bf16.mxu0 %v2258
    %2386 = vmatpush1.bf16.msra.mxu0 %v2257
    %2387 = vmatprep.subr.bf16.mxu0 %v2260
    %2388 = vmatpush1.bf16.msra.mxu0 %v2259
    %2389 = vmatprep.subr.bf16.mxu0 %v2262
    %2390 = vmatpush1.bf16.msra.mxu0 %v2261
    %2391 = vmatprep.subr.bf16.mxu0 %v2264
    %2392 = vmatpush1.bf16.msra.mxu0 %v2263
    %2393 = vmatprep.subr.bf16.mxu0 %v2266
    %2394 = vmatpush1.bf16.msra.mxu0 %v2265
    %2395 = vmatprep.subr.bf16.mxu0 %v2268
    %2396 = vmatpush1.bf16.msra.mxu0 %v2267
    %2397 = vmatprep.subr.bf16.mxu0 %v2270
    %2398 = vmatpush1.bf16.msra.mxu0 %v2269
    %2399 = vmatprep.subr.bf16.mxu0 %v2272
    %2400 = vmatpush1.bf16.msra.mxu0 %v2271
    %2401 = vmatprep.subr.bf16.mxu0 %v2274
    %2402 = vmatpush1.bf16.msra.mxu0 %v2273
    %2403 = vmatprep.subr.bf16.mxu0 %v2276
    %2404 = vmatpush1.bf16.msra.mxu0 %v2275
    %2405 = vmatprep.subr.bf16.mxu0 %v2278
    %2406 = vmatpush1.bf16.msra.mxu0 %v2277
    %2407 = vmatprep.subr.bf16.mxu0 %v2280
    %2408 = vmatpush1.bf16.msra.mxu0 %v2279
    %2409 = vmatprep.mubr.bf16.mxu0 %v1978
    %2410 = vmatmul.mubr.bf16.gmra.mrb[0].mxu0 %v1977
    %v2411 = vpop.f32.mrb[0].mxu0
    %v2412 = vadd.f32 %v2050, %v2411
    %v2413 = vpop.f32.mrb[0].mxu0
    %v2414 = vadd.f32 %v2054, %v2413
    %v2415 = vpop.f32.mrb[0].mxu0
    %v2416 = vpop.f32.mrb[0].mxu0
    %2417 = vdwg.mxu0
    %2418 = vmatprep.subr.bf16.mxu0 %v2282
    %2419 = vmatpush1.bf16.msra.mxu0 %v2281
    %2420 = vmatprep.subr.bf16.mxu0 %v2284
    %2421 = vmatpush1.bf16.msra.mxu0 %v2283
    %2422 = vmatprep.subr.bf16.mxu0 %v2286
    %2423 = vmatpush1.bf16.msra.mxu0 %v2285
    %2424 = vmatprep.subr.bf16.mxu0 %v2288
    %2425 = vmatpush1.bf16.msra.mxu0 %v2287
    %2426 = vmatprep.subr.bf16.mxu0 %v2290
    %2427 = vmatpush1.bf16.msra.mxu0 %v2289
    %2428 = vmatprep.subr.bf16.mxu0 %v2292
    %2429 = vmatpush1.bf16.msra.mxu0 %v2291
    %2430 = vmatprep.subr.bf16.mxu0 %v2294
    %2431 = vmatpush1.bf16.msra.mxu0 %v2293
    %2432 = vmatprep.subr.bf16.mxu0 %v2296
    %2433 = vmatpush1.bf16.msra.mxu0 %v2295
    %2434 = vmatprep.subr.bf16.mxu0 %v2298
    %2435 = vmatpush1.bf16.msra.mxu0 %v2297
    %2436 = vmatprep.subr.bf16.mxu0 %v2300
    %2437 = vmatpush1.bf16.msra.mxu0 %v2299
    %2438 = vmatprep.subr.bf16.mxu0 %v2302
    %2439 = vmatpush1.bf16.msra.mxu0 %v2301
    %2440 = vmatprep.subr.bf16.mxu0 %v2304
    %2441 = vmatpush1.bf16.msra.mxu0 %v2303
    %2442 = vmatprep.subr.bf16.mxu0 %v2306
    %2443 = vmatpush1.bf16.msra.mxu0 %v2305
    %2444 = vmatprep.subr.bf16.mxu0 %v2308
    %2445 = vmatpush1.bf16.msra.mxu0 %v2307
    %2446 = vmatprep.subr.bf16.mxu0 %v2310
    %2447 = vmatpush1.bf16.msra.mxu0 %v2309
    %2448 = vmatprep.subr.bf16.mxu0 %v2312
    %2449 = vmatpush1.bf16.msra.mxu0 %v2311
    %2450 = vmatprep.mubr.bf16.mxu0 %v1980
    %2451 = vmatmul.mubr.bf16.gmra.mrb[0].mxu0 %v1979
    %v2452 = vpop.f32.mrb[0].mxu0
    %v2453 = vadd.f32 %v2412, %v2452
    %v2454 = vpop.f32.mrb[0].mxu0
    %v2455 = vadd.f32 %v2414, %v2454
    %v2456 = vpop.f32.mrb[0].mxu0
    %v2457 = vpop.f32.mrb[0].mxu0
    %2458 = vdwg.mxu0
    %v2459 = vmax.f32 %v2453, 0.0
    %v2460 = vmax.f32 %v2455, 0.0
    %v2461 = vpack.c.bf16 %v2459, %v2459
    %v2462 = vpack.c.bf16 %v2460, %v2460
    %v2463 = vld [vmem:[%s5] sm:$0xf]
    %v2464 = vld [vmem:[%s5 + $0x4] sm:$0xf]
    %v2465 = vld [vmem:[%s5 + $0x8] sm:$0xf]
    %v2466 = vld [vmem:[%s5 + $0xc] sm:$0xf]
    %v2467 = vld [vmem:[%s5 + $0x10] sm:$0xf]
    %v2468 = vld [vmem:[%s5 + $0x14] sm:$0xf]
    %v2469 = vld [vmem:[%s5 + $0x18] sm:$0xf]
    %v2470 = vld [vmem:[%s5 + $0x1c] sm:$0xf]
    %v2471 = vld [vmem:[%s5 + $0x20] sm:$0xf]
    %v2472 = vld [vmem:[%s5 + $0x24] sm:$0xf]
    %v2473 = vld [vmem:[%s5 + $0x28] sm:$0xf]
    %v2474 = vld [vmem:[%s5 + $0x2c] sm:$0xf]
    %v2475 = vld [vmem:[%s5 + $0x30] sm:$0xf]
    %v2476 = vld [vmem:[%s5 + $0x34] sm:$0xf]
    %v2477 = vld [vmem:[%s5 + $0x38] sm:$0xf]
    %v2478 = vld [vmem:[%s5 + $0x3c] sm:$0xf]
    %v2479 = vld [vmem:[%s5 + $0x40] sm:$0xf]
    %v2480 = vld [vmem:[%s5 + $0x44] sm:$0xf]
    %v2481 = vld [vmem:[%s5 + $0x48] sm:$0xf]
    %v2482 = vld [vmem:[%s5 + $0x4c] sm:$0xf]
    %v2483 = vld [vmem:[%s5 + $0x50] sm:$0xf]
    %v2484 = vld [vmem:[%s5 + $0x54] sm:$0xf]
    %v2485 = vld [vmem:[%s5 + $0x58] sm:$0xf]
    %v2486 = vld [vmem:[%s5 + $0x5c] sm:$0xf]
    %v2487 = vld [vmem:[%s5 + $0x60] sm:$0xf]
    %v2488 = vld [vmem:[%s5 + $0x64] sm:$0xf]
    %v2489 = vld [vmem:[%s5 + $0x68] sm:$0xf]
    %v2490 = vld [vmem:[%s5 + $0x6c] sm:$0xf]
    %v2491 = vld [vmem:[%s5 + $0x70] sm:$0xf]
    %v2492 = vld [vmem:[%s5 + $0x74] sm:$0xf]
    %v2493 = vld [vmem:[%s5 + $0x78] sm:$0xf]
    %v2494 = vld [vmem:[%s5 + $0x7c] sm:$0xf]
    %v2495 = vld [vmem:[%s6] sm:$0x1]
    %v2497 = vlaneseq
    %v2498 = vshrl.u32 %v2497, 7
    %v2499 = vsub.s32 0, %v2498
    %v2500 = vrot.slane %v2495, %v2499
    %v2534 = vunpack.c.l.b16 %v2463
    %v2535 = vunpack.c.l.b16 %v2464
    %v2536 = vunpack.c.l.b16 %v2465
    %v2537 = vunpack.c.l.b16 %v2466
    %v2538 = vunpack.c.l.b16 %v2467
    %v2539 = vunpack.c.l.b16 %v2468
    %v2540 = vunpack.c.l.b16 %v2469
    %v2541 = vunpack.c.l.b16 %v2470
    %v2542 = vunpack.c.l.b16 %v2471
    %v2543 = vunpack.c.l.b16 %v2472
    %v2544 = vunpack.c.l.b16 %v2473
    %v2545 = vunpack.c.l.b16 %v2474
    %v2546 = vunpack.c.l.b16 %v2475
    %v2547 = vunpack.c.l.b16 %v2476
    %v2548 = vunpack.c.l.b16 %v2477
    %v2549 = vunpack.c.l.b16 %v2478
    %v2550 = vunpack.c.l.b16 %v2479
    %v2551 = vunpack.c.l.b16 %v2480
    %v2552 = vunpack.c.l.b16 %v2481
    %v2553 = vunpack.c.l.b16 %v2482
    %v2554 = vunpack.c.l.b16 %v2483
    %v2555 = vunpack.c.l.b16 %v2484
    %v2556 = vunpack.c.l.b16 %v2485
    %v2557 = vunpack.c.l.b16 %v2486
    %v2558 = vunpack.c.l.b16 %v2487
    %v2559 = vunpack.c.l.b16 %v2488
    %v2560 = vunpack.c.l.b16 %v2489
    %v2561 = vunpack.c.l.b16 %v2490
    %v2562 = vunpack.c.l.b16 %v2491
    %v2563 = vunpack.c.l.b16 %v2492
    %v2564 = vunpack.c.l.b16 %v2493
    %v2565 = vunpack.c.l.b16 %v2494
    %v2566 = vpack.c.b16 %v2535, %v2534
    %v2567 = vpack.c.b16 %v2537, %v2536
    %v2568 = vpack.c.b16 %v2539, %v2538
    %v2569 = vpack.c.b16 %v2541, %v2540
    %v2570 = vpack.c.b16 %v2543, %v2542
    %v2571 = vpack.c.b16 %v2545, %v2544
    %v2572 = vpack.c.b16 %v2547, %v2546
    %v2573 = vpack.c.b16 %v2549, %v2548
    %v2574 = vpack.c.b16 %v2551, %v2550
    %v2575 = vpack.c.b16 %v2553, %v2552
    %v2576 = vpack.c.b16 %v2555, %v2554
    %v2577 = vpack.c.b16 %v2557, %v2556
    %v2578 = vpack.c.b16 %v2559, %v2558
    %v2579 = vpack.c.b16 %v2561, %v2560
    %v2580 = vpack.c.b16 %v2563, %v2562
    %v2581 = vpack.c.b16 %v2565, %v2564
    %2598 = vmatprep.subr.bf16.mxu0 0
    %2599 = vmatpush1.bf16.msra.mxu0 %v2566
    %2600 = vmatprep.subr.bf16.mxu0 0
    %2601 = vmatpush1.bf16.msra.mxu0 %v2567
    %2602 = vmatprep.subr.bf16.mxu0 0
    %2603 = vmatpush1.bf16.msra.mxu0 %v2568
    %2604 = vmatprep.subr.bf16.mxu0 0
    %2605 = vmatpush1.bf16.msra.mxu0 %v2569
    %2606 = vmatprep.subr.bf16.mxu0 0
    %2607 = vmatpush1.bf16.msra.mxu0 %v2570
    %2608 = vmatprep.subr.bf16.mxu0 0
    %2609 = vmatpush1.bf16.msra.mxu0 %v2571
    %2610 = vmatprep.subr.bf16.mxu0 0
    %2611 = vmatpush1.bf16.msra.mxu0 %v2572
    %2612 = vmatprep.subr.bf16.mxu0 0
    %2613 = vmatpush1.bf16.msra.mxu0 %v2573
    %2614 = vmatprep.subr.bf16.mxu0 0
    %2615 = vmatpush1.bf16.msra.mxu0 %v2574
    %2616 = vmatprep.subr.bf16.mxu0 0
    %2617 = vmatpush1.bf16.msra.mxu0 %v2575
    %2618 = vmatprep.subr.bf16.mxu0 0
    %2619 = vmatpush1.bf16.msra.mxu0 %v2576
    %2620 = vmatprep.subr.bf16.mxu0 0
    %2621 = vmatpush1.bf16.msra.mxu0 %v2577
    %2622 = vmatprep.subr.bf16.mxu0 0
    %2623 = vmatpush1.bf16.msra.mxu0 %v2578
    %2624 = vmatprep.subr.bf16.mxu0 0
    %2625 = vmatpush1.bf16.msra.mxu0 %v2579
    %2626 = vmatprep.subr.bf16.mxu0 0
    %2627 = vmatpush1.bf16.msra.mxu0 %v2580
    %2628 = vmatprep.subr.bf16.mxu0 0
    %2629 = vmatpush1.bf16.msra.mxu0 %v2581
    %2630 = vmatprep.mubr.bf16.mxu0 %v2462
    %2631 = vmatmul.mubr.bf16.gmra.mrb[0].mxu0 %v2461
    %v2632 = vpop.f32.mrb[0].mxu0
    %v2633 = vadd.f32 %v2500, %v2632
    %v2634 = vpop.f32.mrb[0].mxu0
    %v2635 = vpop.f32.mrb[0].mxu0
    %v2636 = vpop.f32.mrb[0].mxu0
    %2637 = vdwg.mxu0
    %2638 = vst [vmem:[#allocation2] sm:$0x3] %v2633
    // Predicated region
    $region30: #{pointnetpp_forward.7} parent=1 // pred_check
      _
    $region31: #{pointnetpp_forward.7} parent=1 // pred_check_branch
      %2640 = sbr.rel (0) target = $region33
    $region32: #{pointnetpp_forward.7} parent=1 // pred_region
      %s2642 = ssub.s32 32, 32
      %2643 = vsyncadd [#allocation3], %s2642
      %s2645 = sshll.u32 [#allocation2], 4
      %s2646 = int_to_ptr.vmem [resolvable:$true] %s2645
      %2648 = dma.vmem_to_hbm [thread:$0]  %s2646, 32, %s7, [#allocation3]
    $region33: #{pointnetpp_forward.7} parent=1 // pred_fallthru
      _
    // Predicated region
    $region34: #{pointnetpp_forward.7} parent=1 // pred_check
      _
    $region35: #{pointnetpp_forward.7} parent=1 // pred_check_branch
      %2650 = sbr.rel (0) target = $region37
    $region36: #{pointnetpp_forward.7} parent=1 // pred_region
      %2651 = dma.done [#allocation3], 32
    $region37: #{pointnetpp_forward.7} parent=1 // pred_fallthru
      _
    %2652 = vsyncpa [#allocation3], 1

</llo_original>
